<compile_context>
chip_gen: v6e
topology: v6e:2x2x1
jax: 0.10.0
libtpu: 0.0.40
codegen_flags: <defaults>
</compile_context>

<pallas_src>
import math
import numpy as np
import jax
import jax.numpy as jnp
from jax.experimental import pallas as pl

# ----------------------------- model config (small) -------------------------
B = 2              # batch
NUM_CHANNEL = 4    # EEG electrodes ("H" of the NCHW conv input)
T = 128            # time samples   ("W" of the NCHW conv input)
F1 = 8             # eeg1_f1
D = 2              # eeg1_D
F2 = D * F1        # 16
EMB = F2           # emb_size (== f2, as the module's rearrange implies)
K1 = 16            # eeg1_kernel_size (first temporal conv, padding='same')
K3 = 16            # second temporal conv kernel (hard-coded 16 in the module)
P1 = 4             # pooling_size1
P2 = 4             # pooling_size2
T1 = T // P1       # 32
NSEQ = T1 // P2    # 8   -> transformer sequence length
HEADS = 4
DH = EMB // HEADS  # 4
DEPTH = 2
HID = 4 * EMB      # FeedForward expansion = 4
NCLASS = 4
FLAT = NSEQ * EMB  # flatten_eeg1 = 128
BN_EPS = 1e-5
LN_EPS = 1e-5
SQRT_E = math.sqrt(float(EMB))
INV_SQRT_E = 1.0 / SQRT_E
PAD_L1, PAD_R1 = (K1 - 1) // 2, K1 // 2   # PyTorch 'same' padding for even kernel
PAD_L3 = (K3 - 1) // 2
NEG_INF = -1e30


# ------------------------------- elementwise math ----------------------------
def _elu(x):
    return jnp.where(x > 0, x, jnp.exp(jnp.minimum(x, 0.0)) - 1.0)


def _gelu(x):
    # TODO(synk): PyTorch nn.GELU() uses the exact erf form; tanh approximation is
    # used since lax.erf is not guaranteed to lower in Mosaic.
    c = math.sqrt(2.0 / math.pi)
    return 0.5 * x * (1.0 + jnp.tanh(c * (x + 0.044715 * x * x * x)))


def _layernorm(x, gamma, beta):
    mu = jnp.mean(x, axis=-1, keepdims=True)
    xc = x - mu
    var = jnp.mean(xc * xc, axis=-1, keepdims=True)
    return xc * jax.lax.rsqrt(var + LN_EPS) * gamma + beta


def _softmax_rows(e, recip):
    e = e - jnp.max(e, axis=-1, keepdims=True)
    p = jnp.exp(e)
    return p * recip(jnp.sum(p, axis=-1, keepdims=True))


# ----------------------- shared forward math (refs OR arrays) ----------------
# Every operand is accessed only with patterns that are valid both on Pallas Refs
# (slice loads) and on plain jnp arrays, so the exact same trace is used by the
# kernel body and the pure-JAX reference check.
def _forward_math(xcol, wf, bf, m, w3, b3, p2t, pos, bias,
                  wq, bq, wk, bk, wv, bv, wo, bo,
                  g1, be1, w1, b1, w2, b2, g2, be2,
                  wcb, rmask, csum, sel, bc, *, recip):
    # ---- CNN stage: conv1 + BN1 + depthwise conv + BN2 folded to one im2col matmul
    y_all = jnp.dot(wf[...], xcol[...],
                    preferred_element_type=jnp.float32) + bf[...]          # (F2, B*T)
    y_all = _elu(y_all)

    xs = []
    for b in range(B):
        y_b = y_all[:, b * T:(b + 1) * T]                 # lane-tile aligned slice (T=128)
        # AvgPool(1,P1) + 'same' zero-pad + im2col for conv3: one constant (T, T1)
        # matrix per tap; taps stacked on sublanes (aligned concat) so conv3
        # (+ folded BN3) becomes a single K = K3*F2 = 256 matmul.
        u_taps = [jnp.dot(y_b, m[k], preferred_element_type=jnp.float32)
                  for k in range(K3)]                      # each (F2, T1)
        ucol = jnp.concatenate(u_taps, axis=0)             # (K3*F2, T1) = (256, 32)
        z = _elu(jnp.dot(w3[...], ucol,
                         preferred_element_type=jnp.float32) + b3[...])    # (F2, T1)
        # AvgPool(1,P2) fused with the (F2, NSEQ) -> (NSEQ, EMB) transpose.
        xb = jax.lax.dot_general(p2t[...], z, (((1,), (1,)), ((), ())),
                                 preferred_element_type=jnp.float32)       # (NSEQ, F2)
        xs.append(xb * SQRT_E + pos[...])                  # cnn*sqrt(E) + pos (dropout=id)
    x0 = jnp.concatenate(xs, axis=0)                       # (B*NSEQ, EMB), batch on sublanes

    # ---- Transformer encoder: batch stacked on sublanes, block-diag attention mask
    attn_bias = bias[...]                                  # (B*NSEQ, B*NSEQ)
    h = x0
    for l in range(DEPTH):
        q = jnp.dot(h, wq[l], preferred_element_type=jnp.float32) + bq[l]
        k = jnp.dot(h, wk[l], preferred_element_type=jnp.float32) + bk[l]
        v = jnp.dot(h, wv[l], preferred_element_type=jnp.float32) + bv[l]
        head_acc = jnp.zeros((B * NSEQ, EMB), jnp.float32)
        for hh in range(HEADS):
            sl = slice(hh * DH, (hh + 1) * DH)
            qh, kh, vh = q[:, sl], k[:, sl], v[:, sl]
            e = jax.lax.dot_general(qh, kh, (((1,), (1,)), ((), ())),
                                    preferred_element_type=jnp.float32)    # (B*NSEQ, B*NSEQ)
            # module scales by sqrt(emb_size); block-diag bias keeps batches separate.
            att = _softmax_rows(e * INV_SQRT_E + attn_bias, recip)
            oh = jnp.dot(att, vh, preferred_element_type=jnp.float32)      # (B*NSEQ, DH)
            # per-head slice of the output projection (heads fused by summation).
            head_acc = head_acc + jnp.dot(oh, wo[l, hh],
                                          preferred_element_type=jnp.float32)
        mha = head_acc + bo[l]
        # ResidualAdd #1 (dropout = identity): LayerNorm(MHA(x) + x)
        y1 = _layernorm(mha + h, g1[l], be1[l])
        # FeedForward + ResidualAdd #2
        f1 = _gelu(jnp.dot(y1, w1[l], preferred_element_type=jnp.float32) + b1[l])
        f2 = jnp.dot(f1, w2[l], preferred_element_type=jnp.float32) + b2[l]
        h = _layernorm(f2 + y1, g2[l], be2[l])

    feats = x0 + h                                          # features = cnn + trans

    # ---- Classification head (flatten expressed via constant mask/selector matmuls)
    p_all = jnp.dot(feats, wcb[...], preferred_element_type=jnp.float32)   # (B*NSEQ, NSEQ*NCLASS)
    m_cls = jnp.dot(p_all * rmask[...], csum[...],
                    preferred_element_type=jnp.float32)                    # (B*NSEQ, NCLASS)
    logits = jnp.dot(sel[...], m_cls,
                     preferred_element_type=jnp.float32) + bc[...]         # (B, NCLASS)
    return feats, logits


# --------------------------- single fused forward kernel ---------------------
def fused_forward_kernel(*refs):
    in_refs = refs[:-2]
    feat_ref, logit_ref = refs[-2], refs[-1]
    feats, logits = _forward_math(
        *in_refs, recip=lambda s: pl.reciprocal(s, approx=True))
    for b in range(B):
        feat_ref[b] = feats[b * NSEQ:(b + 1) * NSEQ, :]     # aligned sublane slices
    logit_ref[...] = logits


# ------------------------------- parameters ----------------------------------
def init_params(key):
    keys = iter(jax.random.split(key, 64))

    def nrm(shape, scale=0.1):
        return scale * jax.random.normal(next(keys), shape, dtype=jnp.float32)

    def bn(n):
        gamma = 1.0 + nrm((n,), 0.05)
        beta = nrm((n,))
        mean = nrm((n,))
        var = 1.0 + 0.05 * jnp.abs(jax.random.normal(next(keys), (n,), jnp.float32))
        scale = gamma * jax.lax.rsqrt(var + BN_EPS)
        return scale, beta - mean * scale

    # --- PatchEmbeddingCNN (PyTorch shapes, folded host-side; conv bias=False) ---
    w1 = nrm((F1, K1))                    # Conv2d(1, F1, (1,K1)) weight squeezed
    a1, c1 = bn(F1)                       # BatchNorm2d(F1) -> scale/offset
    wdw = nrm((F2, NUM_CHANNEL))          # Conv2d(F1, F2, (C,1), groups=F1) squeezed
    a2, c2 = bn(F2)                       # BatchNorm2d(F2)
    w3 = nrm((F2, F2, K3))                # Conv2d(F2, F2, (1,K3)) squeezed
    a3, c3 = bn(F2)                       # BatchNorm2d(F2)
    pos = jax.random.normal(next(keys), (NSEQ, EMB), jnp.float32)  # PositionalEncoding[:NSEQ]

    grp = jnp.repeat(jnp.arange(F1), D)   # output channel j uses conv1 channel j // D
    a1r, c1r, w1r = a1[grp], c1[grp], w1[grp]
    # conv1 + BN1 + depthwise + BN2 folded into one (F2, K1*C) matrix + per-channel bias.
    wf = ((a2 * a1r)[:, None, None] * w1r[:, :, None] * wdw[:, None, :]).reshape(
        F2, K1 * NUM_CHANNEL)
    bf = (a2 * c1r * jnp.sum(wdw, axis=1) + c2).reshape(F2, 1)

    # AvgPool(1,P1) + 'same' zero padding + conv3 im2col, one (T, T1) matrix per tap k.
    m_stack = np.zeros((K3, T, T1), np.float32)
    for k in range(K3):
        for t1 in range(T1):
            u = t1 + k - PAD_L3
            if 0 <= u < T1:
                m_stack[k, u * P1:(u + 1) * P1, t1] = 1.0 / P1

    # conv3 + BN3 folded into one (F2, K3*F2) matrix + bias (column order k*F2 + c_in).
    w3f = a3[:, None] * jnp.transpose(w3, (0, 2, 1)).reshape(F2, K3 * F2)
    b3f = c3.reshape(F2, 1)

    # AvgPool(1,P2) fused with the (F2,NSEQ)->(NSEQ,F2) transpose (rhs-transposed dot).
    pool2t = np.zeros((NSEQ, T1), np.float32)
    for n in range(NSEQ):
        pool2t[n, n * P2:(n + 1) * P2] = 1.0 / P2

    # Block-diagonal additive mask so sublane-stacked batch rows never attend cross-batch.
    attn_bias = np.full((B * NSEQ, B * NSEQ), NEG_INF, np.float32)
    for b in range(B):
        attn_bias[b * NSEQ:(b + 1) * NSEQ, b * NSEQ:(b + 1) * NSEQ] = 0.0

    # --- Transformer encoder blocks (weights stored as (in, out), stacked over depth) ---
    def layer():
        wq, bq = nrm((EMB, EMB)), nrm((1, EMB))
        wk, bk = nrm((EMB, EMB)), nrm((1, EMB))
        wv, bv = nrm((EMB, EMB)), nrm((1, EMB))
        wo = nrm((EMB, EMB)).reshape(HEADS, DH, EMB)   # output projection split per head
        bo = nrm((1, EMB))
        g1, be1 = jnp.ones((1, EMB), jnp.float32), jnp.zeros((1, EMB), jnp.float32)
        w1l, b1l = nrm((EMB, HID)), nrm((1, HID))
        w2l, b2l = nrm((HID, EMB)), nrm((1, EMB))
        g2, be2 = jnp.ones((1, EMB), jnp.float32), jnp.zeros((1, EMB), jnp.float32)
        return (wq, bq, wk, bk, wv, bv, wo, bo, g1, be1, w1l, b1l, w2l, b2l, g2, be2)

    layers = [layer() for _ in range(DEPTH)]
    stacked = tuple(jnp.stack([layers[l][i] for l in range(DEPTH)], axis=0)
                    for i in range(16))

    # --- Classification head: Linear(FLAT, NCLASS), flatten-free formulation ---
    wc, bc = nrm((FLAT, NCLASS)), nrm((1, NCLASS))
    # logits = sel @ (((feat @ wcb) * rmask) @ csum) + bc  ==  flatten(feat) @ wc + bc
    wcb = jnp.transpose(wc.reshape(NSEQ, EMB, NCLASS), (1, 0, 2)).reshape(
        EMB, NSEQ * NCLASS)
    rmask = np.zeros((B * NSEQ, NSEQ * NCLASS), np.float32)
    for r in range(B * NSEQ):
        n = r % NSEQ
        rmask[r, n * NCLASS:(n + 1) * NCLASS] = 1.0
    csum = np.zeros((NSEQ * NCLASS, NCLASS), np.float32)
    for n in range(NSEQ):
        for c in range(NCLASS):
            csum[n * NCLASS + c, c] = 1.0
    sel = np.zeros((B, B * NSEQ), np.float32)
    for b in range(B):
        sel[b, b * NSEQ:(b + 1) * NSEQ] = 1.0

    return (wf, bf, jnp.asarray(m_stack), w3f, b3f, jnp.asarray(pool2t), pos,
            jnp.asarray(attn_bias)) + stacked + (
        wcb, jnp.asarray(rmask), jnp.asarray(csum), jnp.asarray(sel), bc)


# ------------------------------- forward pass ---------------------------------
def _build_im2col(x):
    # x: (B, 1, NUM_CHANNEL, T) float32 (PyTorch NCHW)
    xs = x[:, 0]                                                # (B, C, T)
    x_pad = jnp.pad(xs, ((0, 0), (0, 0), (PAD_L1, PAD_R1)))     # 'same' padding
    # im2col for the folded conv1+depthwise: x_col[k*C+ch, b*T+t] = x_pad[b, ch, t+k]
    cols = jnp.stack([x_pad[:, :, k:k + T] for k in range(K1)], axis=1)   # (B, K1, C, T)
    return jnp.transpose(cols, (1, 2, 0, 3)).reshape(K1 * NUM_CHANNEL, B * T)


@jax.jit
def eeg_transformer_forward(x, params):
    x_col = _build_im2col(x)
    feats, logits = pl.pallas_call(
        fused_forward_kernel,
        out_shape=(jax.ShapeDtypeStruct((B, NSEQ, EMB), jnp.float32),
                   jax.ShapeDtypeStruct((B, NCLASS), jnp.float32)),
    )(x_col, *params)
    return feats, logits


@jax.jit
def eeg_transformer_reference(x, params):
    # Pure-JAX reference reusing the identical math (exact reciprocal instead of
    # the EUP approximate reciprocal) — verifies the Pallas lowering at runtime.
    x_col = _build_im2col(x)
    feats, logits = _forward_math(x_col, *params, recip=lambda s: 1.0 / s)
    return feats.reshape(B, NSEQ, EMB), logits


if __name__ == "__main__":
    key = jax.random.PRNGKey(0)
    kx, kp = jax.random.split(key)
    x = jax.random.normal(kx, (B, 1, NUM_CHANNEL, T), dtype=jnp.float32)
    params = init_params(kp)

    feats, logits = eeg_transformer_forward(x, params)
    jax.block_until_ready((feats, logits))
    assert feats.shape == (B, NSEQ, EMB) and logits.shape == (B, NCLASS)
    assert bool(jnp.all(jnp.isfinite(feats))) and bool(jnp.all(jnp.isfinite(logits)))

    ref_feats, ref_logits = eeg_transformer_reference(x, params)
    jax.block_until_ready((ref_feats, ref_logits))
    # Loose tolerance: the only intended numerical difference is the EUP
    # approximate reciprocal in softmax (~2^-12 relative).
    assert float(jnp.max(jnp.abs(feats - ref_feats))) < 5e-2
    assert float(jnp.max(jnp.abs(logits - ref_logits))) < 5e-2

    print("KERNEL_OK")
</pallas_src>

<mosaic_0001>
module attributes {stable_mosaic.version = 11 : i64} {
  func.func @fused_forward_kernel(%arg0: memref<64x256xf32, #tpu.memory_space<vmem>>, %arg1: memref<16x64xf32, #tpu.memory_space<vmem>>, %arg2: memref<16x1xf32, #tpu.memory_space<vmem>>, %arg3: memref<16x128x32xf32, #tpu.memory_space<vmem>>, %arg4: memref<16x256xf32, #tpu.memory_space<vmem>>, %arg5: memref<16x1xf32, #tpu.memory_space<vmem>>, %arg6: memref<8x32xf32, #tpu.memory_space<vmem>>, %arg7: memref<8x16xf32, #tpu.memory_space<vmem>>, %arg8: memref<16x16xf32, #tpu.memory_space<vmem>>, %arg9: memref<2x16x16xf32, #tpu.memory_space<vmem>>, %arg10: memref<2x1x16xf32, #tpu.memory_space<vmem>>, %arg11: memref<2x16x16xf32, #tpu.memory_space<vmem>>, %arg12: memref<2x1x16xf32, #tpu.memory_space<vmem>>, %arg13: memref<2x16x16xf32, #tpu.memory_space<vmem>>, %arg14: memref<2x1x16xf32, #tpu.memory_space<vmem>>, %arg15: memref<2x4x4x16xf32, #tpu.memory_space<vmem>>, %arg16: memref<2x1x16xf32, #tpu.memory_space<vmem>>, %arg17: memref<2x1x16xf32, #tpu.memory_space<vmem>>, %arg18: memref<2x1x16xf32, #tpu.memory_space<vmem>>, %arg19: memref<2x16x64xf32, #tpu.memory_space<vmem>>, %arg20: memref<2x1x64xf32, #tpu.memory_space<vmem>>, %arg21: memref<2x64x16xf32, #tpu.memory_space<vmem>>, %arg22: memref<2x1x16xf32, #tpu.memory_space<vmem>>, %arg23: memref<2x1x16xf32, #tpu.memory_space<vmem>>, %arg24: memref<2x1x16xf32, #tpu.memory_space<vmem>>, %arg25: memref<16x32xf32, #tpu.memory_space<vmem>>, %arg26: memref<16x32xf32, #tpu.memory_space<vmem>>, %arg27: memref<32x4xf32, #tpu.memory_space<vmem>>, %arg28: memref<2x16xf32, #tpu.memory_space<vmem>>, %arg29: memref<1x4xf32, #tpu.memory_space<vmem>>, %arg30: memref<2x8x16xf32, #tpu.memory_space<vmem>>, %arg31: memref<2x4xf32, #tpu.memory_space<vmem>>) attributes {dimension_semantics = [], scalar_prefetch = 0 : i64, scratch_operands = 0 : i64, tpu.core_type = #tpu.core_type<tc>} {
    %c0 = arith.constant 0 : index
    %c0_0 = arith.constant 0 : index
    %0 = vector.load %arg1[%c0, %c0_0] : memref<16x64xf32, #tpu.memory_space<vmem>>, vector<16x64xf32>
    %c0_1 = arith.constant 0 : index
    %c0_2 = arith.constant 0 : index
    %1 = vector.load %arg0[%c0_1, %c0_2] : memref<64x256xf32, #tpu.memory_space<vmem>>, vector<64x256xf32>
    %cst = arith.constant dense<0.000000e+00> : vector<16x256xf32>
    %2 = tpu.matmul %0, %1, %cst {dimension_numbers = #tpu.dot_dimension_numbers<[1], [0], [0], [1], [0, 0, 1, 1], [], []>} : vector<16x64xf32>, vector<64x256xf32>, vector<16x256xf32> -> vector<16x256xf32>
    %c0_3 = arith.constant 0 : index
    %c0_4 = arith.constant 0 : index
    %3 = vector.load %arg2[%c0_3, %c0_4] : memref<16x1xf32, #tpu.memory_space<vmem>>, vector<16x1xf32>
    %4 = vector.broadcast %3 : vector<16x1xf32> to vector<16x256xf32>
    %5 = arith.addf %2, %4 : vector<16x256xf32>
    %cst_5 = arith.constant 0.000000e+00 : f32
    %6 = vector.broadcast %cst_5 : f32 to vector<16x256xf32>
    %7 = arith.cmpf ogt, %5, %6 : vector<16x256xf32>
    %cst_6 = arith.constant 0.000000e+00 : f32
    %8 = vector.broadcast %cst_6 : f32 to vector<16x256xf32>
    %9 = arith.minimumf %5, %8 : vector<16x256xf32>
    %10 = math.exp %9 : vector<16x256xf32>
    %cst_7 = arith.constant 1.000000e+00 : f32
    %11 = vector.broadcast %cst_7 : f32 to vector<16x256xf32>
    %12 = arith.subf %10, %11 : vector<16x256xf32>
    %13 = arith.select %7, %5, %12 : vector<16x256xi1>, vector<16x256xf32>
    %14 = vector.extract_strided_slice %13 {offsets = [0, 0], sizes = [16, 128], strides = [1, 1]} : vector<16x256xf32> to vector<16x128xf32>
    %c0_8 = arith.constant 0 : index
    %c0_9 = arith.constant 0 : index
    %c0_10 = arith.constant 0 : index
    %15 = vector.load %arg3[%c0_8, %c0_9, %c0_10] : memref<16x128x32xf32, #tpu.memory_space<vmem>>, vector<1x128x32xf32>
    %16 = vector.shape_cast %15 : vector<1x128x32xf32> to vector<128x32xf32>
    %cst_11 = arith.constant dense<0.000000e+00> : vector<16x32xf32>
    %17 = tpu.matmul %14, %16, %cst_11 {dimension_numbers = #tpu.dot_dimension_numbers<[1], [0], [0], [1], [0, 0, 1, 1], [], []>} : vector<16x128xf32>, vector<128x32xf32>, vector<16x32xf32> -> vector<16x32xf32>
    %c1 = arith.constant 1 : index
    %c0_12 = arith.constant 0 : index
    %c0_13 = arith.constant 0 : index
    %18 = vector.load %arg3[%c1, %c0_12, %c0_13] : memref<16x128x32xf32, #tpu.memory_space<vmem>>, vector<1x128x32xf32>
    %19 = vector.shape_cast %18 : vector<1x128x32xf32> to vector<128x32xf32>
    %cst_14 = arith.constant dense<0.000000e+00> : vector<16x32xf32>
    %20 = tpu.matmul %14, %19, %cst_14 {dimension_numbers = #tpu.dot_dimension_numbers<[1], [0], [0], [1], [0, 0, 1, 1], [], []>} : vector<16x128xf32>, vector<128x32xf32>, vector<16x32xf32> -> vector<16x32xf32>
    %c2 = arith.constant 2 : index
    %c0_15 = arith.constant 0 : index
    %c0_16 = arith.constant 0 : index
    %21 = vector.load %arg3[%c2, %c0_15, %c0_16] : memref<16x128x32xf32, #tpu.memory_space<vmem>>, vector<1x128x32xf32>
    %22 = vector.shape_cast %21 : vector<1x128x32xf32> to vector<128x32xf32>
    %cst_17 = arith.constant dense<0.000000e+00> : vector<16x32xf32>
    %23 = tpu.matmul %14, %22, %cst_17 {dimension_numbers = #tpu.dot_dimension_numbers<[1], [0], [0], [1], [0, 0, 1, 1], [], []>} : vector<16x128xf32>, vector<128x32xf32>, vector<16x32xf32> -> vector<16x32xf32>
    %c3 = arith.constant 3 : index
    %c0_18 = arith.constant 0 : index
    %c0_19 = arith.constant 0 : index
    %24 = vector.load %arg3[%c3, %c0_18, %c0_19] : memref<16x128x32xf32, #tpu.memory_space<vmem>>, vector<1x128x32xf32>
    %25 = vector.shape_cast %24 : vector<1x128x32xf32> to vector<128x32xf32>
    %cst_20 = arith.constant dense<0.000000e+00> : vector<16x32xf32>
    %26 = tpu.matmul %14, %25, %cst_20 {dimension_numbers = #tpu.dot_dimension_numbers<[1], [0], [0], [1], [0, 0, 1, 1], [], []>} : vector<16x128xf32>, vector<128x32xf32>, vector<16x32xf32> -> vector<16x32xf32>
    %c4 = arith.constant 4 : index
    %c0_21 = arith.constant 0 : index
    %c0_22 = arith.constant 0 : index
    %27 = vector.load %arg3[%c4, %c0_21, %c0_22] : memref<16x128x32xf32, #tpu.memory_space<vmem>>, vector<1x128x32xf32>
    %28 = vector.shape_cast %27 : vector<1x128x32xf32> to vector<128x32xf32>
    %cst_23 = arith.constant dense<0.000000e+00> : vector<16x32xf32>
    %29 = tpu.matmul %14, %28, %cst_23 {dimension_numbers = #tpu.dot_dimension_numbers<[1], [0], [0], [1], [0, 0, 1, 1], [], []>} : vector<16x128xf32>, vector<128x32xf32>, vector<16x32xf32> -> vector<16x32xf32>
    %c5 = arith.constant 5 : index
    %c0_24 = arith.constant 0 : index
    %c0_25 = arith.constant 0 : index
    %30 = vector.load %arg3[%c5, %c0_24, %c0_25] : memref<16x128x32xf32, #tpu.memory_space<vmem>>, vector<1x128x32xf32>
    %31 = vector.shape_cast %30 : vector<1x128x32xf32> to vector<128x32xf32>
    %cst_26 = arith.constant dense<0.000000e+00> : vector<16x32xf32>
    %32 = tpu.matmul %14, %31, %cst_26 {dimension_numbers = #tpu.dot_dimension_numbers<[1], [0], [0], [1], [0, 0, 1, 1], [], []>} : vector<16x128xf32>, vector<128x32xf32>, vector<16x32xf32> -> vector<16x32xf32>
    %c6 = arith.constant 6 : index
    %c0_27 = arith.constant 0 : index
    %c0_28 = arith.constant 0 : index
    %33 = vector.load %arg3[%c6, %c0_27, %c0_28] : memref<16x128x32xf32, #tpu.memory_space<vmem>>, vector<1x128x32xf32>
    %34 = vector.shape_cast %33 : vector<1x128x32xf32> to vector<128x32xf32>
    %cst_29 = arith.constant dense<0.000000e+00> : vector<16x32xf32>
    %35 = tpu.matmul %14, %34, %cst_29 {dimension_numbers = #tpu.dot_dimension_numbers<[1], [0], [0], [1], [0, 0, 1, 1], [], []>} : vector<16x128xf32>, vector<128x32xf32>, vector<16x32xf32> -> vector<16x32xf32>
    %c7 = arith.constant 7 : index
    %c0_30 = arith.constant 0 : index
    %c0_31 = arith.constant 0 : index
    %36 = vector.load %arg3[%c7, %c0_30, %c0_31] : memref<16x128x32xf32, #tpu.memory_space<vmem>>, vector<1x128x32xf32>
    %37 = vector.shape_cast %36 : vector<1x128x32xf32> to vector<128x32xf32>
    %cst_32 = arith.constant dense<0.000000e+00> : vector<16x32xf32>
    %38 = tpu.matmul %14, %37, %cst_32 {dimension_numbers = #tpu.dot_dimension_numbers<[1], [0], [0], [1], [0, 0, 1, 1], [], []>} : vector<16x128xf32>, vector<128x32xf32>, vector<16x32xf32> -> vector<16x32xf32>
    %c8 = arith.constant 8 : index
    %c0_33 = arith.constant 0 : index
    %c0_34 = arith.constant 0 : index
    %39 = vector.load %arg3[%c8, %c0_33, %c0_34] : memref<16x128x32xf32, #tpu.memory_space<vmem>>, vector<1x128x32xf32>
    %40 = vector.shape_cast %39 : vector<1x128x32xf32> to vector<128x32xf32>
    %cst_35 = arith.constant dense<0.000000e+00> : vector<16x32xf32>
    %41 = tpu.matmul %14, %40, %cst_35 {dimension_numbers = #tpu.dot_dimension_numbers<[1], [0], [0], [1], [0, 0, 1, 1], [], []>} : vector<16x128xf32>, vector<128x32xf32>, vector<16x32xf32> -> vector<16x32xf32>
    %c9 = arith.constant 9 : index
    %c0_36 = arith.constant 0 : index
    %c0_37 = arith.constant 0 : index
    %42 = vector.load %arg3[%c9, %c0_36, %c0_37] : memref<16x128x32xf32, #tpu.memory_space<vmem>>, vector<1x128x32xf32>
    %43 = vector.shape_cast %42 : vector<1x128x32xf32> to vector<128x32xf32>
    %cst_38 = arith.constant dense<0.000000e+00> : vector<16x32xf32>
    %44 = tpu.matmul %14, %43, %cst_38 {dimension_numbers = #tpu.dot_dimension_numbers<[1], [0], [0], [1], [0, 0, 1, 1], [], []>} : vector<16x128xf32>, vector<128x32xf32>, vector<16x32xf32> -> vector<16x32xf32>
    %c10 = arith.constant 10 : index
    %c0_39 = arith.constant 0 : index
    %c0_40 = arith.constant 0 : index
    %45 = vector.load %arg3[%c10, %c0_39, %c0_40] : memref<16x128x32xf32, #tpu.memory_space<vmem>>, vector<1x128x32xf32>
    %46 = vector.shape_cast %45 : vector<1x128x32xf32> to vector<128x32xf32>
    %cst_41 = arith.constant dense<0.000000e+00> : vector<16x32xf32>
    %47 = tpu.matmul %14, %46, %cst_41 {dimension_numbers = #tpu.dot_dimension_numbers<[1], [0], [0], [1], [0, 0, 1, 1], [], []>} : vector<16x128xf32>, vector<128x32xf32>, vector<16x32xf32> -> vector<16x32xf32>
    %c11 = arith.constant 11 : index
    %c0_42 = arith.constant 0 : index
    %c0_43 = arith.constant 0 : index
    %48 = vector.load %arg3[%c11, %c0_42, %c0_43] : memref<16x128x32xf32, #tpu.memory_space<vmem>>, vector<1x128x32xf32>
    %49 = vector.shape_cast %48 : vector<1x128x32xf32> to vector<128x32xf32>
    %cst_44 = arith.constant dense<0.000000e+00> : vector<16x32xf32>
    %50 = tpu.matmul %14, %49, %cst_44 {dimension_numbers = #tpu.dot_dimension_numbers<[1], [0], [0], [1], [0, 0, 1, 1], [], []>} : vector<16x128xf32>, vector<128x32xf32>, vector<16x32xf32> -> vector<16x32xf32>
    %c12 = arith.constant 12 : index
    %c0_45 = arith.constant 0 : index
    %c0_46 = arith.constant 0 : index
    %51 = vector.load %arg3[%c12, %c0_45, %c0_46] : memref<16x128x32xf32, #tpu.memory_space<vmem>>, vector<1x128x32xf32>
    %52 = vector.shape_cast %51 : vector<1x128x32xf32> to vector<128x32xf32>
    %cst_47 = arith.constant dense<0.000000e+00> : vector<16x32xf32>
    %53 = tpu.matmul %14, %52, %cst_47 {dimension_numbers = #tpu.dot_dimension_numbers<[1], [0], [0], [1], [0, 0, 1, 1], [], []>} : vector<16x128xf32>, vector<128x32xf32>, vector<16x32xf32> -> vector<16x32xf32>
    %c13 = arith.constant 13 : index
    %c0_48 = arith.constant 0 : index
    %c0_49 = arith.constant 0 : index
    %54 = vector.load %arg3[%c13, %c0_48, %c0_49] : memref<16x128x32xf32, #tpu.memory_space<vmem>>, vector<1x128x32xf32>
    %55 = vector.shape_cast %54 : vector<1x128x32xf32> to vector<128x32xf32>
    %cst_50 = arith.constant dense<0.000000e+00> : vector<16x32xf32>
    %56 = tpu.matmul %14, %55, %cst_50 {dimension_numbers = #tpu.dot_dimension_numbers<[1], [0], [0], [1], [0, 0, 1, 1], [], []>} : vector<16x128xf32>, vector<128x32xf32>, vector<16x32xf32> -> vector<16x32xf32>
    %c14 = arith.constant 14 : index
    %c0_51 = arith.constant 0 : index
    %c0_52 = arith.constant 0 : index
    %57 = vector.load %arg3[%c14, %c0_51, %c0_52] : memref<16x128x32xf32, #tpu.memory_space<vmem>>, vector<1x128x32xf32>
    %58 = vector.shape_cast %57 : vector<1x128x32xf32> to vector<128x32xf32>
    %cst_53 = arith.constant dense<0.000000e+00> : vector<16x32xf32>
    %59 = tpu.matmul %14, %58, %cst_53 {dimension_numbers = #tpu.dot_dimension_numbers<[1], [0], [0], [1], [0, 0, 1, 1], [], []>} : vector<16x128xf32>, vector<128x32xf32>, vector<16x32xf32> -> vector<16x32xf32>
    %c15 = arith.constant 15 : index
    %c0_54 = arith.constant 0 : index
    %c0_55 = arith.constant 0 : index
    %60 = vector.load %arg3[%c15, %c0_54, %c0_55] : memref<16x128x32xf32, #tpu.memory_space<vmem>>, vector<1x128x32xf32>
    %61 = vector.shape_cast %60 : vector<1x128x32xf32> to vector<128x32xf32>
    %cst_56 = arith.constant dense<0.000000e+00> : vector<16x32xf32>
    %62 = tpu.matmul %14, %61, %cst_56 {dimension_numbers = #tpu.dot_dimension_numbers<[1], [0], [0], [1], [0, 0, 1, 1], [], []>} : vector<16x128xf32>, vector<128x32xf32>, vector<16x32xf32> -> vector<16x32xf32>
    %63 = tpu.concatenate %17, %20, %23, %26, %29, %32, %35, %38, %41, %44, %47, %50, %53, %56, %59, %62 in 0 : vector<16x32xf32>, vector<16x32xf32>, vector<16x32xf32>, vector<16x32xf32>, vector<16x32xf32>, vector<16x32xf32>, vector<16x32xf32>, vector<16x32xf32>, vector<16x32xf32>, vector<16x32xf32>, vector<16x32xf32>, vector<16x32xf32>, vector<16x32xf32>, vector<16x32xf32>, vector<16x32xf32>, vector<16x32xf32> -> vector<256x32xf32>
    %c0_57 = arith.constant 0 : index
    %c0_58 = arith.constant 0 : index
    %64 = vector.load %arg4[%c0_57, %c0_58] : memref<16x256xf32, #tpu.memory_space<vmem>>, vector<16x256xf32>
    %cst_59 = arith.constant dense<0.000000e+00> : vector<16x32xf32>
    %65 = tpu.matmul %64, %63, %cst_59 {dimension_numbers = #tpu.dot_dimension_numbers<[1], [0], [0], [1], [0, 0, 1, 1], [], []>} : vector<16x256xf32>, vector<256x32xf32>, vector<16x32xf32> -> vector<16x32xf32>
    %c0_60 = arith.constant 0 : index
    %c0_61 = arith.constant 0 : index
    %66 = vector.load %arg5[%c0_60, %c0_61] : memref<16x1xf32, #tpu.memory_space<vmem>>, vector<16x1xf32>
    %67 = vector.broadcast %66 : vector<16x1xf32> to vector<16x32xf32>
    %68 = arith.addf %65, %67 : vector<16x32xf32>
    %cst_62 = arith.constant 0.000000e+00 : f32
    %69 = vector.broadcast %cst_62 : f32 to vector<16x32xf32>
    %70 = arith.cmpf ogt, %68, %69 : vector<16x32xf32>
    %cst_63 = arith.constant 0.000000e+00 : f32
    %71 = vector.broadcast %cst_63 : f32 to vector<16x32xf32>
    %72 = arith.minimumf %68, %71 : vector<16x32xf32>
    %73 = math.exp %72 : vector<16x32xf32>
    %cst_64 = arith.constant 1.000000e+00 : f32
    %74 = vector.broadcast %cst_64 : f32 to vector<16x32xf32>
    %75 = arith.subf %73, %74 : vector<16x32xf32>
    %76 = arith.select %70, %68, %75 : vector<16x32xi1>, vector<16x32xf32>
    %c0_65 = arith.constant 0 : index
    %c0_66 = arith.constant 0 : index
    %77 = vector.load %arg6[%c0_65, %c0_66] : memref<8x32xf32, #tpu.memory_space<vmem>>, vector<8x32xf32>
    %cst_67 = arith.constant dense<0.000000e+00> : vector<8x16xf32>
    %78 = tpu.matmul %77, %76, %cst_67 {dimension_numbers = #tpu.dot_dimension_numbers<[1], [1], [0], [0], [0, 0, 1, 0], [], []>} : vector<8x32xf32>, vector<16x32xf32>, vector<8x16xf32> -> vector<8x16xf32>
    %cst_68 = arith.constant 4.000000e+00 : f32
    %79 = vector.broadcast %cst_68 : f32 to vector<8x16xf32>
    %80 = arith.mulf %78, %79 : vector<8x16xf32>
    %c0_69 = arith.constant 0 : index
    %c0_70 = arith.constant 0 : index
    %81 = vector.load %arg7[%c0_69, %c0_70] : memref<8x16xf32, #tpu.memory_space<vmem>>, vector<8x16xf32>
    %82 = arith.addf %80, %81 : vector<8x16xf32>
    %83 = vector.extract_strided_slice %13 {offsets = [0, 128], sizes = [16, 128], strides = [1, 1]} : vector<16x256xf32> to vector<16x128xf32>
    %c0_71 = arith.constant 0 : index
    %c0_72 = arith.constant 0 : index
    %c0_73 = arith.constant 0 : index
    %84 = vector.load %arg3[%c0_71, %c0_72, %c0_73] : memref<16x128x32xf32, #tpu.memory_space<vmem>>, vector<1x128x32xf32>
    %85 = vector.shape_cast %84 : vector<1x128x32xf32> to vector<128x32xf32>
    %cst_74 = arith.constant dense<0.000000e+00> : vector<16x32xf32>
    %86 = tpu.matmul %83, %85, %cst_74 {dimension_numbers = #tpu.dot_dimension_numbers<[1], [0], [0], [1], [0, 0, 1, 1], [], []>} : vector<16x128xf32>, vector<128x32xf32>, vector<16x32xf32> -> vector<16x32xf32>
    %c1_75 = arith.constant 1 : index
    %c0_76 = arith.constant 0 : index
    %c0_77 = arith.constant 0 : index
    %87 = vector.load %arg3[%c1_75, %c0_76, %c0_77] : memref<16x128x32xf32, #tpu.memory_space<vmem>>, vector<1x128x32xf32>
    %88 = vector.shape_cast %87 : vector<1x128x32xf32> to vector<128x32xf32>
    %cst_78 = arith.constant dense<0.000000e+00> : vector<16x32xf32>
    %89 = tpu.matmul %83, %88, %cst_78 {dimension_numbers = #tpu.dot_dimension_numbers<[1], [0], [0], [1], [0, 0, 1, 1], [], []>} : vector<16x128xf32>, vector<128x32xf32>, vector<16x32xf32> -> vector<16x32xf32>
    %c2_79 = arith.constant 2 : index
    %c0_80 = arith.constant 0 : index
    %c0_81 = arith.constant 0 : index
    %90 = vector.load %arg3[%c2_79, %c0_80, %c0_81] : memref<16x128x32xf32, #tpu.memory_space<vmem>>, vector<1x128x32xf32>
    %91 = vector.shape_cast %90 : vector<1x128x32xf32> to vector<128x32xf32>
    %cst_82 = arith.constant dense<0.000000e+00> : vector<16x32xf32>
    %92 = tpu.matmul %83, %91, %cst_82 {dimension_numbers = #tpu.dot_dimension_numbers<[1], [0], [0], [1], [0, 0, 1, 1], [], []>} : vector<16x128xf32>, vector<128x32xf32>, vector<16x32xf32> -> vector<16x32xf32>
    %c3_83 = arith.constant 3 : index
    %c0_84 = arith.constant 0 : index
    %c0_85 = arith.constant 0 : index
    %93 = vector.load %arg3[%c3_83, %c0_84, %c0_85] : memref<16x128x32xf32, #tpu.memory_space<vmem>>, vector<1x128x32xf32>
    %94 = vector.shape_cast %93 : vector<1x128x32xf32> to vector<128x32xf32>
    %cst_86 = arith.constant dense<0.000000e+00> : vector<16x32xf32>
    %95 = tpu.matmul %83, %94, %cst_86 {dimension_numbers = #tpu.dot_dimension_numbers<[1], [0], [0], [1], [0, 0, 1, 1], [], []>} : vector<16x128xf32>, vector<128x32xf32>, vector<16x32xf32> -> vector<16x32xf32>
    %c4_87 = arith.constant 4 : index
    %c0_88 = arith.constant 0 : index
    %c0_89 = arith.constant 0 : index
    %96 = vector.load %arg3[%c4_87, %c0_88, %c0_89] : memref<16x128x32xf32, #tpu.memory_space<vmem>>, vector<1x128x32xf32>
    %97 = vector.shape_cast %96 : vector<1x128x32xf32> to vector<128x32xf32>
    %cst_90 = arith.constant dense<0.000000e+00> : vector<16x32xf32>
    %98 = tpu.matmul %83, %97, %cst_90 {dimension_numbers = #tpu.dot_dimension_numbers<[1], [0], [0], [1], [0, 0, 1, 1], [], []>} : vector<16x128xf32>, vector<128x32xf32>, vector<16x32xf32> -> vector<16x32xf32>
    %c5_91 = arith.constant 5 : index
    %c0_92 = arith.constant 0 : index
    %c0_93 = arith.constant 0 : index
    %99 = vector.load %arg3[%c5_91, %c0_92, %c0_93] : memref<16x128x32xf32, #tpu.memory_space<vmem>>, vector<1x128x32xf32>
    %100 = vector.shape_cast %99 : vector<1x128x32xf32> to vector<128x32xf32>
    %cst_94 = arith.constant dense<0.000000e+00> : vector<16x32xf32>
    %101 = tpu.matmul %83, %100, %cst_94 {dimension_numbers = #tpu.dot_dimension_numbers<[1], [0], [0], [1], [0, 0, 1, 1], [], []>} : vector<16x128xf32>, vector<128x32xf32>, vector<16x32xf32> -> vector<16x32xf32>
    %c6_95 = arith.constant 6 : index
    %c0_96 = arith.constant 0 : index
    %c0_97 = arith.constant 0 : index
    %102 = vector.load %arg3[%c6_95, %c0_96, %c0_97] : memref<16x128x32xf32, #tpu.memory_space<vmem>>, vector<1x128x32xf32>
    %103 = vector.shape_cast %102 : vector<1x128x32xf32> to vector<128x32xf32>
    %cst_98 = arith.constant dense<0.000000e+00> : vector<16x32xf32>
    %104 = tpu.matmul %83, %103, %cst_98 {dimension_numbers = #tpu.dot_dimension_numbers<[1], [0], [0], [1], [0, 0, 1, 1], [], []>} : vector<16x128xf32>, vector<128x32xf32>, vector<16x32xf32> -> vector<16x32xf32>
    %c7_99 = arith.constant 7 : index
    %c0_100 = arith.constant 0 : index
    %c0_101 = arith.constant 0 : index
    %105 = vector.load %arg3[%c7_99, %c0_100, %c0_101] : memref<16x128x32xf32, #tpu.memory_space<vmem>>, vector<1x128x32xf32>
    %106 = vector.shape_cast %105 : vector<1x128x32xf32> to vector<128x32xf32>
    %cst_102 = arith.constant dense<0.000000e+00> : vector<16x32xf32>
    %107 = tpu.matmul %83, %106, %cst_102 {dimension_numbers = #tpu.dot_dimension_numbers<[1], [0], [0], [1], [0, 0, 1, 1], [], []>} : vector<16x128xf32>, vector<128x32xf32>, vector<16x32xf32> -> vector<16x32xf32>
    %c8_103 = arith.constant 8 : index
    %c0_104 = arith.constant 0 : index
    %c0_105 = arith.constant 0 : index
    %108 = vector.load %arg3[%c8_103, %c0_104, %c0_105] : memref<16x128x32xf32, #tpu.memory_space<vmem>>, vector<1x128x32xf32>
    %109 = vector.shape_cast %108 : vector<1x128x32xf32> to vector<128x32xf32>
    %cst_106 = arith.constant dense<0.000000e+00> : vector<16x32xf32>
    %110 = tpu.matmul %83, %109, %cst_106 {dimension_numbers = #tpu.dot_dimension_numbers<[1], [0], [0], [1], [0, 0, 1, 1], [], []>} : vector<16x128xf32>, vector<128x32xf32>, vector<16x32xf32> -> vector<16x32xf32>
    %c9_107 = arith.constant 9 : index
    %c0_108 = arith.constant 0 : index
    %c0_109 = arith.constant 0 : index
    %111 = vector.load %arg3[%c9_107, %c0_108, %c0_109] : memref<16x128x32xf32, #tpu.memory_space<vmem>>, vector<1x128x32xf32>
    %112 = vector.shape_cast %111 : vector<1x128x32xf32> to vector<128x32xf32>
    %cst_110 = arith.constant dense<0.000000e+00> : vector<16x32xf32>
    %113 = tpu.matmul %83, %112, %cst_110 {dimension_numbers = #tpu.dot_dimension_numbers<[1], [0], [0], [1], [0, 0, 1, 1], [], []>} : vector<16x128xf32>, vector<128x32xf32>, vector<16x32xf32> -> vector<16x32xf32>
    %c10_111 = arith.constant 10 : index
    %c0_112 = arith.constant 0 : index
    %c0_113 = arith.constant 0 : index
    %114 = vector.load %arg3[%c10_111, %c0_112, %c0_113] : memref<16x128x32xf32, #tpu.memory_space<vmem>>, vector<1x128x32xf32>
    %115 = vector.shape_cast %114 : vector<1x128x32xf32> to vector<128x32xf32>
    %cst_114 = arith.constant dense<0.000000e+00> : vector<16x32xf32>
    %116 = tpu.matmul %83, %115, %cst_114 {dimension_numbers = #tpu.dot_dimension_numbers<[1], [0], [0], [1], [0, 0, 1, 1], [], []>} : vector<16x128xf32>, vector<128x32xf32>, vector<16x32xf32> -> vector<16x32xf32>
    %c11_115 = arith.constant 11 : index
    %c0_116 = arith.constant 0 : index
    %c0_117 = arith.constant 0 : index
    %117 = vector.load %arg3[%c11_115, %c0_116, %c0_117] : memref<16x128x32xf32, #tpu.memory_space<vmem>>, vector<1x128x32xf32>
    %118 = vector.shape_cast %117 : vector<1x128x32xf32> to vector<128x32xf32>
    %cst_118 = arith.constant dense<0.000000e+00> : vector<16x32xf32>
    %119 = tpu.matmul %83, %118, %cst_118 {dimension_numbers = #tpu.dot_dimension_numbers<[1], [0], [0], [1], [0, 0, 1, 1], [], []>} : vector<16x128xf32>, vector<128x32xf32>, vector<16x32xf32> -> vector<16x32xf32>
    %c12_119 = arith.constant 12 : index
    %c0_120 = arith.constant 0 : index
    %c0_121 = arith.constant 0 : index
    %120 = vector.load %arg3[%c12_119, %c0_120, %c0_121] : memref<16x128x32xf32, #tpu.memory_space<vmem>>, vector<1x128x32xf32>
    %121 = vector.shape_cast %120 : vector<1x128x32xf32> to vector<128x32xf32>
    %cst_122 = arith.constant dense<0.000000e+00> : vector<16x32xf32>
    %122 = tpu.matmul %83, %121, %cst_122 {dimension_numbers = #tpu.dot_dimension_numbers<[1], [0], [0], [1], [0, 0, 1, 1], [], []>} : vector<16x128xf32>, vector<128x32xf32>, vector<16x32xf32> -> vector<16x32xf32>
    %c13_123 = arith.constant 13 : index
    %c0_124 = arith.constant 0 : index
    %c0_125 = arith.constant 0 : index
    %123 = vector.load %arg3[%c13_123, %c0_124, %c0_125] : memref<16x128x32xf32, #tpu.memory_space<vmem>>, vector<1x128x32xf32>
    %124 = vector.shape_cast %123 : vector<1x128x32xf32> to vector<128x32xf32>
    %cst_126 = arith.constant dense<0.000000e+00> : vector<16x32xf32>
    %125 = tpu.matmul %83, %124, %cst_126 {dimension_numbers = #tpu.dot_dimension_numbers<[1], [0], [0], [1], [0, 0, 1, 1], [], []>} : vector<16x128xf32>, vector<128x32xf32>, vector<16x32xf32> -> vector<16x32xf32>
    %c14_127 = arith.constant 14 : index
    %c0_128 = arith.constant 0 : index
    %c0_129 = arith.constant 0 : index
    %126 = vector.load %arg3[%c14_127, %c0_128, %c0_129] : memref<16x128x32xf32, #tpu.memory_space<vmem>>, vector<1x128x32xf32>
    %127 = vector.shape_cast %126 : vector<1x128x32xf32> to vector<128x32xf32>
    %cst_130 = arith.constant dense<0.000000e+00> : vector<16x32xf32>
    %128 = tpu.matmul %83, %127, %cst_130 {dimension_numbers = #tpu.dot_dimension_numbers<[1], [0], [0], [1], [0, 0, 1, 1], [], []>} : vector<16x128xf32>, vector<128x32xf32>, vector<16x32xf32> -> vector<16x32xf32>
    %c15_131 = arith.constant 15 : index
    %c0_132 = arith.constant 0 : index
    %c0_133 = arith.constant 0 : index
    %129 = vector.load %arg3[%c15_131, %c0_132, %c0_133] : memref<16x128x32xf32, #tpu.memory_space<vmem>>, vector<1x128x32xf32>
    %130 = vector.shape_cast %129 : vector<1x128x32xf32> to vector<128x32xf32>
    %cst_134 = arith.constant dense<0.000000e+00> : vector<16x32xf32>
    %131 = tpu.matmul %83, %130, %cst_134 {dimension_numbers = #tpu.dot_dimension_numbers<[1], [0], [0], [1], [0, 0, 1, 1], [], []>} : vector<16x128xf32>, vector<128x32xf32>, vector<16x32xf32> -> vector<16x32xf32>
    %132 = tpu.concatenate %86, %89, %92, %95, %98, %101, %104, %107, %110, %113, %116, %119, %122, %125, %128, %131 in 0 : vector<16x32xf32>, vector<16x32xf32>, vector<16x32xf32>, vector<16x32xf32>, vector<16x32xf32>, vector<16x32xf32>, vector<16x32xf32>, vector<16x32xf32>, vector<16x32xf32>, vector<16x32xf32>, vector<16x32xf32>, vector<16x32xf32>, vector<16x32xf32>, vector<16x32xf32>, vector<16x32xf32>, vector<16x32xf32> -> vector<256x32xf32>
    %c0_135 = arith.constant 0 : index
    %c0_136 = arith.constant 0 : index
    %133 = vector.load %arg4[%c0_135, %c0_136] : memref<16x256xf32, #tpu.memory_space<vmem>>, vector<16x256xf32>
    %cst_137 = arith.constant dense<0.000000e+00> : vector<16x32xf32>
    %134 = tpu.matmul %133, %132, %cst_137 {dimension_numbers = #tpu.dot_dimension_numbers<[1], [0], [0], [1], [0, 0, 1, 1], [], []>} : vector<16x256xf32>, vector<256x32xf32>, vector<16x32xf32> -> vector<16x32xf32>
    %c0_138 = arith.constant 0 : index
    %c0_139 = arith.constant 0 : index
    %135 = vector.load %arg5[%c0_138, %c0_139] : memref<16x1xf32, #tpu.memory_space<vmem>>, vector<16x1xf32>
    %136 = vector.broadcast %135 : vector<16x1xf32> to vector<16x32xf32>
    %137 = arith.addf %134, %136 : vector<16x32xf32>
    %cst_140 = arith.constant 0.000000e+00 : f32
    %138 = vector.broadcast %cst_140 : f32 to vector<16x32xf32>
    %139 = arith.cmpf ogt, %137, %138 : vector<16x32xf32>
    %cst_141 = arith.constant 0.000000e+00 : f32
    %140 = vector.broadcast %cst_141 : f32 to vector<16x32xf32>
    %141 = arith.minimumf %137, %140 : vector<16x32xf32>
    %142 = math.exp %141 : vector<16x32xf32>
    %cst_142 = arith.constant 1.000000e+00 : f32
    %143 = vector.broadcast %cst_142 : f32 to vector<16x32xf32>
    %144 = arith.subf %142, %143 : vector<16x32xf32>
    %145 = arith.select %139, %137, %144 : vector<16x32xi1>, vector<16x32xf32>
    %c0_143 = arith.constant 0 : index
    %c0_144 = arith.constant 0 : index
    %146 = vector.load %arg6[%c0_143, %c0_144] : memref<8x32xf32, #tpu.memory_space<vmem>>, vector<8x32xf32>
    %cst_145 = arith.constant dense<0.000000e+00> : vector<8x16xf32>
    %147 = tpu.matmul %146, %145, %cst_145 {dimension_numbers = #tpu.dot_dimension_numbers<[1], [1], [0], [0], [0, 0, 1, 0], [], []>} : vector<8x32xf32>, vector<16x32xf32>, vector<8x16xf32> -> vector<8x16xf32>
    %cst_146 = arith.constant 4.000000e+00 : f32
    %148 = vector.broadcast %cst_146 : f32 to vector<8x16xf32>
    %149 = arith.mulf %147, %148 : vector<8x16xf32>
    %c0_147 = arith.constant 0 : index
    %c0_148 = arith.constant 0 : index
    %150 = vector.load %arg7[%c0_147, %c0_148] : memref<8x16xf32, #tpu.memory_space<vmem>>, vector<8x16xf32>
    %151 = arith.addf %149, %150 : vector<8x16xf32>
    %152 = tpu.concatenate %82, %151 in 0 : vector<8x16xf32>, vector<8x16xf32> -> vector<16x16xf32>
    %c0_149 = arith.constant 0 : index
    %c0_150 = arith.constant 0 : index
    %153 = vector.load %arg8[%c0_149, %c0_150] : memref<16x16xf32, #tpu.memory_space<vmem>>, vector<16x16xf32>
    %c0_151 = arith.constant 0 : index
    %c0_152 = arith.constant 0 : index
    %c0_153 = arith.constant 0 : index
    %154 = vector.load %arg9[%c0_151, %c0_152, %c0_153] : memref<2x16x16xf32, #tpu.memory_space<vmem>>, vector<1x16x16xf32>
    %155 = vector.shape_cast %154 : vector<1x16x16xf32> to vector<16x16xf32>
    %cst_154 = arith.constant dense<0.000000e+00> : vector<16x16xf32>
    %156 = tpu.matmul %152, %155, %cst_154 {dimension_numbers = #tpu.dot_dimension_numbers<[1], [0], [0], [1], [0, 0, 1, 1], [], []>} : vector<16x16xf32>, vector<16x16xf32>, vector<16x16xf32> -> vector<16x16xf32>
    %c0_155 = arith.constant 0 : index
    %c0_156 = arith.constant 0 : index
    %c0_157 = arith.constant 0 : index
    %157 = vector.load %arg10[%c0_155, %c0_156, %c0_157] : memref<2x1x16xf32, #tpu.memory_space<vmem>>, vector<1x1x16xf32>
    %158 = vector.shape_cast %157 : vector<1x1x16xf32> to vector<1x16xf32>
    %159 = vector.broadcast %158 : vector<1x16xf32> to vector<16x16xf32>
    %160 = arith.addf %156, %159 : vector<16x16xf32>
    %c0_158 = arith.constant 0 : index
    %c0_159 = arith.constant 0 : index
    %c0_160 = arith.constant 0 : index
    %161 = vector.load %arg11[%c0_158, %c0_159, %c0_160] : memref<2x16x16xf32, #tpu.memory_space<vmem>>, vector<1x16x16xf32>
    %162 = vector.shape_cast %161 : vector<1x16x16xf32> to vector<16x16xf32>
    %cst_161 = arith.constant dense<0.000000e+00> : vector<16x16xf32>
    %163 = tpu.matmul %152, %162, %cst_161 {dimension_numbers = #tpu.dot_dimension_numbers<[1], [0], [0], [1], [0, 0, 1, 1], [], []>} : vector<16x16xf32>, vector<16x16xf32>, vector<16x16xf32> -> vector<16x16xf32>
    %c0_162 = arith.constant 0 : index
    %c0_163 = arith.constant 0 : index
    %c0_164 = arith.constant 0 : index
    %164 = vector.load %arg12[%c0_162, %c0_163, %c0_164] : memref<2x1x16xf32, #tpu.memory_space<vmem>>, vector<1x1x16xf32>
    %165 = vector.shape_cast %164 : vector<1x1x16xf32> to vector<1x16xf32>
    %166 = vector.broadcast %165 : vector<1x16xf32> to vector<16x16xf32>
    %167 = arith.addf %163, %166 : vector<16x16xf32>
    %c0_165 = arith.constant 0 : index
    %c0_166 = arith.constant 0 : index
    %c0_167 = arith.constant 0 : index
    %168 = vector.load %arg13[%c0_165, %c0_166, %c0_167] : memref<2x16x16xf32, #tpu.memory_space<vmem>>, vector<1x16x16xf32>
    %169 = vector.shape_cast %168 : vector<1x16x16xf32> to vector<16x16xf32>
    %cst_168 = arith.constant dense<0.000000e+00> : vector<16x16xf32>
    %170 = tpu.matmul %152, %169, %cst_168 {dimension_numbers = #tpu.dot_dimension_numbers<[1], [0], [0], [1], [0, 0, 1, 1], [], []>} : vector<16x16xf32>, vector<16x16xf32>, vector<16x16xf32> -> vector<16x16xf32>
    %c0_169 = arith.constant 0 : index
    %c0_170 = arith.constant 0 : index
    %c0_171 = arith.constant 0 : index
    %171 = vector.load %arg14[%c0_169, %c0_170, %c0_171] : memref<2x1x16xf32, #tpu.memory_space<vmem>>, vector<1x1x16xf32>
    %172 = vector.shape_cast %171 : vector<1x1x16xf32> to vector<1x16xf32>
    %173 = vector.broadcast %172 : vector<1x16xf32> to vector<16x16xf32>
    %174 = arith.addf %170, %173 : vector<16x16xf32>
    %cst_172 = arith.constant 0.000000e+00 : f32
    %175 = vector.broadcast %cst_172 : f32 to vector<16x16xf32>
    %176 = vector.extract_strided_slice %160 {offsets = [0, 0], sizes = [16, 4], strides = [1, 1]} : vector<16x16xf32> to vector<16x4xf32>
    %177 = vector.extract_strided_slice %167 {offsets = [0, 0], sizes = [16, 4], strides = [1, 1]} : vector<16x16xf32> to vector<16x4xf32>
    %178 = vector.extract_strided_slice %174 {offsets = [0, 0], sizes = [16, 4], strides = [1, 1]} : vector<16x16xf32> to vector<16x4xf32>
    %cst_173 = arith.constant dense<0.000000e+00> : vector<16x16xf32>
    %179 = tpu.matmul %176, %177, %cst_173 {dimension_numbers = #tpu.dot_dimension_numbers<[1], [1], [0], [0], [0, 0, 1, 0], [], []>} : vector<16x4xf32>, vector<16x4xf32>, vector<16x16xf32> -> vector<16x16xf32>
    %cst_174 = arith.constant 2.500000e-01 : f32
    %180 = vector.broadcast %cst_174 : f32 to vector<16x16xf32>
    %181 = arith.mulf %179, %180 : vector<16x16xf32>
    %182 = arith.addf %181, %153 : vector<16x16xf32>
    %cst_175 = arith.constant dense<0xFF800000> : vector<16xf32>
    %183 = vector.multi_reduction <maximumf>, %182, %cst_175 [1] : vector<16x16xf32> to vector<16xf32>
    %184 = vector.shape_cast %183 : vector<16xf32> to vector<16x1xf32>
    %185 = vector.broadcast %184 : vector<16x1xf32> to vector<16x16xf32>
    %186 = arith.subf %182, %185 : vector<16x16xf32>
    %187 = math.exp %186 : vector<16x16xf32>
    %cst_176 = arith.constant dense<0.000000e+00> : vector<16xf32>
    %188 = vector.multi_reduction <add>, %187, %cst_176 [1] : vector<16x16xf32> to vector<16xf32>
    %189 = vector.shape_cast %188 : vector<16xf32> to vector<16x1xf32>
    %190 = tpu.reciprocal %189 {approx = true} : vector<16x1xf32> -> vector<16x1xf32>
    %191 = vector.broadcast %190 : vector<16x1xf32> to vector<16x16xf32>
    %192 = arith.mulf %187, %191 : vector<16x16xf32>
    %cst_177 = arith.constant dense<0.000000e+00> : vector<16x4xf32>
    %193 = tpu.matmul %192, %178, %cst_177 {dimension_numbers = #tpu.dot_dimension_numbers<[1], [0], [0], [1], [0, 0, 1, 1], [], []>} : vector<16x16xf32>, vector<16x4xf32>, vector<16x4xf32> -> vector<16x4xf32>
    %c0_178 = arith.constant 0 : index
    %c0_179 = arith.constant 0 : index
    %c0_180 = arith.constant 0 : index
    %c0_181 = arith.constant 0 : index
    %194 = vector.load %arg15[%c0_178, %c0_179, %c0_180, %c0_181] : memref<2x4x4x16xf32, #tpu.memory_space<vmem>>, vector<1x1x4x16xf32>
    %195 = vector.shape_cast %194 : vector<1x1x4x16xf32> to vector<4x16xf32>
    %cst_182 = arith.constant dense<0.000000e+00> : vector<16x16xf32>
    %196 = tpu.matmul %193, %195, %cst_182 {dimension_numbers = #tpu.dot_dimension_numbers<[1], [0], [0], [1], [0, 0, 1, 1], [], []>} : vector<16x4xf32>, vector<4x16xf32>, vector<16x16xf32> -> vector<16x16xf32>
    %197 = arith.addf %175, %196 : vector<16x16xf32>
    %198 = vector.extract_strided_slice %160 {offsets = [0, 4], sizes = [16, 4], strides = [1, 1]} : vector<16x16xf32> to vector<16x4xf32>
    %199 = vector.extract_strided_slice %167 {offsets = [0, 4], sizes = [16, 4], strides = [1, 1]} : vector<16x16xf32> to vector<16x4xf32>
    %200 = vector.extract_strided_slice %174 {offsets = [0, 4], sizes = [16, 4], strides = [1, 1]} : vector<16x16xf32> to vector<16x4xf32>
    %cst_183 = arith.constant dense<0.000000e+00> : vector<16x16xf32>
    %201 = tpu.matmul %198, %199, %cst_183 {dimension_numbers = #tpu.dot_dimension_numbers<[1], [1], [0], [0], [0, 0, 1, 0], [], []>} : vector<16x4xf32>, vector<16x4xf32>, vector<16x16xf32> -> vector<16x16xf32>
    %cst_184 = arith.constant 2.500000e-01 : f32
    %202 = vector.broadcast %cst_184 : f32 to vector<16x16xf32>
    %203 = arith.mulf %201, %202 : vector<16x16xf32>
    %204 = arith.addf %203, %153 : vector<16x16xf32>
    %cst_185 = arith.constant dense<0xFF800000> : vector<16xf32>
    %205 = vector.multi_reduction <maximumf>, %204, %cst_185 [1] : vector<16x16xf32> to vector<16xf32>
    %206 = vector.shape_cast %205 : vector<16xf32> to vector<16x1xf32>
    %207 = vector.broadcast %206 : vector<16x1xf32> to vector<16x16xf32>
    %208 = arith.subf %204, %207 : vector<16x16xf32>
    %209 = math.exp %208 : vector<16x16xf32>
    %cst_186 = arith.constant dense<0.000000e+00> : vector<16xf32>
    %210 = vector.multi_reduction <add>, %209, %cst_186 [1] : vector<16x16xf32> to vector<16xf32>
    %211 = vector.shape_cast %210 : vector<16xf32> to vector<16x1xf32>
    %212 = tpu.reciprocal %211 {approx = true} : vector<16x1xf32> -> vector<16x1xf32>
    %213 = vector.broadcast %212 : vector<16x1xf32> to vector<16x16xf32>
    %214 = arith.mulf %209, %213 : vector<16x16xf32>
    %cst_187 = arith.constant dense<0.000000e+00> : vector<16x4xf32>
    %215 = tpu.matmul %214, %200, %cst_187 {dimension_numbers = #tpu.dot_dimension_numbers<[1], [0], [0], [1], [0, 0, 1, 1], [], []>} : vector<16x16xf32>, vector<16x4xf32>, vector<16x4xf32> -> vector<16x4xf32>
    %c0_188 = arith.constant 0 : index
    %c1_189 = arith.constant 1 : index
    %c0_190 = arith.constant 0 : index
    %c0_191 = arith.constant 0 : index
    %216 = vector.load %arg15[%c0_188, %c1_189, %c0_190, %c0_191] : memref<2x4x4x16xf32, #tpu.memory_space<vmem>>, vector<1x1x4x16xf32>
    %217 = vector.shape_cast %216 : vector<1x1x4x16xf32> to vector<4x16xf32>
    %cst_192 = arith.constant dense<0.000000e+00> : vector<16x16xf32>
    %218 = tpu.matmul %215, %217, %cst_192 {dimension_numbers = #tpu.dot_dimension_numbers<[1], [0], [0], [1], [0, 0, 1, 1], [], []>} : vector<16x4xf32>, vector<4x16xf32>, vector<16x16xf32> -> vector<16x16xf32>
    %219 = arith.addf %197, %218 : vector<16x16xf32>
    %220 = vector.extract_strided_slice %160 {offsets = [0, 8], sizes = [16, 4], strides = [1, 1]} : vector<16x16xf32> to vector<16x4xf32>
    %221 = vector.extract_strided_slice %167 {offsets = [0, 8], sizes = [16, 4], strides = [1, 1]} : vector<16x16xf32> to vector<16x4xf32>
    %222 = vector.extract_strided_slice %174 {offsets = [0, 8], sizes = [16, 4], strides = [1, 1]} : vector<16x16xf32> to vector<16x4xf32>
    %cst_193 = arith.constant dense<0.000000e+00> : vector<16x16xf32>
    %223 = tpu.matmul %220, %221, %cst_193 {dimension_numbers = #tpu.dot_dimension_numbers<[1], [1], [0], [0], [0, 0, 1, 0], [], []>} : vector<16x4xf32>, vector<16x4xf32>, vector<16x16xf32> -> vector<16x16xf32>
    %cst_194 = arith.constant 2.500000e-01 : f32
    %224 = vector.broadcast %cst_194 : f32 to vector<16x16xf32>
    %225 = arith.mulf %223, %224 : vector<16x16xf32>
    %226 = arith.addf %225, %153 : vector<16x16xf32>
    %cst_195 = arith.constant dense<0xFF800000> : vector<16xf32>
    %227 = vector.multi_reduction <maximumf>, %226, %cst_195 [1] : vector<16x16xf32> to vector<16xf32>
    %228 = vector.shape_cast %227 : vector<16xf32> to vector<16x1xf32>
    %229 = vector.broadcast %228 : vector<16x1xf32> to vector<16x16xf32>
    %230 = arith.subf %226, %229 : vector<16x16xf32>
    %231 = math.exp %230 : vector<16x16xf32>
    %cst_196 = arith.constant dense<0.000000e+00> : vector<16xf32>
    %232 = vector.multi_reduction <add>, %231, %cst_196 [1] : vector<16x16xf32> to vector<16xf32>
    %233 = vector.shape_cast %232 : vector<16xf32> to vector<16x1xf32>
    %234 = tpu.reciprocal %233 {approx = true} : vector<16x1xf32> -> vector<16x1xf32>
    %235 = vector.broadcast %234 : vector<16x1xf32> to vector<16x16xf32>
    %236 = arith.mulf %231, %235 : vector<16x16xf32>
    %cst_197 = arith.constant dense<0.000000e+00> : vector<16x4xf32>
    %237 = tpu.matmul %236, %222, %cst_197 {dimension_numbers = #tpu.dot_dimension_numbers<[1], [0], [0], [1], [0, 0, 1, 1], [], []>} : vector<16x16xf32>, vector<16x4xf32>, vector<16x4xf32> -> vector<16x4xf32>
    %c0_198 = arith.constant 0 : index
    %c2_199 = arith.constant 2 : index
    %c0_200 = arith.constant 0 : index
    %c0_201 = arith.constant 0 : index
    %238 = vector.load %arg15[%c0_198, %c2_199, %c0_200, %c0_201] : memref<2x4x4x16xf32, #tpu.memory_space<vmem>>, vector<1x1x4x16xf32>
    %239 = vector.shape_cast %238 : vector<1x1x4x16xf32> to vector<4x16xf32>
    %cst_202 = arith.constant dense<0.000000e+00> : vector<16x16xf32>
    %240 = tpu.matmul %237, %239, %cst_202 {dimension_numbers = #tpu.dot_dimension_numbers<[1], [0], [0], [1], [0, 0, 1, 1], [], []>} : vector<16x4xf32>, vector<4x16xf32>, vector<16x16xf32> -> vector<16x16xf32>
    %241 = arith.addf %219, %240 : vector<16x16xf32>
    %242 = vector.extract_strided_slice %160 {offsets = [0, 12], sizes = [16, 4], strides = [1, 1]} : vector<16x16xf32> to vector<16x4xf32>
    %243 = vector.extract_strided_slice %167 {offsets = [0, 12], sizes = [16, 4], strides = [1, 1]} : vector<16x16xf32> to vector<16x4xf32>
    %244 = vector.extract_strided_slice %174 {offsets = [0, 12], sizes = [16, 4], strides = [1, 1]} : vector<16x16xf32> to vector<16x4xf32>
    %cst_203 = arith.constant dense<0.000000e+00> : vector<16x16xf32>
    %245 = tpu.matmul %242, %243, %cst_203 {dimension_numbers = #tpu.dot_dimension_numbers<[1], [1], [0], [0], [0, 0, 1, 0], [], []>} : vector<16x4xf32>, vector<16x4xf32>, vector<16x16xf32> -> vector<16x16xf32>
    %cst_204 = arith.constant 2.500000e-01 : f32
    %246 = vector.broadcast %cst_204 : f32 to vector<16x16xf32>
    %247 = arith.mulf %245, %246 : vector<16x16xf32>
    %248 = arith.addf %247, %153 : vector<16x16xf32>
    %cst_205 = arith.constant dense<0xFF800000> : vector<16xf32>
    %249 = vector.multi_reduction <maximumf>, %248, %cst_205 [1] : vector<16x16xf32> to vector<16xf32>
    %250 = vector.shape_cast %249 : vector<16xf32> to vector<16x1xf32>
    %251 = vector.broadcast %250 : vector<16x1xf32> to vector<16x16xf32>
    %252 = arith.subf %248, %251 : vector<16x16xf32>
    %253 = math.exp %252 : vector<16x16xf32>
    %cst_206 = arith.constant dense<0.000000e+00> : vector<16xf32>
    %254 = vector.multi_reduction <add>, %253, %cst_206 [1] : vector<16x16xf32> to vector<16xf32>
    %255 = vector.shape_cast %254 : vector<16xf32> to vector<16x1xf32>
    %256 = tpu.reciprocal %255 {approx = true} : vector<16x1xf32> -> vector<16x1xf32>
    %257 = vector.broadcast %256 : vector<16x1xf32> to vector<16x16xf32>
    %258 = arith.mulf %253, %257 : vector<16x16xf32>
    %cst_207 = arith.constant dense<0.000000e+00> : vector<16x4xf32>
    %259 = tpu.matmul %258, %244, %cst_207 {dimension_numbers = #tpu.dot_dimension_numbers<[1], [0], [0], [1], [0, 0, 1, 1], [], []>} : vector<16x16xf32>, vector<16x4xf32>, vector<16x4xf32> -> vector<16x4xf32>
    %c0_208 = arith.constant 0 : index
    %c3_209 = arith.constant 3 : index
    %c0_210 = arith.constant 0 : index
    %c0_211 = arith.constant 0 : index
    %260 = vector.load %arg15[%c0_208, %c3_209, %c0_210, %c0_211] : memref<2x4x4x16xf32, #tpu.memory_space<vmem>>, vector<1x1x4x16xf32>
    %261 = vector.shape_cast %260 : vector<1x1x4x16xf32> to vector<4x16xf32>
    %cst_212 = arith.constant dense<0.000000e+00> : vector<16x16xf32>
    %262 = tpu.matmul %259, %261, %cst_212 {dimension_numbers = #tpu.dot_dimension_numbers<[1], [0], [0], [1], [0, 0, 1, 1], [], []>} : vector<16x4xf32>, vector<4x16xf32>, vector<16x16xf32> -> vector<16x16xf32>
    %263 = arith.addf %241, %262 : vector<16x16xf32>
    %c0_213 = arith.constant 0 : index
    %c0_214 = arith.constant 0 : index
    %c0_215 = arith.constant 0 : index
    %264 = vector.load %arg16[%c0_213, %c0_214, %c0_215] : memref<2x1x16xf32, #tpu.memory_space<vmem>>, vector<1x1x16xf32>
    %265 = vector.shape_cast %264 : vector<1x1x16xf32> to vector<1x16xf32>
    %266 = vector.broadcast %265 : vector<1x16xf32> to vector<16x16xf32>
    %267 = arith.addf %263, %266 : vector<16x16xf32>
    %268 = arith.addf %267, %152 : vector<16x16xf32>
    %c0_216 = arith.constant 0 : index
    %c0_217 = arith.constant 0 : index
    %c0_218 = arith.constant 0 : index
    %269 = vector.load %arg17[%c0_216, %c0_217, %c0_218] : memref<2x1x16xf32, #tpu.memory_space<vmem>>, vector<1x1x16xf32>
    %270 = vector.shape_cast %269 : vector<1x1x16xf32> to vector<1x16xf32>
    %c0_219 = arith.constant 0 : index
    %c0_220 = arith.constant 0 : index
    %c0_221 = arith.constant 0 : index
    %271 = vector.load %arg18[%c0_219, %c0_220, %c0_221] : memref<2x1x16xf32, #tpu.memory_space<vmem>>, vector<1x1x16xf32>
    %272 = vector.shape_cast %271 : vector<1x1x16xf32> to vector<1x16xf32>
    %cst_222 = arith.constant dense<0.000000e+00> : vector<16xf32>
    %273 = vector.multi_reduction <add>, %268, %cst_222 [1] : vector<16x16xf32> to vector<16xf32>
    %274 = vector.shape_cast %273 : vector<16xf32> to vector<16x1xf32>
    %cst_223 = arith.constant 1.600000e+01 : f32
    %275 = vector.broadcast %cst_223 : f32 to vector<16x1xf32>
    %276 = arith.divf %274, %275 : vector<16x1xf32>
    %277 = vector.broadcast %276 : vector<16x1xf32> to vector<16x16xf32>
    %278 = arith.subf %268, %277 : vector<16x16xf32>
    %279 = arith.mulf %278, %278 : vector<16x16xf32>
    %cst_224 = arith.constant dense<0.000000e+00> : vector<16xf32>
    %280 = vector.multi_reduction <add>, %279, %cst_224 [1] : vector<16x16xf32> to vector<16xf32>
    %281 = vector.shape_cast %280 : vector<16xf32> to vector<16x1xf32>
    %cst_225 = arith.constant 1.600000e+01 : f32
    %282 = vector.broadcast %cst_225 : f32 to vector<16x1xf32>
    %283 = arith.divf %281, %282 : vector<16x1xf32>
    %cst_226 = arith.constant 9.99999974E-6 : f32
    %284 = vector.broadcast %cst_226 : f32 to vector<16x1xf32>
    %285 = arith.addf %283, %284 : vector<16x1xf32>
    %286 = math.rsqrt %285 : vector<16x1xf32>
    %287 = vector.broadcast %286 : vector<16x1xf32> to vector<16x16xf32>
    %288 = arith.mulf %278, %287 : vector<16x16xf32>
    %289 = vector.broadcast %270 : vector<1x16xf32> to vector<16x16xf32>
    %290 = arith.mulf %288, %289 : vector<16x16xf32>
    %291 = vector.broadcast %272 : vector<1x16xf32> to vector<16x16xf32>
    %292 = arith.addf %290, %291 : vector<16x16xf32>
    %c0_227 = arith.constant 0 : index
    %c0_228 = arith.constant 0 : index
    %c0_229 = arith.constant 0 : index
    %293 = vector.load %arg19[%c0_227, %c0_228, %c0_229] : memref<2x16x64xf32, #tpu.memory_space<vmem>>, vector<1x16x64xf32>
    %294 = vector.shape_cast %293 : vector<1x16x64xf32> to vector<16x64xf32>
    %cst_230 = arith.constant dense<0.000000e+00> : vector<16x64xf32>
    %295 = tpu.matmul %292, %294, %cst_230 {dimension_numbers = #tpu.dot_dimension_numbers<[1], [0], [0], [1], [0, 0, 1, 1], [], []>} : vector<16x16xf32>, vector<16x64xf32>, vector<16x64xf32> -> vector<16x64xf32>
    %c0_231 = arith.constant 0 : index
    %c0_232 = arith.constant 0 : index
    %c0_233 = arith.constant 0 : index
    %296 = vector.load %arg20[%c0_231, %c0_232, %c0_233] : memref<2x1x64xf32, #tpu.memory_space<vmem>>, vector<1x1x64xf32>
    %297 = vector.shape_cast %296 : vector<1x1x64xf32> to vector<1x64xf32>
    %298 = vector.broadcast %297 : vector<1x64xf32> to vector<16x64xf32>
    %299 = arith.addf %295, %298 : vector<16x64xf32>
    %cst_234 = arith.constant 5.000000e-01 : f32
    %300 = vector.broadcast %cst_234 : f32 to vector<16x64xf32>
    %301 = arith.mulf %300, %299 : vector<16x64xf32>
    %cst_235 = arith.constant 4.471500e-02 : f32
    %302 = vector.broadcast %cst_235 : f32 to vector<16x64xf32>
    %303 = arith.mulf %302, %299 : vector<16x64xf32>
    %304 = arith.mulf %303, %299 : vector<16x64xf32>
    %305 = arith.mulf %304, %299 : vector<16x64xf32>
    %306 = arith.addf %299, %305 : vector<16x64xf32>
    %cst_236 = arith.constant 0.797884583 : f32
    %307 = vector.broadcast %cst_236 : f32 to vector<16x64xf32>
    %308 = arith.mulf %307, %306 : vector<16x64xf32>
    %309 = math.tanh %308 : vector<16x64xf32>
    %cst_237 = arith.constant 1.000000e+00 : f32
    %310 = vector.broadcast %cst_237 : f32 to vector<16x64xf32>
    %311 = arith.addf %310, %309 : vector<16x64xf32>
    %312 = arith.mulf %301, %311 : vector<16x64xf32>
    %c0_238 = arith.constant 0 : index
    %c0_239 = arith.constant 0 : index
    %c0_240 = arith.constant 0 : index
    %313 = vector.load %arg21[%c0_238, %c0_239, %c0_240] : memref<2x64x16xf32, #tpu.memory_space<vmem>>, vector<1x64x16xf32>
    %314 = vector.shape_cast %313 : vector<1x64x16xf32> to vector<64x16xf32>
    %cst_241 = arith.constant dense<0.000000e+00> : vector<16x16xf32>
    %315 = tpu.matmul %312, %314, %cst_241 {dimension_numbers = #tpu.dot_dimension_numbers<[1], [0], [0], [1], [0, 0, 1, 1], [], []>} : vector<16x64xf32>, vector<64x16xf32>, vector<16x16xf32> -> vector<16x16xf32>
    %c0_242 = arith.constant 0 : index
    %c0_243 = arith.constant 0 : index
    %c0_244 = arith.constant 0 : index
    %316 = vector.load %arg22[%c0_242, %c0_243, %c0_244] : memref<2x1x16xf32, #tpu.memory_space<vmem>>, vector<1x1x16xf32>
    %317 = vector.shape_cast %316 : vector<1x1x16xf32> to vector<1x16xf32>
    %318 = vector.broadcast %317 : vector<1x16xf32> to vector<16x16xf32>
    %319 = arith.addf %315, %318 : vector<16x16xf32>
    %320 = arith.addf %319, %292 : vector<16x16xf32>
    %c0_245 = arith.constant 0 : index
    %c0_246 = arith.constant 0 : index
    %c0_247 = arith.constant 0 : index
    %321 = vector.load %arg23[%c0_245, %c0_246, %c0_247] : memref<2x1x16xf32, #tpu.memory_space<vmem>>, vector<1x1x16xf32>
    %322 = vector.shape_cast %321 : vector<1x1x16xf32> to vector<1x16xf32>
    %c0_248 = arith.constant 0 : index
    %c0_249 = arith.constant 0 : index
    %c0_250 = arith.constant 0 : index
    %323 = vector.load %arg24[%c0_248, %c0_249, %c0_250] : memref<2x1x16xf32, #tpu.memory_space<vmem>>, vector<1x1x16xf32>
    %324 = vector.shape_cast %323 : vector<1x1x16xf32> to vector<1x16xf32>
    %cst_251 = arith.constant dense<0.000000e+00> : vector<16xf32>
    %325 = vector.multi_reduction <add>, %320, %cst_251 [1] : vector<16x16xf32> to vector<16xf32>
    %326 = vector.shape_cast %325 : vector<16xf32> to vector<16x1xf32>
    %cst_252 = arith.constant 1.600000e+01 : f32
    %327 = vector.broadcast %cst_252 : f32 to vector<16x1xf32>
    %328 = arith.divf %326, %327 : vector<16x1xf32>
    %329 = vector.broadcast %328 : vector<16x1xf32> to vector<16x16xf32>
    %330 = arith.subf %320, %329 : vector<16x16xf32>
    %331 = arith.mulf %330, %330 : vector<16x16xf32>
    %cst_253 = arith.constant dense<0.000000e+00> : vector<16xf32>
    %332 = vector.multi_reduction <add>, %331, %cst_253 [1] : vector<16x16xf32> to vector<16xf32>
    %333 = vector.shape_cast %332 : vector<16xf32> to vector<16x1xf32>
    %cst_254 = arith.constant 1.600000e+01 : f32
    %334 = vector.broadcast %cst_254 : f32 to vector<16x1xf32>
    %335 = arith.divf %333, %334 : vector<16x1xf32>
    %cst_255 = arith.constant 9.99999974E-6 : f32
    %336 = vector.broadcast %cst_255 : f32 to vector<16x1xf32>
    %337 = arith.addf %335, %336 : vector<16x1xf32>
    %338 = math.rsqrt %337 : vector<16x1xf32>
    %339 = vector.broadcast %338 : vector<16x1xf32> to vector<16x16xf32>
    %340 = arith.mulf %330, %339 : vector<16x16xf32>
    %341 = vector.broadcast %322 : vector<1x16xf32> to vector<16x16xf32>
    %342 = arith.mulf %340, %341 : vector<16x16xf32>
    %343 = vector.broadcast %324 : vector<1x16xf32> to vector<16x16xf32>
    %344 = arith.addf %342, %343 : vector<16x16xf32>
    %c1_256 = arith.constant 1 : index
    %c0_257 = arith.constant 0 : index
    %c0_258 = arith.constant 0 : index
    %345 = vector.load %arg9[%c1_256, %c0_257, %c0_258] : memref<2x16x16xf32, #tpu.memory_space<vmem>>, vector<1x16x16xf32>
    %346 = vector.shape_cast %345 : vector<1x16x16xf32> to vector<16x16xf32>
    %cst_259 = arith.constant dense<0.000000e+00> : vector<16x16xf32>
    %347 = tpu.matmul %344, %346, %cst_259 {dimension_numbers = #tpu.dot_dimension_numbers<[1], [0], [0], [1], [0, 0, 1, 1], [], []>} : vector<16x16xf32>, vector<16x16xf32>, vector<16x16xf32> -> vector<16x16xf32>
    %c1_260 = arith.constant 1 : index
    %c0_261 = arith.constant 0 : index
    %c0_262 = arith.constant 0 : index
    %348 = vector.load %arg10[%c1_260, %c0_261, %c0_262] : memref<2x1x16xf32, #tpu.memory_space<vmem>>, vector<1x1x16xf32>
    %349 = vector.shape_cast %348 : vector<1x1x16xf32> to vector<1x16xf32>
    %350 = vector.broadcast %349 : vector<1x16xf32> to vector<16x16xf32>
    %351 = arith.addf %347, %350 : vector<16x16xf32>
    %c1_263 = arith.constant 1 : index
    %c0_264 = arith.constant 0 : index
    %c0_265 = arith.constant 0 : index
    %352 = vector.load %arg11[%c1_263, %c0_264, %c0_265] : memref<2x16x16xf32, #tpu.memory_space<vmem>>, vector<1x16x16xf32>
    %353 = vector.shape_cast %352 : vector<1x16x16xf32> to vector<16x16xf32>
    %cst_266 = arith.constant dense<0.000000e+00> : vector<16x16xf32>
    %354 = tpu.matmul %344, %353, %cst_266 {dimension_numbers = #tpu.dot_dimension_numbers<[1], [0], [0], [1], [0, 0, 1, 1], [], []>} : vector<16x16xf32>, vector<16x16xf32>, vector<16x16xf32> -> vector<16x16xf32>
    %c1_267 = arith.constant 1 : index
    %c0_268 = arith.constant 0 : index
    %c0_269 = arith.constant 0 : index
    %355 = vector.load %arg12[%c1_267, %c0_268, %c0_269] : memref<2x1x16xf32, #tpu.memory_space<vmem>>, vector<1x1x16xf32>
    %356 = vector.shape_cast %355 : vector<1x1x16xf32> to vector<1x16xf32>
    %357 = vector.broadcast %356 : vector<1x16xf32> to vector<16x16xf32>
    %358 = arith.addf %354, %357 : vector<16x16xf32>
    %c1_270 = arith.constant 1 : index
    %c0_271 = arith.constant 0 : index
    %c0_272 = arith.constant 0 : index
    %359 = vector.load %arg13[%c1_270, %c0_271, %c0_272] : memref<2x16x16xf32, #tpu.memory_space<vmem>>, vector<1x16x16xf32>
    %360 = vector.shape_cast %359 : vector<1x16x16xf32> to vector<16x16xf32>
    %cst_273 = arith.constant dense<0.000000e+00> : vector<16x16xf32>
    %361 = tpu.matmul %344, %360, %cst_273 {dimension_numbers = #tpu.dot_dimension_numbers<[1], [0], [0], [1], [0, 0, 1, 1], [], []>} : vector<16x16xf32>, vector<16x16xf32>, vector<16x16xf32> -> vector<16x16xf32>
    %c1_274 = arith.constant 1 : index
    %c0_275 = arith.constant 0 : index
    %c0_276 = arith.constant 0 : index
    %362 = vector.load %arg14[%c1_274, %c0_275, %c0_276] : memref<2x1x16xf32, #tpu.memory_space<vmem>>, vector<1x1x16xf32>
    %363 = vector.shape_cast %362 : vector<1x1x16xf32> to vector<1x16xf32>
    %364 = vector.broadcast %363 : vector<1x16xf32> to vector<16x16xf32>
    %365 = arith.addf %361, %364 : vector<16x16xf32>
    %cst_277 = arith.constant 0.000000e+00 : f32
    %366 = vector.broadcast %cst_277 : f32 to vector<16x16xf32>
    %367 = vector.extract_strided_slice %351 {offsets = [0, 0], sizes = [16, 4], strides = [1, 1]} : vector<16x16xf32> to vector<16x4xf32>
    %368 = vector.extract_strided_slice %358 {offsets = [0, 0], sizes = [16, 4], strides = [1, 1]} : vector<16x16xf32> to vector<16x4xf32>
    %369 = vector.extract_strided_slice %365 {offsets = [0, 0], sizes = [16, 4], strides = [1, 1]} : vector<16x16xf32> to vector<16x4xf32>
    %cst_278 = arith.constant dense<0.000000e+00> : vector<16x16xf32>
    %370 = tpu.matmul %367, %368, %cst_278 {dimension_numbers = #tpu.dot_dimension_numbers<[1], [1], [0], [0], [0, 0, 1, 0], [], []>} : vector<16x4xf32>, vector<16x4xf32>, vector<16x16xf32> -> vector<16x16xf32>
    %cst_279 = arith.constant 2.500000e-01 : f32
    %371 = vector.broadcast %cst_279 : f32 to vector<16x16xf32>
    %372 = arith.mulf %370, %371 : vector<16x16xf32>
    %373 = arith.addf %372, %153 : vector<16x16xf32>
    %cst_280 = arith.constant dense<0xFF800000> : vector<16xf32>
    %374 = vector.multi_reduction <maximumf>, %373, %cst_280 [1] : vector<16x16xf32> to vector<16xf32>
    %375 = vector.shape_cast %374 : vector<16xf32> to vector<16x1xf32>
    %376 = vector.broadcast %375 : vector<16x1xf32> to vector<16x16xf32>
    %377 = arith.subf %373, %376 : vector<16x16xf32>
    %378 = math.exp %377 : vector<16x16xf32>
    %cst_281 = arith.constant dense<0.000000e+00> : vector<16xf32>
    %379 = vector.multi_reduction <add>, %378, %cst_281 [1] : vector<16x16xf32> to vector<16xf32>
    %380 = vector.shape_cast %379 : vector<16xf32> to vector<16x1xf32>
    %381 = tpu.reciprocal %380 {approx = true} : vector<16x1xf32> -> vector<16x1xf32>
    %382 = vector.broadcast %381 : vector<16x1xf32> to vector<16x16xf32>
    %383 = arith.mulf %378, %382 : vector<16x16xf32>
    %cst_282 = arith.constant dense<0.000000e+00> : vector<16x4xf32>
    %384 = tpu.matmul %383, %369, %cst_282 {dimension_numbers = #tpu.dot_dimension_numbers<[1], [0], [0], [1], [0, 0, 1, 1], [], []>} : vector<16x16xf32>, vector<16x4xf32>, vector<16x4xf32> -> vector<16x4xf32>
    %c1_283 = arith.constant 1 : index
    %c0_284 = arith.constant 0 : index
    %c0_285 = arith.constant 0 : index
    %c0_286 = arith.constant 0 : index
    %385 = vector.load %arg15[%c1_283, %c0_284, %c0_285, %c0_286] : memref<2x4x4x16xf32, #tpu.memory_space<vmem>>, vector<1x1x4x16xf32>
    %386 = vector.shape_cast %385 : vector<1x1x4x16xf32> to vector<4x16xf32>
    %cst_287 = arith.constant dense<0.000000e+00> : vector<16x16xf32>
    %387 = tpu.matmul %384, %386, %cst_287 {dimension_numbers = #tpu.dot_dimension_numbers<[1], [0], [0], [1], [0, 0, 1, 1], [], []>} : vector<16x4xf32>, vector<4x16xf32>, vector<16x16xf32> -> vector<16x16xf32>
    %388 = arith.addf %366, %387 : vector<16x16xf32>
    %389 = vector.extract_strided_slice %351 {offsets = [0, 4], sizes = [16, 4], strides = [1, 1]} : vector<16x16xf32> to vector<16x4xf32>
    %390 = vector.extract_strided_slice %358 {offsets = [0, 4], sizes = [16, 4], strides = [1, 1]} : vector<16x16xf32> to vector<16x4xf32>
    %391 = vector.extract_strided_slice %365 {offsets = [0, 4], sizes = [16, 4], strides = [1, 1]} : vector<16x16xf32> to vector<16x4xf32>
    %cst_288 = arith.constant dense<0.000000e+00> : vector<16x16xf32>
    %392 = tpu.matmul %389, %390, %cst_288 {dimension_numbers = #tpu.dot_dimension_numbers<[1], [1], [0], [0], [0, 0, 1, 0], [], []>} : vector<16x4xf32>, vector<16x4xf32>, vector<16x16xf32> -> vector<16x16xf32>
    %cst_289 = arith.constant 2.500000e-01 : f32
    %393 = vector.broadcast %cst_289 : f32 to vector<16x16xf32>
    %394 = arith.mulf %392, %393 : vector<16x16xf32>
    %395 = arith.addf %394, %153 : vector<16x16xf32>
    %cst_290 = arith.constant dense<0xFF800000> : vector<16xf32>
    %396 = vector.multi_reduction <maximumf>, %395, %cst_290 [1] : vector<16x16xf32> to vector<16xf32>
    %397 = vector.shape_cast %396 : vector<16xf32> to vector<16x1xf32>
    %398 = vector.broadcast %397 : vector<16x1xf32> to vector<16x16xf32>
    %399 = arith.subf %395, %398 : vector<16x16xf32>
    %400 = math.exp %399 : vector<16x16xf32>
    %cst_291 = arith.constant dense<0.000000e+00> : vector<16xf32>
    %401 = vector.multi_reduction <add>, %400, %cst_291 [1] : vector<16x16xf32> to vector<16xf32>
    %402 = vector.shape_cast %401 : vector<16xf32> to vector<16x1xf32>
    %403 = tpu.reciprocal %402 {approx = true} : vector<16x1xf32> -> vector<16x1xf32>
    %404 = vector.broadcast %403 : vector<16x1xf32> to vector<16x16xf32>
    %405 = arith.mulf %400, %404 : vector<16x16xf32>
    %cst_292 = arith.constant dense<0.000000e+00> : vector<16x4xf32>
    %406 = tpu.matmul %405, %391, %cst_292 {dimension_numbers = #tpu.dot_dimension_numbers<[1], [0], [0], [1], [0, 0, 1, 1], [], []>} : vector<16x16xf32>, vector<16x4xf32>, vector<16x4xf32> -> vector<16x4xf32>
    %c1_293 = arith.constant 1 : index
    %c1_294 = arith.constant 1 : index
    %c0_295 = arith.constant 0 : index
    %c0_296 = arith.constant 0 : index
    %407 = vector.load %arg15[%c1_293, %c1_294, %c0_295, %c0_296] : memref<2x4x4x16xf32, #tpu.memory_space<vmem>>, vector<1x1x4x16xf32>
    %408 = vector.shape_cast %407 : vector<1x1x4x16xf32> to vector<4x16xf32>
    %cst_297 = arith.constant dense<0.000000e+00> : vector<16x16xf32>
    %409 = tpu.matmul %406, %408, %cst_297 {dimension_numbers = #tpu.dot_dimension_numbers<[1], [0], [0], [1], [0, 0, 1, 1], [], []>} : vector<16x4xf32>, vector<4x16xf32>, vector<16x16xf32> -> vector<16x16xf32>
    %410 = arith.addf %388, %409 : vector<16x16xf32>
    %411 = vector.extract_strided_slice %351 {offsets = [0, 8], sizes = [16, 4], strides = [1, 1]} : vector<16x16xf32> to vector<16x4xf32>
    %412 = vector.extract_strided_slice %358 {offsets = [0, 8], sizes = [16, 4], strides = [1, 1]} : vector<16x16xf32> to vector<16x4xf32>
    %413 = vector.extract_strided_slice %365 {offsets = [0, 8], sizes = [16, 4], strides = [1, 1]} : vector<16x16xf32> to vector<16x4xf32>
    %cst_298 = arith.constant dense<0.000000e+00> : vector<16x16xf32>
    %414 = tpu.matmul %411, %412, %cst_298 {dimension_numbers = #tpu.dot_dimension_numbers<[1], [1], [0], [0], [0, 0, 1, 0], [], []>} : vector<16x4xf32>, vector<16x4xf32>, vector<16x16xf32> -> vector<16x16xf32>
    %cst_299 = arith.constant 2.500000e-01 : f32
    %415 = vector.broadcast %cst_299 : f32 to vector<16x16xf32>
    %416 = arith.mulf %414, %415 : vector<16x16xf32>
    %417 = arith.addf %416, %153 : vector<16x16xf32>
    %cst_300 = arith.constant dense<0xFF800000> : vector<16xf32>
    %418 = vector.multi_reduction <maximumf>, %417, %cst_300 [1] : vector<16x16xf32> to vector<16xf32>
    %419 = vector.shape_cast %418 : vector<16xf32> to vector<16x1xf32>
    %420 = vector.broadcast %419 : vector<16x1xf32> to vector<16x16xf32>
    %421 = arith.subf %417, %420 : vector<16x16xf32>
    %422 = math.exp %421 : vector<16x16xf32>
    %cst_301 = arith.constant dense<0.000000e+00> : vector<16xf32>
    %423 = vector.multi_reduction <add>, %422, %cst_301 [1] : vector<16x16xf32> to vector<16xf32>
    %424 = vector.shape_cast %423 : vector<16xf32> to vector<16x1xf32>
    %425 = tpu.reciprocal %424 {approx = true} : vector<16x1xf32> -> vector<16x1xf32>
    %426 = vector.broadcast %425 : vector<16x1xf32> to vector<16x16xf32>
    %427 = arith.mulf %422, %426 : vector<16x16xf32>
    %cst_302 = arith.constant dense<0.000000e+00> : vector<16x4xf32>
    %428 = tpu.matmul %427, %413, %cst_302 {dimension_numbers = #tpu.dot_dimension_numbers<[1], [0], [0], [1], [0, 0, 1, 1], [], []>} : vector<16x16xf32>, vector<16x4xf32>, vector<16x4xf32> -> vector<16x4xf32>
    %c1_303 = arith.constant 1 : index
    %c2_304 = arith.constant 2 : index
    %c0_305 = arith.constant 0 : index
    %c0_306 = arith.constant 0 : index
    %429 = vector.load %arg15[%c1_303, %c2_304, %c0_305, %c0_306] : memref<2x4x4x16xf32, #tpu.memory_space<vmem>>, vector<1x1x4x16xf32>
    %430 = vector.shape_cast %429 : vector<1x1x4x16xf32> to vector<4x16xf32>
    %cst_307 = arith.constant dense<0.000000e+00> : vector<16x16xf32>
    %431 = tpu.matmul %428, %430, %cst_307 {dimension_numbers = #tpu.dot_dimension_numbers<[1], [0], [0], [1], [0, 0, 1, 1], [], []>} : vector<16x4xf32>, vector<4x16xf32>, vector<16x16xf32> -> vector<16x16xf32>
    %432 = arith.addf %410, %431 : vector<16x16xf32>
    %433 = vector.extract_strided_slice %351 {offsets = [0, 12], sizes = [16, 4], strides = [1, 1]} : vector<16x16xf32> to vector<16x4xf32>
    %434 = vector.extract_strided_slice %358 {offsets = [0, 12], sizes = [16, 4], strides = [1, 1]} : vector<16x16xf32> to vector<16x4xf32>
    %435 = vector.extract_strided_slice %365 {offsets = [0, 12], sizes = [16, 4], strides = [1, 1]} : vector<16x16xf32> to vector<16x4xf32>
    %cst_308 = arith.constant dense<0.000000e+00> : vector<16x16xf32>
    %436 = tpu.matmul %433, %434, %cst_308 {dimension_numbers = #tpu.dot_dimension_numbers<[1], [1], [0], [0], [0, 0, 1, 0], [], []>} : vector<16x4xf32>, vector<16x4xf32>, vector<16x16xf32> -> vector<16x16xf32>
    %cst_309 = arith.constant 2.500000e-01 : f32
    %437 = vector.broadcast %cst_309 : f32 to vector<16x16xf32>
    %438 = arith.mulf %436, %437 : vector<16x16xf32>
    %439 = arith.addf %438, %153 : vector<16x16xf32>
    %cst_310 = arith.constant dense<0xFF800000> : vector<16xf32>
    %440 = vector.multi_reduction <maximumf>, %439, %cst_310 [1] : vector<16x16xf32> to vector<16xf32>
    %441 = vector.shape_cast %440 : vector<16xf32> to vector<16x1xf32>
    %442 = vector.broadcast %441 : vector<16x1xf32> to vector<16x16xf32>
    %443 = arith.subf %439, %442 : vector<16x16xf32>
    %444 = math.exp %443 : vector<16x16xf32>
    %cst_311 = arith.constant dense<0.000000e+00> : vector<16xf32>
    %445 = vector.multi_reduction <add>, %444, %cst_311 [1] : vector<16x16xf32> to vector<16xf32>
    %446 = vector.shape_cast %445 : vector<16xf32> to vector<16x1xf32>
    %447 = tpu.reciprocal %446 {approx = true} : vector<16x1xf32> -> vector<16x1xf32>
    %448 = vector.broadcast %447 : vector<16x1xf32> to vector<16x16xf32>
    %449 = arith.mulf %444, %448 : vector<16x16xf32>
    %cst_312 = arith.constant dense<0.000000e+00> : vector<16x4xf32>
    %450 = tpu.matmul %449, %435, %cst_312 {dimension_numbers = #tpu.dot_dimension_numbers<[1], [0], [0], [1], [0, 0, 1, 1], [], []>} : vector<16x16xf32>, vector<16x4xf32>, vector<16x4xf32> -> vector<16x4xf32>
    %c1_313 = arith.constant 1 : index
    %c3_314 = arith.constant 3 : index
    %c0_315 = arith.constant 0 : index
    %c0_316 = arith.constant 0 : index
    %451 = vector.load %arg15[%c1_313, %c3_314, %c0_315, %c0_316] : memref<2x4x4x16xf32, #tpu.memory_space<vmem>>, vector<1x1x4x16xf32>
    %452 = vector.shape_cast %451 : vector<1x1x4x16xf32> to vector<4x16xf32>
    %cst_317 = arith.constant dense<0.000000e+00> : vector<16x16xf32>
    %453 = tpu.matmul %450, %452, %cst_317 {dimension_numbers = #tpu.dot_dimension_numbers<[1], [0], [0], [1], [0, 0, 1, 1], [], []>} : vector<16x4xf32>, vector<4x16xf32>, vector<16x16xf32> -> vector<16x16xf32>
    %454 = arith.addf %432, %453 : vector<16x16xf32>
    %c1_318 = arith.constant 1 : index
    %c0_319 = arith.constant 0 : index
    %c0_320 = arith.constant 0 : index
    %455 = vector.load %arg16[%c1_318, %c0_319, %c0_320] : memref<2x1x16xf32, #tpu.memory_space<vmem>>, vector<1x1x16xf32>
    %456 = vector.shape_cast %455 : vector<1x1x16xf32> to vector<1x16xf32>
    %457 = vector.broadcast %456 : vector<1x16xf32> to vector<16x16xf32>
    %458 = arith.addf %454, %457 : vector<16x16xf32>
    %459 = arith.addf %458, %344 : vector<16x16xf32>
    %c1_321 = arith.constant 1 : index
    %c0_322 = arith.constant 0 : index
    %c0_323 = arith.constant 0 : index
    %460 = vector.load %arg17[%c1_321, %c0_322, %c0_323] : memref<2x1x16xf32, #tpu.memory_space<vmem>>, vector<1x1x16xf32>
    %461 = vector.shape_cast %460 : vector<1x1x16xf32> to vector<1x16xf32>
    %c1_324 = arith.constant 1 : index
    %c0_325 = arith.constant 0 : index
    %c0_326 = arith.constant 0 : index
    %462 = vector.load %arg18[%c1_324, %c0_325, %c0_326] : memref<2x1x16xf32, #tpu.memory_space<vmem>>, vector<1x1x16xf32>
    %463 = vector.shape_cast %462 : vector<1x1x16xf32> to vector<1x16xf32>
    %cst_327 = arith.constant dense<0.000000e+00> : vector<16xf32>
    %464 = vector.multi_reduction <add>, %459, %cst_327 [1] : vector<16x16xf32> to vector<16xf32>
    %465 = vector.shape_cast %464 : vector<16xf32> to vector<16x1xf32>
    %cst_328 = arith.constant 1.600000e+01 : f32
    %466 = vector.broadcast %cst_328 : f32 to vector<16x1xf32>
    %467 = arith.divf %465, %466 : vector<16x1xf32>
    %468 = vector.broadcast %467 : vector<16x1xf32> to vector<16x16xf32>
    %469 = arith.subf %459, %468 : vector<16x16xf32>
    %470 = arith.mulf %469, %469 : vector<16x16xf32>
    %cst_329 = arith.constant dense<0.000000e+00> : vector<16xf32>
    %471 = vector.multi_reduction <add>, %470, %cst_329 [1] : vector<16x16xf32> to vector<16xf32>
    %472 = vector.shape_cast %471 : vector<16xf32> to vector<16x1xf32>
    %cst_330 = arith.constant 1.600000e+01 : f32
    %473 = vector.broadcast %cst_330 : f32 to vector<16x1xf32>
    %474 = arith.divf %472, %473 : vector<16x1xf32>
    %cst_331 = arith.constant 9.99999974E-6 : f32
    %475 = vector.broadcast %cst_331 : f32 to vector<16x1xf32>
    %476 = arith.addf %474, %475 : vector<16x1xf32>
    %477 = math.rsqrt %476 : vector<16x1xf32>
    %478 = vector.broadcast %477 : vector<16x1xf32> to vector<16x16xf32>
    %479 = arith.mulf %469, %478 : vector<16x16xf32>
    %480 = vector.broadcast %461 : vector<1x16xf32> to vector<16x16xf32>
    %481 = arith.mulf %479, %480 : vector<16x16xf32>
    %482 = vector.broadcast %463 : vector<1x16xf32> to vector<16x16xf32>
    %483 = arith.addf %481, %482 : vector<16x16xf32>
    %c1_332 = arith.constant 1 : index
    %c0_333 = arith.constant 0 : index
    %c0_334 = arith.constant 0 : index
    %484 = vector.load %arg19[%c1_332, %c0_333, %c0_334] : memref<2x16x64xf32, #tpu.memory_space<vmem>>, vector<1x16x64xf32>
    %485 = vector.shape_cast %484 : vector<1x16x64xf32> to vector<16x64xf32>
    %cst_335 = arith.constant dense<0.000000e+00> : vector<16x64xf32>
    %486 = tpu.matmul %483, %485, %cst_335 {dimension_numbers = #tpu.dot_dimension_numbers<[1], [0], [0], [1], [0, 0, 1, 1], [], []>} : vector<16x16xf32>, vector<16x64xf32>, vector<16x64xf32> -> vector<16x64xf32>
    %c1_336 = arith.constant 1 : index
    %c0_337 = arith.constant 0 : index
    %c0_338 = arith.constant 0 : index
    %487 = vector.load %arg20[%c1_336, %c0_337, %c0_338] : memref<2x1x64xf32, #tpu.memory_space<vmem>>, vector<1x1x64xf32>
    %488 = vector.shape_cast %487 : vector<1x1x64xf32> to vector<1x64xf32>
    %489 = vector.broadcast %488 : vector<1x64xf32> to vector<16x64xf32>
    %490 = arith.addf %486, %489 : vector<16x64xf32>
    %cst_339 = arith.constant 5.000000e-01 : f32
    %491 = vector.broadcast %cst_339 : f32 to vector<16x64xf32>
    %492 = arith.mulf %491, %490 : vector<16x64xf32>
    %cst_340 = arith.constant 4.471500e-02 : f32
    %493 = vector.broadcast %cst_340 : f32 to vector<16x64xf32>
    %494 = arith.mulf %493, %490 : vector<16x64xf32>
    %495 = arith.mulf %494, %490 : vector<16x64xf32>
    %496 = arith.mulf %495, %490 : vector<16x64xf32>
    %497 = arith.addf %490, %496 : vector<16x64xf32>
    %cst_341 = arith.constant 0.797884583 : f32
    %498 = vector.broadcast %cst_341 : f32 to vector<16x64xf32>
    %499 = arith.mulf %498, %497 : vector<16x64xf32>
    %500 = math.tanh %499 : vector<16x64xf32>
    %cst_342 = arith.constant 1.000000e+00 : f32
    %501 = vector.broadcast %cst_342 : f32 to vector<16x64xf32>
    %502 = arith.addf %501, %500 : vector<16x64xf32>
    %503 = arith.mulf %492, %502 : vector<16x64xf32>
    %c1_343 = arith.constant 1 : index
    %c0_344 = arith.constant 0 : index
    %c0_345 = arith.constant 0 : index
    %504 = vector.load %arg21[%c1_343, %c0_344, %c0_345] : memref<2x64x16xf32, #tpu.memory_space<vmem>>, vector<1x64x16xf32>
    %505 = vector.shape_cast %504 : vector<1x64x16xf32> to vector<64x16xf32>
    %cst_346 = arith.constant dense<0.000000e+00> : vector<16x16xf32>
    %506 = tpu.matmul %503, %505, %cst_346 {dimension_numbers = #tpu.dot_dimension_numbers<[1], [0], [0], [1], [0, 0, 1, 1], [], []>} : vector<16x64xf32>, vector<64x16xf32>, vector<16x16xf32> -> vector<16x16xf32>
    %c1_347 = arith.constant 1 : index
    %c0_348 = arith.constant 0 : index
    %c0_349 = arith.constant 0 : index
    %507 = vector.load %arg22[%c1_347, %c0_348, %c0_349] : memref<2x1x16xf32, #tpu.memory_space<vmem>>, vector<1x1x16xf32>
    %508 = vector.shape_cast %507 : vector<1x1x16xf32> to vector<1x16xf32>
    %509 = vector.broadcast %508 : vector<1x16xf32> to vector<16x16xf32>
    %510 = arith.addf %506, %509 : vector<16x16xf32>
    %511 = arith.addf %510, %483 : vector<16x16xf32>
    %c1_350 = arith.constant 1 : index
    %c0_351 = arith.constant 0 : index
    %c0_352 = arith.constant 0 : index
    %512 = vector.load %arg23[%c1_350, %c0_351, %c0_352] : memref<2x1x16xf32, #tpu.memory_space<vmem>>, vector<1x1x16xf32>
    %513 = vector.shape_cast %512 : vector<1x1x16xf32> to vector<1x16xf32>
    %c1_353 = arith.constant 1 : index
    %c0_354 = arith.constant 0 : index
    %c0_355 = arith.constant 0 : index
    %514 = vector.load %arg24[%c1_353, %c0_354, %c0_355] : memref<2x1x16xf32, #tpu.memory_space<vmem>>, vector<1x1x16xf32>
    %515 = vector.shape_cast %514 : vector<1x1x16xf32> to vector<1x16xf32>
    %cst_356 = arith.constant dense<0.000000e+00> : vector<16xf32>
    %516 = vector.multi_reduction <add>, %511, %cst_356 [1] : vector<16x16xf32> to vector<16xf32>
    %517 = vector.shape_cast %516 : vector<16xf32> to vector<16x1xf32>
    %cst_357 = arith.constant 1.600000e+01 : f32
    %518 = vector.broadcast %cst_357 : f32 to vector<16x1xf32>
    %519 = arith.divf %517, %518 : vector<16x1xf32>
    %520 = vector.broadcast %519 : vector<16x1xf32> to vector<16x16xf32>
    %521 = arith.subf %511, %520 : vector<16x16xf32>
    %522 = arith.mulf %521, %521 : vector<16x16xf32>
    %cst_358 = arith.constant dense<0.000000e+00> : vector<16xf32>
    %523 = vector.multi_reduction <add>, %522, %cst_358 [1] : vector<16x16xf32> to vector<16xf32>
    %524 = vector.shape_cast %523 : vector<16xf32> to vector<16x1xf32>
    %cst_359 = arith.constant 1.600000e+01 : f32
    %525 = vector.broadcast %cst_359 : f32 to vector<16x1xf32>
    %526 = arith.divf %524, %525 : vector<16x1xf32>
    %cst_360 = arith.constant 9.99999974E-6 : f32
    %527 = vector.broadcast %cst_360 : f32 to vector<16x1xf32>
    %528 = arith.addf %526, %527 : vector<16x1xf32>
    %529 = math.rsqrt %528 : vector<16x1xf32>
    %530 = vector.broadcast %529 : vector<16x1xf32> to vector<16x16xf32>
    %531 = arith.mulf %521, %530 : vector<16x16xf32>
    %532 = vector.broadcast %513 : vector<1x16xf32> to vector<16x16xf32>
    %533 = arith.mulf %531, %532 : vector<16x16xf32>
    %534 = vector.broadcast %515 : vector<1x16xf32> to vector<16x16xf32>
    %535 = arith.addf %533, %534 : vector<16x16xf32>
    %536 = arith.addf %152, %535 : vector<16x16xf32>
    %c0_361 = arith.constant 0 : index
    %c0_362 = arith.constant 0 : index
    %537 = vector.load %arg25[%c0_361, %c0_362] : memref<16x32xf32, #tpu.memory_space<vmem>>, vector<16x32xf32>
    %cst_363 = arith.constant dense<0.000000e+00> : vector<16x32xf32>
    %538 = tpu.matmul %536, %537, %cst_363 {dimension_numbers = #tpu.dot_dimension_numbers<[1], [0], [0], [1], [0, 0, 1, 1], [], []>} : vector<16x16xf32>, vector<16x32xf32>, vector<16x32xf32> -> vector<16x32xf32>
    %c0_364 = arith.constant 0 : index
    %c0_365 = arith.constant 0 : index
    %539 = vector.load %arg26[%c0_364, %c0_365] : memref<16x32xf32, #tpu.memory_space<vmem>>, vector<16x32xf32>
    %540 = arith.mulf %538, %539 : vector<16x32xf32>
    %c0_366 = arith.constant 0 : index
    %c0_367 = arith.constant 0 : index
    %541 = vector.load %arg27[%c0_366, %c0_367] : memref<32x4xf32, #tpu.memory_space<vmem>>, vector<32x4xf32>
    %cst_368 = arith.constant dense<0.000000e+00> : vector<16x4xf32>
    %542 = tpu.matmul %540, %541, %cst_368 {dimension_numbers = #tpu.dot_dimension_numbers<[1], [0], [0], [1], [0, 0, 1, 1], [], []>} : vector<16x32xf32>, vector<32x4xf32>, vector<16x4xf32> -> vector<16x4xf32>
    %c0_369 = arith.constant 0 : index
    %c0_370 = arith.constant 0 : index
    %543 = vector.load %arg28[%c0_369, %c0_370] : memref<2x16xf32, #tpu.memory_space<vmem>>, vector<2x16xf32>
    %cst_371 = arith.constant dense<0.000000e+00> : vector<2x4xf32>
    %544 = tpu.matmul %543, %542, %cst_371 {dimension_numbers = #tpu.dot_dimension_numbers<[1], [0], [0], [1], [0, 0, 1, 1], [], []>} : vector<2x16xf32>, vector<16x4xf32>, vector<2x4xf32> -> vector<2x4xf32>
    %c0_372 = arith.constant 0 : index
    %c0_373 = arith.constant 0 : index
    %545 = vector.load %arg29[%c0_372, %c0_373] : memref<1x4xf32, #tpu.memory_space<vmem>>, vector<1x4xf32>
    %546 = vector.broadcast %545 : vector<1x4xf32> to vector<2x4xf32>
    %547 = arith.addf %544, %546 : vector<2x4xf32>
    %548 = vector.extract_strided_slice %536 {offsets = [0, 0], sizes = [8, 16], strides = [1, 1]} : vector<16x16xf32> to vector<8x16xf32>
    %c0_374 = arith.constant 0 : index
    %c0_375 = arith.constant 0 : index
    %c0_376 = arith.constant 0 : index
    %549 = vector.load %arg30[%c0_374, %c0_375, %c0_376] : memref<2x8x16xf32, #tpu.memory_space<vmem>>, vector<1x8x16xf32>
    %550 = vector.shape_cast %549 : vector<1x8x16xf32> to vector<8x16xf32>
    %551 = vector.shape_cast %548 : vector<8x16xf32> to vector<1x8x16xf32>
    tpu.vector_store %arg30[%c0_374, %c0_375, %c0_376], %551 {strides = array<i32>} : memref<2x8x16xf32, #tpu.memory_space<vmem>>, vector<1x8x16xf32>,
    %552 = vector.extract_strided_slice %536 {offsets = [8, 0], sizes = [8, 16], strides = [1, 1]} : vector<16x16xf32> to vector<8x16xf32>
    %c1_377 = arith.constant 1 : index
    %c0_378 = arith.constant 0 : index
    %c0_379 = arith.constant 0 : index
    %553 = vector.load %arg30[%c1_377, %c0_378, %c0_379] : memref<2x8x16xf32, #tpu.memory_space<vmem>>, vector<1x8x16xf32>
    %554 = vector.shape_cast %553 : vector<1x8x16xf32> to vector<8x16xf32>
    %555 = vector.shape_cast %552 : vector<8x16xf32> to vector<1x8x16xf32>
    tpu.vector_store %arg30[%c1_377, %c0_378, %c0_379], %555 {strides = array<i32>} : memref<2x8x16xf32, #tpu.memory_space<vmem>>, vector<1x8x16xf32>,
    %c0_380 = arith.constant 0 : index
    %c0_381 = arith.constant 0 : index
    %556 = vector.load %arg31[%c0_380, %c0_381] : memref<2x4xf32, #tpu.memory_space<vmem>>, vector<2x4xf32>
    tpu.vector_store %arg31[%c0_380, %c0_381], %547 {strides = array<i32>} : memref<2x4xf32, #tpu.memory_space<vmem>>, vector<2x4xf32>,
    return
  }
}

</mosaic_0001>

<llo_original>
// kernel: eeg_transformer_forward.1
$region0: #{eeg_transformer_forward.1}
  #allocation0 [shape = 'u32[]', space=smem, size = 0x4, offset = 0x4, fixed_abs, tag = 'smem constant byte address 0x4 - core index']
  #allocation1 [shape = 'u32[144,128]{1,0:T(1,128)}', space=vmem, size = 0x12000, scoped, tag = 'internal scratch']
  %s0 = inlined_call_operand.smem [shape: u32[32], index: -1, kind: input, shape index: {}]
  %s1 = sld [smem:[%s0]]
  %s2 = scalar_lea.smem %s0, 1
  %s3 = sld [smem:[%s2]]
  %s4 = scalar_lea.smem %s0, 2
  %s5 = sld [smem:[%s4]]
  %s6 = scalar_lea.smem %s0, 3
  %s7 = sld [smem:[%s6]]
  %s8 = scalar_lea.smem %s0, 4
  %s9 = sld [smem:[%s8]]
  %s10 = scalar_lea.smem %s0, 5
  %s11 = sld [smem:[%s10]]
  %s12 = scalar_lea.smem %s0, 6
  %s13 = sld [smem:[%s12]]
  %s14 = scalar_lea.smem %s0, 7
  %s15 = sld [smem:[%s14]]
  %s16 = scalar_lea.smem %s0, 8
  %s17 = sld [smem:[%s16]]
  %s18 = scalar_lea.smem %s0, 9
  %s19 = sld [smem:[%s18]]
  %s20 = scalar_lea.smem %s0, 10
  %s21 = sld [smem:[%s20]]
  %s22 = scalar_lea.smem %s0, 11
  %s23 = sld [smem:[%s22]]
  %s24 = scalar_lea.smem %s0, 12
  %s25 = sld [smem:[%s24]]
  %s26 = scalar_lea.smem %s0, 13
  %s27 = sld [smem:[%s26]]
  %s28 = scalar_lea.smem %s0, 14
  %s29 = sld [smem:[%s28]]
  %s30 = scalar_lea.smem %s0, 15
  %s31 = sld [smem:[%s30]]
  %s32 = scalar_lea.smem %s0, 16
  %s33 = sld [smem:[%s32]]
  %s34 = scalar_lea.smem %s0, 17
  %s35 = sld [smem:[%s34]]
  %s36 = scalar_lea.smem %s0, 18
  %s37 = sld [smem:[%s36]]
  %s38 = scalar_lea.smem %s0, 19
  %s39 = sld [smem:[%s38]]
  %s40 = scalar_lea.smem %s0, 20
  %s41 = sld [smem:[%s40]]
  %s42 = scalar_lea.smem %s0, 21
  %s43 = sld [smem:[%s42]]
  %s44 = scalar_lea.smem %s0, 22
  %s45 = sld [smem:[%s44]]
  %s46 = scalar_lea.smem %s0, 23
  %s47 = sld [smem:[%s46]]
  %s48 = scalar_lea.smem %s0, 24
  %s49 = sld [smem:[%s48]]
  %s50 = scalar_lea.smem %s0, 25
  %s51 = sld [smem:[%s50]]
  %s52 = scalar_lea.smem %s0, 26
  %s53 = sld [smem:[%s52]]
  %s54 = scalar_lea.smem %s0, 27
  %s55 = sld [smem:[%s54]]
  %s56 = scalar_lea.smem %s0, 28
  %s57 = sld [smem:[%s56]]
  %s58 = scalar_lea.smem %s0, 29
  %s59 = sld [smem:[%s58]]
  %s60 = scalar_lea.smem %s0, 30
  %s61 = sld [smem:[%s60]]
  %s62 = scalar_lea.smem %s0, 31
  %s63 = sld [smem:[%s62]]
  %64 = xla_tuple %s61, %s63
  %s65 = sld [smem:[#allocation0]]
  $region138: #{eeg_transformer_forward.1} parent=0
    _
  %s67 = ssub.s32 1, %s65
  %s68 = scalar_select 0, %s67, %s65
  $region1: #{eeg_transformer_forward.1} parent=0
    #allocation2 [shape = 'u8[8192]{0}', space=vmem, size = 0x2000, scoped, tag = 'output window, operand 0, single buffered']
    #allocation3 [shape = 's32[1]{0}', space=sflag, size = 0x4, scoped, tag = 'scoped memory for eeg_transformer_forward.1']
    #allocation4 [shape = 'u8[1024]{0}', space=vmem, size = 0x400, scoped, tag = 'output window, operand 1, single buffered']
    #allocation5 [shape = 's32[1]{0}', space=sflag, size = 0x4, scoped, tag = 'scoped memory for eeg_transformer_forward.1']
    %69 = vsyncpa [#allocation3], 0
    %70 = vsyncpa [#allocation5], 0
    // Predicated region
    $region2: #{eeg_transformer_forward.1} parent=1 // pred_check
      _
    $region3: #{eeg_transformer_forward.1} parent=1 // pred_check_branch
      %72 = sbr.rel (0) target = $region5
    $region4: #{eeg_transformer_forward.1} parent=1 // pred_region
      _
    $region5: #{eeg_transformer_forward.1} parent=1 // pred_fallthru
      _
    // Predicated region
    $region6: #{eeg_transformer_forward.1} parent=1 // pred_check
      _
    $region7: #{eeg_transformer_forward.1} parent=1 // pred_check_branch
      %74 = sbr.rel (0) target = $region9
    $region8: #{eeg_transformer_forward.1} parent=1 // pred_region
      _
    $region9: #{eeg_transformer_forward.1} parent=1 // pred_fallthru
      _
    // Predicated region
    $region10: #{eeg_transformer_forward.1} parent=1 // pred_check
      _
    $region11: #{eeg_transformer_forward.1} parent=1 // pred_check_branch
      %76 = sbr.rel (0) target = $region13
    $region12: #{eeg_transformer_forward.1} parent=1 // pred_region
      _
    $region13: #{eeg_transformer_forward.1} parent=1 // pred_fallthru
      _
    // Predicated region
    $region14: #{eeg_transformer_forward.1} parent=1 // pred_check
      _
    $region15: #{eeg_transformer_forward.1} parent=1 // pred_check_branch
      %78 = sbr.rel (0) target = $region17
    $region16: #{eeg_transformer_forward.1} parent=1 // pred_region
      _
    $region17: #{eeg_transformer_forward.1} parent=1 // pred_fallthru
      _
    // Predicated region
    $region18: #{eeg_transformer_forward.1} parent=1 // pred_check
      _
    $region19: #{eeg_transformer_forward.1} parent=1 // pred_check_branch
      %80 = sbr.rel (0) target = $region21
    $region20: #{eeg_transformer_forward.1} parent=1 // pred_region
      _
    $region21: #{eeg_transformer_forward.1} parent=1 // pred_fallthru
      _
    // Predicated region
    $region22: #{eeg_transformer_forward.1} parent=1 // pred_check
      _
    $region23: #{eeg_transformer_forward.1} parent=1 // pred_check_branch
      %82 = sbr.rel (0) target = $region25
    $region24: #{eeg_transformer_forward.1} parent=1 // pred_region
      _
    $region25: #{eeg_transformer_forward.1} parent=1 // pred_fallthru
      _
    // Predicated region
    $region26: #{eeg_transformer_forward.1} parent=1 // pred_check
      _
    $region27: #{eeg_transformer_forward.1} parent=1 // pred_check_branch
      %84 = sbr.rel (0) target = $region29
    $region28: #{eeg_transformer_forward.1} parent=1 // pred_region
      _
    $region29: #{eeg_transformer_forward.1} parent=1 // pred_fallthru
      _
    // Predicated region
    $region30: #{eeg_transformer_forward.1} parent=1 // pred_check
      _
    $region31: #{eeg_transformer_forward.1} parent=1 // pred_check_branch
      %86 = sbr.rel (0) target = $region33
    $region32: #{eeg_transformer_forward.1} parent=1 // pred_region
      _
    $region33: #{eeg_transformer_forward.1} parent=1 // pred_fallthru
      _
    // Predicated region
    $region34: #{eeg_transformer_forward.1} parent=1 // pred_check
      _
    $region35: #{eeg_transformer_forward.1} parent=1 // pred_check_branch
      %88 = sbr.rel (0) target = $region37
    $region36: #{eeg_transformer_forward.1} parent=1 // pred_region
      _
    $region37: #{eeg_transformer_forward.1} parent=1 // pred_fallthru
      _
    // Predicated region
    $region38: #{eeg_transformer_forward.1} parent=1 // pred_check
      _
    $region39: #{eeg_transformer_forward.1} parent=1 // pred_check_branch
      %90 = sbr.rel (0) target = $region41
    $region40: #{eeg_transformer_forward.1} parent=1 // pred_region
      _
    $region41: #{eeg_transformer_forward.1} parent=1 // pred_fallthru
      _
    // Predicated region
    $region42: #{eeg_transformer_forward.1} parent=1 // pred_check
      _
    $region43: #{eeg_transformer_forward.1} parent=1 // pred_check_branch
      %92 = sbr.rel (0) target = $region45
    $region44: #{eeg_transformer_forward.1} parent=1 // pred_region
      _
    $region45: #{eeg_transformer_forward.1} parent=1 // pred_fallthru
      _
    // Predicated region
    $region46: #{eeg_transformer_forward.1} parent=1 // pred_check
      _
    $region47: #{eeg_transformer_forward.1} parent=1 // pred_check_branch
      %94 = sbr.rel (0) target = $region49
    $region48: #{eeg_transformer_forward.1} parent=1 // pred_region
      _
    $region49: #{eeg_transformer_forward.1} parent=1 // pred_fallthru
      _
    // Predicated region
    $region50: #{eeg_transformer_forward.1} parent=1 // pred_check
      _
    $region51: #{eeg_transformer_forward.1} parent=1 // pred_check_branch
      %96 = sbr.rel (0) target = $region53
    $region52: #{eeg_transformer_forward.1} parent=1 // pred_region
      _
    $region53: #{eeg_transformer_forward.1} parent=1 // pred_fallthru
      _
    // Predicated region
    $region54: #{eeg_transformer_forward.1} parent=1 // pred_check
      _
    $region55: #{eeg_transformer_forward.1} parent=1 // pred_check_branch
      %98 = sbr.rel (0) target = $region57
    $region56: #{eeg_transformer_forward.1} parent=1 // pred_region
      _
    $region57: #{eeg_transformer_forward.1} parent=1 // pred_fallthru
      _
    // Predicated region
    $region58: #{eeg_transformer_forward.1} parent=1 // pred_check
      _
    $region59: #{eeg_transformer_forward.1} parent=1 // pred_check_branch
      %100 = sbr.rel (0) target = $region61
    $region60: #{eeg_transformer_forward.1} parent=1 // pred_region
      _
    $region61: #{eeg_transformer_forward.1} parent=1 // pred_fallthru
      _
    // Predicated region
    $region62: #{eeg_transformer_forward.1} parent=1 // pred_check
      _
    $region63: #{eeg_transformer_forward.1} parent=1 // pred_check_branch
      %102 = sbr.rel (0) target = $region65
    $region64: #{eeg_transformer_forward.1} parent=1 // pred_region
      _
    $region65: #{eeg_transformer_forward.1} parent=1 // pred_fallthru
      _
    // Predicated region
    $region66: #{eeg_transformer_forward.1} parent=1 // pred_check
      _
    $region67: #{eeg_transformer_forward.1} parent=1 // pred_check_branch
      %104 = sbr.rel (0) target = $region69
    $region68: #{eeg_transformer_forward.1} parent=1 // pred_region
      _
    $region69: #{eeg_transformer_forward.1} parent=1 // pred_fallthru
      _
    // Predicated region
    $region70: #{eeg_transformer_forward.1} parent=1 // pred_check
      _
    $region71: #{eeg_transformer_forward.1} parent=1 // pred_check_branch
      %106 = sbr.rel (0) target = $region73
    $region72: #{eeg_transformer_forward.1} parent=1 // pred_region
      _
    $region73: #{eeg_transformer_forward.1} parent=1 // pred_fallthru
      _
    // Predicated region
    $region74: #{eeg_transformer_forward.1} parent=1 // pred_check
      _
    $region75: #{eeg_transformer_forward.1} parent=1 // pred_check_branch
      %108 = sbr.rel (0) target = $region77
    $region76: #{eeg_transformer_forward.1} parent=1 // pred_region
      _
    $region77: #{eeg_transformer_forward.1} parent=1 // pred_fallthru
      _
    // Predicated region
    $region78: #{eeg_transformer_forward.1} parent=1 // pred_check
      _
    $region79: #{eeg_transformer_forward.1} parent=1 // pred_check_branch
      %110 = sbr.rel (0) target = $region81
    $region80: #{eeg_transformer_forward.1} parent=1 // pred_region
      _
    $region81: #{eeg_transformer_forward.1} parent=1 // pred_fallthru
      _
    // Predicated region
    $region82: #{eeg_transformer_forward.1} parent=1 // pred_check
      _
    $region83: #{eeg_transformer_forward.1} parent=1 // pred_check_branch
      %112 = sbr.rel (0) target = $region85
    $region84: #{eeg_transformer_forward.1} parent=1 // pred_region
      _
    $region85: #{eeg_transformer_forward.1} parent=1 // pred_fallthru
      _
    // Predicated region
    $region86: #{eeg_transformer_forward.1} parent=1 // pred_check
      _
    $region87: #{eeg_transformer_forward.1} parent=1 // pred_check_branch
      %114 = sbr.rel (0) target = $region89
    $region88: #{eeg_transformer_forward.1} parent=1 // pred_region
      _
    $region89: #{eeg_transformer_forward.1} parent=1 // pred_fallthru
      _
    // Predicated region
    $region90: #{eeg_transformer_forward.1} parent=1 // pred_check
      _
    $region91: #{eeg_transformer_forward.1} parent=1 // pred_check_branch
      %116 = sbr.rel (0) target = $region93
    $region92: #{eeg_transformer_forward.1} parent=1 // pred_region
      _
    $region93: #{eeg_transformer_forward.1} parent=1 // pred_fallthru
      _
    // Predicated region
    $region94: #{eeg_transformer_forward.1} parent=1 // pred_check
      _
    $region95: #{eeg_transformer_forward.1} parent=1 // pred_check_branch
      %118 = sbr.rel (0) target = $region97
    $region96: #{eeg_transformer_forward.1} parent=1 // pred_region
      _
    $region97: #{eeg_transformer_forward.1} parent=1 // pred_fallthru
      _
    // Predicated region
    $region98: #{eeg_transformer_forward.1} parent=1 // pred_check
      _
    $region99: #{eeg_transformer_forward.1} parent=1 // pred_check_branch
      %120 = sbr.rel (0) target = $region101
    $region100: #{eeg_transformer_forward.1} parent=1 // pred_region
      _
    $region101: #{eeg_transformer_forward.1} parent=1 // pred_fallthru
      _
    // Predicated region
    $region102: #{eeg_transformer_forward.1} parent=1 // pred_check
      _
    $region103: #{eeg_transformer_forward.1} parent=1 // pred_check_branch
      %122 = sbr.rel (0) target = $region105
    $region104: #{eeg_transformer_forward.1} parent=1 // pred_region
      _
    $region105: #{eeg_transformer_forward.1} parent=1 // pred_fallthru
      _
    // Predicated region
    $region106: #{eeg_transformer_forward.1} parent=1 // pred_check
      _
    $region107: #{eeg_transformer_forward.1} parent=1 // pred_check_branch
      %124 = sbr.rel (0) target = $region109
    $region108: #{eeg_transformer_forward.1} parent=1 // pred_region
      _
    $region109: #{eeg_transformer_forward.1} parent=1 // pred_fallthru
      _
    // Predicated region
    $region110: #{eeg_transformer_forward.1} parent=1 // pred_check
      _
    $region111: #{eeg_transformer_forward.1} parent=1 // pred_check_branch
      %126 = sbr.rel (0) target = $region113
    $region112: #{eeg_transformer_forward.1} parent=1 // pred_region
      _
    $region113: #{eeg_transformer_forward.1} parent=1 // pred_fallthru
      _
    // Predicated region
    $region114: #{eeg_transformer_forward.1} parent=1 // pred_check
      _
    $region115: #{eeg_transformer_forward.1} parent=1 // pred_check_branch
      %128 = sbr.rel (0) target = $region117
    $region116: #{eeg_transformer_forward.1} parent=1 // pred_region
      _
    $region117: #{eeg_transformer_forward.1} parent=1 // pred_fallthru
      _
    // Predicated region
    $region118: #{eeg_transformer_forward.1} parent=1 // pred_check
      _
    $region119: #{eeg_transformer_forward.1} parent=1 // pred_check_branch
      %130 = sbr.rel (0) target = $region121
    $region120: #{eeg_transformer_forward.1} parent=1 // pred_region
      _
    $region121: #{eeg_transformer_forward.1} parent=1 // pred_fallthru
      _
    %v131 = vld [vmem:[%s3] sm:$0xff]
    %v132 = vld [vmem:[%s3 + $0x8] sm:$0xff]
    %v133 = vld [vmem:[%s1] sm:$0xff]
    %v134 = vld [vmem:[%s1 + $0x8] sm:$0xff]
    %v135 = vld [vmem:[%s1 + $0x10] sm:$0xff]
    %v136 = vld [vmem:[%s1 + $0x18] sm:$0xff]
    %v137 = vld [vmem:[%s1 + $0x20] sm:$0xff]
    %v138 = vld [vmem:[%s1 + $0x28] sm:$0xff]
    %v139 = vld [vmem:[%s1 + $0x30] sm:$0xff]
    %v140 = vld [vmem:[%s1 + $0x38] sm:$0xff]
    %v141 = vld [vmem:[%s1 + $0x40] sm:$0xff]
    %v142 = vld [vmem:[%s1 + $0x48] sm:$0xff]
    %v143 = vld [vmem:[%s1 + $0x50] sm:$0xff]
    %v144 = vld [vmem:[%s1 + $0x58] sm:$0xff]
    %v145 = vld [vmem:[%s1 + $0x60] sm:$0xff]
    %v146 = vld [vmem:[%s1 + $0x68] sm:$0xff]
    %v147 = vld [vmem:[%s1 + $0x70] sm:$0xff]
    %v148 = vld [vmem:[%s1 + $0x78] sm:$0xff]
    %v149 = vld [vmem:[%s5] sm:$0xff]
    %v150 = vld [vmem:[%s5 + $0x8] sm:$0xff]
    %152 = vset.pattern.permute.xlu0 0
    %153 = vperm.xlu0 %152, %v149
    %v154 = vpop.permute.xlu0 %153
    %157 = vset.pattern.permute.xlu0 0
    %158 = vperm.xlu0 %157, %v150
    %v159 = vpop.permute.xlu0 %158
    %vm161 = vcmask 523264
    %v163 = vsel %vm161, %v131, 0
    %v166 = vsel %vm161, %v132, 0
    %168 = vmatprep.subr.mxu0 0.0
    %169 = vmatpush1.msra.mxu0 0.0
    %170 = vmatprep.subr.mxu0 0.0
    %171 = vmatpush1.msra.mxu0 0.0
    %172 = vmatprep.subr.mxu0 0.0
    %173 = vmatpush1.msra.mxu0 0.0
    %174 = vmatprep.subr.mxu0 0.0
    %175 = vmatpush1.msra.mxu0 0.0
    %176 = vmatprep.subr.mxu0 0.0
    %177 = vmatpush1.msra.mxu0 0.0
    %178 = vmatprep.subr.mxu0 0.0
    %179 = vmatpush1.msra.mxu0 0.0
    %180 = vmatprep.subr.mxu0 0.0
    %181 = vmatpush1.msra.mxu0 0.0
    %182 = vmatprep.subr.mxu0 0.0
    %183 = vmatpush1.msra.mxu0 0.0
    %184 = vmatprep.subr.mxu0 %v148
    %185 = vmatpush1.msra.mxu0 %v147
    %186 = vmatprep.subr.mxu0 %v146
    %187 = vmatpush1.msra.mxu0 %v145
    %188 = vmatprep.subr.mxu0 %v144
    %189 = vmatpush1.msra.mxu0 %v143
    %190 = vmatprep.subr.mxu0 %v142
    %191 = vmatpush1.msra.mxu0 %v141
    %192 = vmatprep.subr.mxu0 %v140
    %193 = vmatpush1.msra.mxu0 %v139
    %194 = vmatprep.subr.mxu0 %v138
    %195 = vmatpush1.msra.mxu0 %v137
    %196 = vmatprep.subr.mxu0 %v136
    %197 = vmatpush1.msra.mxu0 %v135
    %198 = vmatprep.subr.mxu0 %v134
    %199 = vmatpush1.msra.mxu0 %v133
    %200 = vmatprep.subr.mxu0 0.0
    %201 = vmatpush2.msra.mxu0 0.0
    %202 = vmatprep.subr.mxu0 0.0
    %203 = vmatpush2.msra.mxu0 0.0
    %204 = vmatprep.subr.mxu0 0.0
    %205 = vmatpush2.msra.mxu0 0.0
    %206 = vmatprep.subr.mxu0 0.0
    %207 = vmatpush2.msra.mxu0 0.0
    %208 = vmatprep.subr.mxu0 0.0
    %209 = vmatpush2.msra.mxu0 0.0
    %210 = vmatprep.subr.mxu0 0.0
    %211 = vmatpush2.msra.mxu0 0.0
    %212 = vmatprep.subr.mxu0 0.0
    %213 = vmatpush2.msra.mxu0 0.0
    %214 = vmatprep.subr.mxu0 0.0
    %215 = vmatpush2.msra.mxu0 0.0
    %216 = vmatprep.subr.mxu0 0.0
    %217 = vmatpush2.msra.mxu0 0.0
    %218 = vmatprep.subr.mxu0 0.0
    %219 = vmatpush2.msra.mxu0 0.0
    %220 = vmatprep.subr.mxu0 0.0
    %221 = vmatpush2.msra.mxu0 0.0
    %222 = vmatprep.subr.mxu0 0.0
    %223 = vmatpush2.msra.mxu0 0.0
    %224 = vmatprep.subr.mxu0 0.0
    %225 = vmatpush2.msra.mxu0 0.0
    %226 = vmatprep.subr.mxu0 0.0
    %227 = vmatpush2.msra.mxu0 0.0
    %228 = vmatprep.subr.mxu0 0.0
    %229 = vmatpush2.msra.mxu0 0.0
    %230 = vmatprep.subr.mxu0 0.0
    %231 = vmatpush2.msra.mxu0 0.0
    %232 = vmatprep.mubr.f32.mxu0 0.0
    %233 = vmatmul.mubr.f32.gmra.mxu0 %v163
    %v234 = vpop.f32.mrf.mxu0
    %v235 = vadd.f32 %v154, %v234
    %v236 = vpop.f32.mrf.mxu0
    %v237 = vadd.f32 %v154, %v236
    %238 = vmatprep.mubr.f32.mxu0 0.0
    %239 = vmatmul.mubr.f32.gmra.mxu0 %v166
    %v240 = vpop.f32.mrf.mxu0
    %v241 = vadd.f32 %v159, %v240
    %v242 = vpop.f32.mrf.mxu0
    %v243 = vadd.f32 %v159, %v242
    %244 = vdwg.mxu0
    %vm245 = vcmp.gt.f32.partialorder %v235, 0.0
    %vm246 = vcmp.gt.f32.partialorder %v237, 0.0
    %vm247 = vcmp.gt.f32.partialorder %v241, 0.0
    %vm248 = vcmp.gt.f32.partialorder %v243, 0.0
    %v249 = vmin.f32 %v235, 0.0
    %v250 = vmin.f32 %v237, 0.0
    %v251 = vmin.f32 %v241, 0.0
    %v252 = vmin.f32 %v243, 0.0
    %v253 = vmul.f32 %v249, 1.442695
    %v254 = vpow.pop %v253
    %v255 = vmul.f32 %v250, 1.442695
    %v256 = vpow.pop %v255
    %v257 = vmul.f32 %v251, 1.442695
    %v258 = vpow.pop %v257
    %v259 = vmul.f32 %v252, 1.442695
    %v260 = vpow.pop %v259
    %v261 = vsub.f32 %v254, 1.0
    %v262 = vsub.f32 %v256, 1.0
    %v263 = vsub.f32 %v258, 1.0
    %v264 = vsub.f32 %v260, 1.0
    %v265 = vsel %vm245, %v235, %v261
    %v266 = vsel %vm246, %v237, %v262
    %v267 = vsel %vm247, %v241, %v263
    %v268 = vsel %vm248, %v243, %v264
    %v269 = vld [vmem:[%s7] sm:$0xff]
    %v270 = vld [vmem:[%s7 + $0x8] sm:$0xff]
    %v271 = vld [vmem:[%s7 + $0x10] sm:$0xff]
    %v272 = vld [vmem:[%s7 + $0x18] sm:$0xff]
    %v273 = vld [vmem:[%s7 + $0x20] sm:$0xff]
    %v274 = vld [vmem:[%s7 + $0x28] sm:$0xff]
    %v275 = vld [vmem:[%s7 + $0x30] sm:$0xff]
    %v276 = vld [vmem:[%s7 + $0x38] sm:$0xff]
    %v277 = vld [vmem:[%s7 + $0x40] sm:$0xff]
    %v278 = vld [vmem:[%s7 + $0x48] sm:$0xff]
    %v279 = vld [vmem:[%s7 + $0x50] sm:$0xff]
    %v280 = vld [vmem:[%s7 + $0x58] sm:$0xff]
    %v281 = vld [vmem:[%s7 + $0x60] sm:$0xff]
    %v282 = vld [vmem:[%s7 + $0x68] sm:$0xff]
    %v283 = vld [vmem:[%s7 + $0x70] sm:$0xff]
    %v284 = vld [vmem:[%s7 + $0x78] sm:$0xff]
    %285 = vmatprep.subr.mxu0 0.0
    %286 = vmatpush1.msra.mxu0 %v284
    %287 = vmatprep.subr.mxu0 0.0
    %288 = vmatpush1.msra.mxu0 %v283
    %289 = vmatprep.subr.mxu0 0.0
    %290 = vmatpush1.msra.mxu0 %v282
    %291 = vmatprep.subr.mxu0 0.0
    %292 = vmatpush1.msra.mxu0 %v281
    %293 = vmatprep.subr.mxu0 0.0
    %294 = vmatpush1.msra.mxu0 %v280
    %295 = vmatprep.subr.mxu0 0.0
    %296 = vmatpush1.msra.mxu0 %v279
    %297 = vmatprep.subr.mxu0 0.0
    %298 = vmatpush1.msra.mxu0 %v278
    %299 = vmatprep.subr.mxu0 0.0
    %300 = vmatpush1.msra.mxu0 %v277
    %301 = vmatprep.subr.mxu0 0.0
    %302 = vmatpush1.msra.mxu0 %v276
    %303 = vmatprep.subr.mxu0 0.0
    %304 = vmatpush1.msra.mxu0 %v275
    %305 = vmatprep.subr.mxu0 0.0
    %306 = vmatpush1.msra.mxu0 %v274
    %307 = vmatprep.subr.mxu0 0.0
    %308 = vmatpush1.msra.mxu0 %v273
    %309 = vmatprep.subr.mxu0 0.0
    %310 = vmatpush1.msra.mxu0 %v272
    %311 = vmatprep.subr.mxu0 0.0
    %312 = vmatpush1.msra.mxu0 %v271
    %313 = vmatprep.subr.mxu0 0.0
    %314 = vmatpush1.msra.mxu0 %v270
    %315 = vmatprep.subr.mxu0 0.0
    %316 = vmatpush1.msra.mxu0 %v269
    %317 = vmatprep.subr.mxu0 0.0
    %318 = vmatpush2.msra.mxu0 0.0
    %319 = vmatprep.subr.mxu0 0.0
    %320 = vmatpush2.msra.mxu0 0.0
    %321 = vmatprep.subr.mxu0 0.0
    %322 = vmatpush2.msra.mxu0 0.0
    %323 = vmatprep.subr.mxu0 0.0
    %324 = vmatpush2.msra.mxu0 0.0
    %325 = vmatprep.subr.mxu0 0.0
    %326 = vmatpush2.msra.mxu0 0.0
    %327 = vmatprep.subr.mxu0 0.0
    %328 = vmatpush2.msra.mxu0 0.0
    %329 = vmatprep.subr.mxu0 0.0
    %330 = vmatpush2.msra.mxu0 0.0
    %331 = vmatprep.subr.mxu0 0.0
    %332 = vmatpush2.msra.mxu0 0.0
    %333 = vmatprep.subr.mxu0 0.0
    %334 = vmatpush2.msra.mxu0 0.0
    %335 = vmatprep.subr.mxu0 0.0
    %336 = vmatpush2.msra.mxu0 0.0
    %337 = vmatprep.subr.mxu0 0.0
    %338 = vmatpush2.msra.mxu0 0.0
    %339 = vmatprep.subr.mxu0 0.0
    %340 = vmatpush2.msra.mxu0 0.0
    %341 = vmatprep.subr.mxu0 0.0
    %342 = vmatpush2.msra.mxu0 0.0
    %343 = vmatprep.subr.mxu0 0.0
    %344 = vmatpush2.msra.mxu0 0.0
    %345 = vmatprep.subr.mxu0 0.0
    %346 = vmatpush2.msra.mxu0 0.0
    %347 = vmatprep.subr.mxu0 0.0
    %348 = vmatpush2.msra.mxu0 0.0
    %349 = vmatprep.mubr.f32.mxu0 0.0
    %350 = vmatmul.mubr.f32.gmra.mxu0 %v265
    %v351 = vpop.f32.mrf.mxu0
    %v352 = vadd.f32 0.0, %v351
    %v353 = vpop.f32.mrf.mxu0
    %354 = vmatprep.mubr.f32.mxu0 0.0
    %355 = vmatmul.mubr.f32.gmra.mxu0 %v267
    %v356 = vpop.f32.mrf.mxu0
    %v357 = vadd.f32 0.0, %v356
    %v358 = vpop.f32.mrf.mxu0
    %359 = vdwg.mxu0
    %s360 = scalar_lea.vmem %s7, 128
    %v361 = vld [vmem:[%s360] sm:$0xff]
    %v362 = vld [vmem:[%s360 + $0x8] sm:$0xff]
    %v363 = vld [vmem:[%s360 + $0x10] sm:$0xff]
    %v364 = vld [vmem:[%s360 + $0x18] sm:$0xff]
    %v365 = vld [vmem:[%s360 + $0x20] sm:$0xff]
    %v366 = vld [vmem:[%s360 + $0x28] sm:$0xff]
    %v367 = vld [vmem:[%s360 + $0x30] sm:$0xff]
    %v368 = vld [vmem:[%s360 + $0x38] sm:$0xff]
    %v369 = vld [vmem:[%s360 + $0x40] sm:$0xff]
    %v370 = vld [vmem:[%s360 + $0x48] sm:$0xff]
    %v371 = vld [vmem:[%s360 + $0x50] sm:$0xff]
    %v372 = vld [vmem:[%s360 + $0x58] sm:$0xff]
    %v373 = vld [vmem:[%s360 + $0x60] sm:$0xff]
    %v374 = vld [vmem:[%s360 + $0x68] sm:$0xff]
    %v375 = vld [vmem:[%s360 + $0x70] sm:$0xff]
    %v376 = vld [vmem:[%s360 + $0x78] sm:$0xff]
    %377 = vmatprep.subr.mxu0 0.0
    %378 = vmatpush1.msra.mxu0 %v376
    %379 = vmatprep.subr.mxu0 0.0
    %380 = vmatpush1.msra.mxu0 %v375
    %381 = vmatprep.subr.mxu0 0.0
    %382 = vmatpush1.msra.mxu0 %v374
    %383 = vmatprep.subr.mxu0 0.0
    %384 = vmatpush1.msra.mxu0 %v373
    %385 = vmatprep.subr.mxu0 0.0
    %386 = vmatpush1.msra.mxu0 %v372
    %387 = vmatprep.subr.mxu0 0.0
    %388 = vmatpush1.msra.mxu0 %v371
    %389 = vmatprep.subr.mxu0 0.0
    %390 = vmatpush1.msra.mxu0 %v370
    %391 = vmatprep.subr.mxu0 0.0
    %392 = vmatpush1.msra.mxu0 %v369
    %393 = vmatprep.subr.mxu0 0.0
    %394 = vmatpush1.msra.mxu0 %v368
    %395 = vmatprep.subr.mxu0 0.0
    %396 = vmatpush1.msra.mxu0 %v367
    %397 = vmatprep.subr.mxu0 0.0
    %398 = vmatpush1.msra.mxu0 %v366
    %399 = vmatprep.subr.mxu0 0.0
    %400 = vmatpush1.msra.mxu0 %v365
    %401 = vmatprep.subr.mxu0 0.0
    %402 = vmatpush1.msra.mxu0 %v364
    %403 = vmatprep.subr.mxu0 0.0
    %404 = vmatpush1.msra.mxu0 %v363
    %405 = vmatprep.subr.mxu0 0.0
    %406 = vmatpush1.msra.mxu0 %v362
    %407 = vmatprep.subr.mxu0 0.0
    %408 = vmatpush1.msra.mxu0 %v361
    %409 = vmatprep.subr.mxu0 0.0
    %410 = vmatpush2.msra.mxu0 0.0
    %411 = vmatprep.subr.mxu0 0.0
    %412 = vmatpush2.msra.mxu0 0.0
    %413 = vmatprep.subr.mxu0 0.0
    %414 = vmatpush2.msra.mxu0 0.0
    %415 = vmatprep.subr.mxu0 0.0
    %416 = vmatpush2.msra.mxu0 0.0
    %417 = vmatprep.subr.mxu0 0.0
    %418 = vmatpush2.msra.mxu0 0.0
    %419 = vmatprep.subr.mxu0 0.0
    %420 = vmatpush2.msra.mxu0 0.0
    %421 = vmatprep.subr.mxu0 0.0
    %422 = vmatpush2.msra.mxu0 0.0
    %423 = vmatprep.subr.mxu0 0.0
    %424 = vmatpush2.msra.mxu0 0.0
    %425 = vmatprep.subr.mxu0 0.0
    %426 = vmatpush2.msra.mxu0 0.0
    %427 = vmatprep.subr.mxu0 0.0
    %428 = vmatpush2.msra.mxu0 0.0
    %429 = vmatprep.subr.mxu0 0.0
    %430 = vmatpush2.msra.mxu0 0.0
    %431 = vmatprep.subr.mxu0 0.0
    %432 = vmatpush2.msra.mxu0 0.0
    %433 = vmatprep.subr.mxu0 0.0
    %434 = vmatpush2.msra.mxu0 0.0
    %435 = vmatprep.subr.mxu0 0.0
    %436 = vmatpush2.msra.mxu0 0.0
    %437 = vmatprep.subr.mxu0 0.0
    %438 = vmatpush2.msra.mxu0 0.0
    %439 = vmatprep.subr.mxu0 0.0
    %440 = vmatpush2.msra.mxu0 0.0
    %441 = vmatprep.mubr.f32.mxu0 0.0
    %442 = vmatmul.mubr.f32.gmra.mxu0 %v265
    %v443 = vpop.f32.mrf.mxu0
    %v444 = vadd.f32 0.0, %v443
    %v445 = vpop.f32.mrf.mxu0
    %446 = vmatprep.mubr.f32.mxu0 0.0
    %447 = vmatmul.mubr.f32.gmra.mxu0 %v267
    %v448 = vpop.f32.mrf.mxu0
    %v449 = vadd.f32 0.0, %v448
    %v450 = vpop.f32.mrf.mxu0
    %451 = vdwg.mxu0
    %s452 = scalar_lea.vmem %s7, 256
    %v453 = vld [vmem:[%s452] sm:$0xff]
    %v454 = vld [vmem:[%s452 + $0x8] sm:$0xff]
    %v455 = vld [vmem:[%s452 + $0x10] sm:$0xff]
    %v456 = vld [vmem:[%s452 + $0x18] sm:$0xff]
    %v457 = vld [vmem:[%s452 + $0x20] sm:$0xff]
    %v458 = vld [vmem:[%s452 + $0x28] sm:$0xff]
    %v459 = vld [vmem:[%s452 + $0x30] sm:$0xff]
    %v460 = vld [vmem:[%s452 + $0x38] sm:$0xff]
    %v461 = vld [vmem:[%s452 + $0x40] sm:$0xff]
    %v462 = vld [vmem:[%s452 + $0x48] sm:$0xff]
    %v463 = vld [vmem:[%s452 + $0x50] sm:$0xff]
    %v464 = vld [vmem:[%s452 + $0x58] sm:$0xff]
    %v465 = vld [vmem:[%s452 + $0x60] sm:$0xff]
    %v466 = vld [vmem:[%s452 + $0x68] sm:$0xff]
    %v467 = vld [vmem:[%s452 + $0x70] sm:$0xff]
    %v468 = vld [vmem:[%s452 + $0x78] sm:$0xff]
    %469 = vmatprep.subr.mxu0 0.0
    %470 = vmatpush1.msra.mxu0 %v468
    %471 = vmatprep.subr.mxu0 0.0
    %472 = vmatpush1.msra.mxu0 %v467
    %473 = vmatprep.subr.mxu0 0.0
    %474 = vmatpush1.msra.mxu0 %v466
    %475 = vmatprep.subr.mxu0 0.0
    %476 = vmatpush1.msra.mxu0 %v465
    %477 = vmatprep.subr.mxu0 0.0
    %478 = vmatpush1.msra.mxu0 %v464
    %479 = vmatprep.subr.mxu0 0.0
    %480 = vmatpush1.msra.mxu0 %v463
    %481 = vmatprep.subr.mxu0 0.0
    %482 = vmatpush1.msra.mxu0 %v462
    %483 = vmatprep.subr.mxu0 0.0
    %484 = vmatpush1.msra.mxu0 %v461
    %485 = vmatprep.subr.mxu0 0.0
    %486 = vmatpush1.msra.mxu0 %v460
    %487 = vmatprep.subr.mxu0 0.0
    %488 = vmatpush1.msra.mxu0 %v459
    %489 = vmatprep.subr.mxu0 0.0
    %490 = vmatpush1.msra.mxu0 %v458
    %491 = vmatprep.subr.mxu0 0.0
    %492 = vmatpush1.msra.mxu0 %v457
    %493 = vmatprep.subr.mxu0 0.0
    %494 = vmatpush1.msra.mxu0 %v456
    %495 = vmatprep.subr.mxu0 0.0
    %496 = vmatpush1.msra.mxu0 %v455
    %497 = vmatprep.subr.mxu0 0.0
    %498 = vmatpush1.msra.mxu0 %v454
    %499 = vmatprep.subr.mxu0 0.0
    %500 = vmatpush1.msra.mxu0 %v453
    %501 = vmatprep.subr.mxu0 0.0
    %502 = vmatpush2.msra.mxu0 0.0
    %503 = vmatprep.subr.mxu0 0.0
    %504 = vmatpush2.msra.mxu0 0.0
    %505 = vmatprep.subr.mxu0 0.0
    %506 = vmatpush2.msra.mxu0 0.0
    %507 = vmatprep.subr.mxu0 0.0
    %508 = vmatpush2.msra.mxu0 0.0
    %509 = vmatprep.subr.mxu0 0.0
    %510 = vmatpush2.msra.mxu0 0.0
    %511 = vmatprep.subr.mxu0 0.0
    %512 = vmatpush2.msra.mxu0 0.0
    %513 = vmatprep.subr.mxu0 0.0
    %514 = vmatpush2.msra.mxu0 0.0
    %515 = vmatprep.subr.mxu0 0.0
    %516 = vmatpush2.msra.mxu0 0.0
    %517 = vmatprep.subr.mxu0 0.0
    %518 = vmatpush2.msra.mxu0 0.0
    %519 = vmatprep.subr.mxu0 0.0
    %520 = vmatpush2.msra.mxu0 0.0
    %521 = vmatprep.subr.mxu0 0.0
    %522 = vmatpush2.msra.mxu0 0.0
    %523 = vmatprep.subr.mxu0 0.0
    %524 = vmatpush2.msra.mxu0 0.0
    %525 = vmatprep.subr.mxu0 0.0
    %526 = vmatpush2.msra.mxu0 0.0
    %527 = vmatprep.subr.mxu0 0.0
    %528 = vmatpush2.msra.mxu0 0.0
    %529 = vmatprep.subr.mxu0 0.0
    %530 = vmatpush2.msra.mxu0 0.0
    %531 = vmatprep.subr.mxu0 0.0
    %532 = vmatpush2.msra.mxu0 0.0
    %533 = vmatprep.mubr.f32.mxu0 0.0
    %534 = vmatmul.mubr.f32.gmra.mxu0 %v265
    %v535 = vpop.f32.mrf.mxu0
    %v536 = vadd.f32 0.0, %v535
    %v537 = vpop.f32.mrf.mxu0
    %538 = vmatprep.mubr.f32.mxu0 0.0
    %539 = vmatmul.mubr.f32.gmra.mxu0 %v267
    %v540 = vpop.f32.mrf.mxu0
    %v541 = vadd.f32 0.0, %v540
    %v542 = vpop.f32.mrf.mxu0
    %543 = vdwg.mxu0
    %s544 = scalar_lea.vmem %s7, 384
    %v545 = vld [vmem:[%s544] sm:$0xff]
    %v546 = vld [vmem:[%s544 + $0x8] sm:$0xff]
    %v547 = vld [vmem:[%s544 + $0x10] sm:$0xff]
    %v548 = vld [vmem:[%s544 + $0x18] sm:$0xff]
    %v549 = vld [vmem:[%s544 + $0x20] sm:$0xff]
    %v550 = vld [vmem:[%s544 + $0x28] sm:$0xff]
    %v551 = vld [vmem:[%s544 + $0x30] sm:$0xff]
    %v552 = vld [vmem:[%s544 + $0x38] sm:$0xff]
    %v553 = vld [vmem:[%s544 + $0x40] sm:$0xff]
    %v554 = vld [vmem:[%s544 + $0x48] sm:$0xff]
    %v555 = vld [vmem:[%s544 + $0x50] sm:$0xff]
    %v556 = vld [vmem:[%s544 + $0x58] sm:$0xff]
    %v557 = vld [vmem:[%s544 + $0x60] sm:$0xff]
    %v558 = vld [vmem:[%s544 + $0x68] sm:$0xff]
    %v559 = vld [vmem:[%s544 + $0x70] sm:$0xff]
    %v560 = vld [vmem:[%s544 + $0x78] sm:$0xff]
    %561 = vmatprep.subr.mxu0 0.0
    %562 = vmatpush1.msra.mxu0 %v560
    %563 = vmatprep.subr.mxu0 0.0
    %564 = vmatpush1.msra.mxu0 %v559
    %565 = vmatprep.subr.mxu0 0.0
    %566 = vmatpush1.msra.mxu0 %v558
    %567 = vmatprep.subr.mxu0 0.0
    %568 = vmatpush1.msra.mxu0 %v557
    %569 = vmatprep.subr.mxu0 0.0
    %570 = vmatpush1.msra.mxu0 %v556
    %571 = vmatprep.subr.mxu0 0.0
    %572 = vmatpush1.msra.mxu0 %v555
    %573 = vmatprep.subr.mxu0 0.0
    %574 = vmatpush1.msra.mxu0 %v554
    %575 = vmatprep.subr.mxu0 0.0
    %576 = vmatpush1.msra.mxu0 %v553
    %577 = vmatprep.subr.mxu0 0.0
    %578 = vmatpush1.msra.mxu0 %v552
    %579 = vmatprep.subr.mxu0 0.0
    %580 = vmatpush1.msra.mxu0 %v551
    %581 = vmatprep.subr.mxu0 0.0
    %582 = vmatpush1.msra.mxu0 %v550
    %583 = vmatprep.subr.mxu0 0.0
    %584 = vmatpush1.msra.mxu0 %v549
    %585 = vmatprep.subr.mxu0 0.0
    %586 = vmatpush1.msra.mxu0 %v548
    %587 = vmatprep.subr.mxu0 0.0
    %588 = vmatpush1.msra.mxu0 %v547
    %589 = vmatprep.subr.mxu0 0.0
    %590 = vmatpush1.msra.mxu0 %v546
    %591 = vmatprep.subr.mxu0 0.0
    %592 = vmatpush1.msra.mxu0 %v545
    %593 = vmatprep.subr.mxu0 0.0
    %594 = vmatpush2.msra.mxu0 0.0
    %595 = vmatprep.subr.mxu0 0.0
    %596 = vmatpush2.msra.mxu0 0.0
    %597 = vmatprep.subr.mxu0 0.0
    %598 = vmatpush2.msra.mxu0 0.0
    %599 = vmatprep.subr.mxu0 0.0
    %600 = vmatpush2.msra.mxu0 0.0
    %601 = vmatprep.subr.mxu0 0.0
    %602 = vmatpush2.msra.mxu0 0.0
    %603 = vmatprep.subr.mxu0 0.0
    %604 = vmatpush2.msra.mxu0 0.0
    %605 = vmatprep.subr.mxu0 0.0
    %606 = vmatpush2.msra.mxu0 0.0
    %607 = vmatprep.subr.mxu0 0.0
    %608 = vmatpush2.msra.mxu0 0.0
    %609 = vmatprep.subr.mxu0 0.0
    %610 = vmatpush2.msra.mxu0 0.0
    %611 = vmatprep.subr.mxu0 0.0
    %612 = vmatpush2.msra.mxu0 0.0
    %613 = vmatprep.subr.mxu0 0.0
    %614 = vmatpush2.msra.mxu0 0.0
    %615 = vmatprep.subr.mxu0 0.0
    %616 = vmatpush2.msra.mxu0 0.0
    %617 = vmatprep.subr.mxu0 0.0
    %618 = vmatpush2.msra.mxu0 0.0
    %619 = vmatprep.subr.mxu0 0.0
    %620 = vmatpush2.msra.mxu0 0.0
    %621 = vmatprep.subr.mxu0 0.0
    %622 = vmatpush2.msra.mxu0 0.0
    %623 = vmatprep.subr.mxu0 0.0
    %624 = vmatpush2.msra.mxu0 0.0
    %625 = vmatprep.mubr.f32.mxu0 0.0
    %626 = vmatmul.mubr.f32.gmra.mxu0 %v265
    %v627 = vpop.f32.mrf.mxu0
    %v628 = vadd.f32 0.0, %v627
    %v629 = vpop.f32.mrf.mxu0
    %630 = vmatprep.mubr.f32.mxu0 0.0
    %631 = vmatmul.mubr.f32.gmra.mxu0 %v267
    %v632 = vpop.f32.mrf.mxu0
    %v633 = vadd.f32 0.0, %v632
    %v634 = vpop.f32.mrf.mxu0
    %635 = vdwg.mxu0
    %s636 = scalar_lea.vmem %s7, 512
    %v637 = vld [vmem:[%s636] sm:$0xff]
    %v638 = vld [vmem:[%s636 + $0x8] sm:$0xff]
    %v639 = vld [vmem:[%s636 + $0x10] sm:$0xff]
    %v640 = vld [vmem:[%s636 + $0x18] sm:$0xff]
    %v641 = vld [vmem:[%s636 + $0x20] sm:$0xff]
    %v642 = vld [vmem:[%s636 + $0x28] sm:$0xff]
    %v643 = vld [vmem:[%s636 + $0x30] sm:$0xff]
    %v644 = vld [vmem:[%s636 + $0x38] sm:$0xff]
    %v645 = vld [vmem:[%s636 + $0x40] sm:$0xff]
    %v646 = vld [vmem:[%s636 + $0x48] sm:$0xff]
    %v647 = vld [vmem:[%s636 + $0x50] sm:$0xff]
    %v648 = vld [vmem:[%s636 + $0x58] sm:$0xff]
    %v649 = vld [vmem:[%s636 + $0x60] sm:$0xff]
    %v650 = vld [vmem:[%s636 + $0x68] sm:$0xff]
    %v651 = vld [vmem:[%s636 + $0x70] sm:$0xff]
    %v652 = vld [vmem:[%s636 + $0x78] sm:$0xff]
    %653 = vmatprep.subr.mxu0 0.0
    %654 = vmatpush1.msra.mxu0 %v652
    %655 = vmatprep.subr.mxu0 0.0
    %656 = vmatpush1.msra.mxu0 %v651
    %657 = vmatprep.subr.mxu0 0.0
    %658 = vmatpush1.msra.mxu0 %v650
    %659 = vmatprep.subr.mxu0 0.0
    %660 = vmatpush1.msra.mxu0 %v649
    %661 = vmatprep.subr.mxu0 0.0
    %662 = vmatpush1.msra.mxu0 %v648
    %663 = vmatprep.subr.mxu0 0.0
    %664 = vmatpush1.msra.mxu0 %v647
    %665 = vmatprep.subr.mxu0 0.0
    %666 = vmatpush1.msra.mxu0 %v646
    %667 = vmatprep.subr.mxu0 0.0
    %668 = vmatpush1.msra.mxu0 %v645
    %669 = vmatprep.subr.mxu0 0.0
    %670 = vmatpush1.msra.mxu0 %v644
    %671 = vmatprep.subr.mxu0 0.0
    %672 = vmatpush1.msra.mxu0 %v643
    %673 = vmatprep.subr.mxu0 0.0
    %674 = vmatpush1.msra.mxu0 %v642
    %675 = vmatprep.subr.mxu0 0.0
    %676 = vmatpush1.msra.mxu0 %v641
    %677 = vmatprep.subr.mxu0 0.0
    %678 = vmatpush1.msra.mxu0 %v640
    %679 = vmatprep.subr.mxu0 0.0
    %680 = vmatpush1.msra.mxu0 %v639
    %681 = vmatprep.subr.mxu0 0.0
    %682 = vmatpush1.msra.mxu0 %v638
    %683 = vmatprep.subr.mxu0 0.0
    %684 = vmatpush1.msra.mxu0 %v637
    %685 = vmatprep.subr.mxu0 0.0
    %686 = vmatpush2.msra.mxu0 0.0
    %687 = vmatprep.subr.mxu0 0.0
    %688 = vmatpush2.msra.mxu0 0.0
    %689 = vmatprep.subr.mxu0 0.0
    %690 = vmatpush2.msra.mxu0 0.0
    %691 = vmatprep.subr.mxu0 0.0
    %692 = vmatpush2.msra.mxu0 0.0
    %693 = vmatprep.subr.mxu0 0.0
    %694 = vmatpush2.msra.mxu0 0.0
    %695 = vmatprep.subr.mxu0 0.0
    %696 = vmatpush2.msra.mxu0 0.0
    %697 = vmatprep.subr.mxu0 0.0
    %698 = vmatpush2.msra.mxu0 0.0
    %699 = vmatprep.subr.mxu0 0.0
    %700 = vmatpush2.msra.mxu0 0.0
    %701 = vmatprep.subr.mxu0 0.0
    %702 = vmatpush2.msra.mxu0 0.0
    %703 = vmatprep.subr.mxu0 0.0
    %704 = vmatpush2.msra.mxu0 0.0
    %705 = vmatprep.subr.mxu0 0.0
    %706 = vmatpush2.msra.mxu0 0.0
    %707 = vmatprep.subr.mxu0 0.0
    %708 = vmatpush2.msra.mxu0 0.0
    %709 = vmatprep.subr.mxu0 0.0
    %710 = vmatpush2.msra.mxu0 0.0
    %711 = vmatprep.subr.mxu0 0.0
    %712 = vmatpush2.msra.mxu0 0.0
    %713 = vmatprep.subr.mxu0 0.0
    %714 = vmatpush2.msra.mxu0 0.0
    %715 = vmatprep.subr.mxu0 0.0
    %716 = vmatpush2.msra.mxu0 0.0
    %717 = vmatprep.mubr.f32.mxu0 0.0
    %718 = vmatmul.mubr.f32.gmra.mxu0 %v265
    %v719 = vpop.f32.mrf.mxu0
    %v720 = vadd.f32 0.0, %v719
    %v721 = vpop.f32.mrf.mxu0
    %722 = vmatprep.mubr.f32.mxu0 0.0
    %723 = vmatmul.mubr.f32.gmra.mxu0 %v267
    %v724 = vpop.f32.mrf.mxu0
    %v725 = vadd.f32 0.0, %v724
    %v726 = vpop.f32.mrf.mxu0
    %727 = vdwg.mxu0
    %s728 = scalar_lea.vmem %s7, 640
    %v729 = vld [vmem:[%s728] sm:$0xff]
    %v730 = vld [vmem:[%s728 + $0x8] sm:$0xff]
    %v731 = vld [vmem:[%s728 + $0x10] sm:$0xff]
    %v732 = vld [vmem:[%s728 + $0x18] sm:$0xff]
    %v733 = vld [vmem:[%s728 + $0x20] sm:$0xff]
    %v734 = vld [vmem:[%s728 + $0x28] sm:$0xff]
    %v735 = vld [vmem:[%s728 + $0x30] sm:$0xff]
    %v736 = vld [vmem:[%s728 + $0x38] sm:$0xff]
    %v737 = vld [vmem:[%s728 + $0x40] sm:$0xff]
    %v738 = vld [vmem:[%s728 + $0x48] sm:$0xff]
    %v739 = vld [vmem:[%s728 + $0x50] sm:$0xff]
    %v740 = vld [vmem:[%s728 + $0x58] sm:$0xff]
    %v741 = vld [vmem:[%s728 + $0x60] sm:$0xff]
    %v742 = vld [vmem:[%s728 + $0x68] sm:$0xff]
    %v743 = vld [vmem:[%s728 + $0x70] sm:$0xff]
    %v744 = vld [vmem:[%s728 + $0x78] sm:$0xff]
    %745 = vmatprep.subr.mxu0 0.0
    %746 = vmatpush1.msra.mxu0 %v744
    %747 = vmatprep.subr.mxu0 0.0
    %748 = vmatpush1.msra.mxu0 %v743
    %749 = vmatprep.subr.mxu0 0.0
    %750 = vmatpush1.msra.mxu0 %v742
    %751 = vmatprep.subr.mxu0 0.0
    %752 = vmatpush1.msra.mxu0 %v741
    %753 = vmatprep.subr.mxu0 0.0
    %754 = vmatpush1.msra.mxu0 %v740
    %755 = vmatprep.subr.mxu0 0.0
    %756 = vmatpush1.msra.mxu0 %v739
    %757 = vmatprep.subr.mxu0 0.0
    %758 = vmatpush1.msra.mxu0 %v738
    %759 = vmatprep.subr.mxu0 0.0
    %760 = vmatpush1.msra.mxu0 %v737
    %761 = vmatprep.subr.mxu0 0.0
    %762 = vmatpush1.msra.mxu0 %v736
    %763 = vmatprep.subr.mxu0 0.0
    %764 = vmatpush1.msra.mxu0 %v735
    %765 = vmatprep.subr.mxu0 0.0
    %766 = vmatpush1.msra.mxu0 %v734
    %767 = vmatprep.subr.mxu0 0.0
    %768 = vmatpush1.msra.mxu0 %v733
    %769 = vmatprep.subr.mxu0 0.0
    %770 = vmatpush1.msra.mxu0 %v732
    %771 = vmatprep.subr.mxu0 0.0
    %772 = vmatpush1.msra.mxu0 %v731
    %773 = vmatprep.subr.mxu0 0.0
    %774 = vmatpush1.msra.mxu0 %v730
    %775 = vmatprep.subr.mxu0 0.0
    %776 = vmatpush1.msra.mxu0 %v729
    %777 = vmatprep.subr.mxu0 0.0
    %778 = vmatpush2.msra.mxu0 0.0
    %779 = vmatprep.subr.mxu0 0.0
    %780 = vmatpush2.msra.mxu0 0.0
    %781 = vmatprep.subr.mxu0 0.0
    %782 = vmatpush2.msra.mxu0 0.0
    %783 = vmatprep.subr.mxu0 0.0
    %784 = vmatpush2.msra.mxu0 0.0
    %785 = vmatprep.subr.mxu0 0.0
    %786 = vmatpush2.msra.mxu0 0.0
    %787 = vmatprep.subr.mxu0 0.0
    %788 = vmatpush2.msra.mxu0 0.0
    %789 = vmatprep.subr.mxu0 0.0
    %790 = vmatpush2.msra.mxu0 0.0
    %791 = vmatprep.subr.mxu0 0.0
    %792 = vmatpush2.msra.mxu0 0.0
    %793 = vmatprep.subr.mxu0 0.0
    %794 = vmatpush2.msra.mxu0 0.0
    %795 = vmatprep.subr.mxu0 0.0
    %796 = vmatpush2.msra.mxu0 0.0
    %797 = vmatprep.subr.mxu0 0.0
    %798 = vmatpush2.msra.mxu0 0.0
    %799 = vmatprep.subr.mxu0 0.0
    %800 = vmatpush2.msra.mxu0 0.0
    %801 = vmatprep.subr.mxu0 0.0
    %802 = vmatpush2.msra.mxu0 0.0
    %803 = vmatprep.subr.mxu0 0.0
    %804 = vmatpush2.msra.mxu0 0.0
    %805 = vmatprep.subr.mxu0 0.0
    %806 = vmatpush2.msra.mxu0 0.0
    %807 = vmatprep.subr.mxu0 0.0
    %808 = vmatpush2.msra.mxu0 0.0
    %809 = vmatprep.mubr.f32.mxu0 0.0
    %810 = vmatmul.mubr.f32.gmra.mxu0 %v265
    %v811 = vpop.f32.mrf.mxu0
    %v812 = vadd.f32 0.0, %v811
    %v813 = vpop.f32.mrf.mxu0
    %814 = vmatprep.mubr.f32.mxu0 0.0
    %815 = vmatmul.mubr.f32.gmra.mxu0 %v267
    %v816 = vpop.f32.mrf.mxu0
    %v817 = vadd.f32 0.0, %v816
    %v818 = vpop.f32.mrf.mxu0
    %819 = vdwg.mxu0
    %s820 = scalar_lea.vmem %s7, 768
    %v821 = vld [vmem:[%s820] sm:$0xff]
    %v822 = vld [vmem:[%s820 + $0x8] sm:$0xff]
    %v823 = vld [vmem:[%s820 + $0x10] sm:$0xff]
    %v824 = vld [vmem:[%s820 + $0x18] sm:$0xff]
    %v825 = vld [vmem:[%s820 + $0x20] sm:$0xff]
    %v826 = vld [vmem:[%s820 + $0x28] sm:$0xff]
    %v827 = vld [vmem:[%s820 + $0x30] sm:$0xff]
    %v828 = vld [vmem:[%s820 + $0x38] sm:$0xff]
    %v829 = vld [vmem:[%s820 + $0x40] sm:$0xff]
    %v830 = vld [vmem:[%s820 + $0x48] sm:$0xff]
    %v831 = vld [vmem:[%s820 + $0x50] sm:$0xff]
    %v832 = vld [vmem:[%s820 + $0x58] sm:$0xff]
    %v833 = vld [vmem:[%s820 + $0x60] sm:$0xff]
    %v834 = vld [vmem:[%s820 + $0x68] sm:$0xff]
    %v835 = vld [vmem:[%s820 + $0x70] sm:$0xff]
    %v836 = vld [vmem:[%s820 + $0x78] sm:$0xff]
    %837 = vmatprep.subr.mxu0 0.0
    %838 = vmatpush1.msra.mxu0 %v836
    %839 = vmatprep.subr.mxu0 0.0
    %840 = vmatpush1.msra.mxu0 %v835
    %841 = vmatprep.subr.mxu0 0.0
    %842 = vmatpush1.msra.mxu0 %v834
    %843 = vmatprep.subr.mxu0 0.0
    %844 = vmatpush1.msra.mxu0 %v833
    %845 = vmatprep.subr.mxu0 0.0
    %846 = vmatpush1.msra.mxu0 %v832
    %847 = vmatprep.subr.mxu0 0.0
    %848 = vmatpush1.msra.mxu0 %v831
    %849 = vmatprep.subr.mxu0 0.0
    %850 = vmatpush1.msra.mxu0 %v830
    %851 = vmatprep.subr.mxu0 0.0
    %852 = vmatpush1.msra.mxu0 %v829
    %853 = vmatprep.subr.mxu0 0.0
    %854 = vmatpush1.msra.mxu0 %v828
    %855 = vmatprep.subr.mxu0 0.0
    %856 = vmatpush1.msra.mxu0 %v827
    %857 = vmatprep.subr.mxu0 0.0
    %858 = vmatpush1.msra.mxu0 %v826
    %859 = vmatprep.subr.mxu0 0.0
    %860 = vmatpush1.msra.mxu0 %v825
    %861 = vmatprep.subr.mxu0 0.0
    %862 = vmatpush1.msra.mxu0 %v824
    %863 = vmatprep.subr.mxu0 0.0
    %864 = vmatpush1.msra.mxu0 %v823
    %865 = vmatprep.subr.mxu0 0.0
    %866 = vmatpush1.msra.mxu0 %v822
    %867 = vmatprep.subr.mxu0 0.0
    %868 = vmatpush1.msra.mxu0 %v821
    %869 = vmatprep.subr.mxu0 0.0
    %870 = vmatpush2.msra.mxu0 0.0
    %871 = vmatprep.subr.mxu0 0.0
    %872 = vmatpush2.msra.mxu0 0.0
    %873 = vmatprep.subr.mxu0 0.0
    %874 = vmatpush2.msra.mxu0 0.0
    %875 = vmatprep.subr.mxu0 0.0
    %876 = vmatpush2.msra.mxu0 0.0
    %877 = vmatprep.subr.mxu0 0.0
    %878 = vmatpush2.msra.mxu0 0.0
    %879 = vmatprep.subr.mxu0 0.0
    %880 = vmatpush2.msra.mxu0 0.0
    %881 = vmatprep.subr.mxu0 0.0
    %882 = vmatpush2.msra.mxu0 0.0
    %883 = vmatprep.subr.mxu0 0.0
    %884 = vmatpush2.msra.mxu0 0.0
    %885 = vmatprep.subr.mxu0 0.0
    %886 = vmatpush2.msra.mxu0 0.0
    %887 = vmatprep.subr.mxu0 0.0
    %888 = vmatpush2.msra.mxu0 0.0
    %889 = vmatprep.subr.mxu0 0.0
    %890 = vmatpush2.msra.mxu0 0.0
    %891 = vmatprep.subr.mxu0 0.0
    %892 = vmatpush2.msra.mxu0 0.0
    %893 = vmatprep.subr.mxu0 0.0
    %894 = vmatpush2.msra.mxu0 0.0
    %895 = vmatprep.subr.mxu0 0.0
    %896 = vmatpush2.msra.mxu0 0.0
    %897 = vmatprep.subr.mxu0 0.0
    %898 = vmatpush2.msra.mxu0 0.0
    %899 = vmatprep.subr.mxu0 0.0
    %900 = vmatpush2.msra.mxu0 0.0
    %901 = vmatprep.mubr.f32.mxu0 0.0
    %902 = vmatmul.mubr.f32.gmra.mxu0 %v265
    %v903 = vpop.f32.mrf.mxu0
    %v904 = vadd.f32 0.0, %v903
    %v905 = vpop.f32.mrf.mxu0
    %906 = vmatprep.mubr.f32.mxu0 0.0
    %907 = vmatmul.mubr.f32.gmra.mxu0 %v267
    %v908 = vpop.f32.mrf.mxu0
    %v909 = vadd.f32 0.0, %v908
    %v910 = vpop.f32.mrf.mxu0
    %911 = vdwg.mxu0
    %s912 = scalar_lea.vmem %s7, 896
    %v913 = vld [vmem:[%s912] sm:$0xff]
    %v914 = vld [vmem:[%s912 + $0x8] sm:$0xff]
    %v915 = vld [vmem:[%s912 + $0x10] sm:$0xff]
    %v916 = vld [vmem:[%s912 + $0x18] sm:$0xff]
    %v917 = vld [vmem:[%s912 + $0x20] sm:$0xff]
    %v918 = vld [vmem:[%s912 + $0x28] sm:$0xff]
    %v919 = vld [vmem:[%s912 + $0x30] sm:$0xff]
    %v920 = vld [vmem:[%s912 + $0x38] sm:$0xff]
    %v921 = vld [vmem:[%s912 + $0x40] sm:$0xff]
    %v922 = vld [vmem:[%s912 + $0x48] sm:$0xff]
    %v923 = vld [vmem:[%s912 + $0x50] sm:$0xff]
    %v924 = vld [vmem:[%s912 + $0x58] sm:$0xff]
    %v925 = vld [vmem:[%s912 + $0x60] sm:$0xff]
    %v926 = vld [vmem:[%s912 + $0x68] sm:$0xff]
    %v927 = vld [vmem:[%s912 + $0x70] sm:$0xff]
    %v928 = vld [vmem:[%s912 + $0x78] sm:$0xff]
    %929 = vmatprep.subr.mxu0 0.0
    %930 = vmatpush1.msra.mxu0 %v928
    %931 = vmatprep.subr.mxu0 0.0
    %932 = vmatpush1.msra.mxu0 %v927
    %933 = vmatprep.subr.mxu0 0.0
    %934 = vmatpush1.msra.mxu0 %v926
    %935 = vmatprep.subr.mxu0 0.0
    %936 = vmatpush1.msra.mxu0 %v925
    %937 = vmatprep.subr.mxu0 0.0
    %938 = vmatpush1.msra.mxu0 %v924
    %939 = vmatprep.subr.mxu0 0.0
    %940 = vmatpush1.msra.mxu0 %v923
    %941 = vmatprep.subr.mxu0 0.0
    %942 = vmatpush1.msra.mxu0 %v922
    %943 = vmatprep.subr.mxu0 0.0
    %944 = vmatpush1.msra.mxu0 %v921
    %945 = vmatprep.subr.mxu0 0.0
    %946 = vmatpush1.msra.mxu0 %v920
    %947 = vmatprep.subr.mxu0 0.0
    %948 = vmatpush1.msra.mxu0 %v919
    %949 = vmatprep.subr.mxu0 0.0
    %950 = vmatpush1.msra.mxu0 %v918
    %951 = vmatprep.subr.mxu0 0.0
    %952 = vmatpush1.msra.mxu0 %v917
    %953 = vmatprep.subr.mxu0 0.0
    %954 = vmatpush1.msra.mxu0 %v916
    %955 = vmatprep.subr.mxu0 0.0
    %956 = vmatpush1.msra.mxu0 %v915
    %957 = vmatprep.subr.mxu0 0.0
    %958 = vmatpush1.msra.mxu0 %v914
    %959 = vmatprep.subr.mxu0 0.0
    %960 = vmatpush1.msra.mxu0 %v913
    %961 = vmatprep.subr.mxu0 0.0
    %962 = vmatpush2.msra.mxu0 0.0
    %963 = vmatprep.subr.mxu0 0.0
    %964 = vmatpush2.msra.mxu0 0.0
    %965 = vmatprep.subr.mxu0 0.0
    %966 = vmatpush2.msra.mxu0 0.0
    %967 = vmatprep.subr.mxu0 0.0
    %968 = vmatpush2.msra.mxu0 0.0
    %969 = vmatprep.subr.mxu0 0.0
    %970 = vmatpush2.msra.mxu0 0.0
    %971 = vmatprep.subr.mxu0 0.0
    %972 = vmatpush2.msra.mxu0 0.0
    %973 = vmatprep.subr.mxu0 0.0
    %974 = vmatpush2.msra.mxu0 0.0
    %975 = vmatprep.subr.mxu0 0.0
    %976 = vmatpush2.msra.mxu0 0.0
    %977 = vmatprep.subr.mxu0 0.0
    %978 = vmatpush2.msra.mxu0 0.0
    %979 = vmatprep.subr.mxu0 0.0
    %980 = vmatpush2.msra.mxu0 0.0
    %981 = vmatprep.subr.mxu0 0.0
    %982 = vmatpush2.msra.mxu0 0.0
    %983 = vmatprep.subr.mxu0 0.0
    %984 = vmatpush2.msra.mxu0 0.0
    %985 = vmatprep.subr.mxu0 0.0
    %986 = vmatpush2.msra.mxu0 0.0
    %987 = vmatprep.subr.mxu0 0.0
    %988 = vmatpush2.msra.mxu0 0.0
    %989 = vmatprep.subr.mxu0 0.0
    %990 = vmatpush2.msra.mxu0 0.0
    %991 = vmatprep.subr.mxu0 0.0
    %992 = vmatpush2.msra.mxu0 0.0
    %993 = vmatprep.mubr.f32.mxu0 0.0
    %994 = vmatmul.mubr.f32.gmra.mxu0 %v265
    %v995 = vpop.f32.mrf.mxu0
    %v996 = vadd.f32 0.0, %v995
    %v997 = vpop.f32.mrf.mxu0
    %998 = vmatprep.mubr.f32.mxu0 0.0
    %999 = vmatmul.mubr.f32.gmra.mxu0 %v267
    %v1000 = vpop.f32.mrf.mxu0
    %v1001 = vadd.f32 0.0, %v1000
    %v1002 = vpop.f32.mrf.mxu0
    %1003 = vdwg.mxu0
    %s1004 = scalar_lea.vmem %s7, 1024
    %v1005 = vld [vmem:[%s1004] sm:$0xff]
    %v1006 = vld [vmem:[%s1004 + $0x8] sm:$0xff]
    %v1007 = vld [vmem:[%s1004 + $0x10] sm:$0xff]
    %v1008 = vld [vmem:[%s1004 + $0x18] sm:$0xff]
    %v1009 = vld [vmem:[%s1004 + $0x20] sm:$0xff]
    %v1010 = vld [vmem:[%s1004 + $0x28] sm:$0xff]
    %v1011 = vld [vmem:[%s1004 + $0x30] sm:$0xff]
    %v1012 = vld [vmem:[%s1004 + $0x38] sm:$0xff]
    %v1013 = vld [vmem:[%s1004 + $0x40] sm:$0xff]
    %v1014 = vld [vmem:[%s1004 + $0x48] sm:$0xff]
    %v1015 = vld [vmem:[%s1004 + $0x50] sm:$0xff]
    %v1016 = vld [vmem:[%s1004 + $0x58] sm:$0xff]
    %v1017 = vld [vmem:[%s1004 + $0x60] sm:$0xff]
    %v1018 = vld [vmem:[%s1004 + $0x68] sm:$0xff]
    %v1019 = vld [vmem:[%s1004 + $0x70] sm:$0xff]
    %v1020 = vld [vmem:[%s1004 + $0x78] sm:$0xff]
    %1021 = vmatprep.subr.mxu0 0.0
    %1022 = vmatpush1.msra.mxu0 %v1020
    %1023 = vmatprep.subr.mxu0 0.0
    %1024 = vmatpush1.msra.mxu0 %v1019
    %1025 = vmatprep.subr.mxu0 0.0
    %1026 = vmatpush1.msra.mxu0 %v1018
    %1027 = vmatprep.subr.mxu0 0.0
    %1028 = vmatpush1.msra.mxu0 %v1017
    %1029 = vmatprep.subr.mxu0 0.0
    %1030 = vmatpush1.msra.mxu0 %v1016
    %1031 = vmatprep.subr.mxu0 0.0
    %1032 = vmatpush1.msra.mxu0 %v1015
    %1033 = vmatprep.subr.mxu0 0.0
    %1034 = vmatpush1.msra.mxu0 %v1014
    %1035 = vmatprep.subr.mxu0 0.0
    %1036 = vmatpush1.msra.mxu0 %v1013
    %1037 = vmatprep.subr.mxu0 0.0
    %1038 = vmatpush1.msra.mxu0 %v1012
    %1039 = vmatprep.subr.mxu0 0.0
    %1040 = vmatpush1.msra.mxu0 %v1011
    %1041 = vmatprep.subr.mxu0 0.0
    %1042 = vmatpush1.msra.mxu0 %v1010
    %1043 = vmatprep.subr.mxu0 0.0
    %1044 = vmatpush1.msra.mxu0 %v1009
    %1045 = vmatprep.subr.mxu0 0.0
    %1046 = vmatpush1.msra.mxu0 %v1008
    %1047 = vmatprep.subr.mxu0 0.0
    %1048 = vmatpush1.msra.mxu0 %v1007
    %1049 = vmatprep.subr.mxu0 0.0
    %1050 = vmatpush1.msra.mxu0 %v1006
    %1051 = vmatprep.subr.mxu0 0.0
    %1052 = vmatpush1.msra.mxu0 %v1005
    %1053 = vmatprep.subr.mxu0 0.0
    %1054 = vmatpush2.msra.mxu0 0.0
    %1055 = vmatprep.subr.mxu0 0.0
    %1056 = vmatpush2.msra.mxu0 0.0
    %1057 = vmatprep.subr.mxu0 0.0
    %1058 = vmatpush2.msra.mxu0 0.0
    %1059 = vmatprep.subr.mxu0 0.0
    %1060 = vmatpush2.msra.mxu0 0.0
    %1061 = vmatprep.subr.mxu0 0.0
    %1062 = vmatpush2.msra.mxu0 0.0
    %1063 = vmatprep.subr.mxu0 0.0
    %1064 = vmatpush2.msra.mxu0 0.0
    %1065 = vmatprep.subr.mxu0 0.0
    %1066 = vmatpush2.msra.mxu0 0.0
    %1067 = vmatprep.subr.mxu0 0.0
    %1068 = vmatpush2.msra.mxu0 0.0
    %1069 = vmatprep.subr.mxu0 0.0
    %1070 = vmatpush2.msra.mxu0 0.0
    %1071 = vmatprep.subr.mxu0 0.0
    %1072 = vmatpush2.msra.mxu0 0.0
    %1073 = vmatprep.subr.mxu0 0.0
    %1074 = vmatpush2.msra.mxu0 0.0
    %1075 = vmatprep.subr.mxu0 0.0
    %1076 = vmatpush2.msra.mxu0 0.0
    %1077 = vmatprep.subr.mxu0 0.0
    %1078 = vmatpush2.msra.mxu0 0.0
    %1079 = vmatprep.subr.mxu0 0.0
    %1080 = vmatpush2.msra.mxu0 0.0
    %1081 = vmatprep.subr.mxu0 0.0
    %1082 = vmatpush2.msra.mxu0 0.0
    %1083 = vmatprep.subr.mxu0 0.0
    %1084 = vmatpush2.msra.mxu0 0.0
    %1085 = vmatprep.mubr.f32.mxu0 0.0
    %1086 = vmatmul.mubr.f32.gmra.mxu0 %v265
    %v1087 = vpop.f32.mrf.mxu0
    %v1088 = vadd.f32 0.0, %v1087
    %v1089 = vpop.f32.mrf.mxu0
    %1090 = vmatprep.mubr.f32.mxu0 0.0
    %1091 = vmatmul.mubr.f32.gmra.mxu0 %v267
    %v1092 = vpop.f32.mrf.mxu0
    %v1093 = vadd.f32 0.0, %v1092
    %v1094 = vpop.f32.mrf.mxu0
    %1095 = vdwg.mxu0
    %s1096 = scalar_lea.vmem %s7, 1152
    %v1097 = vld [vmem:[%s1096] sm:$0xff]
    %v1098 = vld [vmem:[%s1096 + $0x8] sm:$0xff]
    %v1099 = vld [vmem:[%s1096 + $0x10] sm:$0xff]
    %v1100 = vld [vmem:[%s1096 + $0x18] sm:$0xff]
    %v1101 = vld [vmem:[%s1096 + $0x20] sm:$0xff]
    %v1102 = vld [vmem:[%s1096 + $0x28] sm:$0xff]
    %v1103 = vld [vmem:[%s1096 + $0x30] sm:$0xff]
    %v1104 = vld [vmem:[%s1096 + $0x38] sm:$0xff]
    %v1105 = vld [vmem:[%s1096 + $0x40] sm:$0xff]
    %v1106 = vld [vmem:[%s1096 + $0x48] sm:$0xff]
    %v1107 = vld [vmem:[%s1096 + $0x50] sm:$0xff]
    %v1108 = vld [vmem:[%s1096 + $0x58] sm:$0xff]
    %v1109 = vld [vmem:[%s1096 + $0x60] sm:$0xff]
    %v1110 = vld [vmem:[%s1096 + $0x68] sm:$0xff]
    %v1111 = vld [vmem:[%s1096 + $0x70] sm:$0xff]
    %v1112 = vld [vmem:[%s1096 + $0x78] sm:$0xff]
    %1113 = vmatprep.subr.mxu0 0.0
    %1114 = vmatpush1.msra.mxu0 %v1112
    %1115 = vmatprep.subr.mxu0 0.0
    %1116 = vmatpush1.msra.mxu0 %v1111
    %1117 = vmatprep.subr.mxu0 0.0
    %1118 = vmatpush1.msra.mxu0 %v1110
    %1119 = vmatprep.subr.mxu0 0.0
    %1120 = vmatpush1.msra.mxu0 %v1109
    %1121 = vmatprep.subr.mxu0 0.0
    %1122 = vmatpush1.msra.mxu0 %v1108
    %1123 = vmatprep.subr.mxu0 0.0
    %1124 = vmatpush1.msra.mxu0 %v1107
    %1125 = vmatprep.subr.mxu0 0.0
    %1126 = vmatpush1.msra.mxu0 %v1106
    %1127 = vmatprep.subr.mxu0 0.0
    %1128 = vmatpush1.msra.mxu0 %v1105
    %1129 = vmatprep.subr.mxu0 0.0
    %1130 = vmatpush1.msra.mxu0 %v1104
    %1131 = vmatprep.subr.mxu0 0.0
    %1132 = vmatpush1.msra.mxu0 %v1103
    %1133 = vmatprep.subr.mxu0 0.0
    %1134 = vmatpush1.msra.mxu0 %v1102
    %1135 = vmatprep.subr.mxu0 0.0
    %1136 = vmatpush1.msra.mxu0 %v1101
    %1137 = vmatprep.subr.mxu0 0.0
    %1138 = vmatpush1.msra.mxu0 %v1100
    %1139 = vmatprep.subr.mxu0 0.0
    %1140 = vmatpush1.msra.mxu0 %v1099
    %1141 = vmatprep.subr.mxu0 0.0
    %1142 = vmatpush1.msra.mxu0 %v1098
    %1143 = vmatprep.subr.mxu0 0.0
    %1144 = vmatpush1.msra.mxu0 %v1097
    %1145 = vmatprep.subr.mxu0 0.0
    %1146 = vmatpush2.msra.mxu0 0.0
    %1147 = vmatprep.subr.mxu0 0.0
    %1148 = vmatpush2.msra.mxu0 0.0
    %1149 = vmatprep.subr.mxu0 0.0
    %1150 = vmatpush2.msra.mxu0 0.0
    %1151 = vmatprep.subr.mxu0 0.0
    %1152 = vmatpush2.msra.mxu0 0.0
    %1153 = vmatprep.subr.mxu0 0.0
    %1154 = vmatpush2.msra.mxu0 0.0
    %1155 = vmatprep.subr.mxu0 0.0
    %1156 = vmatpush2.msra.mxu0 0.0
    %1157 = vmatprep.subr.mxu0 0.0
    %1158 = vmatpush2.msra.mxu0 0.0
    %1159 = vmatprep.subr.mxu0 0.0
    %1160 = vmatpush2.msra.mxu0 0.0
    %1161 = vmatprep.subr.mxu0 0.0
    %1162 = vmatpush2.msra.mxu0 0.0
    %1163 = vmatprep.subr.mxu0 0.0
    %1164 = vmatpush2.msra.mxu0 0.0
    %1165 = vmatprep.subr.mxu0 0.0
    %1166 = vmatpush2.msra.mxu0 0.0
    %1167 = vmatprep.subr.mxu0 0.0
    %1168 = vmatpush2.msra.mxu0 0.0
    %1169 = vmatprep.subr.mxu0 0.0
    %1170 = vmatpush2.msra.mxu0 0.0
    %1171 = vmatprep.subr.mxu0 0.0
    %1172 = vmatpush2.msra.mxu0 0.0
    %1173 = vmatprep.subr.mxu0 0.0
    %1174 = vmatpush2.msra.mxu0 0.0
    %1175 = vmatprep.subr.mxu0 0.0
    %1176 = vmatpush2.msra.mxu0 0.0
    %1177 = vmatprep.mubr.f32.mxu0 0.0
    %1178 = vmatmul.mubr.f32.gmra.mxu0 %v265
    %v1179 = vpop.f32.mrf.mxu0
    %v1180 = vadd.f32 0.0, %v1179
    %v1181 = vpop.f32.mrf.mxu0
    %1182 = vmatprep.mubr.f32.mxu0 0.0
    %1183 = vmatmul.mubr.f32.gmra.mxu0 %v267
    %v1184 = vpop.f32.mrf.mxu0
    %v1185 = vadd.f32 0.0, %v1184
    %v1186 = vpop.f32.mrf.mxu0
    %1187 = vdwg.mxu0
    %s1188 = scalar_lea.vmem %s7, 1280
    %v1189 = vld [vmem:[%s1188] sm:$0xff]
    %v1190 = vld [vmem:[%s1188 + $0x8] sm:$0xff]
    %v1191 = vld [vmem:[%s1188 + $0x10] sm:$0xff]
    %v1192 = vld [vmem:[%s1188 + $0x18] sm:$0xff]
    %v1193 = vld [vmem:[%s1188 + $0x20] sm:$0xff]
    %v1194 = vld [vmem:[%s1188 + $0x28] sm:$0xff]
    %v1195 = vld [vmem:[%s1188 + $0x30] sm:$0xff]
    %v1196 = vld [vmem:[%s1188 + $0x38] sm:$0xff]
    %v1197 = vld [vmem:[%s1188 + $0x40] sm:$0xff]
    %v1198 = vld [vmem:[%s1188 + $0x48] sm:$0xff]
    %v1199 = vld [vmem:[%s1188 + $0x50] sm:$0xff]
    %v1200 = vld [vmem:[%s1188 + $0x58] sm:$0xff]
    %v1201 = vld [vmem:[%s1188 + $0x60] sm:$0xff]
    %v1202 = vld [vmem:[%s1188 + $0x68] sm:$0xff]
    %v1203 = vld [vmem:[%s1188 + $0x70] sm:$0xff]
    %v1204 = vld [vmem:[%s1188 + $0x78] sm:$0xff]
    %1205 = vmatprep.subr.mxu0 0.0
    %1206 = vmatpush1.msra.mxu0 %v1204
    %1207 = vmatprep.subr.mxu0 0.0
    %1208 = vmatpush1.msra.mxu0 %v1203
    %1209 = vmatprep.subr.mxu0 0.0
    %1210 = vmatpush1.msra.mxu0 %v1202
    %1211 = vmatprep.subr.mxu0 0.0
    %1212 = vmatpush1.msra.mxu0 %v1201
    %1213 = vmatprep.subr.mxu0 0.0
    %1214 = vmatpush1.msra.mxu0 %v1200
    %1215 = vmatprep.subr.mxu0 0.0
    %1216 = vmatpush1.msra.mxu0 %v1199
    %1217 = vmatprep.subr.mxu0 0.0
    %1218 = vmatpush1.msra.mxu0 %v1198
    %1219 = vmatprep.subr.mxu0 0.0
    %1220 = vmatpush1.msra.mxu0 %v1197
    %1221 = vmatprep.subr.mxu0 0.0
    %1222 = vmatpush1.msra.mxu0 %v1196
    %1223 = vmatprep.subr.mxu0 0.0
    %1224 = vmatpush1.msra.mxu0 %v1195
    %1225 = vmatprep.subr.mxu0 0.0
    %1226 = vmatpush1.msra.mxu0 %v1194
    %1227 = vmatprep.subr.mxu0 0.0
    %1228 = vmatpush1.msra.mxu0 %v1193
    %1229 = vmatprep.subr.mxu0 0.0
    %1230 = vmatpush1.msra.mxu0 %v1192
    %1231 = vmatprep.subr.mxu0 0.0
    %1232 = vmatpush1.msra.mxu0 %v1191
    %1233 = vmatprep.subr.mxu0 0.0
    %1234 = vmatpush1.msra.mxu0 %v1190
    %1235 = vmatprep.subr.mxu0 0.0
    %1236 = vmatpush1.msra.mxu0 %v1189
    %1237 = vmatprep.subr.mxu0 0.0
    %1238 = vmatpush2.msra.mxu0 0.0
    %1239 = vmatprep.subr.mxu0 0.0
    %1240 = vmatpush2.msra.mxu0 0.0
    %1241 = vmatprep.subr.mxu0 0.0
    %1242 = vmatpush2.msra.mxu0 0.0
    %1243 = vmatprep.subr.mxu0 0.0
    %1244 = vmatpush2.msra.mxu0 0.0
    %1245 = vmatprep.subr.mxu0 0.0
    %1246 = vmatpush2.msra.mxu0 0.0
    %1247 = vmatprep.subr.mxu0 0.0
    %1248 = vmatpush2.msra.mxu0 0.0
    %1249 = vmatprep.subr.mxu0 0.0
    %1250 = vmatpush2.msra.mxu0 0.0
    %1251 = vmatprep.subr.mxu0 0.0
    %1252 = vmatpush2.msra.mxu0 0.0
    %1253 = vmatprep.subr.mxu0 0.0
    %1254 = vmatpush2.msra.mxu0 0.0
    %1255 = vmatprep.subr.mxu0 0.0
    %1256 = vmatpush2.msra.mxu0 0.0
    %1257 = vmatprep.subr.mxu0 0.0
    %1258 = vmatpush2.msra.mxu0 0.0
    %1259 = vmatprep.subr.mxu0 0.0
    %1260 = vmatpush2.msra.mxu0 0.0
    %1261 = vmatprep.subr.mxu0 0.0
    %1262 = vmatpush2.msra.mxu0 0.0
    %1263 = vmatprep.subr.mxu0 0.0
    %1264 = vmatpush2.msra.mxu0 0.0
    %1265 = vmatprep.subr.mxu0 0.0
    %1266 = vmatpush2.msra.mxu0 0.0
    %1267 = vmatprep.subr.mxu0 0.0
    %1268 = vmatpush2.msra.mxu0 0.0
    %1269 = vmatprep.mubr.f32.mxu0 0.0
    %1270 = vmatmul.mubr.f32.gmra.mxu0 %v265
    %v1271 = vpop.f32.mrf.mxu0
    %v1272 = vadd.f32 0.0, %v1271
    %v1273 = vpop.f32.mrf.mxu0
    %1274 = vmatprep.mubr.f32.mxu0 0.0
    %1275 = vmatmul.mubr.f32.gmra.mxu0 %v267
    %v1276 = vpop.f32.mrf.mxu0
    %v1277 = vadd.f32 0.0, %v1276
    %v1278 = vpop.f32.mrf.mxu0
    %1279 = vdwg.mxu0
    %s1280 = scalar_lea.vmem %s7, 1408
    %v1281 = vld [vmem:[%s1280] sm:$0xff]
    %v1282 = vld [vmem:[%s1280 + $0x8] sm:$0xff]
    %v1283 = vld [vmem:[%s1280 + $0x10] sm:$0xff]
    %v1284 = vld [vmem:[%s1280 + $0x18] sm:$0xff]
    %v1285 = vld [vmem:[%s1280 + $0x20] sm:$0xff]
    %v1286 = vld [vmem:[%s1280 + $0x28] sm:$0xff]
    %v1287 = vld [vmem:[%s1280 + $0x30] sm:$0xff]
    %v1288 = vld [vmem:[%s1280 + $0x38] sm:$0xff]
    %v1289 = vld [vmem:[%s1280 + $0x40] sm:$0xff]
    %v1290 = vld [vmem:[%s1280 + $0x48] sm:$0xff]
    %v1291 = vld [vmem:[%s1280 + $0x50] sm:$0xff]
    %v1292 = vld [vmem:[%s1280 + $0x58] sm:$0xff]
    %v1293 = vld [vmem:[%s1280 + $0x60] sm:$0xff]
    %v1294 = vld [vmem:[%s1280 + $0x68] sm:$0xff]
    %v1295 = vld [vmem:[%s1280 + $0x70] sm:$0xff]
    %v1296 = vld [vmem:[%s1280 + $0x78] sm:$0xff]
    %1297 = vmatprep.subr.mxu0 0.0
    %1298 = vmatpush1.msra.mxu0 %v1296
    %1299 = vmatprep.subr.mxu0 0.0
    %1300 = vmatpush1.msra.mxu0 %v1295
    %1301 = vmatprep.subr.mxu0 0.0
    %1302 = vmatpush1.msra.mxu0 %v1294
    %1303 = vmatprep.subr.mxu0 0.0
    %1304 = vmatpush1.msra.mxu0 %v1293
    %1305 = vmatprep.subr.mxu0 0.0
    %1306 = vmatpush1.msra.mxu0 %v1292
    %1307 = vmatprep.subr.mxu0 0.0
    %1308 = vmatpush1.msra.mxu0 %v1291
    %1309 = vmatprep.subr.mxu0 0.0
    %1310 = vmatpush1.msra.mxu0 %v1290
    %1311 = vmatprep.subr.mxu0 0.0
    %1312 = vmatpush1.msra.mxu0 %v1289
    %1313 = vmatprep.subr.mxu0 0.0
    %1314 = vmatpush1.msra.mxu0 %v1288
    %1315 = vmatprep.subr.mxu0 0.0
    %1316 = vmatpush1.msra.mxu0 %v1287
    %1317 = vmatprep.subr.mxu0 0.0
    %1318 = vmatpush1.msra.mxu0 %v1286
    %1319 = vmatprep.subr.mxu0 0.0
    %1320 = vmatpush1.msra.mxu0 %v1285
    %1321 = vmatprep.subr.mxu0 0.0
    %1322 = vmatpush1.msra.mxu0 %v1284
    %1323 = vmatprep.subr.mxu0 0.0
    %1324 = vmatpush1.msra.mxu0 %v1283
    %1325 = vmatprep.subr.mxu0 0.0
    %1326 = vmatpush1.msra.mxu0 %v1282
    %1327 = vmatprep.subr.mxu0 0.0
    %1328 = vmatpush1.msra.mxu0 %v1281
    %1329 = vmatprep.subr.mxu0 0.0
    %1330 = vmatpush2.msra.mxu0 0.0
    %1331 = vmatprep.subr.mxu0 0.0
    %1332 = vmatpush2.msra.mxu0 0.0
    %1333 = vmatprep.subr.mxu0 0.0
    %1334 = vmatpush2.msra.mxu0 0.0
    %1335 = vmatprep.subr.mxu0 0.0
    %1336 = vmatpush2.msra.mxu0 0.0
    %1337 = vmatprep.subr.mxu0 0.0
    %1338 = vmatpush2.msra.mxu0 0.0
    %1339 = vmatprep.subr.mxu0 0.0
    %1340 = vmatpush2.msra.mxu0 0.0
    %1341 = vmatprep.subr.mxu0 0.0
    %1342 = vmatpush2.msra.mxu0 0.0
    %1343 = vmatprep.subr.mxu0 0.0
    %1344 = vmatpush2.msra.mxu0 0.0
    %1345 = vmatprep.subr.mxu0 0.0
    %1346 = vmatpush2.msra.mxu0 0.0
    %1347 = vmatprep.subr.mxu0 0.0
    %1348 = vmatpush2.msra.mxu0 0.0
    %1349 = vmatprep.subr.mxu0 0.0
    %1350 = vmatpush2.msra.mxu0 0.0
    %1351 = vmatprep.subr.mxu0 0.0
    %1352 = vmatpush2.msra.mxu0 0.0
    %1353 = vmatprep.subr.mxu0 0.0
    %1354 = vmatpush2.msra.mxu0 0.0
    %1355 = vmatprep.subr.mxu0 0.0
    %1356 = vmatpush2.msra.mxu0 0.0
    %1357 = vmatprep.subr.mxu0 0.0
    %1358 = vmatpush2.msra.mxu0 0.0
    %1359 = vmatprep.subr.mxu0 0.0
    %1360 = vmatpush2.msra.mxu0 0.0
    %1361 = vmatprep.mubr.f32.mxu0 0.0
    %1362 = vmatmul.mubr.f32.gmra.mxu0 %v265
    %v1363 = vpop.f32.mrf.mxu0
    %v1364 = vadd.f32 0.0, %v1363
    %v1365 = vpop.f32.mrf.mxu0
    %1366 = vmatprep.mubr.f32.mxu0 0.0
    %1367 = vmatmul.mubr.f32.gmra.mxu0 %v267
    %v1368 = vpop.f32.mrf.mxu0
    %v1369 = vadd.f32 0.0, %v1368
    %v1370 = vpop.f32.mrf.mxu0
    %1371 = vdwg.mxu0
    %s1372 = scalar_lea.vmem %s7, 1536
    %v1373 = vld [vmem:[%s1372] sm:$0xff]
    %v1374 = vld [vmem:[%s1372 + $0x8] sm:$0xff]
    %v1375 = vld [vmem:[%s1372 + $0x10] sm:$0xff]
    %v1376 = vld [vmem:[%s1372 + $0x18] sm:$0xff]
    %v1377 = vld [vmem:[%s1372 + $0x20] sm:$0xff]
    %v1378 = vld [vmem:[%s1372 + $0x28] sm:$0xff]
    %v1379 = vld [vmem:[%s1372 + $0x30] sm:$0xff]
    %v1380 = vld [vmem:[%s1372 + $0x38] sm:$0xff]
    %v1381 = vld [vmem:[%s1372 + $0x40] sm:$0xff]
    %v1382 = vld [vmem:[%s1372 + $0x48] sm:$0xff]
    %v1383 = vld [vmem:[%s1372 + $0x50] sm:$0xff]
    %v1384 = vld [vmem:[%s1372 + $0x58] sm:$0xff]
    %v1385 = vld [vmem:[%s1372 + $0x60] sm:$0xff]
    %v1386 = vld [vmem:[%s1372 + $0x68] sm:$0xff]
    %v1387 = vld [vmem:[%s1372 + $0x70] sm:$0xff]
    %v1388 = vld [vmem:[%s1372 + $0x78] sm:$0xff]
    %1389 = vmatprep.subr.mxu0 0.0
    %1390 = vmatpush1.msra.mxu0 %v1388
    %1391 = vmatprep.subr.mxu0 0.0
    %1392 = vmatpush1.msra.mxu0 %v1387
    %1393 = vmatprep.subr.mxu0 0.0
    %1394 = vmatpush1.msra.mxu0 %v1386
    %1395 = vmatprep.subr.mxu0 0.0
    %1396 = vmatpush1.msra.mxu0 %v1385
    %1397 = vmatprep.subr.mxu0 0.0
    %1398 = vmatpush1.msra.mxu0 %v1384
    %1399 = vmatprep.subr.mxu0 0.0
    %1400 = vmatpush1.msra.mxu0 %v1383
    %1401 = vmatprep.subr.mxu0 0.0
    %1402 = vmatpush1.msra.mxu0 %v1382
    %1403 = vmatprep.subr.mxu0 0.0
    %1404 = vmatpush1.msra.mxu0 %v1381
    %1405 = vmatprep.subr.mxu0 0.0
    %1406 = vmatpush1.msra.mxu0 %v1380
    %1407 = vmatprep.subr.mxu0 0.0
    %1408 = vmatpush1.msra.mxu0 %v1379
    %1409 = vmatprep.subr.mxu0 0.0
    %1410 = vmatpush1.msra.mxu0 %v1378
    %1411 = vmatprep.subr.mxu0 0.0
    %1412 = vmatpush1.msra.mxu0 %v1377
    %1413 = vmatprep.subr.mxu0 0.0
    %1414 = vmatpush1.msra.mxu0 %v1376
    %1415 = vmatprep.subr.mxu0 0.0
    %1416 = vmatpush1.msra.mxu0 %v1375
    %1417 = vmatprep.subr.mxu0 0.0
    %1418 = vmatpush1.msra.mxu0 %v1374
    %1419 = vmatprep.subr.mxu0 0.0
    %1420 = vmatpush1.msra.mxu0 %v1373
    %1421 = vmatprep.subr.mxu0 0.0
    %1422 = vmatpush2.msra.mxu0 0.0
    %1423 = vmatprep.subr.mxu0 0.0
    %1424 = vmatpush2.msra.mxu0 0.0
    %1425 = vmatprep.subr.mxu0 0.0
    %1426 = vmatpush2.msra.mxu0 0.0
    %1427 = vmatprep.subr.mxu0 0.0
    %1428 = vmatpush2.msra.mxu0 0.0
    %1429 = vmatprep.subr.mxu0 0.0
    %1430 = vmatpush2.msra.mxu0 0.0
    %1431 = vmatprep.subr.mxu0 0.0
    %1432 = vmatpush2.msra.mxu0 0.0
    %1433 = vmatprep.subr.mxu0 0.0
    %1434 = vmatpush2.msra.mxu0 0.0
    %1435 = vmatprep.subr.mxu0 0.0
    %1436 = vmatpush2.msra.mxu0 0.0
    %1437 = vmatprep.subr.mxu0 0.0
    %1438 = vmatpush2.msra.mxu0 0.0
    %1439 = vmatprep.subr.mxu0 0.0
    %1440 = vmatpush2.msra.mxu0 0.0
    %1441 = vmatprep.subr.mxu0 0.0
    %1442 = vmatpush2.msra.mxu0 0.0
    %1443 = vmatprep.subr.mxu0 0.0
    %1444 = vmatpush2.msra.mxu0 0.0
    %1445 = vmatprep.subr.mxu0 0.0
    %1446 = vmatpush2.msra.mxu0 0.0
    %1447 = vmatprep.subr.mxu0 0.0
    %1448 = vmatpush2.msra.mxu0 0.0
    %1449 = vmatprep.subr.mxu0 0.0
    %1450 = vmatpush2.msra.mxu0 0.0
    %1451 = vmatprep.subr.mxu0 0.0
    %1452 = vmatpush2.msra.mxu0 0.0
    %1453 = vmatprep.mubr.f32.mxu0 0.0
    %1454 = vmatmul.mubr.f32.gmra.mxu0 %v265
    %v1455 = vpop.f32.mrf.mxu0
    %v1456 = vadd.f32 0.0, %v1455
    %v1457 = vpop.f32.mrf.mxu0
    %1458 = vmatprep.mubr.f32.mxu0 0.0
    %1459 = vmatmul.mubr.f32.gmra.mxu0 %v267
    %v1460 = vpop.f32.mrf.mxu0
    %v1461 = vadd.f32 0.0, %v1460
    %v1462 = vpop.f32.mrf.mxu0
    %1463 = vdwg.mxu0
    %s1464 = scalar_lea.vmem %s7, 1664
    %v1465 = vld [vmem:[%s1464] sm:$0xff]
    %v1466 = vld [vmem:[%s1464 + $0x8] sm:$0xff]
    %v1467 = vld [vmem:[%s1464 + $0x10] sm:$0xff]
    %v1468 = vld [vmem:[%s1464 + $0x18] sm:$0xff]
    %v1469 = vld [vmem:[%s1464 + $0x20] sm:$0xff]
    %v1470 = vld [vmem:[%s1464 + $0x28] sm:$0xff]
    %v1471 = vld [vmem:[%s1464 + $0x30] sm:$0xff]
    %v1472 = vld [vmem:[%s1464 + $0x38] sm:$0xff]
    %v1473 = vld [vmem:[%s1464 + $0x40] sm:$0xff]
    %v1474 = vld [vmem:[%s1464 + $0x48] sm:$0xff]
    %v1475 = vld [vmem:[%s1464 + $0x50] sm:$0xff]
    %v1476 = vld [vmem:[%s1464 + $0x58] sm:$0xff]
    %v1477 = vld [vmem:[%s1464 + $0x60] sm:$0xff]
    %v1478 = vld [vmem:[%s1464 + $0x68] sm:$0xff]
    %v1479 = vld [vmem:[%s1464 + $0x70] sm:$0xff]
    %v1480 = vld [vmem:[%s1464 + $0x78] sm:$0xff]
    %1481 = vmatprep.subr.mxu0 0.0
    %1482 = vmatpush1.msra.mxu0 %v1480
    %1483 = vmatprep.subr.mxu0 0.0
    %1484 = vmatpush1.msra.mxu0 %v1479
    %1485 = vmatprep.subr.mxu0 0.0
    %1486 = vmatpush1.msra.mxu0 %v1478
    %1487 = vmatprep.subr.mxu0 0.0
    %1488 = vmatpush1.msra.mxu0 %v1477
    %1489 = vmatprep.subr.mxu0 0.0
    %1490 = vmatpush1.msra.mxu0 %v1476
    %1491 = vmatprep.subr.mxu0 0.0
    %1492 = vmatpush1.msra.mxu0 %v1475
    %1493 = vmatprep.subr.mxu0 0.0
    %1494 = vmatpush1.msra.mxu0 %v1474
    %1495 = vmatprep.subr.mxu0 0.0
    %1496 = vmatpush1.msra.mxu0 %v1473
    %1497 = vmatprep.subr.mxu0 0.0
    %1498 = vmatpush1.msra.mxu0 %v1472
    %1499 = vmatprep.subr.mxu0 0.0
    %1500 = vmatpush1.msra.mxu0 %v1471
    %1501 = vmatprep.subr.mxu0 0.0
    %1502 = vmatpush1.msra.mxu0 %v1470
    %1503 = vmatprep.subr.mxu0 0.0
    %1504 = vmatpush1.msra.mxu0 %v1469
    %1505 = vmatprep.subr.mxu0 0.0
    %1506 = vmatpush1.msra.mxu0 %v1468
    %1507 = vmatprep.subr.mxu0 0.0
    %1508 = vmatpush1.msra.mxu0 %v1467
    %1509 = vmatprep.subr.mxu0 0.0
    %1510 = vmatpush1.msra.mxu0 %v1466
    %1511 = vmatprep.subr.mxu0 0.0
    %1512 = vmatpush1.msra.mxu0 %v1465
    %1513 = vmatprep.subr.mxu0 0.0
    %1514 = vmatpush2.msra.mxu0 0.0
    %1515 = vmatprep.subr.mxu0 0.0
    %1516 = vmatpush2.msra.mxu0 0.0
    %1517 = vmatprep.subr.mxu0 0.0
    %1518 = vmatpush2.msra.mxu0 0.0
    %1519 = vmatprep.subr.mxu0 0.0
    %1520 = vmatpush2.msra.mxu0 0.0
    %1521 = vmatprep.subr.mxu0 0.0
    %1522 = vmatpush2.msra.mxu0 0.0
    %1523 = vmatprep.subr.mxu0 0.0
    %1524 = vmatpush2.msra.mxu0 0.0
    %1525 = vmatprep.subr.mxu0 0.0
    %1526 = vmatpush2.msra.mxu0 0.0
    %1527 = vmatprep.subr.mxu0 0.0
    %1528 = vmatpush2.msra.mxu0 0.0
    %1529 = vmatprep.subr.mxu0 0.0
    %1530 = vmatpush2.msra.mxu0 0.0
    %1531 = vmatprep.subr.mxu0 0.0
    %1532 = vmatpush2.msra.mxu0 0.0
    %1533 = vmatprep.subr.mxu0 0.0
    %1534 = vmatpush2.msra.mxu0 0.0
    %1535 = vmatprep.subr.mxu0 0.0
    %1536 = vmatpush2.msra.mxu0 0.0
    %1537 = vmatprep.subr.mxu0 0.0
    %1538 = vmatpush2.msra.mxu0 0.0
    %1539 = vmatprep.subr.mxu0 0.0
    %1540 = vmatpush2.msra.mxu0 0.0
    %1541 = vmatprep.subr.mxu0 0.0
    %1542 = vmatpush2.msra.mxu0 0.0
    %1543 = vmatprep.subr.mxu0 0.0
    %1544 = vmatpush2.msra.mxu0 0.0
    %1545 = vmatprep.mubr.f32.mxu0 0.0
    %1546 = vmatmul.mubr.f32.gmra.mxu0 %v265
    %v1547 = vpop.f32.mrf.mxu0
    %v1548 = vadd.f32 0.0, %v1547
    %v1549 = vpop.f32.mrf.mxu0
    %1550 = vmatprep.mubr.f32.mxu0 0.0
    %1551 = vmatmul.mubr.f32.gmra.mxu0 %v267
    %v1552 = vpop.f32.mrf.mxu0
    %v1553 = vadd.f32 0.0, %v1552
    %v1554 = vpop.f32.mrf.mxu0
    %1555 = vdwg.mxu0
    %s1556 = scalar_lea.vmem %s7, 1792
    %v1557 = vld [vmem:[%s1556] sm:$0xff]
    %v1558 = vld [vmem:[%s1556 + $0x8] sm:$0xff]
    %v1559 = vld [vmem:[%s1556 + $0x10] sm:$0xff]
    %v1560 = vld [vmem:[%s1556 + $0x18] sm:$0xff]
    %v1561 = vld [vmem:[%s1556 + $0x20] sm:$0xff]
    %v1562 = vld [vmem:[%s1556 + $0x28] sm:$0xff]
    %v1563 = vld [vmem:[%s1556 + $0x30] sm:$0xff]
    %v1564 = vld [vmem:[%s1556 + $0x38] sm:$0xff]
    %v1565 = vld [vmem:[%s1556 + $0x40] sm:$0xff]
    %v1566 = vld [vmem:[%s1556 + $0x48] sm:$0xff]
    %v1567 = vld [vmem:[%s1556 + $0x50] sm:$0xff]
    %v1568 = vld [vmem:[%s1556 + $0x58] sm:$0xff]
    %v1569 = vld [vmem:[%s1556 + $0x60] sm:$0xff]
    %v1570 = vld [vmem:[%s1556 + $0x68] sm:$0xff]
    %v1571 = vld [vmem:[%s1556 + $0x70] sm:$0xff]
    %v1572 = vld [vmem:[%s1556 + $0x78] sm:$0xff]
    %1573 = vmatprep.subr.mxu0 0.0
    %1574 = vmatpush1.msra.mxu0 %v1572
    %1575 = vmatprep.subr.mxu0 0.0
    %1576 = vmatpush1.msra.mxu0 %v1571
    %1577 = vmatprep.subr.mxu0 0.0
    %1578 = vmatpush1.msra.mxu0 %v1570
    %1579 = vmatprep.subr.mxu0 0.0
    %1580 = vmatpush1.msra.mxu0 %v1569
    %1581 = vmatprep.subr.mxu0 0.0
    %1582 = vmatpush1.msra.mxu0 %v1568
    %1583 = vmatprep.subr.mxu0 0.0
    %1584 = vmatpush1.msra.mxu0 %v1567
    %1585 = vmatprep.subr.mxu0 0.0
    %1586 = vmatpush1.msra.mxu0 %v1566
    %1587 = vmatprep.subr.mxu0 0.0
    %1588 = vmatpush1.msra.mxu0 %v1565
    %1589 = vmatprep.subr.mxu0 0.0
    %1590 = vmatpush1.msra.mxu0 %v1564
    %1591 = vmatprep.subr.mxu0 0.0
    %1592 = vmatpush1.msra.mxu0 %v1563
    %1593 = vmatprep.subr.mxu0 0.0
    %1594 = vmatpush1.msra.mxu0 %v1562
    %1595 = vmatprep.subr.mxu0 0.0
    %1596 = vmatpush1.msra.mxu0 %v1561
    %1597 = vmatprep.subr.mxu0 0.0
    %1598 = vmatpush1.msra.mxu0 %v1560
    %1599 = vmatprep.subr.mxu0 0.0
    %1600 = vmatpush1.msra.mxu0 %v1559
    %1601 = vmatprep.subr.mxu0 0.0
    %1602 = vmatpush1.msra.mxu0 %v1558
    %1603 = vmatprep.subr.mxu0 0.0
    %1604 = vmatpush1.msra.mxu0 %v1557
    %1605 = vmatprep.subr.mxu0 0.0
    %1606 = vmatpush2.msra.mxu0 0.0
    %1607 = vmatprep.subr.mxu0 0.0
    %1608 = vmatpush2.msra.mxu0 0.0
    %1609 = vmatprep.subr.mxu0 0.0
    %1610 = vmatpush2.msra.mxu0 0.0
    %1611 = vmatprep.subr.mxu0 0.0
    %1612 = vmatpush2.msra.mxu0 0.0
    %1613 = vmatprep.subr.mxu0 0.0
    %1614 = vmatpush2.msra.mxu0 0.0
    %1615 = vmatprep.subr.mxu0 0.0
    %1616 = vmatpush2.msra.mxu0 0.0
    %1617 = vmatprep.subr.mxu0 0.0
    %1618 = vmatpush2.msra.mxu0 0.0
    %1619 = vmatprep.subr.mxu0 0.0
    %1620 = vmatpush2.msra.mxu0 0.0
    %1621 = vmatprep.subr.mxu0 0.0
    %1622 = vmatpush2.msra.mxu0 0.0
    %1623 = vmatprep.subr.mxu0 0.0
    %1624 = vmatpush2.msra.mxu0 0.0
    %1625 = vmatprep.subr.mxu0 0.0
    %1626 = vmatpush2.msra.mxu0 0.0
    %1627 = vmatprep.subr.mxu0 0.0
    %1628 = vmatpush2.msra.mxu0 0.0
    %1629 = vmatprep.subr.mxu0 0.0
    %1630 = vmatpush2.msra.mxu0 0.0
    %1631 = vmatprep.subr.mxu0 0.0
    %1632 = vmatpush2.msra.mxu0 0.0
    %1633 = vmatprep.subr.mxu0 0.0
    %1634 = vmatpush2.msra.mxu0 0.0
    %1635 = vmatprep.subr.mxu0 0.0
    %1636 = vmatpush2.msra.mxu0 0.0
    %1637 = vmatprep.mubr.f32.mxu0 0.0
    %1638 = vmatmul.mubr.f32.gmra.mxu0 %v265
    %v1639 = vpop.f32.mrf.mxu0
    %v1640 = vadd.f32 0.0, %v1639
    %v1641 = vpop.f32.mrf.mxu0
    %1642 = vmatprep.mubr.f32.mxu0 0.0
    %1643 = vmatmul.mubr.f32.gmra.mxu0 %v267
    %v1644 = vpop.f32.mrf.mxu0
    %v1645 = vadd.f32 0.0, %v1644
    %v1646 = vpop.f32.mrf.mxu0
    %1647 = vdwg.mxu0
    %s1648 = scalar_lea.vmem %s7, 1920
    %v1649 = vld [vmem:[%s1648] sm:$0xff]
    %v1650 = vld [vmem:[%s1648 + $0x8] sm:$0xff]
    %v1651 = vld [vmem:[%s1648 + $0x10] sm:$0xff]
    %v1652 = vld [vmem:[%s1648 + $0x18] sm:$0xff]
    %v1653 = vld [vmem:[%s1648 + $0x20] sm:$0xff]
    %v1654 = vld [vmem:[%s1648 + $0x28] sm:$0xff]
    %v1655 = vld [vmem:[%s1648 + $0x30] sm:$0xff]
    %v1656 = vld [vmem:[%s1648 + $0x38] sm:$0xff]
    %v1657 = vld [vmem:[%s1648 + $0x40] sm:$0xff]
    %v1658 = vld [vmem:[%s1648 + $0x48] sm:$0xff]
    %v1659 = vld [vmem:[%s1648 + $0x50] sm:$0xff]
    %v1660 = vld [vmem:[%s1648 + $0x58] sm:$0xff]
    %v1661 = vld [vmem:[%s1648 + $0x60] sm:$0xff]
    %v1662 = vld [vmem:[%s1648 + $0x68] sm:$0xff]
    %v1663 = vld [vmem:[%s1648 + $0x70] sm:$0xff]
    %v1664 = vld [vmem:[%s1648 + $0x78] sm:$0xff]
    %1665 = vmatprep.subr.mxu0 0.0
    %1666 = vmatpush1.msra.mxu0 %v1664
    %1667 = vmatprep.subr.mxu0 0.0
    %1668 = vmatpush1.msra.mxu0 %v1663
    %1669 = vmatprep.subr.mxu0 0.0
    %1670 = vmatpush1.msra.mxu0 %v1662
    %1671 = vmatprep.subr.mxu0 0.0
    %1672 = vmatpush1.msra.mxu0 %v1661
    %1673 = vmatprep.subr.mxu0 0.0
    %1674 = vmatpush1.msra.mxu0 %v1660
    %1675 = vmatprep.subr.mxu0 0.0
    %1676 = vmatpush1.msra.mxu0 %v1659
    %1677 = vmatprep.subr.mxu0 0.0
    %1678 = vmatpush1.msra.mxu0 %v1658
    %1679 = vmatprep.subr.mxu0 0.0
    %1680 = vmatpush1.msra.mxu0 %v1657
    %1681 = vmatprep.subr.mxu0 0.0
    %1682 = vmatpush1.msra.mxu0 %v1656
    %1683 = vmatprep.subr.mxu0 0.0
    %1684 = vmatpush1.msra.mxu0 %v1655
    %1685 = vmatprep.subr.mxu0 0.0
    %1686 = vmatpush1.msra.mxu0 %v1654
    %1687 = vmatprep.subr.mxu0 0.0
    %1688 = vmatpush1.msra.mxu0 %v1653
    %1689 = vmatprep.subr.mxu0 0.0
    %1690 = vmatpush1.msra.mxu0 %v1652
    %1691 = vmatprep.subr.mxu0 0.0
    %1692 = vmatpush1.msra.mxu0 %v1651
    %1693 = vmatprep.subr.mxu0 0.0
    %1694 = vmatpush1.msra.mxu0 %v1650
    %1695 = vmatprep.subr.mxu0 0.0
    %1696 = vmatpush1.msra.mxu0 %v1649
    %1697 = vmatprep.subr.mxu0 0.0
    %1698 = vmatpush2.msra.mxu0 0.0
    %1699 = vmatprep.subr.mxu0 0.0
    %1700 = vmatpush2.msra.mxu0 0.0
    %1701 = vmatprep.subr.mxu0 0.0
    %1702 = vmatpush2.msra.mxu0 0.0
    %1703 = vmatprep.subr.mxu0 0.0
    %1704 = vmatpush2.msra.mxu0 0.0
    %1705 = vmatprep.subr.mxu0 0.0
    %1706 = vmatpush2.msra.mxu0 0.0
    %1707 = vmatprep.subr.mxu0 0.0
    %1708 = vmatpush2.msra.mxu0 0.0
    %1709 = vmatprep.subr.mxu0 0.0
    %1710 = vmatpush2.msra.mxu0 0.0
    %1711 = vmatprep.subr.mxu0 0.0
    %1712 = vmatpush2.msra.mxu0 0.0
    %1713 = vmatprep.subr.mxu0 0.0
    %1714 = vmatpush2.msra.mxu0 0.0
    %1715 = vmatprep.subr.mxu0 0.0
    %1716 = vmatpush2.msra.mxu0 0.0
    %1717 = vmatprep.subr.mxu0 0.0
    %1718 = vmatpush2.msra.mxu0 0.0
    %1719 = vmatprep.subr.mxu0 0.0
    %1720 = vmatpush2.msra.mxu0 0.0
    %1721 = vmatprep.subr.mxu0 0.0
    %1722 = vmatpush2.msra.mxu0 0.0
    %1723 = vmatprep.subr.mxu0 0.0
    %1724 = vmatpush2.msra.mxu0 0.0
    %1725 = vmatprep.subr.mxu0 0.0
    %1726 = vmatpush2.msra.mxu0 0.0
    %1727 = vmatprep.subr.mxu0 0.0
    %1728 = vmatpush2.msra.mxu0 0.0
    %1729 = vmatprep.mubr.f32.mxu0 0.0
    %1730 = vmatmul.mubr.f32.gmra.mxu0 %v265
    %v1731 = vpop.f32.mrf.mxu0
    %v1732 = vadd.f32 0.0, %v1731
    %v1733 = vpop.f32.mrf.mxu0
    %1734 = vmatprep.mubr.f32.mxu0 0.0
    %1735 = vmatmul.mubr.f32.gmra.mxu0 %v267
    %v1736 = vpop.f32.mrf.mxu0
    %v1737 = vadd.f32 0.0, %v1736
    %v1738 = vpop.f32.mrf.mxu0
    %1739 = vdwg.mxu0
    %v1740 = vld [vmem:[%s9] sm:$0xff]
    %v1741 = vld [vmem:[%s9 + $0x8] sm:$0xff]
    %v1742 = vld [vmem:[%s9 + $0x10] sm:$0xff]
    %v1743 = vld [vmem:[%s9 + $0x18] sm:$0xff]
    %v1744 = vld [vmem:[%s11] sm:$0xff]
    %v1745 = vld [vmem:[%s11 + $0x8] sm:$0xff]
    %1747 = vset.pattern.permute.xlu0 0
    %1748 = vperm.xlu0 %1747, %v1744
    %v1749 = vpop.permute.xlu0 %1748
    %1752 = vset.pattern.permute.xlu0 0
    %1753 = vperm.xlu0 %1752, %v1745
    %v1754 = vpop.permute.xlu0 %1753
    %1756 = vmatprep.subr.mxu0 0.0
    %1757 = vmatpush1.msra.mxu0 %v1001
    %1758 = vmatprep.subr.mxu0 0.0
    %1759 = vmatpush1.msra.mxu0 %v996
    %1760 = vmatprep.subr.mxu0 0.0
    %1761 = vmatpush1.msra.mxu0 %v909
    %1762 = vmatprep.subr.mxu0 0.0
    %1763 = vmatpush1.msra.mxu0 %v904
    %1764 = vmatprep.subr.mxu0 0.0
    %1765 = vmatpush1.msra.mxu0 %v817
    %1766 = vmatprep.subr.mxu0 0.0
    %1767 = vmatpush1.msra.mxu0 %v812
    %1768 = vmatprep.subr.mxu0 0.0
    %1769 = vmatpush1.msra.mxu0 %v725
    %1770 = vmatprep.subr.mxu0 0.0
    %1771 = vmatpush1.msra.mxu0 %v720
    %1772 = vmatprep.subr.mxu0 0.0
    %1773 = vmatpush1.msra.mxu0 %v633
    %1774 = vmatprep.subr.mxu0 0.0
    %1775 = vmatpush1.msra.mxu0 %v628
    %1776 = vmatprep.subr.mxu0 0.0
    %1777 = vmatpush1.msra.mxu0 %v541
    %1778 = vmatprep.subr.mxu0 0.0
    %1779 = vmatpush1.msra.mxu0 %v536
    %1780 = vmatprep.subr.mxu0 0.0
    %1781 = vmatpush1.msra.mxu0 %v449
    %1782 = vmatprep.subr.mxu0 0.0
    %1783 = vmatpush1.msra.mxu0 %v444
    %1784 = vmatprep.subr.mxu0 0.0
    %1785 = vmatpush1.msra.mxu0 %v357
    %1786 = vmatprep.subr.mxu0 0.0
    %1787 = vmatpush1.msra.mxu0 %v352
    %1788 = vmatprep.subr.mxu0 0.0
    %1789 = vmatpush2.msra.mxu0 %v1737
    %1790 = vmatprep.subr.mxu0 0.0
    %1791 = vmatpush2.msra.mxu0 %v1732
    %1792 = vmatprep.subr.mxu0 0.0
    %1793 = vmatpush2.msra.mxu0 %v1645
    %1794 = vmatprep.subr.mxu0 0.0
    %1795 = vmatpush2.msra.mxu0 %v1640
    %1796 = vmatprep.subr.mxu0 0.0
    %1797 = vmatpush2.msra.mxu0 %v1553
    %1798 = vmatprep.subr.mxu0 0.0
    %1799 = vmatpush2.msra.mxu0 %v1548
    %1800 = vmatprep.subr.mxu0 0.0
    %1801 = vmatpush2.msra.mxu0 %v1461
    %1802 = vmatprep.subr.mxu0 0.0
    %1803 = vmatpush2.msra.mxu0 %v1456
    %1804 = vmatprep.subr.mxu0 0.0
    %1805 = vmatpush2.msra.mxu0 %v1369
    %1806 = vmatprep.subr.mxu0 0.0
    %1807 = vmatpush2.msra.mxu0 %v1364
    %1808 = vmatprep.subr.mxu0 0.0
    %1809 = vmatpush2.msra.mxu0 %v1277
    %1810 = vmatprep.subr.mxu0 0.0
    %1811 = vmatpush2.msra.mxu0 %v1272
    %1812 = vmatprep.subr.mxu0 0.0
    %1813 = vmatpush2.msra.mxu0 %v1185
    %1814 = vmatprep.subr.mxu0 0.0
    %1815 = vmatpush2.msra.mxu0 %v1180
    %1816 = vmatprep.subr.mxu0 0.0
    %1817 = vmatpush2.msra.mxu0 %v1093
    %1818 = vmatprep.subr.mxu0 0.0
    %1819 = vmatpush2.msra.mxu0 %v1088
    %1820 = vmatprep.mubr.f32.mxu0 %v1741
    %1821 = vmatmul.mubr.f32.gmra.mxu0 %v1740
    %v1822 = vpop.f32.mrf.mxu0
    %v1823 = vadd.f32 %v1749, %v1822
    %v1824 = vpop.f32.mrf.mxu0
    %1825 = vmatprep.mubr.f32.mxu0 %v1743
    %1826 = vmatmul.mubr.f32.gmra.mxu0 %v1742
    %v1827 = vpop.f32.mrf.mxu0
    %v1828 = vadd.f32 %v1754, %v1827
    %v1829 = vpop.f32.mrf.mxu0
    %1830 = vdwg.mxu0
    %vm1831 = vcmp.gt.f32.partialorder %v1823, 0.0
    %vm1832 = vcmp.gt.f32.partialorder %v1828, 0.0
    %v1833 = vmin.f32 %v1823, 0.0
    %v1834 = vmin.f32 %v1828, 0.0
    %v1835 = vmul.f32 %v1833, 1.442695
    %v1836 = vpow.pop %v1835
    %v1837 = vmul.f32 %v1834, 1.442695
    %v1838 = vpow.pop %v1837
    %v1839 = vsub.f32 %v1836, 1.0
    %v1840 = vsub.f32 %v1838, 1.0
    %v1841 = vsel %vm1831, %v1823, %v1839
    %v1842 = vsel %vm1832, %v1828, %v1840
    %v1843 = vld [vmem:[%s13] sm:$0xff]
    %vm1844 = vcmask 261120
    %v1846 = vsel %vm1844, %v1843, 0
    %v1849 = vsel %vm1844, %v1841, 0
    %v1852 = vsel %vm1844, %v1842, 0
    %1854 = vmatprep.subr.mxu0 0.0
    %1855 = vmatpush1.xpose.msra.mxu0 0.0
    %1856 = vmatprep.subr.mxu0 0.0
    %1857 = vmatpush1.xpose.msra.mxu0 0.0
    %1858 = vmatprep.subr.mxu0 0.0
    %1859 = vmatpush1.xpose.msra.mxu0 0.0
    %1860 = vmatprep.subr.mxu0 0.0
    %1861 = vmatpush1.xpose.msra.mxu0 0.0
    %1862 = vmatprep.subr.mxu0 0.0
    %1863 = vmatpush1.xpose.msra.mxu0 0.0
    %1864 = vmatprep.subr.mxu0 0.0
    %1865 = vmatpush1.xpose.msra.mxu0 0.0
    %1866 = vmatprep.subr.mxu0 0.0
    %1867 = vmatpush1.xpose.msra.mxu0 0.0
    %1868 = vmatprep.subr.mxu0 0.0
    %1869 = vmatpush1.xpose.msra.mxu0 0.0
    %1870 = vmatprep.subr.mxu0 0.0
    %1871 = vmatpush1.xpose.msra.mxu0 0.0
    %1872 = vmatprep.subr.mxu0 0.0
    %1873 = vmatpush1.xpose.msra.mxu0 0.0
    %1874 = vmatprep.subr.mxu0 0.0
    %1875 = vmatpush1.xpose.msra.mxu0 0.0
    %1876 = vmatprep.subr.mxu0 0.0
    %1877 = vmatpush1.xpose.msra.mxu0 0.0
    %1878 = vmatprep.subr.mxu0 0.0
    %1879 = vmatpush1.xpose.msra.mxu0 0.0
    %1880 = vmatprep.subr.mxu0 0.0
    %1881 = vmatpush1.xpose.msra.mxu0 0.0
    %1882 = vmatprep.subr.mxu0 0.0
    %1883 = vmatpush1.xpose.msra.mxu0 %v1852
    %1884 = vmatprep.subr.mxu0 0.0
    %1885 = vmatpush1.xpose.msra.mxu0 %v1849
    %1886 = vmatprep.subr.mxu0 0.0
    %1887 = vmatpush2.xpose.msra.mxu0 0.0
    %1888 = vmatprep.subr.mxu0 0.0
    %1889 = vmatpush2.xpose.msra.mxu0 0.0
    %1890 = vmatprep.subr.mxu0 0.0
    %1891 = vmatpush2.xpose.msra.mxu0 0.0
    %1892 = vmatprep.subr.mxu0 0.0
    %1893 = vmatpush2.xpose.msra.mxu0 0.0
    %1894 = vmatprep.subr.mxu0 0.0
    %1895 = vmatpush2.xpose.msra.mxu0 0.0
    %1896 = vmatprep.subr.mxu0 0.0
    %1897 = vmatpush2.xpose.msra.mxu0 0.0
    %1898 = vmatprep.subr.mxu0 0.0
    %1899 = vmatpush2.xpose.msra.mxu0 0.0
    %1900 = vmatprep.subr.mxu0 0.0
    %1901 = vmatpush2.xpose.msra.mxu0 0.0
    %1902 = vmatprep.subr.mxu0 0.0
    %1903 = vmatpush2.xpose.msra.mxu0 0.0
    %1904 = vmatprep.subr.mxu0 0.0
    %1905 = vmatpush2.xpose.msra.mxu0 0.0
    %1906 = vmatprep.subr.mxu0 0.0
    %1907 = vmatpush2.xpose.msra.mxu0 0.0
    %1908 = vmatprep.subr.mxu0 0.0
    %1909 = vmatpush2.xpose.msra.mxu0 0.0
    %1910 = vmatprep.subr.mxu0 0.0
    %1911 = vmatpush2.xpose.msra.mxu0 0.0
    %1912 = vmatprep.subr.mxu0 0.0
    %1913 = vmatpush2.xpose.msra.mxu0 0.0
    %1914 = vmatprep.subr.mxu0 0.0
    %1915 = vmatpush2.xpose.msra.mxu0 0.0
    %1916 = vmatprep.subr.mxu0 0.0
    %1917 = vmatpush2.xpose.msra.mxu0 0.0
    %1918 = vmatprep.mubr.f32.mxu0 0.0
    %1919 = vmatmul.mubr.f32.gmra.mxu0 %v1846
    %v1920 = vpop.f32.mrf.mxu0
    %v1921 = vadd.f32 0.0, %v1920
    %v1922 = vpop.f32.mrf.mxu0
    %1923 = vdwg.mxu0
    %v1924 = vmul.f32 %v1921, 4.0
    %v1925 = vld [vmem:[%s15] sm:$0xff]
    %v1926 = vadd.f32 %v1924, %v1925
    %1927 = vmatprep.subr.mxu0 0.0
    %1928 = vmatpush1.msra.mxu0 %v284
    %1929 = vmatprep.subr.mxu0 0.0
    %1930 = vmatpush1.msra.mxu0 %v283
    %1931 = vmatprep.subr.mxu0 0.0
    %1932 = vmatpush1.msra.mxu0 %v282
    %1933 = vmatprep.subr.mxu0 0.0
    %1934 = vmatpush1.msra.mxu0 %v281
    %1935 = vmatprep.subr.mxu0 0.0
    %1936 = vmatpush1.msra.mxu0 %v280
    %1937 = vmatprep.subr.mxu0 0.0
    %1938 = vmatpush1.msra.mxu0 %v279
    %1939 = vmatprep.subr.mxu0 0.0
    %1940 = vmatpush1.msra.mxu0 %v278
    %1941 = vmatprep.subr.mxu0 0.0
    %1942 = vmatpush1.msra.mxu0 %v277
    %1943 = vmatprep.subr.mxu0 0.0
    %1944 = vmatpush1.msra.mxu0 %v276
    %1945 = vmatprep.subr.mxu0 0.0
    %1946 = vmatpush1.msra.mxu0 %v275
    %1947 = vmatprep.subr.mxu0 0.0
    %1948 = vmatpush1.msra.mxu0 %v274
    %1949 = vmatprep.subr.mxu0 0.0
    %1950 = vmatpush1.msra.mxu0 %v273
    %1951 = vmatprep.subr.mxu0 0.0
    %1952 = vmatpush1.msra.mxu0 %v272
    %1953 = vmatprep.subr.mxu0 0.0
    %1954 = vmatpush1.msra.mxu0 %v271
    %1955 = vmatprep.subr.mxu0 0.0
    %1956 = vmatpush1.msra.mxu0 %v270
    %1957 = vmatprep.subr.mxu0 0.0
    %1958 = vmatpush1.msra.mxu0 %v269
    %1959 = vmatprep.subr.mxu0 0.0
    %1960 = vmatpush2.msra.mxu0 0.0
    %1961 = vmatprep.subr.mxu0 0.0
    %1962 = vmatpush2.msra.mxu0 0.0
    %1963 = vmatprep.subr.mxu0 0.0
    %1964 = vmatpush2.msra.mxu0 0.0
    %1965 = vmatprep.subr.mxu0 0.0
    %1966 = vmatpush2.msra.mxu0 0.0
    %1967 = vmatprep.subr.mxu0 0.0
    %1968 = vmatpush2.msra.mxu0 0.0
    %1969 = vmatprep.subr.mxu0 0.0
    %1970 = vmatpush2.msra.mxu0 0.0
    %1971 = vmatprep.subr.mxu0 0.0
    %1972 = vmatpush2.msra.mxu0 0.0
    %1973 = vmatprep.subr.mxu0 0.0
    %1974 = vmatpush2.msra.mxu0 0.0
    %1975 = vmatprep.subr.mxu0 0.0
    %1976 = vmatpush2.msra.mxu0 0.0
    %1977 = vmatprep.subr.mxu0 0.0
    %1978 = vmatpush2.msra.mxu0 0.0
    %1979 = vmatprep.subr.mxu0 0.0
    %1980 = vmatpush2.msra.mxu0 0.0
    %1981 = vmatprep.subr.mxu0 0.0
    %1982 = vmatpush2.msra.mxu0 0.0
    %1983 = vmatprep.subr.mxu0 0.0
    %1984 = vmatpush2.msra.mxu0 0.0
    %1985 = vmatprep.subr.mxu0 0.0
    %1986 = vmatpush2.msra.mxu0 0.0
    %1987 = vmatprep.subr.mxu0 0.0
    %1988 = vmatpush2.msra.mxu0 0.0
    %1989 = vmatprep.subr.mxu0 0.0
    %1990 = vmatpush2.msra.mxu0 0.0
    %1991 = vmatprep.mubr.f32.mxu0 0.0
    %1992 = vmatmul.mubr.f32.gmra.mxu0 %v266
    %v1993 = vpop.f32.mrf.mxu0
    %v1994 = vadd.f32 0.0, %v1993
    %v1995 = vpop.f32.mrf.mxu0
    %1996 = vmatprep.mubr.f32.mxu0 0.0
    %1997 = vmatmul.mubr.f32.gmra.mxu0 %v268
    %v1998 = vpop.f32.mrf.mxu0
    %v1999 = vadd.f32 0.0, %v1998
    %v2000 = vpop.f32.mrf.mxu0
    %2001 = vdwg.mxu0
    %2002 = vmatprep.subr.mxu0 0.0
    %2003 = vmatpush1.msra.mxu0 %v376
    %2004 = vmatprep.subr.mxu0 0.0
    %2005 = vmatpush1.msra.mxu0 %v375
    %2006 = vmatprep.subr.mxu0 0.0
    %2007 = vmatpush1.msra.mxu0 %v374
    %2008 = vmatprep.subr.mxu0 0.0
    %2009 = vmatpush1.msra.mxu0 %v373
    %2010 = vmatprep.subr.mxu0 0.0
    %2011 = vmatpush1.msra.mxu0 %v372
    %2012 = vmatprep.subr.mxu0 0.0
    %2013 = vmatpush1.msra.mxu0 %v371
    %2014 = vmatprep.subr.mxu0 0.0
    %2015 = vmatpush1.msra.mxu0 %v370
    %2016 = vmatprep.subr.mxu0 0.0
    %2017 = vmatpush1.msra.mxu0 %v369
    %2018 = vmatprep.subr.mxu0 0.0
    %2019 = vmatpush1.msra.mxu0 %v368
    %2020 = vmatprep.subr.mxu0 0.0
    %2021 = vmatpush1.msra.mxu0 %v367
    %2022 = vmatprep.subr.mxu0 0.0
    %2023 = vmatpush1.msra.mxu0 %v366
    %2024 = vmatprep.subr.mxu0 0.0
    %2025 = vmatpush1.msra.mxu0 %v365
    %2026 = vmatprep.subr.mxu0 0.0
    %2027 = vmatpush1.msra.mxu0 %v364
    %2028 = vmatprep.subr.mxu0 0.0
    %2029 = vmatpush1.msra.mxu0 %v363
    %2030 = vmatprep.subr.mxu0 0.0
    %2031 = vmatpush1.msra.mxu0 %v362
    %2032 = vmatprep.subr.mxu0 0.0
    %2033 = vmatpush1.msra.mxu0 %v361
    %2034 = vmatprep.subr.mxu0 0.0
    %2035 = vmatpush2.msra.mxu0 0.0
    %2036 = vmatprep.subr.mxu0 0.0
    %2037 = vmatpush2.msra.mxu0 0.0
    %2038 = vmatprep.subr.mxu0 0.0
    %2039 = vmatpush2.msra.mxu0 0.0
    %2040 = vmatprep.subr.mxu0 0.0
    %2041 = vmatpush2.msra.mxu0 0.0
    %2042 = vmatprep.subr.mxu0 0.0
    %2043 = vmatpush2.msra.mxu0 0.0
    %2044 = vmatprep.subr.mxu0 0.0
    %2045 = vmatpush2.msra.mxu0 0.0
    %2046 = vmatprep.subr.mxu0 0.0
    %2047 = vmatpush2.msra.mxu0 0.0
    %2048 = vmatprep.subr.mxu0 0.0
    %2049 = vmatpush2.msra.mxu0 0.0
    %2050 = vmatprep.subr.mxu0 0.0
    %2051 = vmatpush2.msra.mxu0 0.0
    %2052 = vmatprep.subr.mxu0 0.0
    %2053 = vmatpush2.msra.mxu0 0.0
    %2054 = vmatprep.subr.mxu0 0.0
    %2055 = vmatpush2.msra.mxu0 0.0
    %2056 = vmatprep.subr.mxu0 0.0
    %2057 = vmatpush2.msra.mxu0 0.0
    %2058 = vmatprep.subr.mxu0 0.0
    %2059 = vmatpush2.msra.mxu0 0.0
    %2060 = vmatprep.subr.mxu0 0.0
    %2061 = vmatpush2.msra.mxu0 0.0
    %2062 = vmatprep.subr.mxu0 0.0
    %2063 = vmatpush2.msra.mxu0 0.0
    %2064 = vmatprep.subr.mxu0 0.0
    %2065 = vmatpush2.msra.mxu0 0.0
    %2066 = vmatprep.mubr.f32.mxu0 0.0
    %2067 = vmatmul.mubr.f32.gmra.mxu0 %v266
    %v2068 = vpop.f32.mrf.mxu0
    %v2069 = vadd.f32 0.0, %v2068
    %v2070 = vpop.f32.mrf.mxu0
    %2071 = vmatprep.mubr.f32.mxu0 0.0
    %2072 = vmatmul.mubr.f32.gmra.mxu0 %v268
    %v2073 = vpop.f32.mrf.mxu0
    %v2074 = vadd.f32 0.0, %v2073
    %v2075 = vpop.f32.mrf.mxu0
    %2076 = vdwg.mxu0
    %2077 = vmatprep.subr.mxu0 0.0
    %2078 = vmatpush1.msra.mxu0 %v468
    %2079 = vmatprep.subr.mxu0 0.0
    %2080 = vmatpush1.msra.mxu0 %v467
    %2081 = vmatprep.subr.mxu0 0.0
    %2082 = vmatpush1.msra.mxu0 %v466
    %2083 = vmatprep.subr.mxu0 0.0
    %2084 = vmatpush1.msra.mxu0 %v465
    %2085 = vmatprep.subr.mxu0 0.0
    %2086 = vmatpush1.msra.mxu0 %v464
    %2087 = vmatprep.subr.mxu0 0.0
    %2088 = vmatpush1.msra.mxu0 %v463
    %2089 = vmatprep.subr.mxu0 0.0
    %2090 = vmatpush1.msra.mxu0 %v462
    %2091 = vmatprep.subr.mxu0 0.0
    %2092 = vmatpush1.msra.mxu0 %v461
    %2093 = vmatprep.subr.mxu0 0.0
    %2094 = vmatpush1.msra.mxu0 %v460
    %2095 = vmatprep.subr.mxu0 0.0
    %2096 = vmatpush1.msra.mxu0 %v459
    %2097 = vmatprep.subr.mxu0 0.0
    %2098 = vmatpush1.msra.mxu0 %v458
    %2099 = vmatprep.subr.mxu0 0.0
    %2100 = vmatpush1.msra.mxu0 %v457
    %2101 = vmatprep.subr.mxu0 0.0
    %2102 = vmatpush1.msra.mxu0 %v456
    %2103 = vmatprep.subr.mxu0 0.0
    %2104 = vmatpush1.msra.mxu0 %v455
    %2105 = vmatprep.subr.mxu0 0.0
    %2106 = vmatpush1.msra.mxu0 %v454
    %2107 = vmatprep.subr.mxu0 0.0
    %2108 = vmatpush1.msra.mxu0 %v453
    %2109 = vmatprep.subr.mxu0 0.0
    %2110 = vmatpush2.msra.mxu0 0.0
    %2111 = vmatprep.subr.mxu0 0.0
    %2112 = vmatpush2.msra.mxu0 0.0
    %2113 = vmatprep.subr.mxu0 0.0
    %2114 = vmatpush2.msra.mxu0 0.0
    %2115 = vmatprep.subr.mxu0 0.0
    %2116 = vmatpush2.msra.mxu0 0.0
    %2117 = vmatprep.subr.mxu0 0.0
    %2118 = vmatpush2.msra.mxu0 0.0
    %2119 = vmatprep.subr.mxu0 0.0
    %2120 = vmatpush2.msra.mxu0 0.0
    %2121 = vmatprep.subr.mxu0 0.0
    %2122 = vmatpush2.msra.mxu0 0.0
    %2123 = vmatprep.subr.mxu0 0.0
    %2124 = vmatpush2.msra.mxu0 0.0
    %2125 = vmatprep.subr.mxu0 0.0
    %2126 = vmatpush2.msra.mxu0 0.0
    %2127 = vmatprep.subr.mxu0 0.0
    %2128 = vmatpush2.msra.mxu0 0.0
    %2129 = vmatprep.subr.mxu0 0.0
    %2130 = vmatpush2.msra.mxu0 0.0
    %2131 = vmatprep.subr.mxu0 0.0
    %2132 = vmatpush2.msra.mxu0 0.0
    %2133 = vmatprep.subr.mxu0 0.0
    %2134 = vmatpush2.msra.mxu0 0.0
    %2135 = vmatprep.subr.mxu0 0.0
    %2136 = vmatpush2.msra.mxu0 0.0
    %2137 = vmatprep.subr.mxu0 0.0
    %2138 = vmatpush2.msra.mxu0 0.0
    %2139 = vmatprep.subr.mxu0 0.0
    %2140 = vmatpush2.msra.mxu0 0.0
    %2141 = vmatprep.mubr.f32.mxu0 0.0
    %2142 = vmatmul.mubr.f32.gmra.mxu0 %v266
    %v2143 = vpop.f32.mrf.mxu0
    %v2144 = vadd.f32 0.0, %v2143
    %v2145 = vpop.f32.mrf.mxu0
    %2146 = vmatprep.mubr.f32.mxu0 0.0
    %2147 = vmatmul.mubr.f32.gmra.mxu0 %v268
    %v2148 = vpop.f32.mrf.mxu0
    %v2149 = vadd.f32 0.0, %v2148
    %v2150 = vpop.f32.mrf.mxu0
    %2151 = vdwg.mxu0
    %2152 = vmatprep.subr.mxu0 0.0
    %2153 = vmatpush1.msra.mxu0 %v560
    %2154 = vmatprep.subr.mxu0 0.0
    %2155 = vmatpush1.msra.mxu0 %v559
    %2156 = vmatprep.subr.mxu0 0.0
    %2157 = vmatpush1.msra.mxu0 %v558
    %2158 = vmatprep.subr.mxu0 0.0
    %2159 = vmatpush1.msra.mxu0 %v557
    %2160 = vmatprep.subr.mxu0 0.0
    %2161 = vmatpush1.msra.mxu0 %v556
    %2162 = vmatprep.subr.mxu0 0.0
    %2163 = vmatpush1.msra.mxu0 %v555
    %2164 = vmatprep.subr.mxu0 0.0
    %2165 = vmatpush1.msra.mxu0 %v554
    %2166 = vmatprep.subr.mxu0 0.0
    %2167 = vmatpush1.msra.mxu0 %v553
    %2168 = vmatprep.subr.mxu0 0.0
    %2169 = vmatpush1.msra.mxu0 %v552
    %2170 = vmatprep.subr.mxu0 0.0
    %2171 = vmatpush1.msra.mxu0 %v551
    %2172 = vmatprep.subr.mxu0 0.0
    %2173 = vmatpush1.msra.mxu0 %v550
    %2174 = vmatprep.subr.mxu0 0.0
    %2175 = vmatpush1.msra.mxu0 %v549
    %2176 = vmatprep.subr.mxu0 0.0
    %2177 = vmatpush1.msra.mxu0 %v548
    %2178 = vmatprep.subr.mxu0 0.0
    %2179 = vmatpush1.msra.mxu0 %v547
    %2180 = vmatprep.subr.mxu0 0.0
    %2181 = vmatpush1.msra.mxu0 %v546
    %2182 = vmatprep.subr.mxu0 0.0
    %2183 = vmatpush1.msra.mxu0 %v545
    %2184 = vmatprep.subr.mxu0 0.0
    %2185 = vmatpush2.msra.mxu0 0.0
    %2186 = vmatprep.subr.mxu0 0.0
    %2187 = vmatpush2.msra.mxu0 0.0
    %2188 = vmatprep.subr.mxu0 0.0
    %2189 = vmatpush2.msra.mxu0 0.0
    %2190 = vmatprep.subr.mxu0 0.0
    %2191 = vmatpush2.msra.mxu0 0.0
    %2192 = vmatprep.subr.mxu0 0.0
    %2193 = vmatpush2.msra.mxu0 0.0
    %2194 = vmatprep.subr.mxu0 0.0
    %2195 = vmatpush2.msra.mxu0 0.0
    %2196 = vmatprep.subr.mxu0 0.0
    %2197 = vmatpush2.msra.mxu0 0.0
    %2198 = vmatprep.subr.mxu0 0.0
    %2199 = vmatpush2.msra.mxu0 0.0
    %2200 = vmatprep.subr.mxu0 0.0
    %2201 = vmatpush2.msra.mxu0 0.0
    %2202 = vmatprep.subr.mxu0 0.0
    %2203 = vmatpush2.msra.mxu0 0.0
    %2204 = vmatprep.subr.mxu0 0.0
    %2205 = vmatpush2.msra.mxu0 0.0
    %2206 = vmatprep.subr.mxu0 0.0
    %2207 = vmatpush2.msra.mxu0 0.0
    %2208 = vmatprep.subr.mxu0 0.0
    %2209 = vmatpush2.msra.mxu0 0.0
    %2210 = vmatprep.subr.mxu0 0.0
    %2211 = vmatpush2.msra.mxu0 0.0
    %2212 = vmatprep.subr.mxu0 0.0
    %2213 = vmatpush2.msra.mxu0 0.0
    %2214 = vmatprep.subr.mxu0 0.0
    %2215 = vmatpush2.msra.mxu0 0.0
    %2216 = vmatprep.mubr.f32.mxu0 0.0
    %2217 = vmatmul.mubr.f32.gmra.mxu0 %v266
    %v2218 = vpop.f32.mrf.mxu0
    %v2219 = vadd.f32 0.0, %v2218
    %v2220 = vpop.f32.mrf.mxu0
    %2221 = vmatprep.mubr.f32.mxu0 0.0
    %2222 = vmatmul.mubr.f32.gmra.mxu0 %v268
    %v2223 = vpop.f32.mrf.mxu0
    %v2224 = vadd.f32 0.0, %v2223
    %v2225 = vpop.f32.mrf.mxu0
    %2226 = vdwg.mxu0
    %2227 = vmatprep.subr.mxu0 0.0
    %2228 = vmatpush1.msra.mxu0 %v652
    %2229 = vmatprep.subr.mxu0 0.0
    %2230 = vmatpush1.msra.mxu0 %v651
    %2231 = vmatprep.subr.mxu0 0.0
    %2232 = vmatpush1.msra.mxu0 %v650
    %2233 = vmatprep.subr.mxu0 0.0
    %2234 = vmatpush1.msra.mxu0 %v649
    %2235 = vmatprep.subr.mxu0 0.0
    %2236 = vmatpush1.msra.mxu0 %v648
    %2237 = vmatprep.subr.mxu0 0.0
    %2238 = vmatpush1.msra.mxu0 %v647
    %2239 = vmatprep.subr.mxu0 0.0
    %2240 = vmatpush1.msra.mxu0 %v646
    %2241 = vmatprep.subr.mxu0 0.0
    %2242 = vmatpush1.msra.mxu0 %v645
    %2243 = vmatprep.subr.mxu0 0.0
    %2244 = vmatpush1.msra.mxu0 %v644
    %2245 = vmatprep.subr.mxu0 0.0
    %2246 = vmatpush1.msra.mxu0 %v643
    %2247 = vmatprep.subr.mxu0 0.0
    %2248 = vmatpush1.msra.mxu0 %v642
    %2249 = vmatprep.subr.mxu0 0.0
    %2250 = vmatpush1.msra.mxu0 %v641
    %2251 = vmatprep.subr.mxu0 0.0
    %2252 = vmatpush1.msra.mxu0 %v640
    %2253 = vmatprep.subr.mxu0 0.0
    %2254 = vmatpush1.msra.mxu0 %v639
    %2255 = vmatprep.subr.mxu0 0.0
    %2256 = vmatpush1.msra.mxu0 %v638
    %2257 = vmatprep.subr.mxu0 0.0
    %2258 = vmatpush1.msra.mxu0 %v637
    %2259 = vmatprep.subr.mxu0 0.0
    %2260 = vmatpush2.msra.mxu0 0.0
    %2261 = vmatprep.subr.mxu0 0.0
    %2262 = vmatpush2.msra.mxu0 0.0
    %2263 = vmatprep.subr.mxu0 0.0
    %2264 = vmatpush2.msra.mxu0 0.0
    %2265 = vmatprep.subr.mxu0 0.0
    %2266 = vmatpush2.msra.mxu0 0.0
    %2267 = vmatprep.subr.mxu0 0.0
    %2268 = vmatpush2.msra.mxu0 0.0
    %2269 = vmatprep.subr.mxu0 0.0
    %2270 = vmatpush2.msra.mxu0 0.0
    %2271 = vmatprep.subr.mxu0 0.0
    %2272 = vmatpush2.msra.mxu0 0.0
    %2273 = vmatprep.subr.mxu0 0.0
    %2274 = vmatpush2.msra.mxu0 0.0
    %2275 = vmatprep.subr.mxu0 0.0
    %2276 = vmatpush2.msra.mxu0 0.0
    %2277 = vmatprep.subr.mxu0 0.0
    %2278 = vmatpush2.msra.mxu0 0.0
    %2279 = vmatprep.subr.mxu0 0.0
    %2280 = vmatpush2.msra.mxu0 0.0
    %2281 = vmatprep.subr.mxu0 0.0
    %2282 = vmatpush2.msra.mxu0 0.0
    %2283 = vmatprep.subr.mxu0 0.0
    %2284 = vmatpush2.msra.mxu0 0.0
    %2285 = vmatprep.subr.mxu0 0.0
    %2286 = vmatpush2.msra.mxu0 0.0
    %2287 = vmatprep.subr.mxu0 0.0
    %2288 = vmatpush2.msra.mxu0 0.0
    %2289 = vmatprep.subr.mxu0 0.0
    %2290 = vmatpush2.msra.mxu0 0.0
    %2291 = vmatprep.mubr.f32.mxu0 0.0
    %2292 = vmatmul.mubr.f32.gmra.mxu0 %v266
    %v2293 = vpop.f32.mrf.mxu0
    %v2294 = vadd.f32 0.0, %v2293
    %v2295 = vpop.f32.mrf.mxu0
    %2296 = vmatprep.mubr.f32.mxu0 0.0
    %2297 = vmatmul.mubr.f32.gmra.mxu0 %v268
    %v2298 = vpop.f32.mrf.mxu0
    %v2299 = vadd.f32 0.0, %v2298
    %v2300 = vpop.f32.mrf.mxu0
    %2301 = vdwg.mxu0
    %2302 = vmatprep.subr.mxu0 0.0
    %2303 = vmatpush1.msra.mxu0 %v744
    %2304 = vmatprep.subr.mxu0 0.0
    %2305 = vmatpush1.msra.mxu0 %v743
    %2306 = vmatprep.subr.mxu0 0.0
    %2307 = vmatpush1.msra.mxu0 %v742
    %2308 = vmatprep.subr.mxu0 0.0
    %2309 = vmatpush1.msra.mxu0 %v741
    %2310 = vmatprep.subr.mxu0 0.0
    %2311 = vmatpush1.msra.mxu0 %v740
    %2312 = vmatprep.subr.mxu0 0.0
    %2313 = vmatpush1.msra.mxu0 %v739
    %2314 = vmatprep.subr.mxu0 0.0
    %2315 = vmatpush1.msra.mxu0 %v738
    %2316 = vmatprep.subr.mxu0 0.0
    %2317 = vmatpush1.msra.mxu0 %v737
    %2318 = vmatprep.subr.mxu0 0.0
    %2319 = vmatpush1.msra.mxu0 %v736
    %2320 = vmatprep.subr.mxu0 0.0
    %2321 = vmatpush1.msra.mxu0 %v735
    %2322 = vmatprep.subr.mxu0 0.0
    %2323 = vmatpush1.msra.mxu0 %v734
    %2324 = vmatprep.subr.mxu0 0.0
    %2325 = vmatpush1.msra.mxu0 %v733
    %2326 = vmatprep.subr.mxu0 0.0
    %2327 = vmatpush1.msra.mxu0 %v732
    %2328 = vmatprep.subr.mxu0 0.0
    %2329 = vmatpush1.msra.mxu0 %v731
    %2330 = vmatprep.subr.mxu0 0.0
    %2331 = vmatpush1.msra.mxu0 %v730
    %2332 = vmatprep.subr.mxu0 0.0
    %2333 = vmatpush1.msra.mxu0 %v729
    %2334 = vmatprep.subr.mxu0 0.0
    %2335 = vmatpush2.msra.mxu0 0.0
    %2336 = vmatprep.subr.mxu0 0.0
    %2337 = vmatpush2.msra.mxu0 0.0
    %2338 = vmatprep.subr.mxu0 0.0
    %2339 = vmatpush2.msra.mxu0 0.0
    %2340 = vmatprep.subr.mxu0 0.0
    %2341 = vmatpush2.msra.mxu0 0.0
    %2342 = vmatprep.subr.mxu0 0.0
    %2343 = vmatpush2.msra.mxu0 0.0
    %2344 = vmatprep.subr.mxu0 0.0
    %2345 = vmatpush2.msra.mxu0 0.0
    %2346 = vmatprep.subr.mxu0 0.0
    %2347 = vmatpush2.msra.mxu0 0.0
    %2348 = vmatprep.subr.mxu0 0.0
    %2349 = vmatpush2.msra.mxu0 0.0
    %2350 = vmatprep.subr.mxu0 0.0
    %2351 = vmatpush2.msra.mxu0 0.0
    %2352 = vmatprep.subr.mxu0 0.0
    %2353 = vmatpush2.msra.mxu0 0.0
    %2354 = vmatprep.subr.mxu0 0.0
    %2355 = vmatpush2.msra.mxu0 0.0
    %2356 = vmatprep.subr.mxu0 0.0
    %2357 = vmatpush2.msra.mxu0 0.0
    %2358 = vmatprep.subr.mxu0 0.0
    %2359 = vmatpush2.msra.mxu0 0.0
    %2360 = vmatprep.subr.mxu0 0.0
    %2361 = vmatpush2.msra.mxu0 0.0
    %2362 = vmatprep.subr.mxu0 0.0
    %2363 = vmatpush2.msra.mxu0 0.0
    %2364 = vmatprep.subr.mxu0 0.0
    %2365 = vmatpush2.msra.mxu0 0.0
    %2366 = vmatprep.mubr.f32.mxu0 0.0
    %2367 = vmatmul.mubr.f32.gmra.mxu0 %v266
    %v2368 = vpop.f32.mrf.mxu0
    %v2369 = vadd.f32 0.0, %v2368
    %v2370 = vpop.f32.mrf.mxu0
    %2371 = vmatprep.mubr.f32.mxu0 0.0
    %2372 = vmatmul.mubr.f32.gmra.mxu0 %v268
    %v2373 = vpop.f32.mrf.mxu0
    %v2374 = vadd.f32 0.0, %v2373
    %v2375 = vpop.f32.mrf.mxu0
    %2376 = vdwg.mxu0
    %2377 = vmatprep.subr.mxu0 0.0
    %2378 = vmatpush1.msra.mxu0 %v836
    %2379 = vmatprep.subr.mxu0 0.0
    %2380 = vmatpush1.msra.mxu0 %v835
    %2381 = vmatprep.subr.mxu0 0.0
    %2382 = vmatpush1.msra.mxu0 %v834
    %2383 = vmatprep.subr.mxu0 0.0
    %2384 = vmatpush1.msra.mxu0 %v833
    %2385 = vmatprep.subr.mxu0 0.0
    %2386 = vmatpush1.msra.mxu0 %v832
    %2387 = vmatprep.subr.mxu0 0.0
    %2388 = vmatpush1.msra.mxu0 %v831
    %2389 = vmatprep.subr.mxu0 0.0
    %2390 = vmatpush1.msra.mxu0 %v830
    %2391 = vmatprep.subr.mxu0 0.0
    %2392 = vmatpush1.msra.mxu0 %v829
    %2393 = vmatprep.subr.mxu0 0.0
    %2394 = vmatpush1.msra.mxu0 %v828
    %2395 = vmatprep.subr.mxu0 0.0
    %2396 = vmatpush1.msra.mxu0 %v827
    %2397 = vmatprep.subr.mxu0 0.0
    %2398 = vmatpush1.msra.mxu0 %v826
    %2399 = vmatprep.subr.mxu0 0.0
    %2400 = vmatpush1.msra.mxu0 %v825
    %2401 = vmatprep.subr.mxu0 0.0
    %2402 = vmatpush1.msra.mxu0 %v824
    %2403 = vmatprep.subr.mxu0 0.0
    %2404 = vmatpush1.msra.mxu0 %v823
    %2405 = vmatprep.subr.mxu0 0.0
    %2406 = vmatpush1.msra.mxu0 %v822
    %2407 = vmatprep.subr.mxu0 0.0
    %2408 = vmatpush1.msra.mxu0 %v821
    %2409 = vmatprep.subr.mxu0 0.0
    %2410 = vmatpush2.msra.mxu0 0.0
    %2411 = vmatprep.subr.mxu0 0.0
    %2412 = vmatpush2.msra.mxu0 0.0
    %2413 = vmatprep.subr.mxu0 0.0
    %2414 = vmatpush2.msra.mxu0 0.0
    %2415 = vmatprep.subr.mxu0 0.0
    %2416 = vmatpush2.msra.mxu0 0.0
    %2417 = vmatprep.subr.mxu0 0.0
    %2418 = vmatpush2.msra.mxu0 0.0
    %2419 = vmatprep.subr.mxu0 0.0
    %2420 = vmatpush2.msra.mxu0 0.0
    %2421 = vmatprep.subr.mxu0 0.0
    %2422 = vmatpush2.msra.mxu0 0.0
    %2423 = vmatprep.subr.mxu0 0.0
    %2424 = vmatpush2.msra.mxu0 0.0
    %2425 = vmatprep.subr.mxu0 0.0
    %2426 = vmatpush2.msra.mxu0 0.0
    %2427 = vmatprep.subr.mxu0 0.0
    %2428 = vmatpush2.msra.mxu0 0.0
    %2429 = vmatprep.subr.mxu0 0.0
    %2430 = vmatpush2.msra.mxu0 0.0
    %2431 = vmatprep.subr.mxu0 0.0
    %2432 = vmatpush2.msra.mxu0 0.0
    %2433 = vmatprep.subr.mxu0 0.0
    %2434 = vmatpush2.msra.mxu0 0.0
    %2435 = vmatprep.subr.mxu0 0.0
    %2436 = vmatpush2.msra.mxu0 0.0
    %2437 = vmatprep.subr.mxu0 0.0
    %2438 = vmatpush2.msra.mxu0 0.0
    %2439 = vmatprep.subr.mxu0 0.0
    %2440 = vmatpush2.msra.mxu0 0.0
    %2441 = vmatprep.mubr.f32.mxu0 0.0
    %2442 = vmatmul.mubr.f32.gmra.mxu0 %v266
    %v2443 = vpop.f32.mrf.mxu0
    %v2444 = vadd.f32 0.0, %v2443
    %v2445 = vpop.f32.mrf.mxu0
    %2446 = vmatprep.mubr.f32.mxu0 0.0
    %2447 = vmatmul.mubr.f32.gmra.mxu0 %v268
    %v2448 = vpop.f32.mrf.mxu0
    %v2449 = vadd.f32 0.0, %v2448
    %v2450 = vpop.f32.mrf.mxu0
    %2451 = vdwg.mxu0
    %2452 = vmatprep.subr.mxu0 0.0
    %2453 = vmatpush1.msra.mxu0 %v928
    %2454 = vmatprep.subr.mxu0 0.0
    %2455 = vmatpush1.msra.mxu0 %v927
    %2456 = vmatprep.subr.mxu0 0.0
    %2457 = vmatpush1.msra.mxu0 %v926
    %2458 = vmatprep.subr.mxu0 0.0
    %2459 = vmatpush1.msra.mxu0 %v925
    %2460 = vmatprep.subr.mxu0 0.0
    %2461 = vmatpush1.msra.mxu0 %v924
    %2462 = vmatprep.subr.mxu0 0.0
    %2463 = vmatpush1.msra.mxu0 %v923
    %2464 = vmatprep.subr.mxu0 0.0
    %2465 = vmatpush1.msra.mxu0 %v922
    %2466 = vmatprep.subr.mxu0 0.0
    %2467 = vmatpush1.msra.mxu0 %v921
    %2468 = vmatprep.subr.mxu0 0.0
    %2469 = vmatpush1.msra.mxu0 %v920
    %2470 = vmatprep.subr.mxu0 0.0
    %2471 = vmatpush1.msra.mxu0 %v919
    %2472 = vmatprep.subr.mxu0 0.0
    %2473 = vmatpush1.msra.mxu0 %v918
    %2474 = vmatprep.subr.mxu0 0.0
    %2475 = vmatpush1.msra.mxu0 %v917
    %2476 = vmatprep.subr.mxu0 0.0
    %2477 = vmatpush1.msra.mxu0 %v916
    %2478 = vmatprep.subr.mxu0 0.0
    %2479 = vmatpush1.msra.mxu0 %v915
    %2480 = vmatprep.subr.mxu0 0.0
    %2481 = vmatpush1.msra.mxu0 %v914
    %2482 = vmatprep.subr.mxu0 0.0
    %2483 = vmatpush1.msra.mxu0 %v913
    %2484 = vmatprep.subr.mxu0 0.0
    %2485 = vmatpush2.msra.mxu0 0.0
    %2486 = vmatprep.subr.mxu0 0.0
    %2487 = vmatpush2.msra.mxu0 0.0
    %2488 = vmatprep.subr.mxu0 0.0
    %2489 = vmatpush2.msra.mxu0 0.0
    %2490 = vmatprep.subr.mxu0 0.0
    %2491 = vmatpush2.msra.mxu0 0.0
    %2492 = vmatprep.subr.mxu0 0.0
    %2493 = vmatpush2.msra.mxu0 0.0
    %2494 = vmatprep.subr.mxu0 0.0
    %2495 = vmatpush2.msra.mxu0 0.0
    %2496 = vmatprep.subr.mxu0 0.0
    %2497 = vmatpush2.msra.mxu0 0.0
    %2498 = vmatprep.subr.mxu0 0.0
    %2499 = vmatpush2.msra.mxu0 0.0
    %2500 = vmatprep.subr.mxu0 0.0
    %2501 = vmatpush2.msra.mxu0 0.0
    %2502 = vmatprep.subr.mxu0 0.0
    %2503 = vmatpush2.msra.mxu0 0.0
    %2504 = vmatprep.subr.mxu0 0.0
    %2505 = vmatpush2.msra.mxu0 0.0
    %2506 = vmatprep.subr.mxu0 0.0
    %2507 = vmatpush2.msra.mxu0 0.0
    %2508 = vmatprep.subr.mxu0 0.0
    %2509 = vmatpush2.msra.mxu0 0.0
    %2510 = vmatprep.subr.mxu0 0.0
    %2511 = vmatpush2.msra.mxu0 0.0
    %2512 = vmatprep.subr.mxu0 0.0
    %2513 = vmatpush2.msra.mxu0 0.0
    %2514 = vmatprep.subr.mxu0 0.0
    %2515 = vmatpush2.msra.mxu0 0.0
    %2516 = vmatprep.mubr.f32.mxu0 0.0
    %2517 = vmatmul.mubr.f32.gmra.mxu0 %v266
    %v2518 = vpop.f32.mrf.mxu0
    %v2519 = vadd.f32 0.0, %v2518
    %v2520 = vpop.f32.mrf.mxu0
    %2521 = vmatprep.mubr.f32.mxu0 0.0
    %2522 = vmatmul.mubr.f32.gmra.mxu0 %v268
    %v2523 = vpop.f32.mrf.mxu0
    %v2524 = vadd.f32 0.0, %v2523
    %v2525 = vpop.f32.mrf.mxu0
    %2526 = vdwg.mxu0
    %2527 = vmatprep.subr.mxu0 0.0
    %2528 = vmatpush1.msra.mxu0 %v1020
    %2529 = vmatprep.subr.mxu0 0.0
    %2530 = vmatpush1.msra.mxu0 %v1019
    %2531 = vmatprep.subr.mxu0 0.0
    %2532 = vmatpush1.msra.mxu0 %v1018
    %2533 = vmatprep.subr.mxu0 0.0
    %2534 = vmatpush1.msra.mxu0 %v1017
    %2535 = vmatprep.subr.mxu0 0.0
    %2536 = vmatpush1.msra.mxu0 %v1016
    %2537 = vmatprep.subr.mxu0 0.0
    %2538 = vmatpush1.msra.mxu0 %v1015
    %2539 = vmatprep.subr.mxu0 0.0
    %2540 = vmatpush1.msra.mxu0 %v1014
    %2541 = vmatprep.subr.mxu0 0.0
    %2542 = vmatpush1.msra.mxu0 %v1013
    %2543 = vmatprep.subr.mxu0 0.0
    %2544 = vmatpush1.msra.mxu0 %v1012
    %2545 = vmatprep.subr.mxu0 0.0
    %2546 = vmatpush1.msra.mxu0 %v1011
    %2547 = vmatprep.subr.mxu0 0.0
    %2548 = vmatpush1.msra.mxu0 %v1010
    %2549 = vmatprep.subr.mxu0 0.0
    %2550 = vmatpush1.msra.mxu0 %v1009
    %2551 = vmatprep.subr.mxu0 0.0
    %2552 = vmatpush1.msra.mxu0 %v1008
    %2553 = vmatprep.subr.mxu0 0.0
    %2554 = vmatpush1.msra.mxu0 %v1007
    %2555 = vmatprep.subr.mxu0 0.0
    %2556 = vmatpush1.msra.mxu0 %v1006
    %2557 = vmatprep.subr.mxu0 0.0
    %2558 = vmatpush1.msra.mxu0 %v1005
    %2559 = vmatprep.subr.mxu0 0.0
    %2560 = vmatpush2.msra.mxu0 0.0
    %2561 = vmatprep.subr.mxu0 0.0
    %2562 = vmatpush2.msra.mxu0 0.0
    %2563 = vmatprep.subr.mxu0 0.0
    %2564 = vmatpush2.msra.mxu0 0.0
    %2565 = vmatprep.subr.mxu0 0.0
    %2566 = vmatpush2.msra.mxu0 0.0
    %2567 = vmatprep.subr.mxu0 0.0
    %2568 = vmatpush2.msra.mxu0 0.0
    %2569 = vmatprep.subr.mxu0 0.0
    %2570 = vmatpush2.msra.mxu0 0.0
    %2571 = vmatprep.subr.mxu0 0.0
    %2572 = vmatpush2.msra.mxu0 0.0
    %2573 = vmatprep.subr.mxu0 0.0
    %2574 = vmatpush2.msra.mxu0 0.0
    %2575 = vmatprep.subr.mxu0 0.0
    %2576 = vmatpush2.msra.mxu0 0.0
    %2577 = vmatprep.subr.mxu0 0.0
    %2578 = vmatpush2.msra.mxu0 0.0
    %2579 = vmatprep.subr.mxu0 0.0
    %2580 = vmatpush2.msra.mxu0 0.0
    %2581 = vmatprep.subr.mxu0 0.0
    %2582 = vmatpush2.msra.mxu0 0.0
    %2583 = vmatprep.subr.mxu0 0.0
    %2584 = vmatpush2.msra.mxu0 0.0
    %2585 = vmatprep.subr.mxu0 0.0
    %2586 = vmatpush2.msra.mxu0 0.0
    %2587 = vmatprep.subr.mxu0 0.0
    %2588 = vmatpush2.msra.mxu0 0.0
    %2589 = vmatprep.subr.mxu0 0.0
    %2590 = vmatpush2.msra.mxu0 0.0
    %2591 = vmatprep.mubr.f32.mxu0 0.0
    %2592 = vmatmul.mubr.f32.gmra.mxu0 %v266
    %v2593 = vpop.f32.mrf.mxu0
    %v2594 = vadd.f32 0.0, %v2593
    %v2595 = vpop.f32.mrf.mxu0
    %2596 = vmatprep.mubr.f32.mxu0 0.0
    %2597 = vmatmul.mubr.f32.gmra.mxu0 %v268
    %v2598 = vpop.f32.mrf.mxu0
    %v2599 = vadd.f32 0.0, %v2598
    %v2600 = vpop.f32.mrf.mxu0
    %2601 = vdwg.mxu0
    %2602 = vmatprep.subr.mxu0 0.0
    %2603 = vmatpush1.msra.mxu0 %v1112
    %2604 = vmatprep.subr.mxu0 0.0
    %2605 = vmatpush1.msra.mxu0 %v1111
    %2606 = vmatprep.subr.mxu0 0.0
    %2607 = vmatpush1.msra.mxu0 %v1110
    %2608 = vmatprep.subr.mxu0 0.0
    %2609 = vmatpush1.msra.mxu0 %v1109
    %2610 = vmatprep.subr.mxu0 0.0
    %2611 = vmatpush1.msra.mxu0 %v1108
    %2612 = vmatprep.subr.mxu0 0.0
    %2613 = vmatpush1.msra.mxu0 %v1107
    %2614 = vmatprep.subr.mxu0 0.0
    %2615 = vmatpush1.msra.mxu0 %v1106
    %2616 = vmatprep.subr.mxu0 0.0
    %2617 = vmatpush1.msra.mxu0 %v1105
    %2618 = vmatprep.subr.mxu0 0.0
    %2619 = vmatpush1.msra.mxu0 %v1104
    %2620 = vmatprep.subr.mxu0 0.0
    %2621 = vmatpush1.msra.mxu0 %v1103
    %2622 = vmatprep.subr.mxu0 0.0
    %2623 = vmatpush1.msra.mxu0 %v1102
    %2624 = vmatprep.subr.mxu0 0.0
    %2625 = vmatpush1.msra.mxu0 %v1101
    %2626 = vmatprep.subr.mxu0 0.0
    %2627 = vmatpush1.msra.mxu0 %v1100
    %2628 = vmatprep.subr.mxu0 0.0
    %2629 = vmatpush1.msra.mxu0 %v1099
    %2630 = vmatprep.subr.mxu0 0.0
    %2631 = vmatpush1.msra.mxu0 %v1098
    %2632 = vmatprep.subr.mxu0 0.0
    %2633 = vmatpush1.msra.mxu0 %v1097
    %2634 = vmatprep.subr.mxu0 0.0
    %2635 = vmatpush2.msra.mxu0 0.0
    %2636 = vmatprep.subr.mxu0 0.0
    %2637 = vmatpush2.msra.mxu0 0.0
    %2638 = vmatprep.subr.mxu0 0.0
    %2639 = vmatpush2.msra.mxu0 0.0
    %2640 = vmatprep.subr.mxu0 0.0
    %2641 = vmatpush2.msra.mxu0 0.0
    %2642 = vmatprep.subr.mxu0 0.0
    %2643 = vmatpush2.msra.mxu0 0.0
    %2644 = vmatprep.subr.mxu0 0.0
    %2645 = vmatpush2.msra.mxu0 0.0
    %2646 = vmatprep.subr.mxu0 0.0
    %2647 = vmatpush2.msra.mxu0 0.0
    %2648 = vmatprep.subr.mxu0 0.0
    %2649 = vmatpush2.msra.mxu0 0.0
    %2650 = vmatprep.subr.mxu0 0.0
    %2651 = vmatpush2.msra.mxu0 0.0
    %2652 = vmatprep.subr.mxu0 0.0
    %2653 = vmatpush2.msra.mxu0 0.0
    %2654 = vmatprep.subr.mxu0 0.0
    %2655 = vmatpush2.msra.mxu0 0.0
    %2656 = vmatprep.subr.mxu0 0.0
    %2657 = vmatpush2.msra.mxu0 0.0
    %2658 = vmatprep.subr.mxu0 0.0
    %2659 = vmatpush2.msra.mxu0 0.0
    %2660 = vmatprep.subr.mxu0 0.0
    %2661 = vmatpush2.msra.mxu0 0.0
    %2662 = vmatprep.subr.mxu0 0.0
    %2663 = vmatpush2.msra.mxu0 0.0
    %2664 = vmatprep.subr.mxu0 0.0
    %2665 = vmatpush2.msra.mxu0 0.0
    %2666 = vmatprep.mubr.f32.mxu0 0.0
    %2667 = vmatmul.mubr.f32.gmra.mxu0 %v266
    %v2668 = vpop.f32.mrf.mxu0
    %v2669 = vadd.f32 0.0, %v2668
    %v2670 = vpop.f32.mrf.mxu0
    %2671 = vmatprep.mubr.f32.mxu0 0.0
    %2672 = vmatmul.mubr.f32.gmra.mxu0 %v268
    %v2673 = vpop.f32.mrf.mxu0
    %v2674 = vadd.f32 0.0, %v2673
    %v2675 = vpop.f32.mrf.mxu0
    %2676 = vdwg.mxu0
    %2677 = vmatprep.subr.mxu0 0.0
    %2678 = vmatpush1.msra.mxu0 %v1204
    %2679 = vmatprep.subr.mxu0 0.0
    %2680 = vmatpush1.msra.mxu0 %v1203
    %2681 = vmatprep.subr.mxu0 0.0
    %2682 = vmatpush1.msra.mxu0 %v1202
    %2683 = vmatprep.subr.mxu0 0.0
    %2684 = vmatpush1.msra.mxu0 %v1201
    %2685 = vmatprep.subr.mxu0 0.0
    %2686 = vmatpush1.msra.mxu0 %v1200
    %2687 = vmatprep.subr.mxu0 0.0
    %2688 = vmatpush1.msra.mxu0 %v1199
    %2689 = vmatprep.subr.mxu0 0.0
    %2690 = vmatpush1.msra.mxu0 %v1198
    %2691 = vmatprep.subr.mxu0 0.0
    %2692 = vmatpush1.msra.mxu0 %v1197
    %2693 = vmatprep.subr.mxu0 0.0
    %2694 = vmatpush1.msra.mxu0 %v1196
    %2695 = vmatprep.subr.mxu0 0.0
    %2696 = vmatpush1.msra.mxu0 %v1195
    %2697 = vmatprep.subr.mxu0 0.0
    %2698 = vmatpush1.msra.mxu0 %v1194
    %2699 = vmatprep.subr.mxu0 0.0
    %2700 = vmatpush1.msra.mxu0 %v1193
    %2701 = vmatprep.subr.mxu0 0.0
    %2702 = vmatpush1.msra.mxu0 %v1192
    %2703 = vmatprep.subr.mxu0 0.0
    %2704 = vmatpush1.msra.mxu0 %v1191
    %2705 = vmatprep.subr.mxu0 0.0
    %2706 = vmatpush1.msra.mxu0 %v1190
    %2707 = vmatprep.subr.mxu0 0.0
    %2708 = vmatpush1.msra.mxu0 %v1189
    %2709 = vmatprep.subr.mxu0 0.0
    %2710 = vmatpush2.msra.mxu0 0.0
    %2711 = vmatprep.subr.mxu0 0.0
    %2712 = vmatpush2.msra.mxu0 0.0
    %2713 = vmatprep.subr.mxu0 0.0
    %2714 = vmatpush2.msra.mxu0 0.0
    %2715 = vmatprep.subr.mxu0 0.0
    %2716 = vmatpush2.msra.mxu0 0.0
    %2717 = vmatprep.subr.mxu0 0.0
    %2718 = vmatpush2.msra.mxu0 0.0
    %2719 = vmatprep.subr.mxu0 0.0
    %2720 = vmatpush2.msra.mxu0 0.0
    %2721 = vmatprep.subr.mxu0 0.0
    %2722 = vmatpush2.msra.mxu0 0.0
    %2723 = vmatprep.subr.mxu0 0.0
    %2724 = vmatpush2.msra.mxu0 0.0
    %2725 = vmatprep.subr.mxu0 0.0
    %2726 = vmatpush2.msra.mxu0 0.0
    %2727 = vmatprep.subr.mxu0 0.0
    %2728 = vmatpush2.msra.mxu0 0.0
    %2729 = vmatprep.subr.mxu0 0.0
    %2730 = vmatpush2.msra.mxu0 0.0
    %2731 = vmatprep.subr.mxu0 0.0
    %2732 = vmatpush2.msra.mxu0 0.0
    %2733 = vmatprep.subr.mxu0 0.0
    %2734 = vmatpush2.msra.mxu0 0.0
    %2735 = vmatprep.subr.mxu0 0.0
    %2736 = vmatpush2.msra.mxu0 0.0
    %2737 = vmatprep.subr.mxu0 0.0
    %2738 = vmatpush2.msra.mxu0 0.0
    %2739 = vmatprep.subr.mxu0 0.0
    %2740 = vmatpush2.msra.mxu0 0.0
    %2741 = vmatprep.mubr.f32.mxu0 0.0
    %2742 = vmatmul.mubr.f32.gmra.mxu0 %v266
    %v2743 = vpop.f32.mrf.mxu0
    %v2744 = vadd.f32 0.0, %v2743
    %v2745 = vpop.f32.mrf.mxu0
    %2746 = vmatprep.mubr.f32.mxu0 0.0
    %2747 = vmatmul.mubr.f32.gmra.mxu0 %v268
    %v2748 = vpop.f32.mrf.mxu0
    %v2749 = vadd.f32 0.0, %v2748
    %v2750 = vpop.f32.mrf.mxu0
    %2751 = vdwg.mxu0
    %2752 = vmatprep.subr.mxu0 0.0
    %2753 = vmatpush1.msra.mxu0 %v1296
    %2754 = vmatprep.subr.mxu0 0.0
    %2755 = vmatpush1.msra.mxu0 %v1295
    %2756 = vmatprep.subr.mxu0 0.0
    %2757 = vmatpush1.msra.mxu0 %v1294
    %2758 = vmatprep.subr.mxu0 0.0
    %2759 = vmatpush1.msra.mxu0 %v1293
    %2760 = vmatprep.subr.mxu0 0.0
    %2761 = vmatpush1.msra.mxu0 %v1292
    %2762 = vmatprep.subr.mxu0 0.0
    %2763 = vmatpush1.msra.mxu0 %v1291
    %2764 = vmatprep.subr.mxu0 0.0
    %2765 = vmatpush1.msra.mxu0 %v1290
    %2766 = vmatprep.subr.mxu0 0.0
    %2767 = vmatpush1.msra.mxu0 %v1289
    %2768 = vmatprep.subr.mxu0 0.0
    %2769 = vmatpush1.msra.mxu0 %v1288
    %2770 = vmatprep.subr.mxu0 0.0
    %2771 = vmatpush1.msra.mxu0 %v1287
    %2772 = vmatprep.subr.mxu0 0.0
    %2773 = vmatpush1.msra.mxu0 %v1286
    %2774 = vmatprep.subr.mxu0 0.0
    %2775 = vmatpush1.msra.mxu0 %v1285
    %2776 = vmatprep.subr.mxu0 0.0
    %2777 = vmatpush1.msra.mxu0 %v1284
    %2778 = vmatprep.subr.mxu0 0.0
    %2779 = vmatpush1.msra.mxu0 %v1283
    %2780 = vmatprep.subr.mxu0 0.0
    %2781 = vmatpush1.msra.mxu0 %v1282
    %2782 = vmatprep.subr.mxu0 0.0
    %2783 = vmatpush1.msra.mxu0 %v1281
    %2784 = vmatprep.subr.mxu0 0.0
    %2785 = vmatpush2.msra.mxu0 0.0
    %2786 = vmatprep.subr.mxu0 0.0
    %2787 = vmatpush2.msra.mxu0 0.0
    %2788 = vmatprep.subr.mxu0 0.0
    %2789 = vmatpush2.msra.mxu0 0.0
    %2790 = vmatprep.subr.mxu0 0.0
    %2791 = vmatpush2.msra.mxu0 0.0
    %2792 = vmatprep.subr.mxu0 0.0
    %2793 = vmatpush2.msra.mxu0 0.0
    %2794 = vmatprep.subr.mxu0 0.0
    %2795 = vmatpush2.msra.mxu0 0.0
    %2796 = vmatprep.subr.mxu0 0.0
    %2797 = vmatpush2.msra.mxu0 0.0
    %2798 = vmatprep.subr.mxu0 0.0
    %2799 = vmatpush2.msra.mxu0 0.0
    %2800 = vmatprep.subr.mxu0 0.0
    %2801 = vmatpush2.msra.mxu0 0.0
    %2802 = vmatprep.subr.mxu0 0.0
    %2803 = vmatpush2.msra.mxu0 0.0
    %2804 = vmatprep.subr.mxu0 0.0
    %2805 = vmatpush2.msra.mxu0 0.0
    %2806 = vmatprep.subr.mxu0 0.0
    %2807 = vmatpush2.msra.mxu0 0.0
    %2808 = vmatprep.subr.mxu0 0.0
    %2809 = vmatpush2.msra.mxu0 0.0
    %2810 = vmatprep.subr.mxu0 0.0
    %2811 = vmatpush2.msra.mxu0 0.0
    %2812 = vmatprep.subr.mxu0 0.0
    %2813 = vmatpush2.msra.mxu0 0.0
    %2814 = vmatprep.subr.mxu0 0.0
    %2815 = vmatpush2.msra.mxu0 0.0
    %2816 = vmatprep.mubr.f32.mxu0 0.0
    %2817 = vmatmul.mubr.f32.gmra.mxu0 %v266
    %v2818 = vpop.f32.mrf.mxu0
    %v2819 = vadd.f32 0.0, %v2818
    %v2820 = vpop.f32.mrf.mxu0
    %2821 = vmatprep.mubr.f32.mxu0 0.0
    %2822 = vmatmul.mubr.f32.gmra.mxu0 %v268
    %v2823 = vpop.f32.mrf.mxu0
    %v2824 = vadd.f32 0.0, %v2823
    %v2825 = vpop.f32.mrf.mxu0
    %2826 = vdwg.mxu0
    %2827 = vmatprep.subr.mxu0 0.0
    %2828 = vmatpush1.msra.mxu0 %v1388
    %2829 = vmatprep.subr.mxu0 0.0
    %2830 = vmatpush1.msra.mxu0 %v1387
    %2831 = vmatprep.subr.mxu0 0.0
    %2832 = vmatpush1.msra.mxu0 %v1386
    %2833 = vmatprep.subr.mxu0 0.0
    %2834 = vmatpush1.msra.mxu0 %v1385
    %2835 = vmatprep.subr.mxu0 0.0
    %2836 = vmatpush1.msra.mxu0 %v1384
    %2837 = vmatprep.subr.mxu0 0.0
    %2838 = vmatpush1.msra.mxu0 %v1383
    %2839 = vmatprep.subr.mxu0 0.0
    %2840 = vmatpush1.msra.mxu0 %v1382
    %2841 = vmatprep.subr.mxu0 0.0
    %2842 = vmatpush1.msra.mxu0 %v1381
    %2843 = vmatprep.subr.mxu0 0.0
    %2844 = vmatpush1.msra.mxu0 %v1380
    %2845 = vmatprep.subr.mxu0 0.0
    %2846 = vmatpush1.msra.mxu0 %v1379
    %2847 = vmatprep.subr.mxu0 0.0
    %2848 = vmatpush1.msra.mxu0 %v1378
    %2849 = vmatprep.subr.mxu0 0.0
    %2850 = vmatpush1.msra.mxu0 %v1377
    %2851 = vmatprep.subr.mxu0 0.0
    %2852 = vmatpush1.msra.mxu0 %v1376
    %2853 = vmatprep.subr.mxu0 0.0
    %2854 = vmatpush1.msra.mxu0 %v1375
    %2855 = vmatprep.subr.mxu0 0.0
    %2856 = vmatpush1.msra.mxu0 %v1374
    %2857 = vmatprep.subr.mxu0 0.0
    %2858 = vmatpush1.msra.mxu0 %v1373
    %2859 = vmatprep.subr.mxu0 0.0
    %2860 = vmatpush2.msra.mxu0 0.0
    %2861 = vmatprep.subr.mxu0 0.0
    %2862 = vmatpush2.msra.mxu0 0.0
    %2863 = vmatprep.subr.mxu0 0.0
    %2864 = vmatpush2.msra.mxu0 0.0
    %2865 = vmatprep.subr.mxu0 0.0
    %2866 = vmatpush2.msra.mxu0 0.0
    %2867 = vmatprep.subr.mxu0 0.0
    %2868 = vmatpush2.msra.mxu0 0.0
    %2869 = vmatprep.subr.mxu0 0.0
    %2870 = vmatpush2.msra.mxu0 0.0
    %2871 = vmatprep.subr.mxu0 0.0
    %2872 = vmatpush2.msra.mxu0 0.0
    %2873 = vmatprep.subr.mxu0 0.0
    %2874 = vmatpush2.msra.mxu0 0.0
    %2875 = vmatprep.subr.mxu0 0.0
    %2876 = vmatpush2.msra.mxu0 0.0
    %2877 = vmatprep.subr.mxu0 0.0
    %2878 = vmatpush2.msra.mxu0 0.0
    %2879 = vmatprep.subr.mxu0 0.0
    %2880 = vmatpush2.msra.mxu0 0.0
    %2881 = vmatprep.subr.mxu0 0.0
    %2882 = vmatpush2.msra.mxu0 0.0
    %2883 = vmatprep.subr.mxu0 0.0
    %2884 = vmatpush2.msra.mxu0 0.0
    %2885 = vmatprep.subr.mxu0 0.0
    %2886 = vmatpush2.msra.mxu0 0.0
    %2887 = vmatprep.subr.mxu0 0.0
    %2888 = vmatpush2.msra.mxu0 0.0
    %2889 = vmatprep.subr.mxu0 0.0
    %2890 = vmatpush2.msra.mxu0 0.0
    %2891 = vmatprep.mubr.f32.mxu0 0.0
    %2892 = vmatmul.mubr.f32.gmra.mxu0 %v266
    %v2893 = vpop.f32.mrf.mxu0
    %v2894 = vadd.f32 0.0, %v2893
    %v2895 = vpop.f32.mrf.mxu0
    %2896 = vmatprep.mubr.f32.mxu0 0.0
    %2897 = vmatmul.mubr.f32.gmra.mxu0 %v268
    %v2898 = vpop.f32.mrf.mxu0
    %v2899 = vadd.f32 0.0, %v2898
    %v2900 = vpop.f32.mrf.mxu0
    %2901 = vdwg.mxu0
    %2902 = vmatprep.subr.mxu0 0.0
    %2903 = vmatpush1.msra.mxu0 %v1480
    %2904 = vmatprep.subr.mxu0 0.0
    %2905 = vmatpush1.msra.mxu0 %v1479
    %2906 = vmatprep.subr.mxu0 0.0
    %2907 = vmatpush1.msra.mxu0 %v1478
    %2908 = vmatprep.subr.mxu0 0.0
    %2909 = vmatpush1.msra.mxu0 %v1477
    %2910 = vmatprep.subr.mxu0 0.0
    %2911 = vmatpush1.msra.mxu0 %v1476
    %2912 = vmatprep.subr.mxu0 0.0
    %2913 = vmatpush1.msra.mxu0 %v1475
    %2914 = vmatprep.subr.mxu0 0.0
    %2915 = vmatpush1.msra.mxu0 %v1474
    %2916 = vmatprep.subr.mxu0 0.0
    %2917 = vmatpush1.msra.mxu0 %v1473
    %2918 = vmatprep.subr.mxu0 0.0
    %2919 = vmatpush1.msra.mxu0 %v1472
    %2920 = vmatprep.subr.mxu0 0.0
    %2921 = vmatpush1.msra.mxu0 %v1471
    %2922 = vmatprep.subr.mxu0 0.0
    %2923 = vmatpush1.msra.mxu0 %v1470
    %2924 = vmatprep.subr.mxu0 0.0
    %2925 = vmatpush1.msra.mxu0 %v1469
    %2926 = vmatprep.subr.mxu0 0.0
    %2927 = vmatpush1.msra.mxu0 %v1468
    %2928 = vmatprep.subr.mxu0 0.0
    %2929 = vmatpush1.msra.mxu0 %v1467
    %2930 = vmatprep.subr.mxu0 0.0
    %2931 = vmatpush1.msra.mxu0 %v1466
    %2932 = vmatprep.subr.mxu0 0.0
    %2933 = vmatpush1.msra.mxu0 %v1465
    %2934 = vmatprep.subr.mxu0 0.0
    %2935 = vmatpush2.msra.mxu0 0.0
    %2936 = vmatprep.subr.mxu0 0.0
    %2937 = vmatpush2.msra.mxu0 0.0
    %2938 = vmatprep.subr.mxu0 0.0
    %2939 = vmatpush2.msra.mxu0 0.0
    %2940 = vmatprep.subr.mxu0 0.0
    %2941 = vmatpush2.msra.mxu0 0.0
    %2942 = vmatprep.subr.mxu0 0.0
    %2943 = vmatpush2.msra.mxu0 0.0
    %2944 = vmatprep.subr.mxu0 0.0
    %2945 = vmatpush2.msra.mxu0 0.0
    %2946 = vmatprep.subr.mxu0 0.0
    %2947 = vmatpush2.msra.mxu0 0.0
    %2948 = vmatprep.subr.mxu0 0.0
    %2949 = vmatpush2.msra.mxu0 0.0
    %2950 = vmatprep.subr.mxu0 0.0
    %2951 = vmatpush2.msra.mxu0 0.0
    %2952 = vmatprep.subr.mxu0 0.0
    %2953 = vmatpush2.msra.mxu0 0.0
    %2954 = vmatprep.subr.mxu0 0.0
    %2955 = vmatpush2.msra.mxu0 0.0
    %2956 = vmatprep.subr.mxu0 0.0
    %2957 = vmatpush2.msra.mxu0 0.0
    %2958 = vmatprep.subr.mxu0 0.0
    %2959 = vmatpush2.msra.mxu0 0.0
    %2960 = vmatprep.subr.mxu0 0.0
    %2961 = vmatpush2.msra.mxu0 0.0
    %2962 = vmatprep.subr.mxu0 0.0
    %2963 = vmatpush2.msra.mxu0 0.0
    %2964 = vmatprep.subr.mxu0 0.0
    %2965 = vmatpush2.msra.mxu0 0.0
    %2966 = vmatprep.mubr.f32.mxu0 0.0
    %2967 = vmatmul.mubr.f32.gmra.mxu0 %v266
    %v2968 = vpop.f32.mrf.mxu0
    %v2969 = vadd.f32 0.0, %v2968
    %v2970 = vpop.f32.mrf.mxu0
    %2971 = vmatprep.mubr.f32.mxu0 0.0
    %2972 = vmatmul.mubr.f32.gmra.mxu0 %v268
    %v2973 = vpop.f32.mrf.mxu0
    %v2974 = vadd.f32 0.0, %v2973
    %v2975 = vpop.f32.mrf.mxu0
    %2976 = vdwg.mxu0
    %2977 = vmatprep.subr.mxu0 0.0
    %2978 = vmatpush1.msra.mxu0 %v1572
    %2979 = vmatprep.subr.mxu0 0.0
    %2980 = vmatpush1.msra.mxu0 %v1571
    %2981 = vmatprep.subr.mxu0 0.0
    %2982 = vmatpush1.msra.mxu0 %v1570
    %2983 = vmatprep.subr.mxu0 0.0
    %2984 = vmatpush1.msra.mxu0 %v1569
    %2985 = vmatprep.subr.mxu0 0.0
    %2986 = vmatpush1.msra.mxu0 %v1568
    %2987 = vmatprep.subr.mxu0 0.0
    %2988 = vmatpush1.msra.mxu0 %v1567
    %2989 = vmatprep.subr.mxu0 0.0
    %2990 = vmatpush1.msra.mxu0 %v1566
    %2991 = vmatprep.subr.mxu0 0.0
    %2992 = vmatpush1.msra.mxu0 %v1565
    %2993 = vmatprep.subr.mxu0 0.0
    %2994 = vmatpush1.msra.mxu0 %v1564
    %2995 = vmatprep.subr.mxu0 0.0
    %2996 = vmatpush1.msra.mxu0 %v1563
    %2997 = vmatprep.subr.mxu0 0.0
    %2998 = vmatpush1.msra.mxu0 %v1562
    %2999 = vmatprep.subr.mxu0 0.0
    %3000 = vmatpush1.msra.mxu0 %v1561
    %3001 = vmatprep.subr.mxu0 0.0
    %3002 = vmatpush1.msra.mxu0 %v1560
    %3003 = vmatprep.subr.mxu0 0.0
    %3004 = vmatpush1.msra.mxu0 %v1559
    %3005 = vmatprep.subr.mxu0 0.0
    %3006 = vmatpush1.msra.mxu0 %v1558
    %3007 = vmatprep.subr.mxu0 0.0
    %3008 = vmatpush1.msra.mxu0 %v1557
    %3009 = vmatprep.subr.mxu0 0.0
    %3010 = vmatpush2.msra.mxu0 0.0
    %3011 = vmatprep.subr.mxu0 0.0
    %3012 = vmatpush2.msra.mxu0 0.0
    %3013 = vmatprep.subr.mxu0 0.0
    %3014 = vmatpush2.msra.mxu0 0.0
    %3015 = vmatprep.subr.mxu0 0.0
    %3016 = vmatpush2.msra.mxu0 0.0
    %3017 = vmatprep.subr.mxu0 0.0
    %3018 = vmatpush2.msra.mxu0 0.0
    %3019 = vmatprep.subr.mxu0 0.0
    %3020 = vmatpush2.msra.mxu0 0.0
    %3021 = vmatprep.subr.mxu0 0.0
    %3022 = vmatpush2.msra.mxu0 0.0
    %3023 = vmatprep.subr.mxu0 0.0
    %3024 = vmatpush2.msra.mxu0 0.0
    %3025 = vmatprep.subr.mxu0 0.0
    %3026 = vmatpush2.msra.mxu0 0.0
    %3027 = vmatprep.subr.mxu0 0.0
    %3028 = vmatpush2.msra.mxu0 0.0
    %3029 = vmatprep.subr.mxu0 0.0
    %3030 = vmatpush2.msra.mxu0 0.0
    %3031 = vmatprep.subr.mxu0 0.0
    %3032 = vmatpush2.msra.mxu0 0.0
    %3033 = vmatprep.subr.mxu0 0.0
    %3034 = vmatpush2.msra.mxu0 0.0
    %3035 = vmatprep.subr.mxu0 0.0
    %3036 = vmatpush2.msra.mxu0 0.0
    %3037 = vmatprep.subr.mxu0 0.0
    %3038 = vmatpush2.msra.mxu0 0.0
    %3039 = vmatprep.subr.mxu0 0.0
    %3040 = vmatpush2.msra.mxu0 0.0
    %3041 = vmatprep.mubr.f32.mxu0 0.0
    %3042 = vmatmul.mubr.f32.gmra.mxu0 %v266
    %v3043 = vpop.f32.mrf.mxu0
    %v3044 = vadd.f32 0.0, %v3043
    %v3045 = vpop.f32.mrf.mxu0
    %3046 = vmatprep.mubr.f32.mxu0 0.0
    %3047 = vmatmul.mubr.f32.gmra.mxu0 %v268
    %v3048 = vpop.f32.mrf.mxu0
    %v3049 = vadd.f32 0.0, %v3048
    %v3050 = vpop.f32.mrf.mxu0
    %3051 = vdwg.mxu0
    %3052 = vmatprep.subr.mxu0 0.0
    %3053 = vmatpush1.msra.mxu0 %v1664
    %3054 = vmatprep.subr.mxu0 0.0
    %3055 = vmatpush1.msra.mxu0 %v1663
    %3056 = vmatprep.subr.mxu0 0.0
    %3057 = vmatpush1.msra.mxu0 %v1662
    %3058 = vmatprep.subr.mxu0 0.0
    %3059 = vmatpush1.msra.mxu0 %v1661
    %3060 = vmatprep.subr.mxu0 0.0
    %3061 = vmatpush1.msra.mxu0 %v1660
    %3062 = vmatprep.subr.mxu0 0.0
    %3063 = vmatpush1.msra.mxu0 %v1659
    %3064 = vmatprep.subr.mxu0 0.0
    %3065 = vmatpush1.msra.mxu0 %v1658
    %3066 = vmatprep.subr.mxu0 0.0
    %3067 = vmatpush1.msra.mxu0 %v1657
    %3068 = vmatprep.subr.mxu0 0.0
    %3069 = vmatpush1.msra.mxu0 %v1656
    %3070 = vmatprep.subr.mxu0 0.0
    %3071 = vmatpush1.msra.mxu0 %v1655
    %3072 = vmatprep.subr.mxu0 0.0
    %3073 = vmatpush1.msra.mxu0 %v1654
    %3074 = vmatprep.subr.mxu0 0.0
    %3075 = vmatpush1.msra.mxu0 %v1653
    %3076 = vmatprep.subr.mxu0 0.0
    %3077 = vmatpush1.msra.mxu0 %v1652
    %3078 = vmatprep.subr.mxu0 0.0
    %3079 = vmatpush1.msra.mxu0 %v1651
    %3080 = vmatprep.subr.mxu0 0.0
    %3081 = vmatpush1.msra.mxu0 %v1650
    %3082 = vmatprep.subr.mxu0 0.0
    %3083 = vmatpush1.msra.mxu0 %v1649
    %3084 = vmatprep.subr.mxu0 0.0
    %3085 = vmatpush2.msra.mxu0 0.0
    %3086 = vmatprep.subr.mxu0 0.0
    %3087 = vmatpush2.msra.mxu0 0.0
    %3088 = vmatprep.subr.mxu0 0.0
    %3089 = vmatpush2.msra.mxu0 0.0
    %3090 = vmatprep.subr.mxu0 0.0
    %3091 = vmatpush2.msra.mxu0 0.0
    %3092 = vmatprep.subr.mxu0 0.0
    %3093 = vmatpush2.msra.mxu0 0.0
    %3094 = vmatprep.subr.mxu0 0.0
    %3095 = vmatpush2.msra.mxu0 0.0
    %3096 = vmatprep.subr.mxu0 0.0
    %3097 = vmatpush2.msra.mxu0 0.0
    %3098 = vmatprep.subr.mxu0 0.0
    %3099 = vmatpush2.msra.mxu0 0.0
    %3100 = vmatprep.subr.mxu0 0.0
    %3101 = vmatpush2.msra.mxu0 0.0
    %3102 = vmatprep.subr.mxu0 0.0
    %3103 = vmatpush2.msra.mxu0 0.0
    %3104 = vmatprep.subr.mxu0 0.0
    %3105 = vmatpush2.msra.mxu0 0.0
    %3106 = vmatprep.subr.mxu0 0.0
    %3107 = vmatpush2.msra.mxu0 0.0
    %3108 = vmatprep.subr.mxu0 0.0
    %3109 = vmatpush2.msra.mxu0 0.0
    %3110 = vmatprep.subr.mxu0 0.0
    %3111 = vmatpush2.msra.mxu0 0.0
    %3112 = vmatprep.subr.mxu0 0.0
    %3113 = vmatpush2.msra.mxu0 0.0
    %3114 = vmatprep.subr.mxu0 0.0
    %3115 = vmatpush2.msra.mxu0 0.0
    %3116 = vmatprep.mubr.f32.mxu0 0.0
    %3117 = vmatmul.mubr.f32.gmra.mxu0 %v266
    %v3118 = vpop.f32.mrf.mxu0
    %v3119 = vadd.f32 0.0, %v3118
    %v3120 = vpop.f32.mrf.mxu0
    %3121 = vmatprep.mubr.f32.mxu0 0.0
    %3122 = vmatmul.mubr.f32.gmra.mxu0 %v268
    %v3123 = vpop.f32.mrf.mxu0
    %v3124 = vadd.f32 0.0, %v3123
    %v3125 = vpop.f32.mrf.mxu0
    %3126 = vdwg.mxu0
    %3127 = vmatprep.subr.mxu0 0.0
    %3128 = vmatpush1.msra.mxu0 %v2524
    %3129 = vmatprep.subr.mxu0 0.0
    %3130 = vmatpush1.msra.mxu0 %v2519
    %3131 = vmatprep.subr.mxu0 0.0
    %3132 = vmatpush1.msra.mxu0 %v2449
    %3133 = vmatprep.subr.mxu0 0.0
    %3134 = vmatpush1.msra.mxu0 %v2444
    %3135 = vmatprep.subr.mxu0 0.0
    %3136 = vmatpush1.msra.mxu0 %v2374
    %3137 = vmatprep.subr.mxu0 0.0
    %3138 = vmatpush1.msra.mxu0 %v2369
    %3139 = vmatprep.subr.mxu0 0.0
    %3140 = vmatpush1.msra.mxu0 %v2299
    %3141 = vmatprep.subr.mxu0 0.0
    %3142 = vmatpush1.msra.mxu0 %v2294
    %3143 = vmatprep.subr.mxu0 0.0
    %3144 = vmatpush1.msra.mxu0 %v2224
    %3145 = vmatprep.subr.mxu0 0.0
    %3146 = vmatpush1.msra.mxu0 %v2219
    %3147 = vmatprep.subr.mxu0 0.0
    %3148 = vmatpush1.msra.mxu0 %v2149
    %3149 = vmatprep.subr.mxu0 0.0
    %3150 = vmatpush1.msra.mxu0 %v2144
    %3151 = vmatprep.subr.mxu0 0.0
    %3152 = vmatpush1.msra.mxu0 %v2074
    %3153 = vmatprep.subr.mxu0 0.0
    %3154 = vmatpush1.msra.mxu0 %v2069
    %3155 = vmatprep.subr.mxu0 0.0
    %3156 = vmatpush1.msra.mxu0 %v1999
    %3157 = vmatprep.subr.mxu0 0.0
    %3158 = vmatpush1.msra.mxu0 %v1994
    %3159 = vmatprep.subr.mxu0 0.0
    %3160 = vmatpush2.msra.mxu0 %v3124
    %3161 = vmatprep.subr.mxu0 0.0
    %3162 = vmatpush2.msra.mxu0 %v3119
    %3163 = vmatprep.subr.mxu0 0.0
    %3164 = vmatpush2.msra.mxu0 %v3049
    %3165 = vmatprep.subr.mxu0 0.0
    %3166 = vmatpush2.msra.mxu0 %v3044
    %3167 = vmatprep.subr.mxu0 0.0
    %3168 = vmatpush2.msra.mxu0 %v2974
    %3169 = vmatprep.subr.mxu0 0.0
    %3170 = vmatpush2.msra.mxu0 %v2969
    %3171 = vmatprep.subr.mxu0 0.0
    %3172 = vmatpush2.msra.mxu0 %v2899
    %3173 = vmatprep.subr.mxu0 0.0
    %3174 = vmatpush2.msra.mxu0 %v2894
    %3175 = vmatprep.subr.mxu0 0.0
    %3176 = vmatpush2.msra.mxu0 %v2824
    %3177 = vmatprep.subr.mxu0 0.0
    %3178 = vmatpush2.msra.mxu0 %v2819
    %3179 = vmatprep.subr.mxu0 0.0
    %3180 = vmatpush2.msra.mxu0 %v2749
    %3181 = vmatprep.subr.mxu0 0.0
    %3182 = vmatpush2.msra.mxu0 %v2744
    %3183 = vmatprep.subr.mxu0 0.0
    %3184 = vmatpush2.msra.mxu0 %v2674
    %3185 = vmatprep.subr.mxu0 0.0
    %3186 = vmatpush2.msra.mxu0 %v2669
    %3187 = vmatprep.subr.mxu0 0.0
    %3188 = vmatpush2.msra.mxu0 %v2599
    %3189 = vmatprep.subr.mxu0 0.0
    %3190 = vmatpush2.msra.mxu0 %v2594
    %3191 = vmatprep.mubr.f32.mxu0 %v1741
    %3192 = vmatmul.mubr.f32.gmra.mxu0 %v1740
    %v3193 = vpop.f32.mrf.mxu0
    %v3194 = vadd.f32 %v1749, %v3193
    %v3195 = vpop.f32.mrf.mxu0
    %3196 = vmatprep.mubr.f32.mxu0 %v1743
    %3197 = vmatmul.mubr.f32.gmra.mxu0 %v1742
    %v3198 = vpop.f32.mrf.mxu0
    %v3199 = vadd.f32 %v1754, %v3198
    %v3200 = vpop.f32.mrf.mxu0
    %3201 = vdwg.mxu0
    %vm3202 = vcmp.gt.f32.partialorder %v3194, 0.0
    %vm3203 = vcmp.gt.f32.partialorder %v3199, 0.0
    %v3204 = vmin.f32 %v3194, 0.0
    %v3205 = vmin.f32 %v3199, 0.0
    %v3206 = vmul.f32 %v3204, 1.442695
    %v3207 = vpow.pop %v3206
    %v3208 = vmul.f32 %v3205, 1.442695
    %v3209 = vpow.pop %v3208
    %v3210 = vsub.f32 %v3207, 1.0
    %v3211 = vsub.f32 %v3209, 1.0
    %v3212 = vsel %vm3202, %v3194, %v3210
    %v3213 = vsel %vm3203, %v3199, %v3211
    %v3215 = vsel %vm1844, %v3212, 0
    %v3218 = vsel %vm1844, %v3213, 0
    %3220 = vmatprep.subr.mxu0 0.0
    %3221 = vmatpush1.xpose.msra.mxu0 0.0
    %3222 = vmatprep.subr.mxu0 0.0
    %3223 = vmatpush1.xpose.msra.mxu0 0.0
    %3224 = vmatprep.subr.mxu0 0.0
    %3225 = vmatpush1.xpose.msra.mxu0 0.0
    %3226 = vmatprep.subr.mxu0 0.0
    %3227 = vmatpush1.xpose.msra.mxu0 0.0
    %3228 = vmatprep.subr.mxu0 0.0
    %3229 = vmatpush1.xpose.msra.mxu0 0.0
    %3230 = vmatprep.subr.mxu0 0.0
    %3231 = vmatpush1.xpose.msra.mxu0 0.0
    %3232 = vmatprep.subr.mxu0 0.0
    %3233 = vmatpush1.xpose.msra.mxu0 0.0
    %3234 = vmatprep.subr.mxu0 0.0
    %3235 = vmatpush1.xpose.msra.mxu0 0.0
    %3236 = vmatprep.subr.mxu0 0.0
    %3237 = vmatpush1.xpose.msra.mxu0 0.0
    %3238 = vmatprep.subr.mxu0 0.0
    %3239 = vmatpush1.xpose.msra.mxu0 0.0
    %3240 = vmatprep.subr.mxu0 0.0
    %3241 = vmatpush1.xpose.msra.mxu0 0.0
    %3242 = vmatprep.subr.mxu0 0.0
    %3243 = vmatpush1.xpose.msra.mxu0 0.0
    %3244 = vmatprep.subr.mxu0 0.0
    %3245 = vmatpush1.xpose.msra.mxu0 0.0
    %3246 = vmatprep.subr.mxu0 0.0
    %3247 = vmatpush1.xpose.msra.mxu0 0.0
    %3248 = vmatprep.subr.mxu0 0.0
    %3249 = vmatpush1.xpose.msra.mxu0 %v3218
    %3250 = vmatprep.subr.mxu0 0.0
    %3251 = vmatpush1.xpose.msra.mxu0 %v3215
    %3252 = vmatprep.subr.mxu0 0.0
    %3253 = vmatpush2.xpose.msra.mxu0 0.0
    %3254 = vmatprep.subr.mxu0 0.0
    %3255 = vmatpush2.xpose.msra.mxu0 0.0
    %3256 = vmatprep.subr.mxu0 0.0
    %3257 = vmatpush2.xpose.msra.mxu0 0.0
    %3258 = vmatprep.subr.mxu0 0.0
    %3259 = vmatpush2.xpose.msra.mxu0 0.0
    %3260 = vmatprep.subr.mxu0 0.0
    %3261 = vmatpush2.xpose.msra.mxu0 0.0
    %3262 = vmatprep.subr.mxu0 0.0
    %3263 = vmatpush2.xpose.msra.mxu0 0.0
    %3264 = vmatprep.subr.mxu0 0.0
    %3265 = vmatpush2.xpose.msra.mxu0 0.0
    %3266 = vmatprep.subr.mxu0 0.0
    %3267 = vmatpush2.xpose.msra.mxu0 0.0
    %3268 = vmatprep.subr.mxu0 0.0
    %3269 = vmatpush2.xpose.msra.mxu0 0.0
    %3270 = vmatprep.subr.mxu0 0.0
    %3271 = vmatpush2.xpose.msra.mxu0 0.0
    %3272 = vmatprep.subr.mxu0 0.0
    %3273 = vmatpush2.xpose.msra.mxu0 0.0
    %3274 = vmatprep.subr.mxu0 0.0
    %3275 = vmatpush2.xpose.msra.mxu0 0.0
    %3276 = vmatprep.subr.mxu0 0.0
    %3277 = vmatpush2.xpose.msra.mxu0 0.0
    %3278 = vmatprep.subr.mxu0 0.0
    %3279 = vmatpush2.xpose.msra.mxu0 0.0
    %3280 = vmatprep.subr.mxu0 0.0
    %3281 = vmatpush2.xpose.msra.mxu0 0.0
    %3282 = vmatprep.subr.mxu0 0.0
    %3283 = vmatpush2.xpose.msra.mxu0 0.0
    %3284 = vmatprep.mubr.f32.mxu0 0.0
    %3285 = vmatmul.mubr.f32.gmra.mxu0 %v1846
    %v3286 = vpop.f32.mrf.mxu0
    %v3287 = vadd.f32 0.0, %v3286
    %v3288 = vpop.f32.mrf.mxu0
    %3289 = vdwg.mxu0
    %v3290 = vmul.f32 %v3287, 4.0
    %v3291 = vadd.f32 %v3290, %v1925
    %v3292 = vld [vmem:[%s17] sm:$0xff]
    %v3293 = vld [vmem:[%s17 + $0x8] sm:$0xff]
    %v3294 = vld [vmem:[%s19] sm:$0xff]
    %v3295 = vld [vmem:[%s19 + $0x8] sm:$0xff]
    %v3296 = vld [vmem:[%s21] sm:$0x1]
    %v3298 = vlaneseq
    %v3299 = vshrl.u32 %v3298, 7
    %v3300 = vsub.s32 0, %v3299
    %v3301 = vrot.slane %v3296, %v3300
    %vm3303 = vcmask 130048
    %v3305 = vsel %vm3303, %v1926, 0
    %v3308 = vsel %vm3303, %v3291, 0
    %3310 = vmatprep.subr.mxu0 0.0
    %3311 = vmatpush1.msra.mxu0 0.0
    %3312 = vmatprep.subr.mxu0 0.0
    %3313 = vmatpush1.msra.mxu0 0.0
    %3314 = vmatprep.subr.mxu0 0.0
    %3315 = vmatpush1.msra.mxu0 0.0
    %3316 = vmatprep.subr.mxu0 0.0
    %3317 = vmatpush1.msra.mxu0 0.0
    %3318 = vmatprep.subr.mxu0 0.0
    %3319 = vmatpush1.msra.mxu0 0.0
    %3320 = vmatprep.subr.mxu0 0.0
    %3321 = vmatpush1.msra.mxu0 0.0
    %3322 = vmatprep.subr.mxu0 0.0
    %3323 = vmatpush1.msra.mxu0 0.0
    %3324 = vmatprep.subr.mxu0 0.0
    %3325 = vmatpush1.msra.mxu0 0.0
    %3326 = vmatprep.subr.mxu0 0.0
    %3327 = vmatpush1.msra.mxu0 0.0
    %3328 = vmatprep.subr.mxu0 0.0
    %3329 = vmatpush1.msra.mxu0 0.0
    %3330 = vmatprep.subr.mxu0 0.0
    %3331 = vmatpush1.msra.mxu0 0.0
    %3332 = vmatprep.subr.mxu0 0.0
    %3333 = vmatpush1.msra.mxu0 0.0
    %3334 = vmatprep.subr.mxu0 0.0
    %3335 = vmatpush1.msra.mxu0 0.0
    %3336 = vmatprep.subr.mxu0 0.0
    %3337 = vmatpush1.msra.mxu0 0.0
    %3338 = vmatprep.subr.mxu0 0.0
    %3339 = vmatpush1.msra.mxu0 %v3295
    %3340 = vmatprep.subr.mxu0 0.0
    %3341 = vmatpush1.msra.mxu0 %v3294
    %3342 = vmatprep.subr.mxu0 0.0
    %3343 = vmatpush2.msra.mxu0 0.0
    %3344 = vmatprep.subr.mxu0 0.0
    %3345 = vmatpush2.msra.mxu0 0.0
    %3346 = vmatprep.subr.mxu0 0.0
    %3347 = vmatpush2.msra.mxu0 0.0
    %3348 = vmatprep.subr.mxu0 0.0
    %3349 = vmatpush2.msra.mxu0 0.0
    %3350 = vmatprep.subr.mxu0 0.0
    %3351 = vmatpush2.msra.mxu0 0.0
    %3352 = vmatprep.subr.mxu0 0.0
    %3353 = vmatpush2.msra.mxu0 0.0
    %3354 = vmatprep.subr.mxu0 0.0
    %3355 = vmatpush2.msra.mxu0 0.0
    %3356 = vmatprep.subr.mxu0 0.0
    %3357 = vmatpush2.msra.mxu0 0.0
    %3358 = vmatprep.subr.mxu0 0.0
    %3359 = vmatpush2.msra.mxu0 0.0
    %3360 = vmatprep.subr.mxu0 0.0
    %3361 = vmatpush2.msra.mxu0 0.0
    %3362 = vmatprep.subr.mxu0 0.0
    %3363 = vmatpush2.msra.mxu0 0.0
    %3364 = vmatprep.subr.mxu0 0.0
    %3365 = vmatpush2.msra.mxu0 0.0
    %3366 = vmatprep.subr.mxu0 0.0
    %3367 = vmatpush2.msra.mxu0 0.0
    %3368 = vmatprep.subr.mxu0 0.0
    %3369 = vmatpush2.msra.mxu0 0.0
    %3370 = vmatprep.subr.mxu0 0.0
    %3371 = vmatpush2.msra.mxu0 0.0
    %3372 = vmatprep.subr.mxu0 0.0
    %3373 = vmatpush2.msra.mxu0 0.0
    %3374 = vmatprep.mubr.f32.mxu0 0.0
    %3375 = vmatmul.mubr.f32.gmra.mxu0 %v3305
    %v3376 = vpop.f32.mrf.mxu0
    %v3377 = vadd.f32 %v3301, %v3376
    %v3378 = vpop.f32.mrf.mxu0
    %3379 = vmatprep.mubr.f32.mxu0 0.0
    %3380 = vmatmul.mubr.f32.gmra.mxu0 %v3308
    %v3381 = vpop.f32.mrf.mxu0
    %v3382 = vadd.f32 %v3301, %v3381
    %v3383 = vpop.f32.mrf.mxu0
    %3384 = vdwg.mxu0
    %v3385 = vld [vmem:[%s23] sm:$0xff]
    %v3386 = vld [vmem:[%s23 + $0x8] sm:$0xff]
    %v3387 = vld [vmem:[%s25] sm:$0x1]
    %v3389 = vlaneseq
    %v3390 = vshrl.u32 %v3389, 7
    %v3391 = vsub.s32 0, %v3390
    %v3392 = vrot.slane %v3387, %v3391
    %3394 = vmatprep.subr.mxu0 0.0
    %3395 = vmatpush1.msra.mxu0 0.0
    %3396 = vmatprep.subr.mxu0 0.0
    %3397 = vmatpush1.msra.mxu0 0.0
    %3398 = vmatprep.subr.mxu0 0.0
    %3399 = vmatpush1.msra.mxu0 0.0
    %3400 = vmatprep.subr.mxu0 0.0
    %3401 = vmatpush1.msra.mxu0 0.0
    %3402 = vmatprep.subr.mxu0 0.0
    %3403 = vmatpush1.msra.mxu0 0.0
    %3404 = vmatprep.subr.mxu0 0.0
    %3405 = vmatpush1.msra.mxu0 0.0
    %3406 = vmatprep.subr.mxu0 0.0
    %3407 = vmatpush1.msra.mxu0 0.0
    %3408 = vmatprep.subr.mxu0 0.0
    %3409 = vmatpush1.msra.mxu0 0.0
    %3410 = vmatprep.subr.mxu0 0.0
    %3411 = vmatpush1.msra.mxu0 0.0
    %3412 = vmatprep.subr.mxu0 0.0
    %3413 = vmatpush1.msra.mxu0 0.0
    %3414 = vmatprep.subr.mxu0 0.0
    %3415 = vmatpush1.msra.mxu0 0.0
    %3416 = vmatprep.subr.mxu0 0.0
    %3417 = vmatpush1.msra.mxu0 0.0
    %3418 = vmatprep.subr.mxu0 0.0
    %3419 = vmatpush1.msra.mxu0 0.0
    %3420 = vmatprep.subr.mxu0 0.0
    %3421 = vmatpush1.msra.mxu0 0.0
    %3422 = vmatprep.subr.mxu0 0.0
    %3423 = vmatpush1.msra.mxu0 %v3386
    %3424 = vmatprep.subr.mxu0 0.0
    %3425 = vmatpush1.msra.mxu0 %v3385
    %3426 = vmatprep.subr.mxu0 0.0
    %3427 = vmatpush2.msra.mxu0 0.0
    %3428 = vmatprep.subr.mxu0 0.0
    %3429 = vmatpush2.msra.mxu0 0.0
    %3430 = vmatprep.subr.mxu0 0.0
    %3431 = vmatpush2.msra.mxu0 0.0
    %3432 = vmatprep.subr.mxu0 0.0
    %3433 = vmatpush2.msra.mxu0 0.0
    %3434 = vmatprep.subr.mxu0 0.0
    %3435 = vmatpush2.msra.mxu0 0.0
    %3436 = vmatprep.subr.mxu0 0.0
    %3437 = vmatpush2.msra.mxu0 0.0
    %3438 = vmatprep.subr.mxu0 0.0
    %3439 = vmatpush2.msra.mxu0 0.0
    %3440 = vmatprep.subr.mxu0 0.0
    %3441 = vmatpush2.msra.mxu0 0.0
    %3442 = vmatprep.subr.mxu0 0.0
    %3443 = vmatpush2.msra.mxu0 0.0
    %3444 = vmatprep.subr.mxu0 0.0
    %3445 = vmatpush2.msra.mxu0 0.0
    %3446 = vmatprep.subr.mxu0 0.0
    %3447 = vmatpush2.msra.mxu0 0.0
    %3448 = vmatprep.subr.mxu0 0.0
    %3449 = vmatpush2.msra.mxu0 0.0
    %3450 = vmatprep.subr.mxu0 0.0
    %3451 = vmatpush2.msra.mxu0 0.0
    %3452 = vmatprep.subr.mxu0 0.0
    %3453 = vmatpush2.msra.mxu0 0.0
    %3454 = vmatprep.subr.mxu0 0.0
    %3455 = vmatpush2.msra.mxu0 0.0
    %3456 = vmatprep.subr.mxu0 0.0
    %3457 = vmatpush2.msra.mxu0 0.0
    %3458 = vmatprep.mubr.f32.mxu0 0.0
    %3459 = vmatmul.mubr.f32.gmra.mxu0 %v3305
    %v3460 = vpop.f32.mrf.mxu0
    %v3461 = vadd.f32 %v3392, %v3460
    %v3462 = vpop.f32.mrf.mxu0
    %3463 = vmatprep.mubr.f32.mxu0 0.0
    %3464 = vmatmul.mubr.f32.gmra.mxu0 %v3308
    %v3465 = vpop.f32.mrf.mxu0
    %v3466 = vadd.f32 %v3392, %v3465
    %v3467 = vpop.f32.mrf.mxu0
    %3468 = vdwg.mxu0
    %v3469 = vld [vmem:[%s27] sm:$0xff]
    %v3470 = vld [vmem:[%s27 + $0x8] sm:$0xff]
    %v3471 = vld [vmem:[%s29] sm:$0x1]
    %v3473 = vlaneseq
    %v3474 = vshrl.u32 %v3473, 7
    %v3475 = vsub.s32 0, %v3474
    %v3476 = vrot.slane %v3471, %v3475
    %3478 = vmatprep.subr.mxu0 0.0
    %3479 = vmatpush1.msra.mxu0 0.0
    %3480 = vmatprep.subr.mxu0 0.0
    %3481 = vmatpush1.msra.mxu0 0.0
    %3482 = vmatprep.subr.mxu0 0.0
    %3483 = vmatpush1.msra.mxu0 0.0
    %3484 = vmatprep.subr.mxu0 0.0
    %3485 = vmatpush1.msra.mxu0 0.0
    %3486 = vmatprep.subr.mxu0 0.0
    %3487 = vmatpush1.msra.mxu0 0.0
    %3488 = vmatprep.subr.mxu0 0.0
    %3489 = vmatpush1.msra.mxu0 0.0
    %3490 = vmatprep.subr.mxu0 0.0
    %3491 = vmatpush1.msra.mxu0 0.0
    %3492 = vmatprep.subr.mxu0 0.0
    %3493 = vmatpush1.msra.mxu0 0.0
    %3494 = vmatprep.subr.mxu0 0.0
    %3495 = vmatpush1.msra.mxu0 0.0
    %3496 = vmatprep.subr.mxu0 0.0
    %3497 = vmatpush1.msra.mxu0 0.0
    %3498 = vmatprep.subr.mxu0 0.0
    %3499 = vmatpush1.msra.mxu0 0.0
    %3500 = vmatprep.subr.mxu0 0.0
    %3501 = vmatpush1.msra.mxu0 0.0
    %3502 = vmatprep.subr.mxu0 0.0
    %3503 = vmatpush1.msra.mxu0 0.0
    %3504 = vmatprep.subr.mxu0 0.0
    %3505 = vmatpush1.msra.mxu0 0.0
    %3506 = vmatprep.subr.mxu0 0.0
    %3507 = vmatpush1.msra.mxu0 %v3470
    %3508 = vmatprep.subr.mxu0 0.0
    %3509 = vmatpush1.msra.mxu0 %v3469
    %3510 = vmatprep.subr.mxu0 0.0
    %3511 = vmatpush2.msra.mxu0 0.0
    %3512 = vmatprep.subr.mxu0 0.0
    %3513 = vmatpush2.msra.mxu0 0.0
    %3514 = vmatprep.subr.mxu0 0.0
    %3515 = vmatpush2.msra.mxu0 0.0
    %3516 = vmatprep.subr.mxu0 0.0
    %3517 = vmatpush2.msra.mxu0 0.0
    %3518 = vmatprep.subr.mxu0 0.0
    %3519 = vmatpush2.msra.mxu0 0.0
    %3520 = vmatprep.subr.mxu0 0.0
    %3521 = vmatpush2.msra.mxu0 0.0
    %3522 = vmatprep.subr.mxu0 0.0
    %3523 = vmatpush2.msra.mxu0 0.0
    %3524 = vmatprep.subr.mxu0 0.0
    %3525 = vmatpush2.msra.mxu0 0.0
    %3526 = vmatprep.subr.mxu0 0.0
    %3527 = vmatpush2.msra.mxu0 0.0
    %3528 = vmatprep.subr.mxu0 0.0
    %3529 = vmatpush2.msra.mxu0 0.0
    %3530 = vmatprep.subr.mxu0 0.0
    %3531 = vmatpush2.msra.mxu0 0.0
    %3532 = vmatprep.subr.mxu0 0.0
    %3533 = vmatpush2.msra.mxu0 0.0
    %3534 = vmatprep.subr.mxu0 0.0
    %3535 = vmatpush2.msra.mxu0 0.0
    %3536 = vmatprep.subr.mxu0 0.0
    %3537 = vmatpush2.msra.mxu0 0.0
    %3538 = vmatprep.subr.mxu0 0.0
    %3539 = vmatpush2.msra.mxu0 0.0
    %3540 = vmatprep.subr.mxu0 0.0
    %3541 = vmatpush2.msra.mxu0 0.0
    %3542 = vmatprep.mubr.f32.mxu0 0.0
    %3543 = vmatmul.mubr.f32.gmra.mxu0 %v3305
    %v3544 = vpop.f32.mrf.mxu0
    %v3545 = vadd.f32 %v3476, %v3544
    %v3546 = vpop.f32.mrf.mxu0
    %3547 = vmatprep.mubr.f32.mxu0 0.0
    %3548 = vmatmul.mubr.f32.gmra.mxu0 %v3308
    %v3549 = vpop.f32.mrf.mxu0
    %v3550 = vadd.f32 %v3476, %v3549
    %v3551 = vpop.f32.mrf.mxu0
    %3552 = vdwg.mxu0
    %vm3553 = vcmask 31744
    %v3555 = vsel %vm3553, %v3377, 0
    %v3558 = vsel %vm3553, %v3382, 0
    %v3561 = vsel %vm3553, %v3461, 0
    %v3564 = vsel %vm3553, %v3466, 0
    %3566 = vmatprep.subr.mxu0 0.0
    %3567 = vmatpush1.xpose.msra.mxu0 0.0
    %3568 = vmatprep.subr.mxu0 0.0
    %3569 = vmatpush1.xpose.msra.mxu0 0.0
    %3570 = vmatprep.subr.mxu0 0.0
    %3571 = vmatpush1.xpose.msra.mxu0 0.0
    %3572 = vmatprep.subr.mxu0 0.0
    %3573 = vmatpush1.xpose.msra.mxu0 0.0
    %3574 = vmatprep.subr.mxu0 0.0
    %3575 = vmatpush1.xpose.msra.mxu0 0.0
    %3576 = vmatprep.subr.mxu0 0.0
    %3577 = vmatpush1.xpose.msra.mxu0 0.0
    %3578 = vmatprep.subr.mxu0 0.0
    %3579 = vmatpush1.xpose.msra.mxu0 0.0
    %3580 = vmatprep.subr.mxu0 0.0
    %3581 = vmatpush1.xpose.msra.mxu0 0.0
    %3582 = vmatprep.subr.mxu0 0.0
    %3583 = vmatpush1.xpose.msra.mxu0 0.0
    %3584 = vmatprep.subr.mxu0 0.0
    %3585 = vmatpush1.xpose.msra.mxu0 0.0
    %3586 = vmatprep.subr.mxu0 0.0
    %3587 = vmatpush1.xpose.msra.mxu0 0.0
    %3588 = vmatprep.subr.mxu0 0.0
    %3589 = vmatpush1.xpose.msra.mxu0 0.0
    %3590 = vmatprep.subr.mxu0 0.0
    %3591 = vmatpush1.xpose.msra.mxu0 0.0
    %3592 = vmatprep.subr.mxu0 0.0
    %3593 = vmatpush1.xpose.msra.mxu0 0.0
    %3594 = vmatprep.subr.mxu0 0.0
    %3595 = vmatpush1.xpose.msra.mxu0 %v3564
    %3596 = vmatprep.subr.mxu0 0.0
    %3597 = vmatpush1.xpose.msra.mxu0 %v3561
    %3598 = vmatprep.subr.mxu0 0.0
    %3599 = vmatpush2.xpose.msra.mxu0 0.0
    %3600 = vmatprep.subr.mxu0 0.0
    %3601 = vmatpush2.xpose.msra.mxu0 0.0
    %3602 = vmatprep.subr.mxu0 0.0
    %3603 = vmatpush2.xpose.msra.mxu0 0.0
    %3604 = vmatprep.subr.mxu0 0.0
    %3605 = vmatpush2.xpose.msra.mxu0 0.0
    %3606 = vmatprep.subr.mxu0 0.0
    %3607 = vmatpush2.xpose.msra.mxu0 0.0
    %3608 = vmatprep.subr.mxu0 0.0
    %3609 = vmatpush2.xpose.msra.mxu0 0.0
    %3610 = vmatprep.subr.mxu0 0.0
    %3611 = vmatpush2.xpose.msra.mxu0 0.0
    %3612 = vmatprep.subr.mxu0 0.0
    %3613 = vmatpush2.xpose.msra.mxu0 0.0
    %3614 = vmatprep.subr.mxu0 0.0
    %3615 = vmatpush2.xpose.msra.mxu0 0.0
    %3616 = vmatprep.subr.mxu0 0.0
    %3617 = vmatpush2.xpose.msra.mxu0 0.0
    %3618 = vmatprep.subr.mxu0 0.0
    %3619 = vmatpush2.xpose.msra.mxu0 0.0
    %3620 = vmatprep.subr.mxu0 0.0
    %3621 = vmatpush2.xpose.msra.mxu0 0.0
    %3622 = vmatprep.subr.mxu0 0.0
    %3623 = vmatpush2.xpose.msra.mxu0 0.0
    %3624 = vmatprep.subr.mxu0 0.0
    %3625 = vmatpush2.xpose.msra.mxu0 0.0
    %3626 = vmatprep.subr.mxu0 0.0
    %3627 = vmatpush2.xpose.msra.mxu0 0.0
    %3628 = vmatprep.subr.mxu0 0.0
    %3629 = vmatpush2.xpose.msra.mxu0 0.0
    %3630 = vmatprep.mubr.f32.mxu0 0.0
    %3631 = vmatmul.mubr.f32.gmra.mxu0 %v3555
    %v3632 = vpop.f32.mrf.mxu0
    %v3633 = vadd.f32 0.0, %v3632
    %v3634 = vpop.f32.mrf.mxu0
    %3635 = vmatprep.mubr.f32.mxu0 0.0
    %3636 = vmatmul.mubr.f32.gmra.mxu0 %v3558
    %v3637 = vpop.f32.mrf.mxu0
    %v3638 = vadd.f32 0.0, %v3637
    %v3639 = vpop.f32.mrf.mxu0
    %3640 = vdwg.mxu0
    %v3641 = vmul.f32 %v3633, 0.25
    %v3642 = vmul.f32 %v3638, 0.25
    %v3643 = vadd.f32 %v3641, %v3292
    %v3644 = vadd.f32 %v3642, %v3293
    %v3645 = vsel %vm3303, %v3643, -inf
    %3646 = vmax.xlane.f32.xlu0 %v3645
    %v3647 = vpop.xlane.xlu0 %3646
    %v3648 = vsel %vm3303, %v3644, -inf
    %3649 = vmax.xlane.f32.xlu0 %v3648
    %v3650 = vpop.xlane.xlu0 %3649
    %v3651 = vsub.f32 %v3643, %v3647
    %v3652 = vsub.f32 %v3644, %v3650
    %v3653 = vmul.f32 %v3651, 1.442695
    %v3654 = vpow.pop %v3653
    %v3655 = vmul.f32 %v3652, 1.442695
    %v3656 = vpow.pop %v3655
    %v3657 = vsel %vm3303, %v3654, 0.0
    %3658 = vadd.xlane.f32.xlu0 %v3657
    %v3659 = vpop.xlane.xlu0 %3658
    %v3660 = vsel %vm3303, %v3656, 0.0
    %3661 = vadd.xlane.f32.xlu0 %v3660
    %v3662 = vpop.xlane.xlu0 %3661
    %v3663 = vrcp.pop %v3659
    %v3664 = vrcp.pop %v3662
    %v3665 = vmul.f32 %v3654, %v3663
    %v3666 = vmul.f32 %v3656, %v3664
    %v3668 = vsel %vm3303, %v3665, 0
    %v3671 = vsel %vm3303, %v3666, 0
    %3673 = vmatprep.subr.mxu0 0.0
    %3674 = vmatpush1.msra.mxu0 0.0
    %3675 = vmatprep.subr.mxu0 0.0
    %3676 = vmatpush1.msra.mxu0 0.0
    %3677 = vmatprep.subr.mxu0 0.0
    %3678 = vmatpush1.msra.mxu0 0.0
    %3679 = vmatprep.subr.mxu0 0.0
    %3680 = vmatpush1.msra.mxu0 0.0
    %3681 = vmatprep.subr.mxu0 0.0
    %3682 = vmatpush1.msra.mxu0 0.0
    %3683 = vmatprep.subr.mxu0 0.0
    %3684 = vmatpush1.msra.mxu0 0.0
    %3685 = vmatprep.subr.mxu0 0.0
    %3686 = vmatpush1.msra.mxu0 0.0
    %3687 = vmatprep.subr.mxu0 0.0
    %3688 = vmatpush1.msra.mxu0 0.0
    %3689 = vmatprep.subr.mxu0 0.0
    %3690 = vmatpush1.msra.mxu0 0.0
    %3691 = vmatprep.subr.mxu0 0.0
    %3692 = vmatpush1.msra.mxu0 0.0
    %3693 = vmatprep.subr.mxu0 0.0
    %3694 = vmatpush1.msra.mxu0 0.0
    %3695 = vmatprep.subr.mxu0 0.0
    %3696 = vmatpush1.msra.mxu0 0.0
    %3697 = vmatprep.subr.mxu0 0.0
    %3698 = vmatpush1.msra.mxu0 0.0
    %3699 = vmatprep.subr.mxu0 0.0
    %3700 = vmatpush1.msra.mxu0 0.0
    %3701 = vmatprep.subr.mxu0 0.0
    %3702 = vmatpush1.msra.mxu0 %v3550
    %3703 = vmatprep.subr.mxu0 0.0
    %3704 = vmatpush1.msra.mxu0 %v3545
    %3705 = vmatprep.subr.mxu0 0.0
    %3706 = vmatpush2.msra.mxu0 0.0
    %3707 = vmatprep.subr.mxu0 0.0
    %3708 = vmatpush2.msra.mxu0 0.0
    %3709 = vmatprep.subr.mxu0 0.0
    %3710 = vmatpush2.msra.mxu0 0.0
    %3711 = vmatprep.subr.mxu0 0.0
    %3712 = vmatpush2.msra.mxu0 0.0
    %3713 = vmatprep.subr.mxu0 0.0
    %3714 = vmatpush2.msra.mxu0 0.0
    %3715 = vmatprep.subr.mxu0 0.0
    %3716 = vmatpush2.msra.mxu0 0.0
    %3717 = vmatprep.subr.mxu0 0.0
    %3718 = vmatpush2.msra.mxu0 0.0
    %3719 = vmatprep.subr.mxu0 0.0
    %3720 = vmatpush2.msra.mxu0 0.0
    %3721 = vmatprep.subr.mxu0 0.0
    %3722 = vmatpush2.msra.mxu0 0.0
    %3723 = vmatprep.subr.mxu0 0.0
    %3724 = vmatpush2.msra.mxu0 0.0
    %3725 = vmatprep.subr.mxu0 0.0
    %3726 = vmatpush2.msra.mxu0 0.0
    %3727 = vmatprep.subr.mxu0 0.0
    %3728 = vmatpush2.msra.mxu0 0.0
    %3729 = vmatprep.subr.mxu0 0.0
    %3730 = vmatpush2.msra.mxu0 0.0
    %3731 = vmatprep.subr.mxu0 0.0
    %3732 = vmatpush2.msra.mxu0 0.0
    %3733 = vmatprep.subr.mxu0 0.0
    %3734 = vmatpush2.msra.mxu0 0.0
    %3735 = vmatprep.subr.mxu0 0.0
    %3736 = vmatpush2.msra.mxu0 0.0
    %3737 = vmatprep.mubr.f32.mxu0 0.0
    %3738 = vmatmul.mubr.f32.gmra.mxu0 %v3668
    %v3739 = vpop.f32.mrf.mxu0
    %v3740 = vadd.f32 0.0, %v3739
    %v3741 = vpop.f32.mrf.mxu0
    %3742 = vmatprep.mubr.f32.mxu0 0.0
    %3743 = vmatmul.mubr.f32.gmra.mxu0 %v3671
    %v3744 = vpop.f32.mrf.mxu0
    %v3745 = vadd.f32 0.0, %v3744
    %v3746 = vpop.f32.mrf.mxu0
    %3747 = vdwg.mxu0
    %v3748 = vld [vmem:[%s31] sm:$0xf]
    %3749 = vrot.lane.b32.xlu0 %v3377, 124
    %v3750 = vpop.permute.xlu0 %3749
    %3751 = vrot.lane.b32.xlu0 %v3382, 124
    %v3752 = vpop.permute.xlu0 %3751
    %3753 = vrot.lane.b32.xlu0 %v3461, 124
    %v3754 = vpop.permute.xlu0 %3753
    %3755 = vrot.lane.b32.xlu0 %v3466, 124
    %v3756 = vpop.permute.xlu0 %3755
    %v3757 = vsel %vm3553, %v3750, 0
    %v3759 = vsel %vm3553, %v3752, 0
    %v3761 = vsel %vm3553, %v3754, 0
    %v3763 = vsel %vm3553, %v3756, 0
    %3765 = vmatprep.subr.mxu0 0.0
    %3766 = vmatpush1.xpose.msra.mxu0 0.0
    %3767 = vmatprep.subr.mxu0 0.0
    %3768 = vmatpush1.xpose.msra.mxu0 0.0
    %3769 = vmatprep.subr.mxu0 0.0
    %3770 = vmatpush1.xpose.msra.mxu0 0.0
    %3771 = vmatprep.subr.mxu0 0.0
    %3772 = vmatpush1.xpose.msra.mxu0 0.0
    %3773 = vmatprep.subr.mxu0 0.0
    %3774 = vmatpush1.xpose.msra.mxu0 0.0
    %3775 = vmatprep.subr.mxu0 0.0
    %3776 = vmatpush1.xpose.msra.mxu0 0.0
    %3777 = vmatprep.subr.mxu0 0.0
    %3778 = vmatpush1.xpose.msra.mxu0 0.0
    %3779 = vmatprep.subr.mxu0 0.0
    %3780 = vmatpush1.xpose.msra.mxu0 0.0
    %3781 = vmatprep.subr.mxu0 0.0
    %3782 = vmatpush1.xpose.msra.mxu0 0.0
    %3783 = vmatprep.subr.mxu0 0.0
    %3784 = vmatpush1.xpose.msra.mxu0 0.0
    %3785 = vmatprep.subr.mxu0 0.0
    %3786 = vmatpush1.xpose.msra.mxu0 0.0
    %3787 = vmatprep.subr.mxu0 0.0
    %3788 = vmatpush1.xpose.msra.mxu0 0.0
    %3789 = vmatprep.subr.mxu0 0.0
    %3790 = vmatpush1.xpose.msra.mxu0 0.0
    %3791 = vmatprep.subr.mxu0 0.0
    %3792 = vmatpush1.xpose.msra.mxu0 0.0
    %3793 = vmatprep.subr.mxu0 0.0
    %3794 = vmatpush1.xpose.msra.mxu0 %v3763
    %3795 = vmatprep.subr.mxu0 0.0
    %3796 = vmatpush1.xpose.msra.mxu0 %v3761
    %3797 = vmatprep.subr.mxu0 0.0
    %3798 = vmatpush2.xpose.msra.mxu0 0.0
    %3799 = vmatprep.subr.mxu0 0.0
    %3800 = vmatpush2.xpose.msra.mxu0 0.0
    %3801 = vmatprep.subr.mxu0 0.0
    %3802 = vmatpush2.xpose.msra.mxu0 0.0
    %3803 = vmatprep.subr.mxu0 0.0
    %3804 = vmatpush2.xpose.msra.mxu0 0.0
    %3805 = vmatprep.subr.mxu0 0.0
    %3806 = vmatpush2.xpose.msra.mxu0 0.0
    %3807 = vmatprep.subr.mxu0 0.0
    %3808 = vmatpush2.xpose.msra.mxu0 0.0
    %3809 = vmatprep.subr.mxu0 0.0
    %3810 = vmatpush2.xpose.msra.mxu0 0.0
    %3811 = vmatprep.subr.mxu0 0.0
    %3812 = vmatpush2.xpose.msra.mxu0 0.0
    %3813 = vmatprep.subr.mxu0 0.0
    %3814 = vmatpush2.xpose.msra.mxu0 0.0
    %3815 = vmatprep.subr.mxu0 0.0
    %3816 = vmatpush2.xpose.msra.mxu0 0.0
    %3817 = vmatprep.subr.mxu0 0.0
    %3818 = vmatpush2.xpose.msra.mxu0 0.0
    %3819 = vmatprep.subr.mxu0 0.0
    %3820 = vmatpush2.xpose.msra.mxu0 0.0
    %3821 = vmatprep.subr.mxu0 0.0
    %3822 = vmatpush2.xpose.msra.mxu0 0.0
    %3823 = vmatprep.subr.mxu0 0.0
    %3824 = vmatpush2.xpose.msra.mxu0 0.0
    %3825 = vmatprep.subr.mxu0 0.0
    %3826 = vmatpush2.xpose.msra.mxu0 0.0
    %3827 = vmatprep.subr.mxu0 0.0
    %3828 = vmatpush2.xpose.msra.mxu0 0.0
    %3829 = vmatprep.mubr.f32.mxu0 0.0
    %3830 = vmatmul.mubr.f32.gmra.mxu0 %v3757
    %v3831 = vpop.f32.mrf.mxu0
    %v3832 = vadd.f32 0.0, %v3831
    %v3833 = vpop.f32.mrf.mxu0
    %3834 = vmatprep.mubr.f32.mxu0 0.0
    %3835 = vmatmul.mubr.f32.gmra.mxu0 %v3759
    %v3836 = vpop.f32.mrf.mxu0
    %v3837 = vadd.f32 0.0, %v3836
    %v3838 = vpop.f32.mrf.mxu0
    %3839 = vdwg.mxu0
    %v3840 = vmul.f32 %v3832, 0.25
    %v3841 = vmul.f32 %v3837, 0.25
    %v3842 = vadd.f32 %v3840, %v3292
    %v3843 = vadd.f32 %v3841, %v3293
    %v3844 = vsel %vm3303, %v3842, -inf
    %3845 = vmax.xlane.f32.xlu0 %v3844
    %v3846 = vpop.xlane.xlu0 %3845
    %v3847 = vsel %vm3303, %v3843, -inf
    %3848 = vmax.xlane.f32.xlu0 %v3847
    %v3849 = vpop.xlane.xlu0 %3848
    %v3850 = vsub.f32 %v3842, %v3846
    %v3851 = vsub.f32 %v3843, %v3849
    %v3852 = vmul.f32 %v3850, 1.442695
    %v3853 = vpow.pop %v3852
    %v3854 = vmul.f32 %v3851, 1.442695
    %v3855 = vpow.pop %v3854
    %v3856 = vsel %vm3303, %v3853, 0.0
    %3857 = vadd.xlane.f32.xlu0 %v3856
    %v3858 = vpop.xlane.xlu0 %3857
    %v3859 = vsel %vm3303, %v3855, 0.0
    %3860 = vadd.xlane.f32.xlu0 %v3859
    %v3861 = vpop.xlane.xlu0 %3860
    %v3862 = vrcp.pop %v3858
    %v3863 = vrcp.pop %v3861
    %v3864 = vmul.f32 %v3853, %v3862
    %v3865 = vmul.f32 %v3855, %v3863
    %3868 = vrot.lane.b32.xlu0 %v3545, 124
    %v3869 = vpop.permute.xlu0 %3868
    %3870 = vrot.lane.b32.xlu0 %v3550, 124
    %v3871 = vpop.permute.xlu0 %3870
    %v3875 = vsel %vm3303, %v3864, 0
    %v3878 = vsel %vm3303, %v3865, 0
    %3880 = vmatprep.subr.mxu0 0.0
    %3881 = vmatpush1.msra.mxu0 0.0
    %3882 = vmatprep.subr.mxu0 0.0
    %3883 = vmatpush1.msra.mxu0 0.0
    %3884 = vmatprep.subr.mxu0 0.0
    %3885 = vmatpush1.msra.mxu0 0.0
    %3886 = vmatprep.subr.mxu0 0.0
    %3887 = vmatpush1.msra.mxu0 0.0
    %3888 = vmatprep.subr.mxu0 0.0
    %3889 = vmatpush1.msra.mxu0 0.0
    %3890 = vmatprep.subr.mxu0 0.0
    %3891 = vmatpush1.msra.mxu0 0.0
    %3892 = vmatprep.subr.mxu0 0.0
    %3893 = vmatpush1.msra.mxu0 0.0
    %3894 = vmatprep.subr.mxu0 0.0
    %3895 = vmatpush1.msra.mxu0 0.0
    %3896 = vmatprep.subr.mxu0 0.0
    %3897 = vmatpush1.msra.mxu0 0.0
    %3898 = vmatprep.subr.mxu0 0.0
    %3899 = vmatpush1.msra.mxu0 0.0
    %3900 = vmatprep.subr.mxu0 0.0
    %3901 = vmatpush1.msra.mxu0 0.0
    %3902 = vmatprep.subr.mxu0 0.0
    %3903 = vmatpush1.msra.mxu0 0.0
    %3904 = vmatprep.subr.mxu0 0.0
    %3905 = vmatpush1.msra.mxu0 0.0
    %3906 = vmatprep.subr.mxu0 0.0
    %3907 = vmatpush1.msra.mxu0 0.0
    %3908 = vmatprep.subr.mxu0 0.0
    %3909 = vmatpush1.msra.mxu0 %v3871
    %3910 = vmatprep.subr.mxu0 0.0
    %3911 = vmatpush1.msra.mxu0 %v3869
    %3912 = vmatprep.subr.mxu0 0.0
    %3913 = vmatpush2.msra.mxu0 0.0
    %3914 = vmatprep.subr.mxu0 0.0
    %3915 = vmatpush2.msra.mxu0 0.0
    %3916 = vmatprep.subr.mxu0 0.0
    %3917 = vmatpush2.msra.mxu0 0.0
    %3918 = vmatprep.subr.mxu0 0.0
    %3919 = vmatpush2.msra.mxu0 0.0
    %3920 = vmatprep.subr.mxu0 0.0
    %3921 = vmatpush2.msra.mxu0 0.0
    %3922 = vmatprep.subr.mxu0 0.0
    %3923 = vmatpush2.msra.mxu0 0.0
    %3924 = vmatprep.subr.mxu0 0.0
    %3925 = vmatpush2.msra.mxu0 0.0
    %3926 = vmatprep.subr.mxu0 0.0
    %3927 = vmatpush2.msra.mxu0 0.0
    %3928 = vmatprep.subr.mxu0 0.0
    %3929 = vmatpush2.msra.mxu0 0.0
    %3930 = vmatprep.subr.mxu0 0.0
    %3931 = vmatpush2.msra.mxu0 0.0
    %3932 = vmatprep.subr.mxu0 0.0
    %3933 = vmatpush2.msra.mxu0 0.0
    %3934 = vmatprep.subr.mxu0 0.0
    %3935 = vmatpush2.msra.mxu0 0.0
    %3936 = vmatprep.subr.mxu0 0.0
    %3937 = vmatpush2.msra.mxu0 0.0
    %3938 = vmatprep.subr.mxu0 0.0
    %3939 = vmatpush2.msra.mxu0 0.0
    %3940 = vmatprep.subr.mxu0 0.0
    %3941 = vmatpush2.msra.mxu0 0.0
    %3942 = vmatprep.subr.mxu0 0.0
    %3943 = vmatpush2.msra.mxu0 0.0
    %3944 = vmatprep.mubr.f32.mxu0 0.0
    %3945 = vmatmul.mubr.f32.gmra.mxu0 %v3875
    %v3946 = vpop.f32.mrf.mxu0
    %v3947 = vadd.f32 0.0, %v3946
    %v3948 = vpop.f32.mrf.mxu0
    %3949 = vmatprep.mubr.f32.mxu0 0.0
    %3950 = vmatmul.mubr.f32.gmra.mxu0 %v3878
    %v3951 = vpop.f32.mrf.mxu0
    %v3952 = vadd.f32 0.0, %v3951
    %v3953 = vpop.f32.mrf.mxu0
    %3954 = vdwg.mxu0
    %s3955 = scalar_lea.vmem %s31, 4
    %v3956 = vld [vmem:[%s3955] sm:$0xf]
    %v3958 = vsel %vm3553, %v3947, 0
    %v3961 = vsel %vm3553, %v3952, 0
    %vm3963 = vcmask 1043456
    %v3965 = vsel %vm3963, %v3956, 0
    %3967 = vmatprep.subr.mxu0 0.0
    %3968 = vmatpush1.msra.mxu0 0.0
    %3969 = vmatprep.subr.mxu0 0.0
    %3970 = vmatpush1.msra.mxu0 0.0
    %3971 = vmatprep.subr.mxu0 0.0
    %3972 = vmatpush1.msra.mxu0 0.0
    %3973 = vmatprep.subr.mxu0 0.0
    %3974 = vmatpush1.msra.mxu0 0.0
    %3975 = vmatprep.subr.mxu0 0.0
    %3976 = vmatpush1.msra.mxu0 0.0
    %3977 = vmatprep.subr.mxu0 0.0
    %3978 = vmatpush1.msra.mxu0 0.0
    %3979 = vmatprep.subr.mxu0 0.0
    %3980 = vmatpush1.msra.mxu0 0.0
    %3981 = vmatprep.subr.mxu0 0.0
    %3982 = vmatpush1.msra.mxu0 0.0
    %3983 = vmatprep.subr.mxu0 0.0
    %3984 = vmatpush1.msra.mxu0 0.0
    %3985 = vmatprep.subr.mxu0 0.0
    %3986 = vmatpush1.msra.mxu0 0.0
    %3987 = vmatprep.subr.mxu0 0.0
    %3988 = vmatpush1.msra.mxu0 0.0
    %3989 = vmatprep.subr.mxu0 0.0
    %3990 = vmatpush1.msra.mxu0 0.0
    %3991 = vmatprep.subr.mxu0 0.0
    %3992 = vmatpush1.msra.mxu0 0.0
    %3993 = vmatprep.subr.mxu0 0.0
    %3994 = vmatpush1.msra.mxu0 0.0
    %3995 = vmatprep.subr.mxu0 0.0
    %3996 = vmatpush1.msra.mxu0 0.0
    %3997 = vmatprep.subr.mxu0 0.0
    %3998 = vmatpush1.msra.mxu0 %v3965
    %3999 = vmatprep.subr.mxu0 0.0
    %4000 = vmatpush2.msra.mxu0 0.0
    %4001 = vmatprep.subr.mxu0 0.0
    %4002 = vmatpush2.msra.mxu0 0.0
    %4003 = vmatprep.subr.mxu0 0.0
    %4004 = vmatpush2.msra.mxu0 0.0
    %4005 = vmatprep.subr.mxu0 0.0
    %4006 = vmatpush2.msra.mxu0 0.0
    %4007 = vmatprep.subr.mxu0 0.0
    %4008 = vmatpush2.msra.mxu0 0.0
    %4009 = vmatprep.subr.mxu0 0.0
    %4010 = vmatpush2.msra.mxu0 0.0
    %4011 = vmatprep.subr.mxu0 0.0
    %4012 = vmatpush2.msra.mxu0 0.0
    %4013 = vmatprep.subr.mxu0 0.0
    %4014 = vmatpush2.msra.mxu0 0.0
    %4015 = vmatprep.subr.mxu0 0.0
    %4016 = vmatpush2.msra.mxu0 0.0
    %4017 = vmatprep.subr.mxu0 0.0
    %4018 = vmatpush2.msra.mxu0 0.0
    %4019 = vmatprep.subr.mxu0 0.0
    %4020 = vmatpush2.msra.mxu0 0.0
    %4021 = vmatprep.subr.mxu0 0.0
    %4022 = vmatpush2.msra.mxu0 0.0
    %4023 = vmatprep.subr.mxu0 0.0
    %4024 = vmatpush2.msra.mxu0 0.0
    %4025 = vmatprep.subr.mxu0 0.0
    %4026 = vmatpush2.msra.mxu0 0.0
    %4027 = vmatprep.subr.mxu0 0.0
    %4028 = vmatpush2.msra.mxu0 0.0
    %4029 = vmatprep.subr.mxu0 0.0
    %4030 = vmatpush2.msra.mxu0 0.0
    %4031 = vmatprep.mubr.f32.mxu0 0.0
    %4032 = vmatmul.mubr.f32.gmra.mxu0 %v3958
    %v4033 = vpop.f32.mrf.mxu0
    %v4034 = vadd.f32 0.0, %v4033
    %v4035 = vpop.f32.mrf.mxu0
    %4036 = vmatprep.mubr.f32.mxu0 0.0
    %4037 = vmatmul.mubr.f32.gmra.mxu0 %v3961
    %v4038 = vpop.f32.mrf.mxu0
    %v4039 = vadd.f32 0.0, %v4038
    %v4040 = vpop.f32.mrf.mxu0
    %4041 = vdwg.mxu0
    %v4043 = vsel %vm3553, %v3740, 0
    %v4046 = vsel %vm3553, %v3745, 0
    %v4049 = vsel %vm3963, %v3748, 0
    %4051 = vmatprep.subr.mxu0 0.0
    %4052 = vmatpush1.msra.mxu0 0.0
    %4053 = vmatprep.subr.mxu0 0.0
    %4054 = vmatpush1.msra.mxu0 0.0
    %4055 = vmatprep.subr.mxu0 0.0
    %4056 = vmatpush1.msra.mxu0 0.0
    %4057 = vmatprep.subr.mxu0 0.0
    %4058 = vmatpush1.msra.mxu0 0.0
    %4059 = vmatprep.subr.mxu0 0.0
    %4060 = vmatpush1.msra.mxu0 0.0
    %4061 = vmatprep.subr.mxu0 0.0
    %4062 = vmatpush1.msra.mxu0 0.0
    %4063 = vmatprep.subr.mxu0 0.0
    %4064 = vmatpush1.msra.mxu0 0.0
    %4065 = vmatprep.subr.mxu0 0.0
    %4066 = vmatpush1.msra.mxu0 0.0
    %4067 = vmatprep.subr.mxu0 0.0
    %4068 = vmatpush1.msra.mxu0 0.0
    %4069 = vmatprep.subr.mxu0 0.0
    %4070 = vmatpush1.msra.mxu0 0.0
    %4071 = vmatprep.subr.mxu0 0.0
    %4072 = vmatpush1.msra.mxu0 0.0
    %4073 = vmatprep.subr.mxu0 0.0
    %4074 = vmatpush1.msra.mxu0 0.0
    %4075 = vmatprep.subr.mxu0 0.0
    %4076 = vmatpush1.msra.mxu0 0.0
    %4077 = vmatprep.subr.mxu0 0.0
    %4078 = vmatpush1.msra.mxu0 0.0
    %4079 = vmatprep.subr.mxu0 0.0
    %4080 = vmatpush1.msra.mxu0 0.0
    %4081 = vmatprep.subr.mxu0 0.0
    %4082 = vmatpush1.msra.mxu0 %v4049
    %4083 = vmatprep.subr.mxu0 0.0
    %4084 = vmatpush2.msra.mxu0 0.0
    %4085 = vmatprep.subr.mxu0 0.0
    %4086 = vmatpush2.msra.mxu0 0.0
    %4087 = vmatprep.subr.mxu0 0.0
    %4088 = vmatpush2.msra.mxu0 0.0
    %4089 = vmatprep.subr.mxu0 0.0
    %4090 = vmatpush2.msra.mxu0 0.0
    %4091 = vmatprep.subr.mxu0 0.0
    %4092 = vmatpush2.msra.mxu0 0.0
    %4093 = vmatprep.subr.mxu0 0.0
    %4094 = vmatpush2.msra.mxu0 0.0
    %4095 = vmatprep.subr.mxu0 0.0
    %4096 = vmatpush2.msra.mxu0 0.0
    %4097 = vmatprep.subr.mxu0 0.0
    %4098 = vmatpush2.msra.mxu0 0.0
    %4099 = vmatprep.subr.mxu0 0.0
    %4100 = vmatpush2.msra.mxu0 0.0
    %4101 = vmatprep.subr.mxu0 0.0
    %4102 = vmatpush2.msra.mxu0 0.0
    %4103 = vmatprep.subr.mxu0 0.0
    %4104 = vmatpush2.msra.mxu0 0.0
    %4105 = vmatprep.subr.mxu0 0.0
    %4106 = vmatpush2.msra.mxu0 0.0
    %4107 = vmatprep.subr.mxu0 0.0
    %4108 = vmatpush2.msra.mxu0 0.0
    %4109 = vmatprep.subr.mxu0 0.0
    %4110 = vmatpush2.msra.mxu0 0.0
    %4111 = vmatprep.subr.mxu0 0.0
    %4112 = vmatpush2.msra.mxu0 0.0
    %4113 = vmatprep.subr.mxu0 0.0
    %4114 = vmatpush2.msra.mxu0 0.0
    %4115 = vmatprep.mubr.f32.mxu0 0.0
    %4116 = vmatmul.mubr.f32.gmra.mxu0 %v4043
    %v4117 = vpop.f32.mrf.mxu0
    %v4118 = vadd.f32 %v4034, %v4117
    %v4119 = vpop.f32.mrf.mxu0
    %4120 = vmatprep.mubr.f32.mxu0 0.0
    %4121 = vmatmul.mubr.f32.gmra.mxu0 %v4046
    %v4122 = vpop.f32.mrf.mxu0
    %v4123 = vadd.f32 %v4039, %v4122
    %v4124 = vpop.f32.mrf.mxu0
    %4125 = vdwg.mxu0
    %4126 = vrot.lane.b32.xlu0 %v3377, 120
    %v4127 = vpop.permute.xlu0 %4126
    %4128 = vrot.lane.b32.xlu0 %v3382, 120
    %v4129 = vpop.permute.xlu0 %4128
    %4130 = vrot.lane.b32.xlu0 %v3461, 120
    %v4131 = vpop.permute.xlu0 %4130
    %4132 = vrot.lane.b32.xlu0 %v3466, 120
    %v4133 = vpop.permute.xlu0 %4132
    %v4134 = vsel %vm3553, %v4127, 0
    %v4136 = vsel %vm3553, %v4129, 0
    %v4138 = vsel %vm3553, %v4131, 0
    %v4140 = vsel %vm3553, %v4133, 0
    %4142 = vmatprep.subr.mxu0 0.0
    %4143 = vmatpush1.xpose.msra.mxu0 0.0
    %4144 = vmatprep.subr.mxu0 0.0
    %4145 = vmatpush1.xpose.msra.mxu0 0.0
    %4146 = vmatprep.subr.mxu0 0.0
    %4147 = vmatpush1.xpose.msra.mxu0 0.0
    %4148 = vmatprep.subr.mxu0 0.0
    %4149 = vmatpush1.xpose.msra.mxu0 0.0
    %4150 = vmatprep.subr.mxu0 0.0
    %4151 = vmatpush1.xpose.msra.mxu0 0.0
    %4152 = vmatprep.subr.mxu0 0.0
    %4153 = vmatpush1.xpose.msra.mxu0 0.0
    %4154 = vmatprep.subr.mxu0 0.0
    %4155 = vmatpush1.xpose.msra.mxu0 0.0
    %4156 = vmatprep.subr.mxu0 0.0
    %4157 = vmatpush1.xpose.msra.mxu0 0.0
    %4158 = vmatprep.subr.mxu0 0.0
    %4159 = vmatpush1.xpose.msra.mxu0 0.0
    %4160 = vmatprep.subr.mxu0 0.0
    %4161 = vmatpush1.xpose.msra.mxu0 0.0
    %4162 = vmatprep.subr.mxu0 0.0
    %4163 = vmatpush1.xpose.msra.mxu0 0.0
    %4164 = vmatprep.subr.mxu0 0.0
    %4165 = vmatpush1.xpose.msra.mxu0 0.0
    %4166 = vmatprep.subr.mxu0 0.0
    %4167 = vmatpush1.xpose.msra.mxu0 0.0
    %4168 = vmatprep.subr.mxu0 0.0
    %4169 = vmatpush1.xpose.msra.mxu0 0.0
    %4170 = vmatprep.subr.mxu0 0.0
    %4171 = vmatpush1.xpose.msra.mxu0 %v4140
    %4172 = vmatprep.subr.mxu0 0.0
    %4173 = vmatpush1.xpose.msra.mxu0 %v4138
    %4174 = vmatprep.subr.mxu0 0.0
    %4175 = vmatpush2.xpose.msra.mxu0 0.0
    %4176 = vmatprep.subr.mxu0 0.0
    %4177 = vmatpush2.xpose.msra.mxu0 0.0
    %4178 = vmatprep.subr.mxu0 0.0
    %4179 = vmatpush2.xpose.msra.mxu0 0.0
    %4180 = vmatprep.subr.mxu0 0.0
    %4181 = vmatpush2.xpose.msra.mxu0 0.0
    %4182 = vmatprep.subr.mxu0 0.0
    %4183 = vmatpush2.xpose.msra.mxu0 0.0
    %4184 = vmatprep.subr.mxu0 0.0
    %4185 = vmatpush2.xpose.msra.mxu0 0.0
    %4186 = vmatprep.subr.mxu0 0.0
    %4187 = vmatpush2.xpose.msra.mxu0 0.0
    %4188 = vmatprep.subr.mxu0 0.0
    %4189 = vmatpush2.xpose.msra.mxu0 0.0
    %4190 = vmatprep.subr.mxu0 0.0
    %4191 = vmatpush2.xpose.msra.mxu0 0.0
    %4192 = vmatprep.subr.mxu0 0.0
    %4193 = vmatpush2.xpose.msra.mxu0 0.0
    %4194 = vmatprep.subr.mxu0 0.0
    %4195 = vmatpush2.xpose.msra.mxu0 0.0
    %4196 = vmatprep.subr.mxu0 0.0
    %4197 = vmatpush2.xpose.msra.mxu0 0.0
    %4198 = vmatprep.subr.mxu0 0.0
    %4199 = vmatpush2.xpose.msra.mxu0 0.0
    %4200 = vmatprep.subr.mxu0 0.0
    %4201 = vmatpush2.xpose.msra.mxu0 0.0
    %4202 = vmatprep.subr.mxu0 0.0
    %4203 = vmatpush2.xpose.msra.mxu0 0.0
    %4204 = vmatprep.subr.mxu0 0.0
    %4205 = vmatpush2.xpose.msra.mxu0 0.0
    %4206 = vmatprep.mubr.f32.mxu0 0.0
    %4207 = vmatmul.mubr.f32.gmra.mxu0 %v4134
    %v4208 = vpop.f32.mrf.mxu0
    %v4209 = vadd.f32 0.0, %v4208
    %v4210 = vpop.f32.mrf.mxu0
    %4211 = vmatprep.mubr.f32.mxu0 0.0
    %4212 = vmatmul.mubr.f32.gmra.mxu0 %v4136
    %v4213 = vpop.f32.mrf.mxu0
    %v4214 = vadd.f32 0.0, %v4213
    %v4215 = vpop.f32.mrf.mxu0
    %4216 = vdwg.mxu0
    %v4217 = vmul.f32 %v4209, 0.25
    %v4218 = vmul.f32 %v4214, 0.25
    %v4219 = vadd.f32 %v4217, %v3292
    %v4220 = vadd.f32 %v4218, %v3293
    %v4221 = vsel %vm3303, %v4219, -inf
    %4222 = vmax.xlane.f32.xlu0 %v4221
    %v4223 = vpop.xlane.xlu0 %4222
    %v4224 = vsel %vm3303, %v4220, -inf
    %4225 = vmax.xlane.f32.xlu0 %v4224
    %v4226 = vpop.xlane.xlu0 %4225
    %v4227 = vsub.f32 %v4219, %v4223
    %v4228 = vsub.f32 %v4220, %v4226
    %v4229 = vmul.f32 %v4227, 1.442695
    %v4230 = vpow.pop %v4229
    %v4231 = vmul.f32 %v4228, 1.442695
    %v4232 = vpow.pop %v4231
    %v4233 = vsel %vm3303, %v4230, 0.0
    %4234 = vadd.xlane.f32.xlu0 %v4233
    %v4235 = vpop.xlane.xlu0 %4234
    %v4236 = vsel %vm3303, %v4232, 0.0
    %4237 = vadd.xlane.f32.xlu0 %v4236
    %v4238 = vpop.xlane.xlu0 %4237
    %v4239 = vrcp.pop %v4235
    %v4240 = vrcp.pop %v4238
    %v4241 = vmul.f32 %v4230, %v4239
    %v4242 = vmul.f32 %v4232, %v4240
    %4243 = vrot.lane.b32.xlu0 %v3545, 120
    %v4244 = vpop.permute.xlu0 %4243
    %4245 = vrot.lane.b32.xlu0 %v3550, 120
    %v4246 = vpop.permute.xlu0 %4245
    %v4250 = vsel %vm3303, %v4241, 0
    %v4253 = vsel %vm3303, %v4242, 0
    %4255 = vmatprep.subr.mxu0 0.0
    %4256 = vmatpush1.msra.mxu0 0.0
    %4257 = vmatprep.subr.mxu0 0.0
    %4258 = vmatpush1.msra.mxu0 0.0
    %4259 = vmatprep.subr.mxu0 0.0
    %4260 = vmatpush1.msra.mxu0 0.0
    %4261 = vmatprep.subr.mxu0 0.0
    %4262 = vmatpush1.msra.mxu0 0.0
    %4263 = vmatprep.subr.mxu0 0.0
    %4264 = vmatpush1.msra.mxu0 0.0
    %4265 = vmatprep.subr.mxu0 0.0
    %4266 = vmatpush1.msra.mxu0 0.0
    %4267 = vmatprep.subr.mxu0 0.0
    %4268 = vmatpush1.msra.mxu0 0.0
    %4269 = vmatprep.subr.mxu0 0.0
    %4270 = vmatpush1.msra.mxu0 0.0
    %4271 = vmatprep.subr.mxu0 0.0
    %4272 = vmatpush1.msra.mxu0 0.0
    %4273 = vmatprep.subr.mxu0 0.0
    %4274 = vmatpush1.msra.mxu0 0.0
    %4275 = vmatprep.subr.mxu0 0.0
    %4276 = vmatpush1.msra.mxu0 0.0
    %4277 = vmatprep.subr.mxu0 0.0
    %4278 = vmatpush1.msra.mxu0 0.0
    %4279 = vmatprep.subr.mxu0 0.0
    %4280 = vmatpush1.msra.mxu0 0.0
    %4281 = vmatprep.subr.mxu0 0.0
    %4282 = vmatpush1.msra.mxu0 0.0
    %4283 = vmatprep.subr.mxu0 0.0
    %4284 = vmatpush1.msra.mxu0 %v4246
    %4285 = vmatprep.subr.mxu0 0.0
    %4286 = vmatpush1.msra.mxu0 %v4244
    %4287 = vmatprep.subr.mxu0 0.0
    %4288 = vmatpush2.msra.mxu0 0.0
    %4289 = vmatprep.subr.mxu0 0.0
    %4290 = vmatpush2.msra.mxu0 0.0
    %4291 = vmatprep.subr.mxu0 0.0
    %4292 = vmatpush2.msra.mxu0 0.0
    %4293 = vmatprep.subr.mxu0 0.0
    %4294 = vmatpush2.msra.mxu0 0.0
    %4295 = vmatprep.subr.mxu0 0.0
    %4296 = vmatpush2.msra.mxu0 0.0
    %4297 = vmatprep.subr.mxu0 0.0
    %4298 = vmatpush2.msra.mxu0 0.0
    %4299 = vmatprep.subr.mxu0 0.0
    %4300 = vmatpush2.msra.mxu0 0.0
    %4301 = vmatprep.subr.mxu0 0.0
    %4302 = vmatpush2.msra.mxu0 0.0
    %4303 = vmatprep.subr.mxu0 0.0
    %4304 = vmatpush2.msra.mxu0 0.0
    %4305 = vmatprep.subr.mxu0 0.0
    %4306 = vmatpush2.msra.mxu0 0.0
    %4307 = vmatprep.subr.mxu0 0.0
    %4308 = vmatpush2.msra.mxu0 0.0
    %4309 = vmatprep.subr.mxu0 0.0
    %4310 = vmatpush2.msra.mxu0 0.0
    %4311 = vmatprep.subr.mxu0 0.0
    %4312 = vmatpush2.msra.mxu0 0.0
    %4313 = vmatprep.subr.mxu0 0.0
    %4314 = vmatpush2.msra.mxu0 0.0
    %4315 = vmatprep.subr.mxu0 0.0
    %4316 = vmatpush2.msra.mxu0 0.0
    %4317 = vmatprep.subr.mxu0 0.0
    %4318 = vmatpush2.msra.mxu0 0.0
    %4319 = vmatprep.mubr.f32.mxu0 0.0
    %4320 = vmatmul.mubr.f32.gmra.mxu0 %v4250
    %v4321 = vpop.f32.mrf.mxu0
    %v4322 = vadd.f32 0.0, %v4321
    %v4323 = vpop.f32.mrf.mxu0
    %4324 = vmatprep.mubr.f32.mxu0 0.0
    %4325 = vmatmul.mubr.f32.gmra.mxu0 %v4253
    %v4326 = vpop.f32.mrf.mxu0
    %v4327 = vadd.f32 0.0, %v4326
    %v4328 = vpop.f32.mrf.mxu0
    %4329 = vdwg.mxu0
    %s4330 = scalar_lea.vmem %s31, 8
    %v4331 = vld [vmem:[%s4330] sm:$0xf]
    %v4333 = vsel %vm3553, %v4322, 0
    %v4336 = vsel %vm3553, %v4327, 0
    %v4339 = vsel %vm3963, %v4331, 0
    %4341 = vmatprep.subr.mxu0 0.0
    %4342 = vmatpush1.msra.mxu0 0.0
    %4343 = vmatprep.subr.mxu0 0.0
    %4344 = vmatpush1.msra.mxu0 0.0
    %4345 = vmatprep.subr.mxu0 0.0
    %4346 = vmatpush1.msra.mxu0 0.0
    %4347 = vmatprep.subr.mxu0 0.0
    %4348 = vmatpush1.msra.mxu0 0.0
    %4349 = vmatprep.subr.mxu0 0.0
    %4350 = vmatpush1.msra.mxu0 0.0
    %4351 = vmatprep.subr.mxu0 0.0
    %4352 = vmatpush1.msra.mxu0 0.0
    %4353 = vmatprep.subr.mxu0 0.0
    %4354 = vmatpush1.msra.mxu0 0.0
    %4355 = vmatprep.subr.mxu0 0.0
    %4356 = vmatpush1.msra.mxu0 0.0
    %4357 = vmatprep.subr.mxu0 0.0
    %4358 = vmatpush1.msra.mxu0 0.0
    %4359 = vmatprep.subr.mxu0 0.0
    %4360 = vmatpush1.msra.mxu0 0.0
    %4361 = vmatprep.subr.mxu0 0.0
    %4362 = vmatpush1.msra.mxu0 0.0
    %4363 = vmatprep.subr.mxu0 0.0
    %4364 = vmatpush1.msra.mxu0 0.0
    %4365 = vmatprep.subr.mxu0 0.0
    %4366 = vmatpush1.msra.mxu0 0.0
    %4367 = vmatprep.subr.mxu0 0.0
    %4368 = vmatpush1.msra.mxu0 0.0
    %4369 = vmatprep.subr.mxu0 0.0
    %4370 = vmatpush1.msra.mxu0 0.0
    %4371 = vmatprep.subr.mxu0 0.0
    %4372 = vmatpush1.msra.mxu0 %v4339
    %4373 = vmatprep.subr.mxu0 0.0
    %4374 = vmatpush2.msra.mxu0 0.0
    %4375 = vmatprep.subr.mxu0 0.0
    %4376 = vmatpush2.msra.mxu0 0.0
    %4377 = vmatprep.subr.mxu0 0.0
    %4378 = vmatpush2.msra.mxu0 0.0
    %4379 = vmatprep.subr.mxu0 0.0
    %4380 = vmatpush2.msra.mxu0 0.0
    %4381 = vmatprep.subr.mxu0 0.0
    %4382 = vmatpush2.msra.mxu0 0.0
    %4383 = vmatprep.subr.mxu0 0.0
    %4384 = vmatpush2.msra.mxu0 0.0
    %4385 = vmatprep.subr.mxu0 0.0
    %4386 = vmatpush2.msra.mxu0 0.0
    %4387 = vmatprep.subr.mxu0 0.0
    %4388 = vmatpush2.msra.mxu0 0.0
    %4389 = vmatprep.subr.mxu0 0.0
    %4390 = vmatpush2.msra.mxu0 0.0
    %4391 = vmatprep.subr.mxu0 0.0
    %4392 = vmatpush2.msra.mxu0 0.0
    %4393 = vmatprep.subr.mxu0 0.0
    %4394 = vmatpush2.msra.mxu0 0.0
    %4395 = vmatprep.subr.mxu0 0.0
    %4396 = vmatpush2.msra.mxu0 0.0
    %4397 = vmatprep.subr.mxu0 0.0
    %4398 = vmatpush2.msra.mxu0 0.0
    %4399 = vmatprep.subr.mxu0 0.0
    %4400 = vmatpush2.msra.mxu0 0.0
    %4401 = vmatprep.subr.mxu0 0.0
    %4402 = vmatpush2.msra.mxu0 0.0
    %4403 = vmatprep.subr.mxu0 0.0
    %4404 = vmatpush2.msra.mxu0 0.0
    %4405 = vmatprep.mubr.f32.mxu0 0.0
    %4406 = vmatmul.mubr.f32.gmra.mxu0 %v4333
    %v4407 = vpop.f32.mrf.mxu0
    %v4408 = vadd.f32 0.0, %v4407
    %v4409 = vpop.f32.mrf.mxu0
    %4410 = vmatprep.mubr.f32.mxu0 0.0
    %4411 = vmatmul.mubr.f32.gmra.mxu0 %v4336
    %v4412 = vpop.f32.mrf.mxu0
    %v4413 = vadd.f32 0.0, %v4412
    %v4414 = vpop.f32.mrf.mxu0
    %4415 = vdwg.mxu0
    %v4416 = vadd.f32 %v4118, %v4408
    %v4417 = vadd.f32 %v4123, %v4413
    %4418 = vrot.lane.b32.xlu0 %v3377, 116
    %v4419 = vpop.permute.xlu0 %4418
    %4420 = vrot.lane.b32.xlu0 %v3382, 116
    %v4421 = vpop.permute.xlu0 %4420
    %4422 = vrot.lane.b32.xlu0 %v3461, 116
    %v4423 = vpop.permute.xlu0 %4422
    %4424 = vrot.lane.b32.xlu0 %v3466, 116
    %v4425 = vpop.permute.xlu0 %4424
    %v4426 = vsel %vm3553, %v4419, 0
    %v4428 = vsel %vm3553, %v4421, 0
    %v4430 = vsel %vm3553, %v4423, 0
    %v4432 = vsel %vm3553, %v4425, 0
    %4434 = vmatprep.subr.mxu0 0.0
    %4435 = vmatpush1.xpose.msra.mxu0 0.0
    %4436 = vmatprep.subr.mxu0 0.0
    %4437 = vmatpush1.xpose.msra.mxu0 0.0
    %4438 = vmatprep.subr.mxu0 0.0
    %4439 = vmatpush1.xpose.msra.mxu0 0.0
    %4440 = vmatprep.subr.mxu0 0.0
    %4441 = vmatpush1.xpose.msra.mxu0 0.0
    %4442 = vmatprep.subr.mxu0 0.0
    %4443 = vmatpush1.xpose.msra.mxu0 0.0
    %4444 = vmatprep.subr.mxu0 0.0
    %4445 = vmatpush1.xpose.msra.mxu0 0.0
    %4446 = vmatprep.subr.mxu0 0.0
    %4447 = vmatpush1.xpose.msra.mxu0 0.0
    %4448 = vmatprep.subr.mxu0 0.0
    %4449 = vmatpush1.xpose.msra.mxu0 0.0
    %4450 = vmatprep.subr.mxu0 0.0
    %4451 = vmatpush1.xpose.msra.mxu0 0.0
    %4452 = vmatprep.subr.mxu0 0.0
    %4453 = vmatpush1.xpose.msra.mxu0 0.0
    %4454 = vmatprep.subr.mxu0 0.0
    %4455 = vmatpush1.xpose.msra.mxu0 0.0
    %4456 = vmatprep.subr.mxu0 0.0
    %4457 = vmatpush1.xpose.msra.mxu0 0.0
    %4458 = vmatprep.subr.mxu0 0.0
    %4459 = vmatpush1.xpose.msra.mxu0 0.0
    %4460 = vmatprep.subr.mxu0 0.0
    %4461 = vmatpush1.xpose.msra.mxu0 0.0
    %4462 = vmatprep.subr.mxu0 0.0
    %4463 = vmatpush1.xpose.msra.mxu0 %v4432
    %4464 = vmatprep.subr.mxu0 0.0
    %4465 = vmatpush1.xpose.msra.mxu0 %v4430
    %4466 = vmatprep.subr.mxu0 0.0
    %4467 = vmatpush2.xpose.msra.mxu0 0.0
    %4468 = vmatprep.subr.mxu0 0.0
    %4469 = vmatpush2.xpose.msra.mxu0 0.0
    %4470 = vmatprep.subr.mxu0 0.0
    %4471 = vmatpush2.xpose.msra.mxu0 0.0
    %4472 = vmatprep.subr.mxu0 0.0
    %4473 = vmatpush2.xpose.msra.mxu0 0.0
    %4474 = vmatprep.subr.mxu0 0.0
    %4475 = vmatpush2.xpose.msra.mxu0 0.0
    %4476 = vmatprep.subr.mxu0 0.0
    %4477 = vmatpush2.xpose.msra.mxu0 0.0
    %4478 = vmatprep.subr.mxu0 0.0
    %4479 = vmatpush2.xpose.msra.mxu0 0.0
    %4480 = vmatprep.subr.mxu0 0.0
    %4481 = vmatpush2.xpose.msra.mxu0 0.0
    %4482 = vmatprep.subr.mxu0 0.0
    %4483 = vmatpush2.xpose.msra.mxu0 0.0
    %4484 = vmatprep.subr.mxu0 0.0
    %4485 = vmatpush2.xpose.msra.mxu0 0.0
    %4486 = vmatprep.subr.mxu0 0.0
    %4487 = vmatpush2.xpose.msra.mxu0 0.0
    %4488 = vmatprep.subr.mxu0 0.0
    %4489 = vmatpush2.xpose.msra.mxu0 0.0
    %4490 = vmatprep.subr.mxu0 0.0
    %4491 = vmatpush2.xpose.msra.mxu0 0.0
    %4492 = vmatprep.subr.mxu0 0.0
    %4493 = vmatpush2.xpose.msra.mxu0 0.0
    %4494 = vmatprep.subr.mxu0 0.0
    %4495 = vmatpush2.xpose.msra.mxu0 0.0
    %4496 = vmatprep.subr.mxu0 0.0
    %4497 = vmatpush2.xpose.msra.mxu0 0.0
    %4498 = vmatprep.mubr.f32.mxu0 0.0
    %4499 = vmatmul.mubr.f32.gmra.mxu0 %v4426
    %v4500 = vpop.f32.mrf.mxu0
    %v4501 = vadd.f32 0.0, %v4500
    %v4502 = vpop.f32.mrf.mxu0
    %4503 = vmatprep.mubr.f32.mxu0 0.0
    %4504 = vmatmul.mubr.f32.gmra.mxu0 %v4428
    %v4505 = vpop.f32.mrf.mxu0
    %v4506 = vadd.f32 0.0, %v4505
    %v4507 = vpop.f32.mrf.mxu0
    %4508 = vdwg.mxu0
    %v4509 = vmul.f32 %v4501, 0.25
    %v4510 = vmul.f32 %v4506, 0.25
    %v4511 = vadd.f32 %v4509, %v3292
    %v4512 = vadd.f32 %v4510, %v3293
    %v4513 = vsel %vm3303, %v4511, -inf
    %4514 = vmax.xlane.f32.xlu0 %v4513
    %v4515 = vpop.xlane.xlu0 %4514
    %v4516 = vsel %vm3303, %v4512, -inf
    %4517 = vmax.xlane.f32.xlu0 %v4516
    %v4518 = vpop.xlane.xlu0 %4517
    %v4519 = vsub.f32 %v4511, %v4515
    %v4520 = vsub.f32 %v4512, %v4518
    %v4521 = vmul.f32 %v4519, 1.442695
    %v4522 = vpow.pop %v4521
    %v4523 = vmul.f32 %v4520, 1.442695
    %v4524 = vpow.pop %v4523
    %v4525 = vsel %vm3303, %v4522, 0.0
    %4526 = vadd.xlane.f32.xlu0 %v4525
    %v4527 = vpop.xlane.xlu0 %4526
    %v4528 = vsel %vm3303, %v4524, 0.0
    %4529 = vadd.xlane.f32.xlu0 %v4528
    %v4530 = vpop.xlane.xlu0 %4529
    %v4531 = vrcp.pop %v4527
    %v4532 = vrcp.pop %v4530
    %v4533 = vmul.f32 %v4522, %v4531
    %v4534 = vmul.f32 %v4524, %v4532
    %4535 = vrot.lane.b32.xlu0 %v3545, 116
    %v4536 = vpop.permute.xlu0 %4535
    %4537 = vrot.lane.b32.xlu0 %v3550, 116
    %v4538 = vpop.permute.xlu0 %4537
    %v4542 = vsel %vm3303, %v4533, 0
    %v4545 = vsel %vm3303, %v4534, 0
    %4547 = vmatprep.subr.mxu0 0.0
    %4548 = vmatpush1.msra.mxu0 0.0
    %4549 = vmatprep.subr.mxu0 0.0
    %4550 = vmatpush1.msra.mxu0 0.0
    %4551 = vmatprep.subr.mxu0 0.0
    %4552 = vmatpush1.msra.mxu0 0.0
    %4553 = vmatprep.subr.mxu0 0.0
    %4554 = vmatpush1.msra.mxu0 0.0
    %4555 = vmatprep.subr.mxu0 0.0
    %4556 = vmatpush1.msra.mxu0 0.0
    %4557 = vmatprep.subr.mxu0 0.0
    %4558 = vmatpush1.msra.mxu0 0.0
    %4559 = vmatprep.subr.mxu0 0.0
    %4560 = vmatpush1.msra.mxu0 0.0
    %4561 = vmatprep.subr.mxu0 0.0
    %4562 = vmatpush1.msra.mxu0 0.0
    %4563 = vmatprep.subr.mxu0 0.0
    %4564 = vmatpush1.msra.mxu0 0.0
    %4565 = vmatprep.subr.mxu0 0.0
    %4566 = vmatpush1.msra.mxu0 0.0
    %4567 = vmatprep.subr.mxu0 0.0
    %4568 = vmatpush1.msra.mxu0 0.0
    %4569 = vmatprep.subr.mxu0 0.0
    %4570 = vmatpush1.msra.mxu0 0.0
    %4571 = vmatprep.subr.mxu0 0.0
    %4572 = vmatpush1.msra.mxu0 0.0
    %4573 = vmatprep.subr.mxu0 0.0
    %4574 = vmatpush1.msra.mxu0 0.0
    %4575 = vmatprep.subr.mxu0 0.0
    %4576 = vmatpush1.msra.mxu0 %v4538
    %4577 = vmatprep.subr.mxu0 0.0
    %4578 = vmatpush1.msra.mxu0 %v4536
    %4579 = vmatprep.subr.mxu0 0.0
    %4580 = vmatpush2.msra.mxu0 0.0
    %4581 = vmatprep.subr.mxu0 0.0
    %4582 = vmatpush2.msra.mxu0 0.0
    %4583 = vmatprep.subr.mxu0 0.0
    %4584 = vmatpush2.msra.mxu0 0.0
    %4585 = vmatprep.subr.mxu0 0.0
    %4586 = vmatpush2.msra.mxu0 0.0
    %4587 = vmatprep.subr.mxu0 0.0
    %4588 = vmatpush2.msra.mxu0 0.0
    %4589 = vmatprep.subr.mxu0 0.0
    %4590 = vmatpush2.msra.mxu0 0.0
    %4591 = vmatprep.subr.mxu0 0.0
    %4592 = vmatpush2.msra.mxu0 0.0
    %4593 = vmatprep.subr.mxu0 0.0
    %4594 = vmatpush2.msra.mxu0 0.0
    %4595 = vmatprep.subr.mxu0 0.0
    %4596 = vmatpush2.msra.mxu0 0.0
    %4597 = vmatprep.subr.mxu0 0.0
    %4598 = vmatpush2.msra.mxu0 0.0
    %4599 = vmatprep.subr.mxu0 0.0
    %4600 = vmatpush2.msra.mxu0 0.0
    %4601 = vmatprep.subr.mxu0 0.0
    %4602 = vmatpush2.msra.mxu0 0.0
    %4603 = vmatprep.subr.mxu0 0.0
    %4604 = vmatpush2.msra.mxu0 0.0
    %4605 = vmatprep.subr.mxu0 0.0
    %4606 = vmatpush2.msra.mxu0 0.0
    %4607 = vmatprep.subr.mxu0 0.0
    %4608 = vmatpush2.msra.mxu0 0.0
    %4609 = vmatprep.subr.mxu0 0.0
    %4610 = vmatpush2.msra.mxu0 0.0
    %4611 = vmatprep.mubr.f32.mxu0 0.0
    %4612 = vmatmul.mubr.f32.gmra.mxu0 %v4542
    %v4613 = vpop.f32.mrf.mxu0
    %v4614 = vadd.f32 0.0, %v4613
    %v4615 = vpop.f32.mrf.mxu0
    %4616 = vmatprep.mubr.f32.mxu0 0.0
    %4617 = vmatmul.mubr.f32.gmra.mxu0 %v4545
    %v4618 = vpop.f32.mrf.mxu0
    %v4619 = vadd.f32 0.0, %v4618
    %v4620 = vpop.f32.mrf.mxu0
    %4621 = vdwg.mxu0
    %s4622 = scalar_lea.vmem %s31, 12
    %v4623 = vld [vmem:[%s4622] sm:$0xf]
    %v4625 = vsel %vm3553, %v4614, 0
    %v4628 = vsel %vm3553, %v4619, 0
    %v4631 = vsel %vm3963, %v4623, 0
    %4633 = vmatprep.subr.mxu0 0.0
    %4634 = vmatpush1.msra.mxu0 0.0
    %4635 = vmatprep.subr.mxu0 0.0
    %4636 = vmatpush1.msra.mxu0 0.0
    %4637 = vmatprep.subr.mxu0 0.0
    %4638 = vmatpush1.msra.mxu0 0.0
    %4639 = vmatprep.subr.mxu0 0.0
    %4640 = vmatpush1.msra.mxu0 0.0
    %4641 = vmatprep.subr.mxu0 0.0
    %4642 = vmatpush1.msra.mxu0 0.0
    %4643 = vmatprep.subr.mxu0 0.0
    %4644 = vmatpush1.msra.mxu0 0.0
    %4645 = vmatprep.subr.mxu0 0.0
    %4646 = vmatpush1.msra.mxu0 0.0
    %4647 = vmatprep.subr.mxu0 0.0
    %4648 = vmatpush1.msra.mxu0 0.0
    %4649 = vmatprep.subr.mxu0 0.0
    %4650 = vmatpush1.msra.mxu0 0.0
    %4651 = vmatprep.subr.mxu0 0.0
    %4652 = vmatpush1.msra.mxu0 0.0
    %4653 = vmatprep.subr.mxu0 0.0
    %4654 = vmatpush1.msra.mxu0 0.0
    %4655 = vmatprep.subr.mxu0 0.0
    %4656 = vmatpush1.msra.mxu0 0.0
    %4657 = vmatprep.subr.mxu0 0.0
    %4658 = vmatpush1.msra.mxu0 0.0
    %4659 = vmatprep.subr.mxu0 0.0
    %4660 = vmatpush1.msra.mxu0 0.0
    %4661 = vmatprep.subr.mxu0 0.0
    %4662 = vmatpush1.msra.mxu0 0.0
    %4663 = vmatprep.subr.mxu0 0.0
    %4664 = vmatpush1.msra.mxu0 %v4631
    %4665 = vmatprep.subr.mxu0 0.0
    %4666 = vmatpush2.msra.mxu0 0.0
    %4667 = vmatprep.subr.mxu0 0.0
    %4668 = vmatpush2.msra.mxu0 0.0
    %4669 = vmatprep.subr.mxu0 0.0
    %4670 = vmatpush2.msra.mxu0 0.0
    %4671 = vmatprep.subr.mxu0 0.0
    %4672 = vmatpush2.msra.mxu0 0.0
    %4673 = vmatprep.subr.mxu0 0.0
    %4674 = vmatpush2.msra.mxu0 0.0
    %4675 = vmatprep.subr.mxu0 0.0
    %4676 = vmatpush2.msra.mxu0 0.0
    %4677 = vmatprep.subr.mxu0 0.0
    %4678 = vmatpush2.msra.mxu0 0.0
    %4679 = vmatprep.subr.mxu0 0.0
    %4680 = vmatpush2.msra.mxu0 0.0
    %4681 = vmatprep.subr.mxu0 0.0
    %4682 = vmatpush2.msra.mxu0 0.0
    %4683 = vmatprep.subr.mxu0 0.0
    %4684 = vmatpush2.msra.mxu0 0.0
    %4685 = vmatprep.subr.mxu0 0.0
    %4686 = vmatpush2.msra.mxu0 0.0
    %4687 = vmatprep.subr.mxu0 0.0
    %4688 = vmatpush2.msra.mxu0 0.0
    %4689 = vmatprep.subr.mxu0 0.0
    %4690 = vmatpush2.msra.mxu0 0.0
    %4691 = vmatprep.subr.mxu0 0.0
    %4692 = vmatpush2.msra.mxu0 0.0
    %4693 = vmatprep.subr.mxu0 0.0
    %4694 = vmatpush2.msra.mxu0 0.0
    %4695 = vmatprep.subr.mxu0 0.0
    %4696 = vmatpush2.msra.mxu0 0.0
    %4697 = vmatprep.mubr.f32.mxu0 0.0
    %4698 = vmatmul.mubr.f32.gmra.mxu0 %v4625
    %v4699 = vpop.f32.mrf.mxu0
    %v4700 = vadd.f32 0.0, %v4699
    %v4701 = vpop.f32.mrf.mxu0
    %4702 = vmatprep.mubr.f32.mxu0 0.0
    %4703 = vmatmul.mubr.f32.gmra.mxu0 %v4628
    %v4704 = vpop.f32.mrf.mxu0
    %v4705 = vadd.f32 0.0, %v4704
    %v4706 = vpop.f32.mrf.mxu0
    %4707 = vdwg.mxu0
    %v4708 = vadd.f32 %v4416, %v4700
    %v4709 = vadd.f32 %v4417, %v4705
    %v4710 = vld [vmem:[%s33] sm:$0x1]
    %v4712 = vlaneseq
    %v4713 = vshrl.u32 %v4712, 7
    %v4714 = vsub.s32 0, %v4713
    %v4715 = vrot.slane %v4710, %v4714
    %v4717 = vadd.f32 %v4708, %v4715
    %v4718 = vadd.f32 %v4709, %v4715
    %v4719 = vadd.f32 %v4717, %v1926
    %v4720 = vadd.f32 %v4718, %v3291
    %v4721 = vld [vmem:[%s35] sm:$0x1]
    %v4722 = vld [vmem:[%s37] sm:$0x1]
    %v4723 = vsel %vm3303, %v4719, 0.0
    %4724 = vadd.xlane.f32.xlu0 %v4723
    %v4725 = vpop.xlane.xlu0 %4724
    %v4726 = vsel %vm3303, %v4720, 0.0
    %4727 = vadd.xlane.f32.xlu0 %v4726
    %v4728 = vpop.xlane.xlu0 %4727
    %v4729 = vrcp.pop 16.0
    %v4730 = vmul.f32 %v4725, %v4729
    %v4731 = vmul.f32 %v4728, %v4729
    %v4732 = vsub.f32 %v4719, %v4730
    %v4733 = vsub.f32 %v4720, %v4731
    %v4734 = vmul.f32 %v4732, %v4732
    %v4735 = vmul.f32 %v4733, %v4733
    %v4736 = vsel %vm3303, %v4734, 0.0
    %4737 = vadd.xlane.f32.xlu0 %v4736
    %v4738 = vpop.xlane.xlu0 %4737
    %v4739 = vsel %vm3303, %v4735, 0.0
    %4740 = vadd.xlane.f32.xlu0 %v4739
    %v4741 = vpop.xlane.xlu0 %4740
    %v4742 = vmul.f32 %v4738, %v4729
    %v4743 = vmul.f32 %v4741, %v4729
    %v4744 = vadd.f32 %v4742, 1e-05
    %v4745 = vadd.f32 %v4743, 1e-05
    %v4746 = vrsqrt.pop %v4744
    %v4747 = vrsqrt.pop %v4745
    %v4748 = vmul.f32 %v4732, %v4746
    %v4749 = vmul.f32 %v4733, %v4747
    %v4751 = vlaneseq
    %v4752 = vshrl.u32 %v4751, 7
    %v4753 = vsub.s32 0, %v4752
    %v4754 = vrot.slane %v4721, %v4753
    %v4756 = vmul.f32 %v4748, %v4754
    %v4757 = vmul.f32 %v4749, %v4754
    %v4759 = vlaneseq
    %v4760 = vshrl.u32 %v4759, 7
    %v4761 = vsub.s32 0, %v4760
    %v4762 = vrot.slane %v4722, %v4761
    %v4764 = vadd.f32 %v4756, %v4762
    %v4765 = vadd.f32 %v4757, %v4762
    %v4766 = vld [vmem:[%s39] sm:$0xff]
    %v4767 = vld [vmem:[%s39 + $0x8] sm:$0xff]
    %v4768 = vld [vmem:[%s41] sm:$0x1]
    %v4770 = vlaneseq
    %v4771 = vshrl.u32 %v4770, 7
    %v4772 = vsub.s32 0, %v4771
    %v4773 = vrot.slane %v4768, %v4772
    %v4776 = vsel %vm3303, %v4764, 0
    %v4779 = vsel %vm3303, %v4765, 0
    %4781 = vmatprep.subr.mxu0 0.0
    %4782 = vmatpush1.msra.mxu0 0.0
    %4783 = vmatprep.subr.mxu0 0.0
    %4784 = vmatpush1.msra.mxu0 0.0
    %4785 = vmatprep.subr.mxu0 0.0
    %4786 = vmatpush1.msra.mxu0 0.0
    %4787 = vmatprep.subr.mxu0 0.0
    %4788 = vmatpush1.msra.mxu0 0.0
    %4789 = vmatprep.subr.mxu0 0.0
    %4790 = vmatpush1.msra.mxu0 0.0
    %4791 = vmatprep.subr.mxu0 0.0
    %4792 = vmatpush1.msra.mxu0 0.0
    %4793 = vmatprep.subr.mxu0 0.0
    %4794 = vmatpush1.msra.mxu0 0.0
    %4795 = vmatprep.subr.mxu0 0.0
    %4796 = vmatpush1.msra.mxu0 0.0
    %4797 = vmatprep.subr.mxu0 0.0
    %4798 = vmatpush1.msra.mxu0 0.0
    %4799 = vmatprep.subr.mxu0 0.0
    %4800 = vmatpush1.msra.mxu0 0.0
    %4801 = vmatprep.subr.mxu0 0.0
    %4802 = vmatpush1.msra.mxu0 0.0
    %4803 = vmatprep.subr.mxu0 0.0
    %4804 = vmatpush1.msra.mxu0 0.0
    %4805 = vmatprep.subr.mxu0 0.0
    %4806 = vmatpush1.msra.mxu0 0.0
    %4807 = vmatprep.subr.mxu0 0.0
    %4808 = vmatpush1.msra.mxu0 0.0
    %4809 = vmatprep.subr.mxu0 0.0
    %4810 = vmatpush1.msra.mxu0 %v4767
    %4811 = vmatprep.subr.mxu0 0.0
    %4812 = vmatpush1.msra.mxu0 %v4766
    %4813 = vmatprep.subr.mxu0 0.0
    %4814 = vmatpush2.msra.mxu0 0.0
    %4815 = vmatprep.subr.mxu0 0.0
    %4816 = vmatpush2.msra.mxu0 0.0
    %4817 = vmatprep.subr.mxu0 0.0
    %4818 = vmatpush2.msra.mxu0 0.0
    %4819 = vmatprep.subr.mxu0 0.0
    %4820 = vmatpush2.msra.mxu0 0.0
    %4821 = vmatprep.subr.mxu0 0.0
    %4822 = vmatpush2.msra.mxu0 0.0
    %4823 = vmatprep.subr.mxu0 0.0
    %4824 = vmatpush2.msra.mxu0 0.0
    %4825 = vmatprep.subr.mxu0 0.0
    %4826 = vmatpush2.msra.mxu0 0.0
    %4827 = vmatprep.subr.mxu0 0.0
    %4828 = vmatpush2.msra.mxu0 0.0
    %4829 = vmatprep.subr.mxu0 0.0
    %4830 = vmatpush2.msra.mxu0 0.0
    %4831 = vmatprep.subr.mxu0 0.0
    %4832 = vmatpush2.msra.mxu0 0.0
    %4833 = vmatprep.subr.mxu0 0.0
    %4834 = vmatpush2.msra.mxu0 0.0
    %4835 = vmatprep.subr.mxu0 0.0
    %4836 = vmatpush2.msra.mxu0 0.0
    %4837 = vmatprep.subr.mxu0 0.0
    %4838 = vmatpush2.msra.mxu0 0.0
    %4839 = vmatprep.subr.mxu0 0.0
    %4840 = vmatpush2.msra.mxu0 0.0
    %4841 = vmatprep.subr.mxu0 0.0
    %4842 = vmatpush2.msra.mxu0 0.0
    %4843 = vmatprep.subr.mxu0 0.0
    %4844 = vmatpush2.msra.mxu0 0.0
    %4845 = vmatprep.mubr.f32.mxu0 0.0
    %4846 = vmatmul.mubr.f32.gmra.mxu0 %v4776
    %v4847 = vpop.f32.mrf.mxu0
    %v4848 = vadd.f32 %v4773, %v4847
    %v4849 = vpop.f32.mrf.mxu0
    %4850 = vmatprep.mubr.f32.mxu0 0.0
    %4851 = vmatmul.mubr.f32.gmra.mxu0 %v4779
    %v4852 = vpop.f32.mrf.mxu0
    %v4853 = vadd.f32 %v4773, %v4852
    %v4854 = vpop.f32.mrf.mxu0
    %4855 = vdwg.mxu0
    %v4856 = vmul.f32 %v4848, 0.5
    %v4857 = vmul.f32 %v4853, 0.5
    %v4858 = vmul.f32 %v4848, 0.044715
    %v4859 = vmul.f32 %v4853, 0.044715
    %v4860 = vmul.f32 %v4858, %v4848
    %v4861 = vmul.f32 %v4859, %v4853
    %v4862 = vmul.f32 %v4860, %v4848
    %v4863 = vmul.f32 %v4861, %v4853
    %v4864 = vadd.f32 %v4848, %v4862
    %v4865 = vadd.f32 %v4853, %v4863
    %v4866 = vmul.f32 %v4864, 0.7978846
    %v4867 = vmul.f32 %v4865, 0.7978846
    %v4868 = vtanh.pop %v4866
    %v4869 = vtanh.pop %v4867
    %v4870 = vadd.f32 %v4868, 1.0
    %v4871 = vadd.f32 %v4869, 1.0
    %v4872 = vmul.f32 %v4856, %v4870
    %v4873 = vmul.f32 %v4857, %v4871
    %v4874 = vld [vmem:[%s43] sm:$0xff]
    %v4875 = vld [vmem:[%s43 + $0x8] sm:$0xff]
    %v4876 = vld [vmem:[%s43 + $0x10] sm:$0xff]
    %v4877 = vld [vmem:[%s43 + $0x18] sm:$0xff]
    %v4878 = vld [vmem:[%s43 + $0x20] sm:$0xff]
    %v4879 = vld [vmem:[%s43 + $0x28] sm:$0xff]
    %v4880 = vld [vmem:[%s43 + $0x30] sm:$0xff]
    %v4881 = vld [vmem:[%s43 + $0x38] sm:$0xff]
    %v4882 = vld [vmem:[%s45] sm:$0x1]
    %v4884 = vlaneseq
    %v4885 = vshrl.u32 %v4884, 7
    %v4886 = vsub.s32 0, %v4885
    %v4887 = vrot.slane %v4882, %v4886
    %v4890 = vsel %vm161, %v4872, 0
    %v4893 = vsel %vm161, %v4873, 0
    %4895 = vmatprep.subr.mxu0 0.0
    %4896 = vmatpush1.msra.mxu0 0.0
    %4897 = vmatprep.subr.mxu0 0.0
    %4898 = vmatpush1.msra.mxu0 0.0
    %4899 = vmatprep.subr.mxu0 0.0
    %4900 = vmatpush1.msra.mxu0 0.0
    %4901 = vmatprep.subr.mxu0 0.0
    %4902 = vmatpush1.msra.mxu0 0.0
    %4903 = vmatprep.subr.mxu0 0.0
    %4904 = vmatpush1.msra.mxu0 0.0
    %4905 = vmatprep.subr.mxu0 0.0
    %4906 = vmatpush1.msra.mxu0 0.0
    %4907 = vmatprep.subr.mxu0 0.0
    %4908 = vmatpush1.msra.mxu0 0.0
    %4909 = vmatprep.subr.mxu0 0.0
    %4910 = vmatpush1.msra.mxu0 0.0
    %4911 = vmatprep.subr.mxu0 0.0
    %4912 = vmatpush1.msra.mxu0 %v4881
    %4913 = vmatprep.subr.mxu0 0.0
    %4914 = vmatpush1.msra.mxu0 %v4880
    %4915 = vmatprep.subr.mxu0 0.0
    %4916 = vmatpush1.msra.mxu0 %v4879
    %4917 = vmatprep.subr.mxu0 0.0
    %4918 = vmatpush1.msra.mxu0 %v4878
    %4919 = vmatprep.subr.mxu0 0.0
    %4920 = vmatpush1.msra.mxu0 %v4877
    %4921 = vmatprep.subr.mxu0 0.0
    %4922 = vmatpush1.msra.mxu0 %v4876
    %4923 = vmatprep.subr.mxu0 0.0
    %4924 = vmatpush1.msra.mxu0 %v4875
    %4925 = vmatprep.subr.mxu0 0.0
    %4926 = vmatpush1.msra.mxu0 %v4874
    %4927 = vmatprep.subr.mxu0 0.0
    %4928 = vmatpush2.msra.mxu0 0.0
    %4929 = vmatprep.subr.mxu0 0.0
    %4930 = vmatpush2.msra.mxu0 0.0
    %4931 = vmatprep.subr.mxu0 0.0
    %4932 = vmatpush2.msra.mxu0 0.0
    %4933 = vmatprep.subr.mxu0 0.0
    %4934 = vmatpush2.msra.mxu0 0.0
    %4935 = vmatprep.subr.mxu0 0.0
    %4936 = vmatpush2.msra.mxu0 0.0
    %4937 = vmatprep.subr.mxu0 0.0
    %4938 = vmatpush2.msra.mxu0 0.0
    %4939 = vmatprep.subr.mxu0 0.0
    %4940 = vmatpush2.msra.mxu0 0.0
    %4941 = vmatprep.subr.mxu0 0.0
    %4942 = vmatpush2.msra.mxu0 0.0
    %4943 = vmatprep.subr.mxu0 0.0
    %4944 = vmatpush2.msra.mxu0 0.0
    %4945 = vmatprep.subr.mxu0 0.0
    %4946 = vmatpush2.msra.mxu0 0.0
    %4947 = vmatprep.subr.mxu0 0.0
    %4948 = vmatpush2.msra.mxu0 0.0
    %4949 = vmatprep.subr.mxu0 0.0
    %4950 = vmatpush2.msra.mxu0 0.0
    %4951 = vmatprep.subr.mxu0 0.0
    %4952 = vmatpush2.msra.mxu0 0.0
    %4953 = vmatprep.subr.mxu0 0.0
    %4954 = vmatpush2.msra.mxu0 0.0
    %4955 = vmatprep.subr.mxu0 0.0
    %4956 = vmatpush2.msra.mxu0 0.0
    %4957 = vmatprep.subr.mxu0 0.0
    %4958 = vmatpush2.msra.mxu0 0.0
    %4959 = vmatprep.mubr.f32.mxu0 0.0
    %4960 = vmatmul.mubr.f32.gmra.mxu0 %v4890
    %v4961 = vpop.f32.mrf.mxu0
    %v4962 = vadd.f32 %v4887, %v4961
    %v4963 = vpop.f32.mrf.mxu0
    %4964 = vmatprep.mubr.f32.mxu0 0.0
    %4965 = vmatmul.mubr.f32.gmra.mxu0 %v4893
    %v4966 = vpop.f32.mrf.mxu0
    %v4967 = vadd.f32 %v4887, %v4966
    %v4968 = vpop.f32.mrf.mxu0
    %4969 = vdwg.mxu0
    %v4970 = vadd.f32 %v4962, %v4764
    %v4971 = vadd.f32 %v4967, %v4765
    %v4972 = vld [vmem:[%s47] sm:$0x1]
    %v4973 = vld [vmem:[%s49] sm:$0x1]
    %v4974 = vsel %vm3303, %v4970, 0.0
    %4975 = vadd.xlane.f32.xlu0 %v4974
    %v4976 = vpop.xlane.xlu0 %4975
    %v4977 = vsel %vm3303, %v4971, 0.0
    %4978 = vadd.xlane.f32.xlu0 %v4977
    %v4979 = vpop.xlane.xlu0 %4978
    %v4980 = vmul.f32 %v4976, %v4729
    %v4981 = vmul.f32 %v4979, %v4729
    %v4982 = vsub.f32 %v4970, %v4980
    %v4983 = vsub.f32 %v4971, %v4981
    %v4984 = vmul.f32 %v4982, %v4982
    %v4985 = vmul.f32 %v4983, %v4983
    %v4986 = vsel %vm3303, %v4984, 0.0
    %4987 = vadd.xlane.f32.xlu0 %v4986
    %v4988 = vpop.xlane.xlu0 %4987
    %v4989 = vsel %vm3303, %v4985, 0.0
    %4990 = vadd.xlane.f32.xlu0 %v4989
    %v4991 = vpop.xlane.xlu0 %4990
    %v4992 = vmul.f32 %v4988, %v4729
    %v4993 = vmul.f32 %v4991, %v4729
    %v4994 = vadd.f32 %v4992, 1e-05
    %v4995 = vadd.f32 %v4993, 1e-05
    %v4996 = vrsqrt.pop %v4994
    %v4997 = vrsqrt.pop %v4995
    %v4998 = vmul.f32 %v4982, %v4996
    %v4999 = vmul.f32 %v4983, %v4997
    %v5001 = vlaneseq
    %v5002 = vshrl.u32 %v5001, 7
    %v5003 = vsub.s32 0, %v5002
    %v5004 = vrot.slane %v4972, %v5003
    %v5006 = vmul.f32 %v4998, %v5004
    %v5007 = vmul.f32 %v4999, %v5004
    %v5009 = vlaneseq
    %v5010 = vshrl.u32 %v5009, 7
    %v5011 = vsub.s32 0, %v5010
    %v5012 = vrot.slane %v4973, %v5011
    %v5014 = vadd.f32 %v5006, %v5012
    %v5015 = vadd.f32 %v5007, %v5012
    %s5016 = scalar_lea.vmem %s19, 16
    %v5017 = vld [vmem:[%s5016] sm:$0xff]
    %v5018 = vld [vmem:[%s5016 + $0x8] sm:$0xff]
    %s5019 = scalar_lea.vmem %s21, 1
    %v5020 = vld [vmem:[%s5019] sm:$0x1]
    %v5022 = vlaneseq
    %v5023 = vshrl.u32 %v5022, 7
    %v5024 = vsub.s32 0, %v5023
    %v5025 = vrot.slane %v5020, %v5024
    %v5028 = vsel %vm3303, %v5014, 0
    %v5031 = vsel %vm3303, %v5015, 0
    %5033 = vmatprep.subr.mxu0 0.0
    %5034 = vmatpush1.msra.mxu0 0.0
    %5035 = vmatprep.subr.mxu0 0.0
    %5036 = vmatpush1.msra.mxu0 0.0
    %5037 = vmatprep.subr.mxu0 0.0
    %5038 = vmatpush1.msra.mxu0 0.0
    %5039 = vmatprep.subr.mxu0 0.0
    %5040 = vmatpush1.msra.mxu0 0.0
    %5041 = vmatprep.subr.mxu0 0.0
    %5042 = vmatpush1.msra.mxu0 0.0
    %5043 = vmatprep.subr.mxu0 0.0
    %5044 = vmatpush1.msra.mxu0 0.0
    %5045 = vmatprep.subr.mxu0 0.0
    %5046 = vmatpush1.msra.mxu0 0.0
    %5047 = vmatprep.subr.mxu0 0.0
    %5048 = vmatpush1.msra.mxu0 0.0
    %5049 = vmatprep.subr.mxu0 0.0
    %5050 = vmatpush1.msra.mxu0 0.0
    %5051 = vmatprep.subr.mxu0 0.0
    %5052 = vmatpush1.msra.mxu0 0.0
    %5053 = vmatprep.subr.mxu0 0.0
    %5054 = vmatpush1.msra.mxu0 0.0
    %5055 = vmatprep.subr.mxu0 0.0
    %5056 = vmatpush1.msra.mxu0 0.0
    %5057 = vmatprep.subr.mxu0 0.0
    %5058 = vmatpush1.msra.mxu0 0.0
    %5059 = vmatprep.subr.mxu0 0.0
    %5060 = vmatpush1.msra.mxu0 0.0
    %5061 = vmatprep.subr.mxu0 0.0
    %5062 = vmatpush1.msra.mxu0 %v5018
    %5063 = vmatprep.subr.mxu0 0.0
    %5064 = vmatpush1.msra.mxu0 %v5017
    %5065 = vmatprep.subr.mxu0 0.0
    %5066 = vmatpush2.msra.mxu0 0.0
    %5067 = vmatprep.subr.mxu0 0.0
    %5068 = vmatpush2.msra.mxu0 0.0
    %5069 = vmatprep.subr.mxu0 0.0
    %5070 = vmatpush2.msra.mxu0 0.0
    %5071 = vmatprep.subr.mxu0 0.0
    %5072 = vmatpush2.msra.mxu0 0.0
    %5073 = vmatprep.subr.mxu0 0.0
    %5074 = vmatpush2.msra.mxu0 0.0
    %5075 = vmatprep.subr.mxu0 0.0
    %5076 = vmatpush2.msra.mxu0 0.0
    %5077 = vmatprep.subr.mxu0 0.0
    %5078 = vmatpush2.msra.mxu0 0.0
    %5079 = vmatprep.subr.mxu0 0.0
    %5080 = vmatpush2.msra.mxu0 0.0
    %5081 = vmatprep.subr.mxu0 0.0
    %5082 = vmatpush2.msra.mxu0 0.0
    %5083 = vmatprep.subr.mxu0 0.0
    %5084 = vmatpush2.msra.mxu0 0.0
    %5085 = vmatprep.subr.mxu0 0.0
    %5086 = vmatpush2.msra.mxu0 0.0
    %5087 = vmatprep.subr.mxu0 0.0
    %5088 = vmatpush2.msra.mxu0 0.0
    %5089 = vmatprep.subr.mxu0 0.0
    %5090 = vmatpush2.msra.mxu0 0.0
    %5091 = vmatprep.subr.mxu0 0.0
    %5092 = vmatpush2.msra.mxu0 0.0
    %5093 = vmatprep.subr.mxu0 0.0
    %5094 = vmatpush2.msra.mxu0 0.0
    %5095 = vmatprep.subr.mxu0 0.0
    %5096 = vmatpush2.msra.mxu0 0.0
    %5097 = vmatprep.mubr.f32.mxu0 0.0
    %5098 = vmatmul.mubr.f32.gmra.mxu0 %v5028
    %v5099 = vpop.f32.mrf.mxu0
    %v5100 = vadd.f32 %v5025, %v5099
    %v5101 = vpop.f32.mrf.mxu0
    %5102 = vmatprep.mubr.f32.mxu0 0.0
    %5103 = vmatmul.mubr.f32.gmra.mxu0 %v5031
    %v5104 = vpop.f32.mrf.mxu0
    %v5105 = vadd.f32 %v5025, %v5104
    %v5106 = vpop.f32.mrf.mxu0
    %5107 = vdwg.mxu0
    %s5108 = scalar_lea.vmem %s23, 16
    %v5109 = vld [vmem:[%s5108] sm:$0xff]
    %v5110 = vld [vmem:[%s5108 + $0x8] sm:$0xff]
    %s5111 = scalar_lea.vmem %s25, 1
    %v5112 = vld [vmem:[%s5111] sm:$0x1]
    %v5114 = vlaneseq
    %v5115 = vshrl.u32 %v5114, 7
    %v5116 = vsub.s32 0, %v5115
    %v5117 = vrot.slane %v5112, %v5116
    %5119 = vmatprep.subr.mxu0 0.0
    %5120 = vmatpush1.msra.mxu0 0.0
    %5121 = vmatprep.subr.mxu0 0.0
    %5122 = vmatpush1.msra.mxu0 0.0
    %5123 = vmatprep.subr.mxu0 0.0
    %5124 = vmatpush1.msra.mxu0 0.0
    %5125 = vmatprep.subr.mxu0 0.0
    %5126 = vmatpush1.msra.mxu0 0.0
    %5127 = vmatprep.subr.mxu0 0.0
    %5128 = vmatpush1.msra.mxu0 0.0
    %5129 = vmatprep.subr.mxu0 0.0
    %5130 = vmatpush1.msra.mxu0 0.0
    %5131 = vmatprep.subr.mxu0 0.0
    %5132 = vmatpush1.msra.mxu0 0.0
    %5133 = vmatprep.subr.mxu0 0.0
    %5134 = vmatpush1.msra.mxu0 0.0
    %5135 = vmatprep.subr.mxu0 0.0
    %5136 = vmatpush1.msra.mxu0 0.0
    %5137 = vmatprep.subr.mxu0 0.0
    %5138 = vmatpush1.msra.mxu0 0.0
    %5139 = vmatprep.subr.mxu0 0.0
    %5140 = vmatpush1.msra.mxu0 0.0
    %5141 = vmatprep.subr.mxu0 0.0
    %5142 = vmatpush1.msra.mxu0 0.0
    %5143 = vmatprep.subr.mxu0 0.0
    %5144 = vmatpush1.msra.mxu0 0.0
    %5145 = vmatprep.subr.mxu0 0.0
    %5146 = vmatpush1.msra.mxu0 0.0
    %5147 = vmatprep.subr.mxu0 0.0
    %5148 = vmatpush1.msra.mxu0 %v5110
    %5149 = vmatprep.subr.mxu0 0.0
    %5150 = vmatpush1.msra.mxu0 %v5109
    %5151 = vmatprep.subr.mxu0 0.0
    %5152 = vmatpush2.msra.mxu0 0.0
    %5153 = vmatprep.subr.mxu0 0.0
    %5154 = vmatpush2.msra.mxu0 0.0
    %5155 = vmatprep.subr.mxu0 0.0
    %5156 = vmatpush2.msra.mxu0 0.0
    %5157 = vmatprep.subr.mxu0 0.0
    %5158 = vmatpush2.msra.mxu0 0.0
    %5159 = vmatprep.subr.mxu0 0.0
    %5160 = vmatpush2.msra.mxu0 0.0
    %5161 = vmatprep.subr.mxu0 0.0
    %5162 = vmatpush2.msra.mxu0 0.0
    %5163 = vmatprep.subr.mxu0 0.0
    %5164 = vmatpush2.msra.mxu0 0.0
    %5165 = vmatprep.subr.mxu0 0.0
    %5166 = vmatpush2.msra.mxu0 0.0
    %5167 = vmatprep.subr.mxu0 0.0
    %5168 = vmatpush2.msra.mxu0 0.0
    %5169 = vmatprep.subr.mxu0 0.0
    %5170 = vmatpush2.msra.mxu0 0.0
    %5171 = vmatprep.subr.mxu0 0.0
    %5172 = vmatpush2.msra.mxu0 0.0
    %5173 = vmatprep.subr.mxu0 0.0
    %5174 = vmatpush2.msra.mxu0 0.0
    %5175 = vmatprep.subr.mxu0 0.0
    %5176 = vmatpush2.msra.mxu0 0.0
    %5177 = vmatprep.subr.mxu0 0.0
    %5178 = vmatpush2.msra.mxu0 0.0
    %5179 = vmatprep.subr.mxu0 0.0
    %5180 = vmatpush2.msra.mxu0 0.0
    %5181 = vmatprep.subr.mxu0 0.0
    %5182 = vmatpush2.msra.mxu0 0.0
    %5183 = vmatprep.mubr.f32.mxu0 0.0
    %5184 = vmatmul.mubr.f32.gmra.mxu0 %v5028
    %v5185 = vpop.f32.mrf.mxu0
    %v5186 = vadd.f32 %v5117, %v5185
    %v5187 = vpop.f32.mrf.mxu0
    %5188 = vmatprep.mubr.f32.mxu0 0.0
    %5189 = vmatmul.mubr.f32.gmra.mxu0 %v5031
    %v5190 = vpop.f32.mrf.mxu0
    %v5191 = vadd.f32 %v5117, %v5190
    %v5192 = vpop.f32.mrf.mxu0
    %5193 = vdwg.mxu0
    %s5194 = scalar_lea.vmem %s27, 16
    %v5195 = vld [vmem:[%s5194] sm:$0xff]
    %v5196 = vld [vmem:[%s5194 + $0x8] sm:$0xff]
    %s5197 = scalar_lea.vmem %s29, 1
    %v5198 = vld [vmem:[%s5197] sm:$0x1]
    %v5200 = vlaneseq
    %v5201 = vshrl.u32 %v5200, 7
    %v5202 = vsub.s32 0, %v5201
    %v5203 = vrot.slane %v5198, %v5202
    %5205 = vmatprep.subr.mxu0 0.0
    %5206 = vmatpush1.msra.mxu0 0.0
    %5207 = vmatprep.subr.mxu0 0.0
    %5208 = vmatpush1.msra.mxu0 0.0
    %5209 = vmatprep.subr.mxu0 0.0
    %5210 = vmatpush1.msra.mxu0 0.0
    %5211 = vmatprep.subr.mxu0 0.0
    %5212 = vmatpush1.msra.mxu0 0.0
    %5213 = vmatprep.subr.mxu0 0.0
    %5214 = vmatpush1.msra.mxu0 0.0
    %5215 = vmatprep.subr.mxu0 0.0
    %5216 = vmatpush1.msra.mxu0 0.0
    %5217 = vmatprep.subr.mxu0 0.0
    %5218 = vmatpush1.msra.mxu0 0.0
    %5219 = vmatprep.subr.mxu0 0.0
    %5220 = vmatpush1.msra.mxu0 0.0
    %5221 = vmatprep.subr.mxu0 0.0
    %5222 = vmatpush1.msra.mxu0 0.0
    %5223 = vmatprep.subr.mxu0 0.0
    %5224 = vmatpush1.msra.mxu0 0.0
    %5225 = vmatprep.subr.mxu0 0.0
    %5226 = vmatpush1.msra.mxu0 0.0
    %5227 = vmatprep.subr.mxu0 0.0
    %5228 = vmatpush1.msra.mxu0 0.0
    %5229 = vmatprep.subr.mxu0 0.0
    %5230 = vmatpush1.msra.mxu0 0.0
    %5231 = vmatprep.subr.mxu0 0.0
    %5232 = vmatpush1.msra.mxu0 0.0
    %5233 = vmatprep.subr.mxu0 0.0
    %5234 = vmatpush1.msra.mxu0 %v5196
    %5235 = vmatprep.subr.mxu0 0.0
    %5236 = vmatpush1.msra.mxu0 %v5195
    %5237 = vmatprep.subr.mxu0 0.0
    %5238 = vmatpush2.msra.mxu0 0.0
    %5239 = vmatprep.subr.mxu0 0.0
    %5240 = vmatpush2.msra.mxu0 0.0
    %5241 = vmatprep.subr.mxu0 0.0
    %5242 = vmatpush2.msra.mxu0 0.0
    %5243 = vmatprep.subr.mxu0 0.0
    %5244 = vmatpush2.msra.mxu0 0.0
    %5245 = vmatprep.subr.mxu0 0.0
    %5246 = vmatpush2.msra.mxu0 0.0
    %5247 = vmatprep.subr.mxu0 0.0
    %5248 = vmatpush2.msra.mxu0 0.0
    %5249 = vmatprep.subr.mxu0 0.0
    %5250 = vmatpush2.msra.mxu0 0.0
    %5251 = vmatprep.subr.mxu0 0.0
    %5252 = vmatpush2.msra.mxu0 0.0
    %5253 = vmatprep.subr.mxu0 0.0
    %5254 = vmatpush2.msra.mxu0 0.0
    %5255 = vmatprep.subr.mxu0 0.0
    %5256 = vmatpush2.msra.mxu0 0.0
    %5257 = vmatprep.subr.mxu0 0.0
    %5258 = vmatpush2.msra.mxu0 0.0
    %5259 = vmatprep.subr.mxu0 0.0
    %5260 = vmatpush2.msra.mxu0 0.0
    %5261 = vmatprep.subr.mxu0 0.0
    %5262 = vmatpush2.msra.mxu0 0.0
    %5263 = vmatprep.subr.mxu0 0.0
    %5264 = vmatpush2.msra.mxu0 0.0
    %5265 = vmatprep.subr.mxu0 0.0
    %5266 = vmatpush2.msra.mxu0 0.0
    %5267 = vmatprep.subr.mxu0 0.0
    %5268 = vmatpush2.msra.mxu0 0.0
    %5269 = vmatprep.mubr.f32.mxu0 0.0
    %5270 = vmatmul.mubr.f32.gmra.mxu0 %v5028
    %v5271 = vpop.f32.mrf.mxu0
    %v5272 = vadd.f32 %v5203, %v5271
    %v5273 = vpop.f32.mrf.mxu0
    %5274 = vmatprep.mubr.f32.mxu0 0.0
    %5275 = vmatmul.mubr.f32.gmra.mxu0 %v5031
    %v5276 = vpop.f32.mrf.mxu0
    %v5277 = vadd.f32 %v5203, %v5276
    %v5278 = vpop.f32.mrf.mxu0
    %5279 = vdwg.mxu0
    %v5281 = vsel %vm3553, %v5100, 0
    %v5284 = vsel %vm3553, %v5105, 0
    %v5287 = vsel %vm3553, %v5186, 0
    %v5290 = vsel %vm3553, %v5191, 0
    %5292 = vmatprep.subr.mxu0 0.0
    %5293 = vmatpush1.xpose.msra.mxu0 0.0
    %5294 = vmatprep.subr.mxu0 0.0
    %5295 = vmatpush1.xpose.msra.mxu0 0.0
    %5296 = vmatprep.subr.mxu0 0.0
    %5297 = vmatpush1.xpose.msra.mxu0 0.0
    %5298 = vmatprep.subr.mxu0 0.0
    %5299 = vmatpush1.xpose.msra.mxu0 0.0
    %5300 = vmatprep.subr.mxu0 0.0
    %5301 = vmatpush1.xpose.msra.mxu0 0.0
    %5302 = vmatprep.subr.mxu0 0.0
    %5303 = vmatpush1.xpose.msra.mxu0 0.0
    %5304 = vmatprep.subr.mxu0 0.0
    %5305 = vmatpush1.xpose.msra.mxu0 0.0
    %5306 = vmatprep.subr.mxu0 0.0
    %5307 = vmatpush1.xpose.msra.mxu0 0.0
    %5308 = vmatprep.subr.mxu0 0.0
    %5309 = vmatpush1.xpose.msra.mxu0 0.0
    %5310 = vmatprep.subr.mxu0 0.0
    %5311 = vmatpush1.xpose.msra.mxu0 0.0
    %5312 = vmatprep.subr.mxu0 0.0
    %5313 = vmatpush1.xpose.msra.mxu0 0.0
    %5314 = vmatprep.subr.mxu0 0.0
    %5315 = vmatpush1.xpose.msra.mxu0 0.0
    %5316 = vmatprep.subr.mxu0 0.0
    %5317 = vmatpush1.xpose.msra.mxu0 0.0
    %5318 = vmatprep.subr.mxu0 0.0
    %5319 = vmatpush1.xpose.msra.mxu0 0.0
    %5320 = vmatprep.subr.mxu0 0.0
    %5321 = vmatpush1.xpose.msra.mxu0 %v5290
    %5322 = vmatprep.subr.mxu0 0.0
    %5323 = vmatpush1.xpose.msra.mxu0 %v5287
    %5324 = vmatprep.subr.mxu0 0.0
    %5325 = vmatpush2.xpose.msra.mxu0 0.0
    %5326 = vmatprep.subr.mxu0 0.0
    %5327 = vmatpush2.xpose.msra.mxu0 0.0
    %5328 = vmatprep.subr.mxu0 0.0
    %5329 = vmatpush2.xpose.msra.mxu0 0.0
    %5330 = vmatprep.subr.mxu0 0.0
    %5331 = vmatpush2.xpose.msra.mxu0 0.0
    %5332 = vmatprep.subr.mxu0 0.0
    %5333 = vmatpush2.xpose.msra.mxu0 0.0
    %5334 = vmatprep.subr.mxu0 0.0
    %5335 = vmatpush2.xpose.msra.mxu0 0.0
    %5336 = vmatprep.subr.mxu0 0.0
    %5337 = vmatpush2.xpose.msra.mxu0 0.0
    %5338 = vmatprep.subr.mxu0 0.0
    %5339 = vmatpush2.xpose.msra.mxu0 0.0
    %5340 = vmatprep.subr.mxu0 0.0
    %5341 = vmatpush2.xpose.msra.mxu0 0.0
    %5342 = vmatprep.subr.mxu0 0.0
    %5343 = vmatpush2.xpose.msra.mxu0 0.0
    %5344 = vmatprep.subr.mxu0 0.0
    %5345 = vmatpush2.xpose.msra.mxu0 0.0
    %5346 = vmatprep.subr.mxu0 0.0
    %5347 = vmatpush2.xpose.msra.mxu0 0.0
    %5348 = vmatprep.subr.mxu0 0.0
    %5349 = vmatpush2.xpose.msra.mxu0 0.0
    %5350 = vmatprep.subr.mxu0 0.0
    %5351 = vmatpush2.xpose.msra.mxu0 0.0
    %5352 = vmatprep.subr.mxu0 0.0
    %5353 = vmatpush2.xpose.msra.mxu0 0.0
    %5354 = vmatprep.subr.mxu0 0.0
    %5355 = vmatpush2.xpose.msra.mxu0 0.0
    %5356 = vmatprep.mubr.f32.mxu0 0.0
    %5357 = vmatmul.mubr.f32.gmra.mxu0 %v5281
    %v5358 = vpop.f32.mrf.mxu0
    %v5359 = vadd.f32 0.0, %v5358
    %v5360 = vpop.f32.mrf.mxu0
    %5361 = vmatprep.mubr.f32.mxu0 0.0
    %5362 = vmatmul.mubr.f32.gmra.mxu0 %v5284
    %v5363 = vpop.f32.mrf.mxu0
    %v5364 = vadd.f32 0.0, %v5363
    %v5365 = vpop.f32.mrf.mxu0
    %5366 = vdwg.mxu0
    %v5367 = vmul.f32 %v5359, 0.25
    %v5368 = vmul.f32 %v5364, 0.25
    %v5369 = vadd.f32 %v5367, %v3292
    %v5370 = vadd.f32 %v5368, %v3293
    %v5371 = vsel %vm3303, %v5369, -inf
    %5372 = vmax.xlane.f32.xlu0 %v5371
    %v5373 = vpop.xlane.xlu0 %5372
    %v5374 = vsel %vm3303, %v5370, -inf
    %5375 = vmax.xlane.f32.xlu0 %v5374
    %v5376 = vpop.xlane.xlu0 %5375
    %v5377 = vsub.f32 %v5369, %v5373
    %v5378 = vsub.f32 %v5370, %v5376
    %v5379 = vmul.f32 %v5377, 1.442695
    %v5380 = vpow.pop %v5379
    %v5381 = vmul.f32 %v5378, 1.442695
    %v5382 = vpow.pop %v5381
    %v5383 = vsel %vm3303, %v5380, 0.0
    %5384 = vadd.xlane.f32.xlu0 %v5383
    %v5385 = vpop.xlane.xlu0 %5384
    %v5386 = vsel %vm3303, %v5382, 0.0
    %5387 = vadd.xlane.f32.xlu0 %v5386
    %v5388 = vpop.xlane.xlu0 %5387
    %v5389 = vrcp.pop %v5385
    %v5390 = vrcp.pop %v5388
    %v5391 = vmul.f32 %v5380, %v5389
    %v5392 = vmul.f32 %v5382, %v5390
    %v5394 = vsel %vm3303, %v5391, 0
    %v5397 = vsel %vm3303, %v5392, 0
    %5399 = vmatprep.subr.mxu0 0.0
    %5400 = vmatpush1.msra.mxu0 0.0
    %5401 = vmatprep.subr.mxu0 0.0
    %5402 = vmatpush1.msra.mxu0 0.0
    %5403 = vmatprep.subr.mxu0 0.0
    %5404 = vmatpush1.msra.mxu0 0.0
    %5405 = vmatprep.subr.mxu0 0.0
    %5406 = vmatpush1.msra.mxu0 0.0
    %5407 = vmatprep.subr.mxu0 0.0
    %5408 = vmatpush1.msra.mxu0 0.0
    %5409 = vmatprep.subr.mxu0 0.0
    %5410 = vmatpush1.msra.mxu0 0.0
    %5411 = vmatprep.subr.mxu0 0.0
    %5412 = vmatpush1.msra.mxu0 0.0
    %5413 = vmatprep.subr.mxu0 0.0
    %5414 = vmatpush1.msra.mxu0 0.0
    %5415 = vmatprep.subr.mxu0 0.0
    %5416 = vmatpush1.msra.mxu0 0.0
    %5417 = vmatprep.subr.mxu0 0.0
    %5418 = vmatpush1.msra.mxu0 0.0
    %5419 = vmatprep.subr.mxu0 0.0
    %5420 = vmatpush1.msra.mxu0 0.0
    %5421 = vmatprep.subr.mxu0 0.0
    %5422 = vmatpush1.msra.mxu0 0.0
    %5423 = vmatprep.subr.mxu0 0.0
    %5424 = vmatpush1.msra.mxu0 0.0
    %5425 = vmatprep.subr.mxu0 0.0
    %5426 = vmatpush1.msra.mxu0 0.0
    %5427 = vmatprep.subr.mxu0 0.0
    %5428 = vmatpush1.msra.mxu0 %v5277
    %5429 = vmatprep.subr.mxu0 0.0
    %5430 = vmatpush1.msra.mxu0 %v5272
    %5431 = vmatprep.subr.mxu0 0.0
    %5432 = vmatpush2.msra.mxu0 0.0
    %5433 = vmatprep.subr.mxu0 0.0
    %5434 = vmatpush2.msra.mxu0 0.0
    %5435 = vmatprep.subr.mxu0 0.0
    %5436 = vmatpush2.msra.mxu0 0.0
    %5437 = vmatprep.subr.mxu0 0.0
    %5438 = vmatpush2.msra.mxu0 0.0
    %5439 = vmatprep.subr.mxu0 0.0
    %5440 = vmatpush2.msra.mxu0 0.0
    %5441 = vmatprep.subr.mxu0 0.0
    %5442 = vmatpush2.msra.mxu0 0.0
    %5443 = vmatprep.subr.mxu0 0.0
    %5444 = vmatpush2.msra.mxu0 0.0
    %5445 = vmatprep.subr.mxu0 0.0
    %5446 = vmatpush2.msra.mxu0 0.0
    %5447 = vmatprep.subr.mxu0 0.0
    %5448 = vmatpush2.msra.mxu0 0.0
    %5449 = vmatprep.subr.mxu0 0.0
    %5450 = vmatpush2.msra.mxu0 0.0
    %5451 = vmatprep.subr.mxu0 0.0
    %5452 = vmatpush2.msra.mxu0 0.0
    %5453 = vmatprep.subr.mxu0 0.0
    %5454 = vmatpush2.msra.mxu0 0.0
    %5455 = vmatprep.subr.mxu0 0.0
    %5456 = vmatpush2.msra.mxu0 0.0
    %5457 = vmatprep.subr.mxu0 0.0
    %5458 = vmatpush2.msra.mxu0 0.0
    %5459 = vmatprep.subr.mxu0 0.0
    %5460 = vmatpush2.msra.mxu0 0.0
    %5461 = vmatprep.subr.mxu0 0.0
    %5462 = vmatpush2.msra.mxu0 0.0
    %5463 = vmatprep.mubr.f32.mxu0 0.0
    %5464 = vmatmul.mubr.f32.gmra.mxu0 %v5394
    %v5465 = vpop.f32.mrf.mxu0
    %v5466 = vadd.f32 0.0, %v5465
    %v5467 = vpop.f32.mrf.mxu0
    %5468 = vmatprep.mubr.f32.mxu0 0.0
    %5469 = vmatmul.mubr.f32.gmra.mxu0 %v5397
    %v5470 = vpop.f32.mrf.mxu0
    %v5471 = vadd.f32 0.0, %v5470
    %v5472 = vpop.f32.mrf.mxu0
    %5473 = vdwg.mxu0
    %s5474 = scalar_lea.vmem %s31, 16
    %v5475 = vld [vmem:[%s5474] sm:$0xf]
    %5476 = vrot.lane.b32.xlu0 %v5100, 124
    %v5477 = vpop.permute.xlu0 %5476
    %5478 = vrot.lane.b32.xlu0 %v5105, 124
    %v5479 = vpop.permute.xlu0 %5478
    %5480 = vrot.lane.b32.xlu0 %v5186, 124
    %v5481 = vpop.permute.xlu0 %5480
    %5482 = vrot.lane.b32.xlu0 %v5191, 124
    %v5483 = vpop.permute.xlu0 %5482
    %v5484 = vsel %vm3553, %v5477, 0
    %v5486 = vsel %vm3553, %v5479, 0
    %v5488 = vsel %vm3553, %v5481, 0
    %v5490 = vsel %vm3553, %v5483, 0
    %5492 = vmatprep.subr.mxu0 0.0
    %5493 = vmatpush1.xpose.msra.mxu0 0.0
    %5494 = vmatprep.subr.mxu0 0.0
    %5495 = vmatpush1.xpose.msra.mxu0 0.0
    %5496 = vmatprep.subr.mxu0 0.0
    %5497 = vmatpush1.xpose.msra.mxu0 0.0
    %5498 = vmatprep.subr.mxu0 0.0
    %5499 = vmatpush1.xpose.msra.mxu0 0.0
    %5500 = vmatprep.subr.mxu0 0.0
    %5501 = vmatpush1.xpose.msra.mxu0 0.0
    %5502 = vmatprep.subr.mxu0 0.0
    %5503 = vmatpush1.xpose.msra.mxu0 0.0
    %5504 = vmatprep.subr.mxu0 0.0
    %5505 = vmatpush1.xpose.msra.mxu0 0.0
    %5506 = vmatprep.subr.mxu0 0.0
    %5507 = vmatpush1.xpose.msra.mxu0 0.0
    %5508 = vmatprep.subr.mxu0 0.0
    %5509 = vmatpush1.xpose.msra.mxu0 0.0
    %5510 = vmatprep.subr.mxu0 0.0
    %5511 = vmatpush1.xpose.msra.mxu0 0.0
    %5512 = vmatprep.subr.mxu0 0.0
    %5513 = vmatpush1.xpose.msra.mxu0 0.0
    %5514 = vmatprep.subr.mxu0 0.0
    %5515 = vmatpush1.xpose.msra.mxu0 0.0
    %5516 = vmatprep.subr.mxu0 0.0
    %5517 = vmatpush1.xpose.msra.mxu0 0.0
    %5518 = vmatprep.subr.mxu0 0.0
    %5519 = vmatpush1.xpose.msra.mxu0 0.0
    %5520 = vmatprep.subr.mxu0 0.0
    %5521 = vmatpush1.xpose.msra.mxu0 %v5490
    %5522 = vmatprep.subr.mxu0 0.0
    %5523 = vmatpush1.xpose.msra.mxu0 %v5488
    %5524 = vmatprep.subr.mxu0 0.0
    %5525 = vmatpush2.xpose.msra.mxu0 0.0
    %5526 = vmatprep.subr.mxu0 0.0
    %5527 = vmatpush2.xpose.msra.mxu0 0.0
    %5528 = vmatprep.subr.mxu0 0.0
    %5529 = vmatpush2.xpose.msra.mxu0 0.0
    %5530 = vmatprep.subr.mxu0 0.0
    %5531 = vmatpush2.xpose.msra.mxu0 0.0
    %5532 = vmatprep.subr.mxu0 0.0
    %5533 = vmatpush2.xpose.msra.mxu0 0.0
    %5534 = vmatprep.subr.mxu0 0.0
    %5535 = vmatpush2.xpose.msra.mxu0 0.0
    %5536 = vmatprep.subr.mxu0 0.0
    %5537 = vmatpush2.xpose.msra.mxu0 0.0
    %5538 = vmatprep.subr.mxu0 0.0
    %5539 = vmatpush2.xpose.msra.mxu0 0.0
    %5540 = vmatprep.subr.mxu0 0.0
    %5541 = vmatpush2.xpose.msra.mxu0 0.0
    %5542 = vmatprep.subr.mxu0 0.0
    %5543 = vmatpush2.xpose.msra.mxu0 0.0
    %5544 = vmatprep.subr.mxu0 0.0
    %5545 = vmatpush2.xpose.msra.mxu0 0.0
    %5546 = vmatprep.subr.mxu0 0.0
    %5547 = vmatpush2.xpose.msra.mxu0 0.0
    %5548 = vmatprep.subr.mxu0 0.0
    %5549 = vmatpush2.xpose.msra.mxu0 0.0
    %5550 = vmatprep.subr.mxu0 0.0
    %5551 = vmatpush2.xpose.msra.mxu0 0.0
    %5552 = vmatprep.subr.mxu0 0.0
    %5553 = vmatpush2.xpose.msra.mxu0 0.0
    %5554 = vmatprep.subr.mxu0 0.0
    %5555 = vmatpush2.xpose.msra.mxu0 0.0
    %5556 = vmatprep.mubr.f32.mxu0 0.0
    %5557 = vmatmul.mubr.f32.gmra.mxu0 %v5484
    %v5558 = vpop.f32.mrf.mxu0
    %v5559 = vadd.f32 0.0, %v5558
    %v5560 = vpop.f32.mrf.mxu0
    %5561 = vmatprep.mubr.f32.mxu0 0.0
    %5562 = vmatmul.mubr.f32.gmra.mxu0 %v5486
    %v5563 = vpop.f32.mrf.mxu0
    %v5564 = vadd.f32 0.0, %v5563
    %v5565 = vpop.f32.mrf.mxu0
    %5566 = vdwg.mxu0
    %v5567 = vmul.f32 %v5559, 0.25
    %v5568 = vmul.f32 %v5564, 0.25
    %v5569 = vadd.f32 %v5567, %v3292
    %v5570 = vadd.f32 %v5568, %v3293
    %v5571 = vsel %vm3303, %v5569, -inf
    %5572 = vmax.xlane.f32.xlu0 %v5571
    %v5573 = vpop.xlane.xlu0 %5572
    %v5574 = vsel %vm3303, %v5570, -inf
    %5575 = vmax.xlane.f32.xlu0 %v5574
    %v5576 = vpop.xlane.xlu0 %5575
    %v5577 = vsub.f32 %v5569, %v5573
    %v5578 = vsub.f32 %v5570, %v5576
    %v5579 = vmul.f32 %v5577, 1.442695
    %v5580 = vpow.pop %v5579
    %v5581 = vmul.f32 %v5578, 1.442695
    %v5582 = vpow.pop %v5581
    %v5583 = vsel %vm3303, %v5580, 0.0
    %5584 = vadd.xlane.f32.xlu0 %v5583
    %v5585 = vpop.xlane.xlu0 %5584
    %v5586 = vsel %vm3303, %v5582, 0.0
    %5587 = vadd.xlane.f32.xlu0 %v5586
    %v5588 = vpop.xlane.xlu0 %5587
    %v5589 = vrcp.pop %v5585
    %v5590 = vrcp.pop %v5588
    %v5591 = vmul.f32 %v5580, %v5589
    %v5592 = vmul.f32 %v5582, %v5590
    %5595 = vrot.lane.b32.xlu0 %v5272, 124
    %v5596 = vpop.permute.xlu0 %5595
    %5597 = vrot.lane.b32.xlu0 %v5277, 124
    %v5598 = vpop.permute.xlu0 %5597
    %v5602 = vsel %vm3303, %v5591, 0
    %v5605 = vsel %vm3303, %v5592, 0
    %5607 = vmatprep.subr.mxu0 0.0
    %5608 = vmatpush1.msra.mxu0 0.0
    %5609 = vmatprep.subr.mxu0 0.0
    %5610 = vmatpush1.msra.mxu0 0.0
    %5611 = vmatprep.subr.mxu0 0.0
    %5612 = vmatpush1.msra.mxu0 0.0
    %5613 = vmatprep.subr.mxu0 0.0
    %5614 = vmatpush1.msra.mxu0 0.0
    %5615 = vmatprep.subr.mxu0 0.0
    %5616 = vmatpush1.msra.mxu0 0.0
    %5617 = vmatprep.subr.mxu0 0.0
    %5618 = vmatpush1.msra.mxu0 0.0
    %5619 = vmatprep.subr.mxu0 0.0
    %5620 = vmatpush1.msra.mxu0 0.0
    %5621 = vmatprep.subr.mxu0 0.0
    %5622 = vmatpush1.msra.mxu0 0.0
    %5623 = vmatprep.subr.mxu0 0.0
    %5624 = vmatpush1.msra.mxu0 0.0
    %5625 = vmatprep.subr.mxu0 0.0
    %5626 = vmatpush1.msra.mxu0 0.0
    %5627 = vmatprep.subr.mxu0 0.0
    %5628 = vmatpush1.msra.mxu0 0.0
    %5629 = vmatprep.subr.mxu0 0.0
    %5630 = vmatpush1.msra.mxu0 0.0
    %5631 = vmatprep.subr.mxu0 0.0
    %5632 = vmatpush1.msra.mxu0 0.0
    %5633 = vmatprep.subr.mxu0 0.0
    %5634 = vmatpush1.msra.mxu0 0.0
    %5635 = vmatprep.subr.mxu0 0.0
    %5636 = vmatpush1.msra.mxu0 %v5598
    %5637 = vmatprep.subr.mxu0 0.0
    %5638 = vmatpush1.msra.mxu0 %v5596
    %5639 = vmatprep.subr.mxu0 0.0
    %5640 = vmatpush2.msra.mxu0 0.0
    %5641 = vmatprep.subr.mxu0 0.0
    %5642 = vmatpush2.msra.mxu0 0.0
    %5643 = vmatprep.subr.mxu0 0.0
    %5644 = vmatpush2.msra.mxu0 0.0
    %5645 = vmatprep.subr.mxu0 0.0
    %5646 = vmatpush2.msra.mxu0 0.0
    %5647 = vmatprep.subr.mxu0 0.0
    %5648 = vmatpush2.msra.mxu0 0.0
    %5649 = vmatprep.subr.mxu0 0.0
    %5650 = vmatpush2.msra.mxu0 0.0
    %5651 = vmatprep.subr.mxu0 0.0
    %5652 = vmatpush2.msra.mxu0 0.0
    %5653 = vmatprep.subr.mxu0 0.0
    %5654 = vmatpush2.msra.mxu0 0.0
    %5655 = vmatprep.subr.mxu0 0.0
    %5656 = vmatpush2.msra.mxu0 0.0
    %5657 = vmatprep.subr.mxu0 0.0
    %5658 = vmatpush2.msra.mxu0 0.0
    %5659 = vmatprep.subr.mxu0 0.0
    %5660 = vmatpush2.msra.mxu0 0.0
    %5661 = vmatprep.subr.mxu0 0.0
    %5662 = vmatpush2.msra.mxu0 0.0
    %5663 = vmatprep.subr.mxu0 0.0
    %5664 = vmatpush2.msra.mxu0 0.0
    %5665 = vmatprep.subr.mxu0 0.0
    %5666 = vmatpush2.msra.mxu0 0.0
    %5667 = vmatprep.subr.mxu0 0.0
    %5668 = vmatpush2.msra.mxu0 0.0
    %5669 = vmatprep.subr.mxu0 0.0
    %5670 = vmatpush2.msra.mxu0 0.0
    %5671 = vmatprep.mubr.f32.mxu0 0.0
    %5672 = vmatmul.mubr.f32.gmra.mxu0 %v5602
    %v5673 = vpop.f32.mrf.mxu0
    %v5674 = vadd.f32 0.0, %v5673
    %v5675 = vpop.f32.mrf.mxu0
    %5676 = vmatprep.mubr.f32.mxu0 0.0
    %5677 = vmatmul.mubr.f32.gmra.mxu0 %v5605
    %v5678 = vpop.f32.mrf.mxu0
    %v5679 = vadd.f32 0.0, %v5678
    %v5680 = vpop.f32.mrf.mxu0
    %5681 = vdwg.mxu0
    %s5682 = scalar_lea.vmem %s31, 20
    %v5683 = vld [vmem:[%s5682] sm:$0xf]
    %v5685 = vsel %vm3553, %v5674, 0
    %v5688 = vsel %vm3553, %v5679, 0
    %v5691 = vsel %vm3963, %v5683, 0
    %5693 = vmatprep.subr.mxu0 0.0
    %5694 = vmatpush1.msra.mxu0 0.0
    %5695 = vmatprep.subr.mxu0 0.0
    %5696 = vmatpush1.msra.mxu0 0.0
    %5697 = vmatprep.subr.mxu0 0.0
    %5698 = vmatpush1.msra.mxu0 0.0
    %5699 = vmatprep.subr.mxu0 0.0
    %5700 = vmatpush1.msra.mxu0 0.0
    %5701 = vmatprep.subr.mxu0 0.0
    %5702 = vmatpush1.msra.mxu0 0.0
    %5703 = vmatprep.subr.mxu0 0.0
    %5704 = vmatpush1.msra.mxu0 0.0
    %5705 = vmatprep.subr.mxu0 0.0
    %5706 = vmatpush1.msra.mxu0 0.0
    %5707 = vmatprep.subr.mxu0 0.0
    %5708 = vmatpush1.msra.mxu0 0.0
    %5709 = vmatprep.subr.mxu0 0.0
    %5710 = vmatpush1.msra.mxu0 0.0
    %5711 = vmatprep.subr.mxu0 0.0
    %5712 = vmatpush1.msra.mxu0 0.0
    %5713 = vmatprep.subr.mxu0 0.0
    %5714 = vmatpush1.msra.mxu0 0.0
    %5715 = vmatprep.subr.mxu0 0.0
    %5716 = vmatpush1.msra.mxu0 0.0
    %5717 = vmatprep.subr.mxu0 0.0
    %5718 = vmatpush1.msra.mxu0 0.0
    %5719 = vmatprep.subr.mxu0 0.0
    %5720 = vmatpush1.msra.mxu0 0.0
    %5721 = vmatprep.subr.mxu0 0.0
    %5722 = vmatpush1.msra.mxu0 0.0
    %5723 = vmatprep.subr.mxu0 0.0
    %5724 = vmatpush1.msra.mxu0 %v5691
    %5725 = vmatprep.subr.mxu0 0.0
    %5726 = vmatpush2.msra.mxu0 0.0
    %5727 = vmatprep.subr.mxu0 0.0
    %5728 = vmatpush2.msra.mxu0 0.0
    %5729 = vmatprep.subr.mxu0 0.0
    %5730 = vmatpush2.msra.mxu0 0.0
    %5731 = vmatprep.subr.mxu0 0.0
    %5732 = vmatpush2.msra.mxu0 0.0
    %5733 = vmatprep.subr.mxu0 0.0
    %5734 = vmatpush2.msra.mxu0 0.0
    %5735 = vmatprep.subr.mxu0 0.0
    %5736 = vmatpush2.msra.mxu0 0.0
    %5737 = vmatprep.subr.mxu0 0.0
    %5738 = vmatpush2.msra.mxu0 0.0
    %5739 = vmatprep.subr.mxu0 0.0
    %5740 = vmatpush2.msra.mxu0 0.0
    %5741 = vmatprep.subr.mxu0 0.0
    %5742 = vmatpush2.msra.mxu0 0.0
    %5743 = vmatprep.subr.mxu0 0.0
    %5744 = vmatpush2.msra.mxu0 0.0
    %5745 = vmatprep.subr.mxu0 0.0
    %5746 = vmatpush2.msra.mxu0 0.0
    %5747 = vmatprep.subr.mxu0 0.0
    %5748 = vmatpush2.msra.mxu0 0.0
    %5749 = vmatprep.subr.mxu0 0.0
    %5750 = vmatpush2.msra.mxu0 0.0
    %5751 = vmatprep.subr.mxu0 0.0
    %5752 = vmatpush2.msra.mxu0 0.0
    %5753 = vmatprep.subr.mxu0 0.0
    %5754 = vmatpush2.msra.mxu0 0.0
    %5755 = vmatprep.subr.mxu0 0.0
    %5756 = vmatpush2.msra.mxu0 0.0
    %5757 = vmatprep.mubr.f32.mxu0 0.0
    %5758 = vmatmul.mubr.f32.gmra.mxu0 %v5685
    %v5759 = vpop.f32.mrf.mxu0
    %v5760 = vadd.f32 0.0, %v5759
    %v5761 = vpop.f32.mrf.mxu0
    %5762 = vmatprep.mubr.f32.mxu0 0.0
    %5763 = vmatmul.mubr.f32.gmra.mxu0 %v5688
    %v5764 = vpop.f32.mrf.mxu0
    %v5765 = vadd.f32 0.0, %v5764
    %v5766 = vpop.f32.mrf.mxu0
    %5767 = vdwg.mxu0
    %v5769 = vsel %vm3553, %v5466, 0
    %v5772 = vsel %vm3553, %v5471, 0
    %v5775 = vsel %vm3963, %v5475, 0
    %5777 = vmatprep.subr.mxu0 0.0
    %5778 = vmatpush1.msra.mxu0 0.0
    %5779 = vmatprep.subr.mxu0 0.0
    %5780 = vmatpush1.msra.mxu0 0.0
    %5781 = vmatprep.subr.mxu0 0.0
    %5782 = vmatpush1.msra.mxu0 0.0
    %5783 = vmatprep.subr.mxu0 0.0
    %5784 = vmatpush1.msra.mxu0 0.0
    %5785 = vmatprep.subr.mxu0 0.0
    %5786 = vmatpush1.msra.mxu0 0.0
    %5787 = vmatprep.subr.mxu0 0.0
    %5788 = vmatpush1.msra.mxu0 0.0
    %5789 = vmatprep.subr.mxu0 0.0
    %5790 = vmatpush1.msra.mxu0 0.0
    %5791 = vmatprep.subr.mxu0 0.0
    %5792 = vmatpush1.msra.mxu0 0.0
    %5793 = vmatprep.subr.mxu0 0.0
    %5794 = vmatpush1.msra.mxu0 0.0
    %5795 = vmatprep.subr.mxu0 0.0
    %5796 = vmatpush1.msra.mxu0 0.0
    %5797 = vmatprep.subr.mxu0 0.0
    %5798 = vmatpush1.msra.mxu0 0.0
    %5799 = vmatprep.subr.mxu0 0.0
    %5800 = vmatpush1.msra.mxu0 0.0
    %5801 = vmatprep.subr.mxu0 0.0
    %5802 = vmatpush1.msra.mxu0 0.0
    %5803 = vmatprep.subr.mxu0 0.0
    %5804 = vmatpush1.msra.mxu0 0.0
    %5805 = vmatprep.subr.mxu0 0.0
    %5806 = vmatpush1.msra.mxu0 0.0
    %5807 = vmatprep.subr.mxu0 0.0
    %5808 = vmatpush1.msra.mxu0 %v5775
    %5809 = vmatprep.subr.mxu0 0.0
    %5810 = vmatpush2.msra.mxu0 0.0
    %5811 = vmatprep.subr.mxu0 0.0
    %5812 = vmatpush2.msra.mxu0 0.0
    %5813 = vmatprep.subr.mxu0 0.0
    %5814 = vmatpush2.msra.mxu0 0.0
    %5815 = vmatprep.subr.mxu0 0.0
    %5816 = vmatpush2.msra.mxu0 0.0
    %5817 = vmatprep.subr.mxu0 0.0
    %5818 = vmatpush2.msra.mxu0 0.0
    %5819 = vmatprep.subr.mxu0 0.0
    %5820 = vmatpush2.msra.mxu0 0.0
    %5821 = vmatprep.subr.mxu0 0.0
    %5822 = vmatpush2.msra.mxu0 0.0
    %5823 = vmatprep.subr.mxu0 0.0
    %5824 = vmatpush2.msra.mxu0 0.0
    %5825 = vmatprep.subr.mxu0 0.0
    %5826 = vmatpush2.msra.mxu0 0.0
    %5827 = vmatprep.subr.mxu0 0.0
    %5828 = vmatpush2.msra.mxu0 0.0
    %5829 = vmatprep.subr.mxu0 0.0
    %5830 = vmatpush2.msra.mxu0 0.0
    %5831 = vmatprep.subr.mxu0 0.0
    %5832 = vmatpush2.msra.mxu0 0.0
    %5833 = vmatprep.subr.mxu0 0.0
    %5834 = vmatpush2.msra.mxu0 0.0
    %5835 = vmatprep.subr.mxu0 0.0
    %5836 = vmatpush2.msra.mxu0 0.0
    %5837 = vmatprep.subr.mxu0 0.0
    %5838 = vmatpush2.msra.mxu0 0.0
    %5839 = vmatprep.subr.mxu0 0.0
    %5840 = vmatpush2.msra.mxu0 0.0
    %5841 = vmatprep.mubr.f32.mxu0 0.0
    %5842 = vmatmul.mubr.f32.gmra.mxu0 %v5769
    %v5843 = vpop.f32.mrf.mxu0
    %v5844 = vadd.f32 %v5760, %v5843
    %v5845 = vpop.f32.mrf.mxu0
    %5846 = vmatprep.mubr.f32.mxu0 0.0
    %5847 = vmatmul.mubr.f32.gmra.mxu0 %v5772
    %v5848 = vpop.f32.mrf.mxu0
    %v5849 = vadd.f32 %v5765, %v5848
    %v5850 = vpop.f32.mrf.mxu0
    %5851 = vdwg.mxu0
    %5852 = vrot.lane.b32.xlu0 %v5100, 120
    %v5853 = vpop.permute.xlu0 %5852
    %5854 = vrot.lane.b32.xlu0 %v5105, 120
    %v5855 = vpop.permute.xlu0 %5854
    %5856 = vrot.lane.b32.xlu0 %v5186, 120
    %v5857 = vpop.permute.xlu0 %5856
    %5858 = vrot.lane.b32.xlu0 %v5191, 120
    %v5859 = vpop.permute.xlu0 %5858
    %v5860 = vsel %vm3553, %v5853, 0
    %v5862 = vsel %vm3553, %v5855, 0
    %v5864 = vsel %vm3553, %v5857, 0
    %v5866 = vsel %vm3553, %v5859, 0
    %5868 = vmatprep.subr.mxu0 0.0
    %5869 = vmatpush1.xpose.msra.mxu0 0.0
    %5870 = vmatprep.subr.mxu0 0.0
    %5871 = vmatpush1.xpose.msra.mxu0 0.0
    %5872 = vmatprep.subr.mxu0 0.0
    %5873 = vmatpush1.xpose.msra.mxu0 0.0
    %5874 = vmatprep.subr.mxu0 0.0
    %5875 = vmatpush1.xpose.msra.mxu0 0.0
    %5876 = vmatprep.subr.mxu0 0.0
    %5877 = vmatpush1.xpose.msra.mxu0 0.0
    %5878 = vmatprep.subr.mxu0 0.0
    %5879 = vmatpush1.xpose.msra.mxu0 0.0
    %5880 = vmatprep.subr.mxu0 0.0
    %5881 = vmatpush1.xpose.msra.mxu0 0.0
    %5882 = vmatprep.subr.mxu0 0.0
    %5883 = vmatpush1.xpose.msra.mxu0 0.0
    %5884 = vmatprep.subr.mxu0 0.0
    %5885 = vmatpush1.xpose.msra.mxu0 0.0
    %5886 = vmatprep.subr.mxu0 0.0
    %5887 = vmatpush1.xpose.msra.mxu0 0.0
    %5888 = vmatprep.subr.mxu0 0.0
    %5889 = vmatpush1.xpose.msra.mxu0 0.0
    %5890 = vmatprep.subr.mxu0 0.0
    %5891 = vmatpush1.xpose.msra.mxu0 0.0
    %5892 = vmatprep.subr.mxu0 0.0
    %5893 = vmatpush1.xpose.msra.mxu0 0.0
    %5894 = vmatprep.subr.mxu0 0.0
    %5895 = vmatpush1.xpose.msra.mxu0 0.0
    %5896 = vmatprep.subr.mxu0 0.0
    %5897 = vmatpush1.xpose.msra.mxu0 %v5866
    %5898 = vmatprep.subr.mxu0 0.0
    %5899 = vmatpush1.xpose.msra.mxu0 %v5864
    %5900 = vmatprep.subr.mxu0 0.0
    %5901 = vmatpush2.xpose.msra.mxu0 0.0
    %5902 = vmatprep.subr.mxu0 0.0
    %5903 = vmatpush2.xpose.msra.mxu0 0.0
    %5904 = vmatprep.subr.mxu0 0.0
    %5905 = vmatpush2.xpose.msra.mxu0 0.0
    %5906 = vmatprep.subr.mxu0 0.0
    %5907 = vmatpush2.xpose.msra.mxu0 0.0
    %5908 = vmatprep.subr.mxu0 0.0
    %5909 = vmatpush2.xpose.msra.mxu0 0.0
    %5910 = vmatprep.subr.mxu0 0.0
    %5911 = vmatpush2.xpose.msra.mxu0 0.0
    %5912 = vmatprep.subr.mxu0 0.0
    %5913 = vmatpush2.xpose.msra.mxu0 0.0
    %5914 = vmatprep.subr.mxu0 0.0
    %5915 = vmatpush2.xpose.msra.mxu0 0.0
    %5916 = vmatprep.subr.mxu0 0.0
    %5917 = vmatpush2.xpose.msra.mxu0 0.0
    %5918 = vmatprep.subr.mxu0 0.0
    %5919 = vmatpush2.xpose.msra.mxu0 0.0
    %5920 = vmatprep.subr.mxu0 0.0
    %5921 = vmatpush2.xpose.msra.mxu0 0.0
    %5922 = vmatprep.subr.mxu0 0.0
    %5923 = vmatpush2.xpose.msra.mxu0 0.0
    %5924 = vmatprep.subr.mxu0 0.0
    %5925 = vmatpush2.xpose.msra.mxu0 0.0
    %5926 = vmatprep.subr.mxu0 0.0
    %5927 = vmatpush2.xpose.msra.mxu0 0.0
    %5928 = vmatprep.subr.mxu0 0.0
    %5929 = vmatpush2.xpose.msra.mxu0 0.0
    %5930 = vmatprep.subr.mxu0 0.0
    %5931 = vmatpush2.xpose.msra.mxu0 0.0
    %5932 = vmatprep.mubr.f32.mxu0 0.0
    %5933 = vmatmul.mubr.f32.gmra.mxu0 %v5860
    %v5934 = vpop.f32.mrf.mxu0
    %v5935 = vadd.f32 0.0, %v5934
    %v5936 = vpop.f32.mrf.mxu0
    %5937 = vmatprep.mubr.f32.mxu0 0.0
    %5938 = vmatmul.mubr.f32.gmra.mxu0 %v5862
    %v5939 = vpop.f32.mrf.mxu0
    %v5940 = vadd.f32 0.0, %v5939
    %v5941 = vpop.f32.mrf.mxu0
    %5942 = vdwg.mxu0
    %v5943 = vmul.f32 %v5935, 0.25
    %v5944 = vmul.f32 %v5940, 0.25
    %v5945 = vadd.f32 %v5943, %v3292
    %v5946 = vadd.f32 %v5944, %v3293
    %v5947 = vsel %vm3303, %v5945, -inf
    %5948 = vmax.xlane.f32.xlu0 %v5947
    %v5949 = vpop.xlane.xlu0 %5948
    %v5950 = vsel %vm3303, %v5946, -inf
    %5951 = vmax.xlane.f32.xlu0 %v5950
    %v5952 = vpop.xlane.xlu0 %5951
    %v5953 = vsub.f32 %v5945, %v5949
    %v5954 = vsub.f32 %v5946, %v5952
    %v5955 = vmul.f32 %v5953, 1.442695
    %v5956 = vpow.pop %v5955
    %v5957 = vmul.f32 %v5954, 1.442695
    %v5958 = vpow.pop %v5957
    %v5959 = vsel %vm3303, %v5956, 0.0
    %5960 = vadd.xlane.f32.xlu0 %v5959
    %v5961 = vpop.xlane.xlu0 %5960
    %v5962 = vsel %vm3303, %v5958, 0.0
    %5963 = vadd.xlane.f32.xlu0 %v5962
    %v5964 = vpop.xlane.xlu0 %5963
    %v5965 = vrcp.pop %v5961
    %v5966 = vrcp.pop %v5964
    %v5967 = vmul.f32 %v5956, %v5965
    %v5968 = vmul.f32 %v5958, %v5966
    %5969 = vrot.lane.b32.xlu0 %v5272, 120
    %v5970 = vpop.permute.xlu0 %5969
    %5971 = vrot.lane.b32.xlu0 %v5277, 120
    %v5972 = vpop.permute.xlu0 %5971
    %v5976 = vsel %vm3303, %v5967, 0
    %v5979 = vsel %vm3303, %v5968, 0
    %5981 = vmatprep.subr.mxu0 0.0
    %5982 = vmatpush1.msra.mxu0 0.0
    %5983 = vmatprep.subr.mxu0 0.0
    %5984 = vmatpush1.msra.mxu0 0.0
    %5985 = vmatprep.subr.mxu0 0.0
    %5986 = vmatpush1.msra.mxu0 0.0
    %5987 = vmatprep.subr.mxu0 0.0
    %5988 = vmatpush1.msra.mxu0 0.0
    %5989 = vmatprep.subr.mxu0 0.0
    %5990 = vmatpush1.msra.mxu0 0.0
    %5991 = vmatprep.subr.mxu0 0.0
    %5992 = vmatpush1.msra.mxu0 0.0
    %5993 = vmatprep.subr.mxu0 0.0
    %5994 = vmatpush1.msra.mxu0 0.0
    %5995 = vmatprep.subr.mxu0 0.0
    %5996 = vmatpush1.msra.mxu0 0.0
    %5997 = vmatprep.subr.mxu0 0.0
    %5998 = vmatpush1.msra.mxu0 0.0
    %5999 = vmatprep.subr.mxu0 0.0
    %6000 = vmatpush1.msra.mxu0 0.0
    %6001 = vmatprep.subr.mxu0 0.0
    %6002 = vmatpush1.msra.mxu0 0.0
    %6003 = vmatprep.subr.mxu0 0.0
    %6004 = vmatpush1.msra.mxu0 0.0
    %6005 = vmatprep.subr.mxu0 0.0
    %6006 = vmatpush1.msra.mxu0 0.0
    %6007 = vmatprep.subr.mxu0 0.0
    %6008 = vmatpush1.msra.mxu0 0.0
    %6009 = vmatprep.subr.mxu0 0.0
    %6010 = vmatpush1.msra.mxu0 %v5972
    %6011 = vmatprep.subr.mxu0 0.0
    %6012 = vmatpush1.msra.mxu0 %v5970
    %6013 = vmatprep.subr.mxu0 0.0
    %6014 = vmatpush2.msra.mxu0 0.0
    %6015 = vmatprep.subr.mxu0 0.0
    %6016 = vmatpush2.msra.mxu0 0.0
    %6017 = vmatprep.subr.mxu0 0.0
    %6018 = vmatpush2.msra.mxu0 0.0
    %6019 = vmatprep.subr.mxu0 0.0
    %6020 = vmatpush2.msra.mxu0 0.0
    %6021 = vmatprep.subr.mxu0 0.0
    %6022 = vmatpush2.msra.mxu0 0.0
    %6023 = vmatprep.subr.mxu0 0.0
    %6024 = vmatpush2.msra.mxu0 0.0
    %6025 = vmatprep.subr.mxu0 0.0
    %6026 = vmatpush2.msra.mxu0 0.0
    %6027 = vmatprep.subr.mxu0 0.0
    %6028 = vmatpush2.msra.mxu0 0.0
    %6029 = vmatprep.subr.mxu0 0.0
    %6030 = vmatpush2.msra.mxu0 0.0
    %6031 = vmatprep.subr.mxu0 0.0
    %6032 = vmatpush2.msra.mxu0 0.0
    %6033 = vmatprep.subr.mxu0 0.0
    %6034 = vmatpush2.msra.mxu0 0.0
    %6035 = vmatprep.subr.mxu0 0.0
    %6036 = vmatpush2.msra.mxu0 0.0
    %6037 = vmatprep.subr.mxu0 0.0
    %6038 = vmatpush2.msra.mxu0 0.0
    %6039 = vmatprep.subr.mxu0 0.0
    %6040 = vmatpush2.msra.mxu0 0.0
    %6041 = vmatprep.subr.mxu0 0.0
    %6042 = vmatpush2.msra.mxu0 0.0
    %6043 = vmatprep.subr.mxu0 0.0
    %6044 = vmatpush2.msra.mxu0 0.0
    %6045 = vmatprep.mubr.f32.mxu0 0.0
    %6046 = vmatmul.mubr.f32.gmra.mxu0 %v5976
    %v6047 = vpop.f32.mrf.mxu0
    %v6048 = vadd.f32 0.0, %v6047
    %v6049 = vpop.f32.mrf.mxu0
    %6050 = vmatprep.mubr.f32.mxu0 0.0
    %6051 = vmatmul.mubr.f32.gmra.mxu0 %v5979
    %v6052 = vpop.f32.mrf.mxu0
    %v6053 = vadd.f32 0.0, %v6052
    %v6054 = vpop.f32.mrf.mxu0
    %6055 = vdwg.mxu0
    %s6056 = scalar_lea.vmem %s31, 24
    %v6057 = vld [vmem:[%s6056] sm:$0xf]
    %v6059 = vsel %vm3553, %v6048, 0
    %v6062 = vsel %vm3553, %v6053, 0
    %v6065 = vsel %vm3963, %v6057, 0
    %6067 = vmatprep.subr.mxu0 0.0
    %6068 = vmatpush1.msra.mxu0 0.0
    %6069 = vmatprep.subr.mxu0 0.0
    %6070 = vmatpush1.msra.mxu0 0.0
    %6071 = vmatprep.subr.mxu0 0.0
    %6072 = vmatpush1.msra.mxu0 0.0
    %6073 = vmatprep.subr.mxu0 0.0
    %6074 = vmatpush1.msra.mxu0 0.0
    %6075 = vmatprep.subr.mxu0 0.0
    %6076 = vmatpush1.msra.mxu0 0.0
    %6077 = vmatprep.subr.mxu0 0.0
    %6078 = vmatpush1.msra.mxu0 0.0
    %6079 = vmatprep.subr.mxu0 0.0
    %6080 = vmatpush1.msra.mxu0 0.0
    %6081 = vmatprep.subr.mxu0 0.0
    %6082 = vmatpush1.msra.mxu0 0.0
    %6083 = vmatprep.subr.mxu0 0.0
    %6084 = vmatpush1.msra.mxu0 0.0
    %6085 = vmatprep.subr.mxu0 0.0
    %6086 = vmatpush1.msra.mxu0 0.0
    %6087 = vmatprep.subr.mxu0 0.0
    %6088 = vmatpush1.msra.mxu0 0.0
    %6089 = vmatprep.subr.mxu0 0.0
    %6090 = vmatpush1.msra.mxu0 0.0
    %6091 = vmatprep.subr.mxu0 0.0
    %6092 = vmatpush1.msra.mxu0 0.0
    %6093 = vmatprep.subr.mxu0 0.0
    %6094 = vmatpush1.msra.mxu0 0.0
    %6095 = vmatprep.subr.mxu0 0.0
    %6096 = vmatpush1.msra.mxu0 0.0
    %6097 = vmatprep.subr.mxu0 0.0
    %6098 = vmatpush1.msra.mxu0 %v6065
    %6099 = vmatprep.subr.mxu0 0.0
    %6100 = vmatpush2.msra.mxu0 0.0
    %6101 = vmatprep.subr.mxu0 0.0
    %6102 = vmatpush2.msra.mxu0 0.0
    %6103 = vmatprep.subr.mxu0 0.0
    %6104 = vmatpush2.msra.mxu0 0.0
    %6105 = vmatprep.subr.mxu0 0.0
    %6106 = vmatpush2.msra.mxu0 0.0
    %6107 = vmatprep.subr.mxu0 0.0
    %6108 = vmatpush2.msra.mxu0 0.0
    %6109 = vmatprep.subr.mxu0 0.0
    %6110 = vmatpush2.msra.mxu0 0.0
    %6111 = vmatprep.subr.mxu0 0.0
    %6112 = vmatpush2.msra.mxu0 0.0
    %6113 = vmatprep.subr.mxu0 0.0
    %6114 = vmatpush2.msra.mxu0 0.0
    %6115 = vmatprep.subr.mxu0 0.0
    %6116 = vmatpush2.msra.mxu0 0.0
    %6117 = vmatprep.subr.mxu0 0.0
    %6118 = vmatpush2.msra.mxu0 0.0
    %6119 = vmatprep.subr.mxu0 0.0
    %6120 = vmatpush2.msra.mxu0 0.0
    %6121 = vmatprep.subr.mxu0 0.0
    %6122 = vmatpush2.msra.mxu0 0.0
    %6123 = vmatprep.subr.mxu0 0.0
    %6124 = vmatpush2.msra.mxu0 0.0
    %6125 = vmatprep.subr.mxu0 0.0
    %6126 = vmatpush2.msra.mxu0 0.0
    %6127 = vmatprep.subr.mxu0 0.0
    %6128 = vmatpush2.msra.mxu0 0.0
    %6129 = vmatprep.subr.mxu0 0.0
    %6130 = vmatpush2.msra.mxu0 0.0
    %6131 = vmatprep.mubr.f32.mxu0 0.0
    %6132 = vmatmul.mubr.f32.gmra.mxu0 %v6059
    %v6133 = vpop.f32.mrf.mxu0
    %v6134 = vadd.f32 0.0, %v6133
    %v6135 = vpop.f32.mrf.mxu0
    %6136 = vmatprep.mubr.f32.mxu0 0.0
    %6137 = vmatmul.mubr.f32.gmra.mxu0 %v6062
    %v6138 = vpop.f32.mrf.mxu0
    %v6139 = vadd.f32 0.0, %v6138
    %v6140 = vpop.f32.mrf.mxu0
    %6141 = vdwg.mxu0
    %v6142 = vadd.f32 %v5844, %v6134
    %v6143 = vadd.f32 %v5849, %v6139
    %6144 = vrot.lane.b32.xlu0 %v5100, 116
    %v6145 = vpop.permute.xlu0 %6144
    %6146 = vrot.lane.b32.xlu0 %v5105, 116
    %v6147 = vpop.permute.xlu0 %6146
    %6148 = vrot.lane.b32.xlu0 %v5186, 116
    %v6149 = vpop.permute.xlu0 %6148
    %6150 = vrot.lane.b32.xlu0 %v5191, 116
    %v6151 = vpop.permute.xlu0 %6150
    %v6152 = vsel %vm3553, %v6145, 0
    %v6154 = vsel %vm3553, %v6147, 0
    %v6156 = vsel %vm3553, %v6149, 0
    %v6158 = vsel %vm3553, %v6151, 0
    %6160 = vmatprep.subr.mxu0 0.0
    %6161 = vmatpush1.xpose.msra.mxu0 0.0
    %6162 = vmatprep.subr.mxu0 0.0
    %6163 = vmatpush1.xpose.msra.mxu0 0.0
    %6164 = vmatprep.subr.mxu0 0.0
    %6165 = vmatpush1.xpose.msra.mxu0 0.0
    %6166 = vmatprep.subr.mxu0 0.0
    %6167 = vmatpush1.xpose.msra.mxu0 0.0
    %6168 = vmatprep.subr.mxu0 0.0
    %6169 = vmatpush1.xpose.msra.mxu0 0.0
    %6170 = vmatprep.subr.mxu0 0.0
    %6171 = vmatpush1.xpose.msra.mxu0 0.0
    %6172 = vmatprep.subr.mxu0 0.0
    %6173 = vmatpush1.xpose.msra.mxu0 0.0
    %6174 = vmatprep.subr.mxu0 0.0
    %6175 = vmatpush1.xpose.msra.mxu0 0.0
    %6176 = vmatprep.subr.mxu0 0.0
    %6177 = vmatpush1.xpose.msra.mxu0 0.0
    %6178 = vmatprep.subr.mxu0 0.0
    %6179 = vmatpush1.xpose.msra.mxu0 0.0
    %6180 = vmatprep.subr.mxu0 0.0
    %6181 = vmatpush1.xpose.msra.mxu0 0.0
    %6182 = vmatprep.subr.mxu0 0.0
    %6183 = vmatpush1.xpose.msra.mxu0 0.0
    %6184 = vmatprep.subr.mxu0 0.0
    %6185 = vmatpush1.xpose.msra.mxu0 0.0
    %6186 = vmatprep.subr.mxu0 0.0
    %6187 = vmatpush1.xpose.msra.mxu0 0.0
    %6188 = vmatprep.subr.mxu0 0.0
    %6189 = vmatpush1.xpose.msra.mxu0 %v6158
    %6190 = vmatprep.subr.mxu0 0.0
    %6191 = vmatpush1.xpose.msra.mxu0 %v6156
    %6192 = vmatprep.subr.mxu0 0.0
    %6193 = vmatpush2.xpose.msra.mxu0 0.0
    %6194 = vmatprep.subr.mxu0 0.0
    %6195 = vmatpush2.xpose.msra.mxu0 0.0
    %6196 = vmatprep.subr.mxu0 0.0
    %6197 = vmatpush2.xpose.msra.mxu0 0.0
    %6198 = vmatprep.subr.mxu0 0.0
    %6199 = vmatpush2.xpose.msra.mxu0 0.0
    %6200 = vmatprep.subr.mxu0 0.0
    %6201 = vmatpush2.xpose.msra.mxu0 0.0
    %6202 = vmatprep.subr.mxu0 0.0
    %6203 = vmatpush2.xpose.msra.mxu0 0.0
    %6204 = vmatprep.subr.mxu0 0.0
    %6205 = vmatpush2.xpose.msra.mxu0 0.0
    %6206 = vmatprep.subr.mxu0 0.0
    %6207 = vmatpush2.xpose.msra.mxu0 0.0
    %6208 = vmatprep.subr.mxu0 0.0
    %6209 = vmatpush2.xpose.msra.mxu0 0.0
    %6210 = vmatprep.subr.mxu0 0.0
    %6211 = vmatpush2.xpose.msra.mxu0 0.0
    %6212 = vmatprep.subr.mxu0 0.0
    %6213 = vmatpush2.xpose.msra.mxu0 0.0
    %6214 = vmatprep.subr.mxu0 0.0
    %6215 = vmatpush2.xpose.msra.mxu0 0.0
    %6216 = vmatprep.subr.mxu0 0.0
    %6217 = vmatpush2.xpose.msra.mxu0 0.0
    %6218 = vmatprep.subr.mxu0 0.0
    %6219 = vmatpush2.xpose.msra.mxu0 0.0
    %6220 = vmatprep.subr.mxu0 0.0
    %6221 = vmatpush2.xpose.msra.mxu0 0.0
    %6222 = vmatprep.subr.mxu0 0.0
    %6223 = vmatpush2.xpose.msra.mxu0 0.0
    %6224 = vmatprep.mubr.f32.mxu0 0.0
    %6225 = vmatmul.mubr.f32.gmra.mxu0 %v6152
    %v6226 = vpop.f32.mrf.mxu0
    %v6227 = vadd.f32 0.0, %v6226
    %v6228 = vpop.f32.mrf.mxu0
    %6229 = vmatprep.mubr.f32.mxu0 0.0
    %6230 = vmatmul.mubr.f32.gmra.mxu0 %v6154
    %v6231 = vpop.f32.mrf.mxu0
    %v6232 = vadd.f32 0.0, %v6231
    %v6233 = vpop.f32.mrf.mxu0
    %6234 = vdwg.mxu0
    %v6235 = vmul.f32 %v6227, 0.25
    %v6236 = vmul.f32 %v6232, 0.25
    %v6237 = vadd.f32 %v6235, %v3292
    %v6238 = vadd.f32 %v6236, %v3293
    %v6239 = vsel %vm3303, %v6237, -inf
    %6240 = vmax.xlane.f32.xlu0 %v6239
    %v6241 = vpop.xlane.xlu0 %6240
    %v6242 = vsel %vm3303, %v6238, -inf
    %6243 = vmax.xlane.f32.xlu0 %v6242
    %v6244 = vpop.xlane.xlu0 %6243
    %v6245 = vsub.f32 %v6237, %v6241
    %v6246 = vsub.f32 %v6238, %v6244
    %v6247 = vmul.f32 %v6245, 1.442695
    %v6248 = vpow.pop %v6247
    %v6249 = vmul.f32 %v6246, 1.442695
    %v6250 = vpow.pop %v6249
    %v6251 = vsel %vm3303, %v6248, 0.0
    %6252 = vadd.xlane.f32.xlu0 %v6251
    %v6253 = vpop.xlane.xlu0 %6252
    %v6254 = vsel %vm3303, %v6250, 0.0
    %6255 = vadd.xlane.f32.xlu0 %v6254
    %v6256 = vpop.xlane.xlu0 %6255
    %v6257 = vrcp.pop %v6253
    %v6258 = vrcp.pop %v6256
    %v6259 = vmul.f32 %v6248, %v6257
    %v6260 = vmul.f32 %v6250, %v6258
    %6261 = vrot.lane.b32.xlu0 %v5272, 116
    %v6262 = vpop.permute.xlu0 %6261
    %6263 = vrot.lane.b32.xlu0 %v5277, 116
    %v6264 = vpop.permute.xlu0 %6263
    %v6268 = vsel %vm3303, %v6259, 0
    %v6271 = vsel %vm3303, %v6260, 0
    %6273 = vmatprep.subr.mxu0 0.0
    %6274 = vmatpush1.msra.mxu0 0.0
    %6275 = vmatprep.subr.mxu0 0.0
    %6276 = vmatpush1.msra.mxu0 0.0
    %6277 = vmatprep.subr.mxu0 0.0
    %6278 = vmatpush1.msra.mxu0 0.0
    %6279 = vmatprep.subr.mxu0 0.0
    %6280 = vmatpush1.msra.mxu0 0.0
    %6281 = vmatprep.subr.mxu0 0.0
    %6282 = vmatpush1.msra.mxu0 0.0
    %6283 = vmatprep.subr.mxu0 0.0
    %6284 = vmatpush1.msra.mxu0 0.0
    %6285 = vmatprep.subr.mxu0 0.0
    %6286 = vmatpush1.msra.mxu0 0.0
    %6287 = vmatprep.subr.mxu0 0.0
    %6288 = vmatpush1.msra.mxu0 0.0
    %6289 = vmatprep.subr.mxu0 0.0
    %6290 = vmatpush1.msra.mxu0 0.0
    %6291 = vmatprep.subr.mxu0 0.0
    %6292 = vmatpush1.msra.mxu0 0.0
    %6293 = vmatprep.subr.mxu0 0.0
    %6294 = vmatpush1.msra.mxu0 0.0
    %6295 = vmatprep.subr.mxu0 0.0
    %6296 = vmatpush1.msra.mxu0 0.0
    %6297 = vmatprep.subr.mxu0 0.0
    %6298 = vmatpush1.msra.mxu0 0.0
    %6299 = vmatprep.subr.mxu0 0.0
    %6300 = vmatpush1.msra.mxu0 0.0
    %6301 = vmatprep.subr.mxu0 0.0
    %6302 = vmatpush1.msra.mxu0 %v6264
    %6303 = vmatprep.subr.mxu0 0.0
    %6304 = vmatpush1.msra.mxu0 %v6262
    %6305 = vmatprep.subr.mxu0 0.0
    %6306 = vmatpush2.msra.mxu0 0.0
    %6307 = vmatprep.subr.mxu0 0.0
    %6308 = vmatpush2.msra.mxu0 0.0
    %6309 = vmatprep.subr.mxu0 0.0
    %6310 = vmatpush2.msra.mxu0 0.0
    %6311 = vmatprep.subr.mxu0 0.0
    %6312 = vmatpush2.msra.mxu0 0.0
    %6313 = vmatprep.subr.mxu0 0.0
    %6314 = vmatpush2.msra.mxu0 0.0
    %6315 = vmatprep.subr.mxu0 0.0
    %6316 = vmatpush2.msra.mxu0 0.0
    %6317 = vmatprep.subr.mxu0 0.0
    %6318 = vmatpush2.msra.mxu0 0.0
    %6319 = vmatprep.subr.mxu0 0.0
    %6320 = vmatpush2.msra.mxu0 0.0
    %6321 = vmatprep.subr.mxu0 0.0
    %6322 = vmatpush2.msra.mxu0 0.0
    %6323 = vmatprep.subr.mxu0 0.0
    %6324 = vmatpush2.msra.mxu0 0.0
    %6325 = vmatprep.subr.mxu0 0.0
    %6326 = vmatpush2.msra.mxu0 0.0
    %6327 = vmatprep.subr.mxu0 0.0
    %6328 = vmatpush2.msra.mxu0 0.0
    %6329 = vmatprep.subr.mxu0 0.0
    %6330 = vmatpush2.msra.mxu0 0.0
    %6331 = vmatprep.subr.mxu0 0.0
    %6332 = vmatpush2.msra.mxu0 0.0
    %6333 = vmatprep.subr.mxu0 0.0
    %6334 = vmatpush2.msra.mxu0 0.0
    %6335 = vmatprep.subr.mxu0 0.0
    %6336 = vmatpush2.msra.mxu0 0.0
    %6337 = vmatprep.mubr.f32.mxu0 0.0
    %6338 = vmatmul.mubr.f32.gmra.mxu0 %v6268
    %v6339 = vpop.f32.mrf.mxu0
    %v6340 = vadd.f32 0.0, %v6339
    %v6341 = vpop.f32.mrf.mxu0
    %6342 = vmatprep.mubr.f32.mxu0 0.0
    %6343 = vmatmul.mubr.f32.gmra.mxu0 %v6271
    %v6344 = vpop.f32.mrf.mxu0
    %v6345 = vadd.f32 0.0, %v6344
    %v6346 = vpop.f32.mrf.mxu0
    %6347 = vdwg.mxu0
    %s6348 = scalar_lea.vmem %s31, 28
    %v6349 = vld [vmem:[%s6348] sm:$0xf]
    %v6351 = vsel %vm3553, %v6340, 0
    %v6354 = vsel %vm3553, %v6345, 0
    %v6357 = vsel %vm3963, %v6349, 0
    %6359 = vmatprep.subr.mxu0 0.0
    %6360 = vmatpush1.msra.mxu0 0.0
    %6361 = vmatprep.subr.mxu0 0.0
    %6362 = vmatpush1.msra.mxu0 0.0
    %6363 = vmatprep.subr.mxu0 0.0
    %6364 = vmatpush1.msra.mxu0 0.0
    %6365 = vmatprep.subr.mxu0 0.0
    %6366 = vmatpush1.msra.mxu0 0.0
    %6367 = vmatprep.subr.mxu0 0.0
    %6368 = vmatpush1.msra.mxu0 0.0
    %6369 = vmatprep.subr.mxu0 0.0
    %6370 = vmatpush1.msra.mxu0 0.0
    %6371 = vmatprep.subr.mxu0 0.0
    %6372 = vmatpush1.msra.mxu0 0.0
    %6373 = vmatprep.subr.mxu0 0.0
    %6374 = vmatpush1.msra.mxu0 0.0
    %6375 = vmatprep.subr.mxu0 0.0
    %6376 = vmatpush1.msra.mxu0 0.0
    %6377 = vmatprep.subr.mxu0 0.0
    %6378 = vmatpush1.msra.mxu0 0.0
    %6379 = vmatprep.subr.mxu0 0.0
    %6380 = vmatpush1.msra.mxu0 0.0
    %6381 = vmatprep.subr.mxu0 0.0
    %6382 = vmatpush1.msra.mxu0 0.0
    %6383 = vmatprep.subr.mxu0 0.0
    %6384 = vmatpush1.msra.mxu0 0.0
    %6385 = vmatprep.subr.mxu0 0.0
    %6386 = vmatpush1.msra.mxu0 0.0
    %6387 = vmatprep.subr.mxu0 0.0
    %6388 = vmatpush1.msra.mxu0 0.0
    %6389 = vmatprep.subr.mxu0 0.0
    %6390 = vmatpush1.msra.mxu0 %v6357
    %6391 = vmatprep.subr.mxu0 0.0
    %6392 = vmatpush2.msra.mxu0 0.0
    %6393 = vmatprep.subr.mxu0 0.0
    %6394 = vmatpush2.msra.mxu0 0.0
    %6395 = vmatprep.subr.mxu0 0.0
    %6396 = vmatpush2.msra.mxu0 0.0
    %6397 = vmatprep.subr.mxu0 0.0
    %6398 = vmatpush2.msra.mxu0 0.0
    %6399 = vmatprep.subr.mxu0 0.0
    %6400 = vmatpush2.msra.mxu0 0.0
    %6401 = vmatprep.subr.mxu0 0.0
    %6402 = vmatpush2.msra.mxu0 0.0
    %6403 = vmatprep.subr.mxu0 0.0
    %6404 = vmatpush2.msra.mxu0 0.0
    %6405 = vmatprep.subr.mxu0 0.0
    %6406 = vmatpush2.msra.mxu0 0.0
    %6407 = vmatprep.subr.mxu0 0.0
    %6408 = vmatpush2.msra.mxu0 0.0
    %6409 = vmatprep.subr.mxu0 0.0
    %6410 = vmatpush2.msra.mxu0 0.0
    %6411 = vmatprep.subr.mxu0 0.0
    %6412 = vmatpush2.msra.mxu0 0.0
    %6413 = vmatprep.subr.mxu0 0.0
    %6414 = vmatpush2.msra.mxu0 0.0
    %6415 = vmatprep.subr.mxu0 0.0
    %6416 = vmatpush2.msra.mxu0 0.0
    %6417 = vmatprep.subr.mxu0 0.0
    %6418 = vmatpush2.msra.mxu0 0.0
    %6419 = vmatprep.subr.mxu0 0.0
    %6420 = vmatpush2.msra.mxu0 0.0
    %6421 = vmatprep.subr.mxu0 0.0
    %6422 = vmatpush2.msra.mxu0 0.0
    %6423 = vmatprep.mubr.f32.mxu0 0.0
    %6424 = vmatmul.mubr.f32.gmra.mxu0 %v6351
    %v6425 = vpop.f32.mrf.mxu0
    %v6426 = vadd.f32 0.0, %v6425
    %v6427 = vpop.f32.mrf.mxu0
    %6428 = vmatprep.mubr.f32.mxu0 0.0
    %6429 = vmatmul.mubr.f32.gmra.mxu0 %v6354
    %v6430 = vpop.f32.mrf.mxu0
    %v6431 = vadd.f32 0.0, %v6430
    %v6432 = vpop.f32.mrf.mxu0
    %6433 = vdwg.mxu0
    %v6434 = vadd.f32 %v6142, %v6426
    %v6435 = vadd.f32 %v6143, %v6431
    %s6436 = scalar_lea.vmem %s33, 1
    %v6437 = vld [vmem:[%s6436] sm:$0x1]
    %v6439 = vlaneseq
    %v6440 = vshrl.u32 %v6439, 7
    %v6441 = vsub.s32 0, %v6440
    %v6442 = vrot.slane %v6437, %v6441
    %v6444 = vadd.f32 %v6434, %v6442
    %v6445 = vadd.f32 %v6435, %v6442
    %v6446 = vadd.f32 %v6444, %v5014
    %v6447 = vadd.f32 %v6445, %v5015
    %s6448 = scalar_lea.vmem %s35, 1
    %v6449 = vld [vmem:[%s6448] sm:$0x1]
    %s6450 = scalar_lea.vmem %s37, 1
    %v6451 = vld [vmem:[%s6450] sm:$0x1]
    %v6452 = vsel %vm3303, %v6446, 0.0
    %6453 = vadd.xlane.f32.xlu0 %v6452
    %v6454 = vpop.xlane.xlu0 %6453
    %v6455 = vsel %vm3303, %v6447, 0.0
    %6456 = vadd.xlane.f32.xlu0 %v6455
    %v6457 = vpop.xlane.xlu0 %6456
    %v6458 = vmul.f32 %v6454, %v4729
    %v6459 = vmul.f32 %v6457, %v4729
    %v6460 = vsub.f32 %v6446, %v6458
    %v6461 = vsub.f32 %v6447, %v6459
    %v6462 = vmul.f32 %v6460, %v6460
    %v6463 = vmul.f32 %v6461, %v6461
    %v6464 = vsel %vm3303, %v6462, 0.0
    %6465 = vadd.xlane.f32.xlu0 %v6464
    %v6466 = vpop.xlane.xlu0 %6465
    %v6467 = vsel %vm3303, %v6463, 0.0
    %6468 = vadd.xlane.f32.xlu0 %v6467
    %v6469 = vpop.xlane.xlu0 %6468
    %v6470 = vmul.f32 %v6466, %v4729
    %v6471 = vmul.f32 %v6469, %v4729
    %v6472 = vadd.f32 %v6470, 1e-05
    %v6473 = vadd.f32 %v6471, 1e-05
    %v6474 = vrsqrt.pop %v6472
    %v6475 = vrsqrt.pop %v6473
    %v6476 = vmul.f32 %v6460, %v6474
    %v6477 = vmul.f32 %v6461, %v6475
    %v6479 = vlaneseq
    %v6480 = vshrl.u32 %v6479, 7
    %v6481 = vsub.s32 0, %v6480
    %v6482 = vrot.slane %v6449, %v6481
    %v6484 = vmul.f32 %v6476, %v6482
    %v6485 = vmul.f32 %v6477, %v6482
    %v6487 = vlaneseq
    %v6488 = vshrl.u32 %v6487, 7
    %v6489 = vsub.s32 0, %v6488
    %v6490 = vrot.slane %v6451, %v6489
    %v6492 = vadd.f32 %v6484, %v6490
    %v6493 = vadd.f32 %v6485, %v6490
    %s6494 = scalar_lea.vmem %s39, 16
    %v6495 = vld [vmem:[%s6494] sm:$0xff]
    %v6496 = vld [vmem:[%s6494 + $0x8] sm:$0xff]
    %s6497 = scalar_lea.vmem %s41, 1
    %v6498 = vld [vmem:[%s6497] sm:$0x1]
    %v6500 = vlaneseq
    %v6501 = vshrl.u32 %v6500, 7
    %v6502 = vsub.s32 0, %v6501
    %v6503 = vrot.slane %v6498, %v6502
    %v6506 = vsel %vm3303, %v6492, 0
    %v6509 = vsel %vm3303, %v6493, 0
    %6511 = vmatprep.subr.mxu0 0.0
    %6512 = vmatpush1.msra.mxu0 0.0
    %6513 = vmatprep.subr.mxu0 0.0
    %6514 = vmatpush1.msra.mxu0 0.0
    %6515 = vmatprep.subr.mxu0 0.0
    %6516 = vmatpush1.msra.mxu0 0.0
    %6517 = vmatprep.subr.mxu0 0.0
    %6518 = vmatpush1.msra.mxu0 0.0
    %6519 = vmatprep.subr.mxu0 0.0
    %6520 = vmatpush1.msra.mxu0 0.0
    %6521 = vmatprep.subr.mxu0 0.0
    %6522 = vmatpush1.msra.mxu0 0.0
    %6523 = vmatprep.subr.mxu0 0.0
    %6524 = vmatpush1.msra.mxu0 0.0
    %6525 = vmatprep.subr.mxu0 0.0
    %6526 = vmatpush1.msra.mxu0 0.0
    %6527 = vmatprep.subr.mxu0 0.0
    %6528 = vmatpush1.msra.mxu0 0.0
    %6529 = vmatprep.subr.mxu0 0.0
    %6530 = vmatpush1.msra.mxu0 0.0
    %6531 = vmatprep.subr.mxu0 0.0
    %6532 = vmatpush1.msra.mxu0 0.0
    %6533 = vmatprep.subr.mxu0 0.0
    %6534 = vmatpush1.msra.mxu0 0.0
    %6535 = vmatprep.subr.mxu0 0.0
    %6536 = vmatpush1.msra.mxu0 0.0
    %6537 = vmatprep.subr.mxu0 0.0
    %6538 = vmatpush1.msra.mxu0 0.0
    %6539 = vmatprep.subr.mxu0 0.0
    %6540 = vmatpush1.msra.mxu0 %v6496
    %6541 = vmatprep.subr.mxu0 0.0
    %6542 = vmatpush1.msra.mxu0 %v6495
    %6543 = vmatprep.subr.mxu0 0.0
    %6544 = vmatpush2.msra.mxu0 0.0
    %6545 = vmatprep.subr.mxu0 0.0
    %6546 = vmatpush2.msra.mxu0 0.0
    %6547 = vmatprep.subr.mxu0 0.0
    %6548 = vmatpush2.msra.mxu0 0.0
    %6549 = vmatprep.subr.mxu0 0.0
    %6550 = vmatpush2.msra.mxu0 0.0
    %6551 = vmatprep.subr.mxu0 0.0
    %6552 = vmatpush2.msra.mxu0 0.0
    %6553 = vmatprep.subr.mxu0 0.0
    %6554 = vmatpush2.msra.mxu0 0.0
    %6555 = vmatprep.subr.mxu0 0.0
    %6556 = vmatpush2.msra.mxu0 0.0
    %6557 = vmatprep.subr.mxu0 0.0
    %6558 = vmatpush2.msra.mxu0 0.0
    %6559 = vmatprep.subr.mxu0 0.0
    %6560 = vmatpush2.msra.mxu0 0.0
    %6561 = vmatprep.subr.mxu0 0.0
    %6562 = vmatpush2.msra.mxu0 0.0
    %6563 = vmatprep.subr.mxu0 0.0
    %6564 = vmatpush2.msra.mxu0 0.0
    %6565 = vmatprep.subr.mxu0 0.0
    %6566 = vmatpush2.msra.mxu0 0.0
    %6567 = vmatprep.subr.mxu0 0.0
    %6568 = vmatpush2.msra.mxu0 0.0
    %6569 = vmatprep.subr.mxu0 0.0
    %6570 = vmatpush2.msra.mxu0 0.0
    %6571 = vmatprep.subr.mxu0 0.0
    %6572 = vmatpush2.msra.mxu0 0.0
    %6573 = vmatprep.subr.mxu0 0.0
    %6574 = vmatpush2.msra.mxu0 0.0
    %6575 = vmatprep.mubr.f32.mxu0 0.0
    %6576 = vmatmul.mubr.f32.gmra.mxu0 %v6506
    %v6577 = vpop.f32.mrf.mxu0
    %v6578 = vadd.f32 %v6503, %v6577
    %v6579 = vpop.f32.mrf.mxu0
    %6580 = vmatprep.mubr.f32.mxu0 0.0
    %6581 = vmatmul.mubr.f32.gmra.mxu0 %v6509
    %v6582 = vpop.f32.mrf.mxu0
    %v6583 = vadd.f32 %v6503, %v6582
    %v6584 = vpop.f32.mrf.mxu0
    %6585 = vdwg.mxu0
    %v6586 = vmul.f32 %v6578, 0.5
    %v6587 = vmul.f32 %v6583, 0.5
    %v6588 = vmul.f32 %v6578, 0.044715
    %v6589 = vmul.f32 %v6583, 0.044715
    %v6590 = vmul.f32 %v6588, %v6578
    %v6591 = vmul.f32 %v6589, %v6583
    %v6592 = vmul.f32 %v6590, %v6578
    %v6593 = vmul.f32 %v6591, %v6583
    %v6594 = vadd.f32 %v6578, %v6592
    %v6595 = vadd.f32 %v6583, %v6593
    %v6596 = vmul.f32 %v6594, 0.7978846
    %v6597 = vmul.f32 %v6595, 0.7978846
    %v6598 = vtanh.pop %v6596
    %v6599 = vtanh.pop %v6597
    %v6600 = vadd.f32 %v6598, 1.0
    %v6601 = vadd.f32 %v6599, 1.0
    %v6602 = vmul.f32 %v6586, %v6600
    %v6603 = vmul.f32 %v6587, %v6601
    %s6604 = scalar_lea.vmem %s43, 64
    %v6605 = vld [vmem:[%s6604] sm:$0xff]
    %v6606 = vld [vmem:[%s6604 + $0x8] sm:$0xff]
    %v6607 = vld [vmem:[%s6604 + $0x10] sm:$0xff]
    %v6608 = vld [vmem:[%s6604 + $0x18] sm:$0xff]
    %v6609 = vld [vmem:[%s6604 + $0x20] sm:$0xff]
    %v6610 = vld [vmem:[%s6604 + $0x28] sm:$0xff]
    %v6611 = vld [vmem:[%s6604 + $0x30] sm:$0xff]
    %v6612 = vld [vmem:[%s6604 + $0x38] sm:$0xff]
    %s6613 = scalar_lea.vmem %s45, 1
    %v6614 = vld [vmem:[%s6613] sm:$0x1]
    %v6616 = vlaneseq
    %v6617 = vshrl.u32 %v6616, 7
    %v6618 = vsub.s32 0, %v6617
    %v6619 = vrot.slane %v6614, %v6618
    %v6622 = vsel %vm161, %v6602, 0
    %v6625 = vsel %vm161, %v6603, 0
    %6627 = vmatprep.subr.mxu0 0.0
    %6628 = vmatpush1.msra.mxu0 0.0
    %6629 = vmatprep.subr.mxu0 0.0
    %6630 = vmatpush1.msra.mxu0 0.0
    %6631 = vmatprep.subr.mxu0 0.0
    %6632 = vmatpush1.msra.mxu0 0.0
    %6633 = vmatprep.subr.mxu0 0.0
    %6634 = vmatpush1.msra.mxu0 0.0
    %6635 = vmatprep.subr.mxu0 0.0
    %6636 = vmatpush1.msra.mxu0 0.0
    %6637 = vmatprep.subr.mxu0 0.0
    %6638 = vmatpush1.msra.mxu0 0.0
    %6639 = vmatprep.subr.mxu0 0.0
    %6640 = vmatpush1.msra.mxu0 0.0
    %6641 = vmatprep.subr.mxu0 0.0
    %6642 = vmatpush1.msra.mxu0 0.0
    %6643 = vmatprep.subr.mxu0 0.0
    %6644 = vmatpush1.msra.mxu0 %v6612
    %6645 = vmatprep.subr.mxu0 0.0
    %6646 = vmatpush1.msra.mxu0 %v6611
    %6647 = vmatprep.subr.mxu0 0.0
    %6648 = vmatpush1.msra.mxu0 %v6610
    %6649 = vmatprep.subr.mxu0 0.0
    %6650 = vmatpush1.msra.mxu0 %v6609
    %6651 = vmatprep.subr.mxu0 0.0
    %6652 = vmatpush1.msra.mxu0 %v6608
    %6653 = vmatprep.subr.mxu0 0.0
    %6654 = vmatpush1.msra.mxu0 %v6607
    %6655 = vmatprep.subr.mxu0 0.0
    %6656 = vmatpush1.msra.mxu0 %v6606
    %6657 = vmatprep.subr.mxu0 0.0
    %6658 = vmatpush1.msra.mxu0 %v6605
    %6659 = vmatprep.subr.mxu0 0.0
    %6660 = vmatpush2.msra.mxu0 0.0
    %6661 = vmatprep.subr.mxu0 0.0
    %6662 = vmatpush2.msra.mxu0 0.0
    %6663 = vmatprep.subr.mxu0 0.0
    %6664 = vmatpush2.msra.mxu0 0.0
    %6665 = vmatprep.subr.mxu0 0.0
    %6666 = vmatpush2.msra.mxu0 0.0
    %6667 = vmatprep.subr.mxu0 0.0
    %6668 = vmatpush2.msra.mxu0 0.0
    %6669 = vmatprep.subr.mxu0 0.0
    %6670 = vmatpush2.msra.mxu0 0.0
    %6671 = vmatprep.subr.mxu0 0.0
    %6672 = vmatpush2.msra.mxu0 0.0
    %6673 = vmatprep.subr.mxu0 0.0
    %6674 = vmatpush2.msra.mxu0 0.0
    %6675 = vmatprep.subr.mxu0 0.0
    %6676 = vmatpush2.msra.mxu0 0.0
    %6677 = vmatprep.subr.mxu0 0.0
    %6678 = vmatpush2.msra.mxu0 0.0
    %6679 = vmatprep.subr.mxu0 0.0
    %6680 = vmatpush2.msra.mxu0 0.0
    %6681 = vmatprep.subr.mxu0 0.0
    %6682 = vmatpush2.msra.mxu0 0.0
    %6683 = vmatprep.subr.mxu0 0.0
    %6684 = vmatpush2.msra.mxu0 0.0
    %6685 = vmatprep.subr.mxu0 0.0
    %6686 = vmatpush2.msra.mxu0 0.0
    %6687 = vmatprep.subr.mxu0 0.0
    %6688 = vmatpush2.msra.mxu0 0.0
    %6689 = vmatprep.subr.mxu0 0.0
    %6690 = vmatpush2.msra.mxu0 0.0
    %6691 = vmatprep.mubr.f32.mxu0 0.0
    %6692 = vmatmul.mubr.f32.gmra.mxu0 %v6622
    %v6693 = vpop.f32.mrf.mxu0
    %v6694 = vadd.f32 %v6619, %v6693
    %v6695 = vpop.f32.mrf.mxu0
    %6696 = vmatprep.mubr.f32.mxu0 0.0
    %6697 = vmatmul.mubr.f32.gmra.mxu0 %v6625
    %v6698 = vpop.f32.mrf.mxu0
    %v6699 = vadd.f32 %v6619, %v6698
    %v6700 = vpop.f32.mrf.mxu0
    %6701 = vdwg.mxu0
    %v6702 = vadd.f32 %v6694, %v6492
    %v6703 = vadd.f32 %v6699, %v6493
    %s6704 = scalar_lea.vmem %s47, 1
    %v6705 = vld [vmem:[%s6704] sm:$0x1]
    %s6706 = scalar_lea.vmem %s49, 1
    %v6707 = vld [vmem:[%s6706] sm:$0x1]
    %v6708 = vsel %vm3303, %v6702, 0.0
    %6709 = vadd.xlane.f32.xlu0 %v6708
    %v6710 = vpop.xlane.xlu0 %6709
    %v6711 = vsel %vm3303, %v6703, 0.0
    %6712 = vadd.xlane.f32.xlu0 %v6711
    %v6713 = vpop.xlane.xlu0 %6712
    %v6714 = vmul.f32 %v6710, %v4729
    %v6715 = vmul.f32 %v6713, %v4729
    %v6716 = vsub.f32 %v6702, %v6714
    %v6717 = vsub.f32 %v6703, %v6715
    %v6718 = vmul.f32 %v6716, %v6716
    %v6719 = vmul.f32 %v6717, %v6717
    %v6720 = vsel %vm3303, %v6718, 0.0
    %6721 = vadd.xlane.f32.xlu0 %v6720
    %v6722 = vpop.xlane.xlu0 %6721
    %v6723 = vsel %vm3303, %v6719, 0.0
    %6724 = vadd.xlane.f32.xlu0 %v6723
    %v6725 = vpop.xlane.xlu0 %6724
    %v6726 = vmul.f32 %v6722, %v4729
    %v6727 = vmul.f32 %v6725, %v4729
    %v6728 = vadd.f32 %v6726, 1e-05
    %v6729 = vadd.f32 %v6727, 1e-05
    %v6730 = vrsqrt.pop %v6728
    %v6731 = vrsqrt.pop %v6729
    %v6732 = vmul.f32 %v6716, %v6730
    %v6733 = vmul.f32 %v6717, %v6731
    %v6735 = vlaneseq
    %v6736 = vshrl.u32 %v6735, 7
    %v6737 = vsub.s32 0, %v6736
    %v6738 = vrot.slane %v6705, %v6737
    %v6740 = vmul.f32 %v6732, %v6738
    %v6741 = vmul.f32 %v6733, %v6738
    %v6743 = vlaneseq
    %v6744 = vshrl.u32 %v6743, 7
    %v6745 = vsub.s32 0, %v6744
    %v6746 = vrot.slane %v6707, %v6745
    %v6748 = vadd.f32 %v6740, %v6746
    %v6749 = vadd.f32 %v6741, %v6746
    %v6750 = vadd.f32 %v1926, %v6748
    %v6751 = vadd.f32 %v3291, %v6749
    %v6752 = vld [vmem:[%s51] sm:$0xff]
    %v6753 = vld [vmem:[%s51 + $0x8] sm:$0xff]
    %v6755 = vsel %vm3303, %v6750, 0
    %v6758 = vsel %vm3303, %v6751, 0
    %6760 = vmatprep.subr.mxu0 0.0
    %6761 = vmatpush1.msra.mxu0 0.0
    %6762 = vmatprep.subr.mxu0 0.0
    %6763 = vmatpush1.msra.mxu0 0.0
    %6764 = vmatprep.subr.mxu0 0.0
    %6765 = vmatpush1.msra.mxu0 0.0
    %6766 = vmatprep.subr.mxu0 0.0
    %6767 = vmatpush1.msra.mxu0 0.0
    %6768 = vmatprep.subr.mxu0 0.0
    %6769 = vmatpush1.msra.mxu0 0.0
    %6770 = vmatprep.subr.mxu0 0.0
    %6771 = vmatpush1.msra.mxu0 0.0
    %6772 = vmatprep.subr.mxu0 0.0
    %6773 = vmatpush1.msra.mxu0 0.0
    %6774 = vmatprep.subr.mxu0 0.0
    %6775 = vmatpush1.msra.mxu0 0.0
    %6776 = vmatprep.subr.mxu0 0.0
    %6777 = vmatpush1.msra.mxu0 0.0
    %6778 = vmatprep.subr.mxu0 0.0
    %6779 = vmatpush1.msra.mxu0 0.0
    %6780 = vmatprep.subr.mxu0 0.0
    %6781 = vmatpush1.msra.mxu0 0.0
    %6782 = vmatprep.subr.mxu0 0.0
    %6783 = vmatpush1.msra.mxu0 0.0
    %6784 = vmatprep.subr.mxu0 0.0
    %6785 = vmatpush1.msra.mxu0 0.0
    %6786 = vmatprep.subr.mxu0 0.0
    %6787 = vmatpush1.msra.mxu0 0.0
    %6788 = vmatprep.subr.mxu0 0.0
    %6789 = vmatpush1.msra.mxu0 %v6753
    %6790 = vmatprep.subr.mxu0 0.0
    %6791 = vmatpush1.msra.mxu0 %v6752
    %6792 = vmatprep.subr.mxu0 0.0
    %6793 = vmatpush2.msra.mxu0 0.0
    %6794 = vmatprep.subr.mxu0 0.0
    %6795 = vmatpush2.msra.mxu0 0.0
    %6796 = vmatprep.subr.mxu0 0.0
    %6797 = vmatpush2.msra.mxu0 0.0
    %6798 = vmatprep.subr.mxu0 0.0
    %6799 = vmatpush2.msra.mxu0 0.0
    %6800 = vmatprep.subr.mxu0 0.0
    %6801 = vmatpush2.msra.mxu0 0.0
    %6802 = vmatprep.subr.mxu0 0.0
    %6803 = vmatpush2.msra.mxu0 0.0
    %6804 = vmatprep.subr.mxu0 0.0
    %6805 = vmatpush2.msra.mxu0 0.0
    %6806 = vmatprep.subr.mxu0 0.0
    %6807 = vmatpush2.msra.mxu0 0.0
    %6808 = vmatprep.subr.mxu0 0.0
    %6809 = vmatpush2.msra.mxu0 0.0
    %6810 = vmatprep.subr.mxu0 0.0
    %6811 = vmatpush2.msra.mxu0 0.0
    %6812 = vmatprep.subr.mxu0 0.0
    %6813 = vmatpush2.msra.mxu0 0.0
    %6814 = vmatprep.subr.mxu0 0.0
    %6815 = vmatpush2.msra.mxu0 0.0
    %6816 = vmatprep.subr.mxu0 0.0
    %6817 = vmatpush2.msra.mxu0 0.0
    %6818 = vmatprep.subr.mxu0 0.0
    %6819 = vmatpush2.msra.mxu0 0.0
    %6820 = vmatprep.subr.mxu0 0.0
    %6821 = vmatpush2.msra.mxu0 0.0
    %6822 = vmatprep.subr.mxu0 0.0
    %6823 = vmatpush2.msra.mxu0 0.0
    %6824 = vmatprep.mubr.f32.mxu0 0.0
    %6825 = vmatmul.mubr.f32.gmra.mxu0 %v6755
    %v6826 = vpop.f32.mrf.mxu0
    %v6827 = vadd.f32 0.0, %v6826
    %v6828 = vpop.f32.mrf.mxu0
    %6829 = vmatprep.mubr.f32.mxu0 0.0
    %6830 = vmatmul.mubr.f32.gmra.mxu0 %v6758
    %v6831 = vpop.f32.mrf.mxu0
    %v6832 = vadd.f32 0.0, %v6831
    %v6833 = vpop.f32.mrf.mxu0
    %6834 = vdwg.mxu0
    %v6835 = vld [vmem:[%s53] sm:$0xff]
    %v6836 = vld [vmem:[%s53 + $0x8] sm:$0xff]
    %v6837 = vmul.f32 %v6827, %v6835
    %v6838 = vmul.f32 %v6832, %v6836
    %v6839 = vld [vmem:[%s55] sm:$0xff]
    %v6840 = vld [vmem:[%s55 + $0x8] sm:$0xff]
    %v6841 = vld [vmem:[%s55 + $0x10] sm:$0xff]
    %v6842 = vld [vmem:[%s55 + $0x18] sm:$0xff]
    %v6844 = vsel %vm1844, %v6837, 0
    %v6847 = vsel %vm1844, %v6838, 0
    %6849 = vmatprep.subr.mxu0 0.0
    %6850 = vmatpush1.msra.mxu0 0.0
    %6851 = vmatprep.subr.mxu0 0.0
    %6852 = vmatpush1.msra.mxu0 0.0
    %6853 = vmatprep.subr.mxu0 0.0
    %6854 = vmatpush1.msra.mxu0 0.0
    %6855 = vmatprep.subr.mxu0 0.0
    %6856 = vmatpush1.msra.mxu0 0.0
    %6857 = vmatprep.subr.mxu0 0.0
    %6858 = vmatpush1.msra.mxu0 0.0
    %6859 = vmatprep.subr.mxu0 0.0
    %6860 = vmatpush1.msra.mxu0 0.0
    %6861 = vmatprep.subr.mxu0 0.0
    %6862 = vmatpush1.msra.mxu0 0.0
    %6863 = vmatprep.subr.mxu0 0.0
    %6864 = vmatpush1.msra.mxu0 0.0
    %6865 = vmatprep.subr.mxu0 0.0
    %6866 = vmatpush1.msra.mxu0 0.0
    %6867 = vmatprep.subr.mxu0 0.0
    %6868 = vmatpush1.msra.mxu0 0.0
    %6869 = vmatprep.subr.mxu0 0.0
    %6870 = vmatpush1.msra.mxu0 0.0
    %6871 = vmatprep.subr.mxu0 0.0
    %6872 = vmatpush1.msra.mxu0 0.0
    %6873 = vmatprep.subr.mxu0 0.0
    %6874 = vmatpush1.msra.mxu0 %v6842
    %6875 = vmatprep.subr.mxu0 0.0
    %6876 = vmatpush1.msra.mxu0 %v6841
    %6877 = vmatprep.subr.mxu0 0.0
    %6878 = vmatpush1.msra.mxu0 %v6840
    %6879 = vmatprep.subr.mxu0 0.0
    %6880 = vmatpush1.msra.mxu0 %v6839
    %6881 = vmatprep.subr.mxu0 0.0
    %6882 = vmatpush2.msra.mxu0 0.0
    %6883 = vmatprep.subr.mxu0 0.0
    %6884 = vmatpush2.msra.mxu0 0.0
    %6885 = vmatprep.subr.mxu0 0.0
    %6886 = vmatpush2.msra.mxu0 0.0
    %6887 = vmatprep.subr.mxu0 0.0
    %6888 = vmatpush2.msra.mxu0 0.0
    %6889 = vmatprep.subr.mxu0 0.0
    %6890 = vmatpush2.msra.mxu0 0.0
    %6891 = vmatprep.subr.mxu0 0.0
    %6892 = vmatpush2.msra.mxu0 0.0
    %6893 = vmatprep.subr.mxu0 0.0
    %6894 = vmatpush2.msra.mxu0 0.0
    %6895 = vmatprep.subr.mxu0 0.0
    %6896 = vmatpush2.msra.mxu0 0.0
    %6897 = vmatprep.subr.mxu0 0.0
    %6898 = vmatpush2.msra.mxu0 0.0
    %6899 = vmatprep.subr.mxu0 0.0
    %6900 = vmatpush2.msra.mxu0 0.0
    %6901 = vmatprep.subr.mxu0 0.0
    %6902 = vmatpush2.msra.mxu0 0.0
    %6903 = vmatprep.subr.mxu0 0.0
    %6904 = vmatpush2.msra.mxu0 0.0
    %6905 = vmatprep.subr.mxu0 0.0
    %6906 = vmatpush2.msra.mxu0 0.0
    %6907 = vmatprep.subr.mxu0 0.0
    %6908 = vmatpush2.msra.mxu0 0.0
    %6909 = vmatprep.subr.mxu0 0.0
    %6910 = vmatpush2.msra.mxu0 0.0
    %6911 = vmatprep.subr.mxu0 0.0
    %6912 = vmatpush2.msra.mxu0 0.0
    %6913 = vmatprep.mubr.f32.mxu0 0.0
    %6914 = vmatmul.mubr.f32.gmra.mxu0 %v6844
    %v6915 = vpop.f32.mrf.mxu0
    %v6916 = vadd.f32 0.0, %v6915
    %v6917 = vpop.f32.mrf.mxu0
    %6918 = vmatprep.mubr.f32.mxu0 0.0
    %6919 = vmatmul.mubr.f32.gmra.mxu0 %v6847
    %v6920 = vpop.f32.mrf.mxu0
    %v6921 = vadd.f32 0.0, %v6920
    %v6922 = vpop.f32.mrf.mxu0
    %6923 = vdwg.mxu0
    %v6924 = vld [vmem:[%s57] sm:$0x3]
    %v6925 = vld [vmem:[%s59] sm:$0x1]
    %v6927 = vlaneseq
    %v6928 = vshrl.u32 %v6927, 7
    %v6929 = vsub.s32 0, %v6928
    %v6930 = vrot.slane %v6925, %v6929
    %v6933 = vsel %vm3303, %v6924, 0
    %6935 = vmatprep.subr.mxu0 0.0
    %6936 = vmatpush1.msra.mxu0 0.0
    %6937 = vmatprep.subr.mxu0 0.0
    %6938 = vmatpush1.msra.mxu0 0.0
    %6939 = vmatprep.subr.mxu0 0.0
    %6940 = vmatpush1.msra.mxu0 0.0
    %6941 = vmatprep.subr.mxu0 0.0
    %6942 = vmatpush1.msra.mxu0 0.0
    %6943 = vmatprep.subr.mxu0 0.0
    %6944 = vmatpush1.msra.mxu0 0.0
    %6945 = vmatprep.subr.mxu0 0.0
    %6946 = vmatpush1.msra.mxu0 0.0
    %6947 = vmatprep.subr.mxu0 0.0
    %6948 = vmatpush1.msra.mxu0 0.0
    %6949 = vmatprep.subr.mxu0 0.0
    %6950 = vmatpush1.msra.mxu0 0.0
    %6951 = vmatprep.subr.mxu0 0.0
    %6952 = vmatpush1.msra.mxu0 0.0
    %6953 = vmatprep.subr.mxu0 0.0
    %6954 = vmatpush1.msra.mxu0 0.0
    %6955 = vmatprep.subr.mxu0 0.0
    %6956 = vmatpush1.msra.mxu0 0.0
    %6957 = vmatprep.subr.mxu0 0.0
    %6958 = vmatpush1.msra.mxu0 0.0
    %6959 = vmatprep.subr.mxu0 0.0
    %6960 = vmatpush1.msra.mxu0 0.0
    %6961 = vmatprep.subr.mxu0 0.0
    %6962 = vmatpush1.msra.mxu0 0.0
    %6963 = vmatprep.subr.mxu0 0.0
    %6964 = vmatpush1.msra.mxu0 %v6921
    %6965 = vmatprep.subr.mxu0 0.0
    %6966 = vmatpush1.msra.mxu0 %v6916
    %6967 = vmatprep.subr.mxu0 0.0
    %6968 = vmatpush2.msra.mxu0 0.0
    %6969 = vmatprep.subr.mxu0 0.0
    %6970 = vmatpush2.msra.mxu0 0.0
    %6971 = vmatprep.subr.mxu0 0.0
    %6972 = vmatpush2.msra.mxu0 0.0
    %6973 = vmatprep.subr.mxu0 0.0
    %6974 = vmatpush2.msra.mxu0 0.0
    %6975 = vmatprep.subr.mxu0 0.0
    %6976 = vmatpush2.msra.mxu0 0.0
    %6977 = vmatprep.subr.mxu0 0.0
    %6978 = vmatpush2.msra.mxu0 0.0
    %6979 = vmatprep.subr.mxu0 0.0
    %6980 = vmatpush2.msra.mxu0 0.0
    %6981 = vmatprep.subr.mxu0 0.0
    %6982 = vmatpush2.msra.mxu0 0.0
    %6983 = vmatprep.subr.mxu0 0.0
    %6984 = vmatpush2.msra.mxu0 0.0
    %6985 = vmatprep.subr.mxu0 0.0
    %6986 = vmatpush2.msra.mxu0 0.0
    %6987 = vmatprep.subr.mxu0 0.0
    %6988 = vmatpush2.msra.mxu0 0.0
    %6989 = vmatprep.subr.mxu0 0.0
    %6990 = vmatpush2.msra.mxu0 0.0
    %6991 = vmatprep.subr.mxu0 0.0
    %6992 = vmatpush2.msra.mxu0 0.0
    %6993 = vmatprep.subr.mxu0 0.0
    %6994 = vmatpush2.msra.mxu0 0.0
    %6995 = vmatprep.subr.mxu0 0.0
    %6996 = vmatpush2.msra.mxu0 0.0
    %6997 = vmatprep.subr.mxu0 0.0
    %6998 = vmatpush2.msra.mxu0 0.0
    %6999 = vmatprep.mubr.f32.mxu0 0.0
    %7000 = vmatmul.mubr.f32.gmra.mxu0 %v6933
    %v7001 = vpop.f32.mrf.mxu0
    %v7002 = vadd.f32 %v6930, %v7001
    %v7003 = vpop.f32.mrf.mxu0
    %7004 = vdwg.mxu0
    %7005 = vst.msk [vmem:[#allocation2] sm:$0xff] %vm3303, %v6750
    %s7006 = scalar_lea.vmem [#allocation2], 8
    %7007 = vst.msk [vmem:[%s7006] sm:$0xff] %vm3303, %v6751
    %vm7008 = vcmask 25600
    %7009 = vst.msk [vmem:[#allocation4] sm:$0x3] %vm7008, %v7002
    // Predicated region
    $region122: #{eeg_transformer_forward.1} parent=1 // pred_check
      _
    $region123: #{eeg_transformer_forward.1} parent=1 // pred_check_branch
      %7011 = sbr.rel (0) target = $region125
    $region124: #{eeg_transformer_forward.1} parent=1 // pred_region
      %s7013 = ssub.s32 256, 256
      %7014 = vsyncadd [#allocation3], %s7013
      %s7015 = sshll.u32 [#allocation2], 4
      %s7016 = int_to_ptr.vmem [resolvable:$true] %s7015
      %7021 = dma.vmem_to_hbm [thread:$0]  %s7016, 256, %s61, [#allocation3], 128, 128, 8
    $region125: #{eeg_transformer_forward.1} parent=1 // pred_fallthru
      _
    // Predicated region
    $region126: #{eeg_transformer_forward.1} parent=1 // pred_check
      _
    $region127: #{eeg_transformer_forward.1} parent=1 // pred_check_branch
      %7023 = sbr.rel (0) target = $region129
    $region128: #{eeg_transformer_forward.1} parent=1 // pred_region
      %s7025 = ssub.s32 32, 32
      %7026 = vsyncadd [#allocation5], %s7025
      %s7028 = sshll.u32 [#allocation4], 4
      %s7029 = int_to_ptr.vmem [resolvable:$true] %s7028
      %7031 = dma.vmem_to_hbm [thread:$0]  %s7029, 32, %s63, [#allocation5]
    $region129: #{eeg_transformer_forward.1} parent=1 // pred_fallthru
      _
    // Predicated region
    $region130: #{eeg_transformer_forward.1} parent=1 // pred_check
      _
    $region131: #{eeg_transformer_forward.1} parent=1 // pred_check_branch
      %7033 = sbr.rel (0) target = $region133
    $region132: #{eeg_transformer_forward.1} parent=1 // pred_region
      %7034 = dma.done [#allocation3], 256
    $region133: #{eeg_transformer_forward.1} parent=1 // pred_fallthru
      _
    // Predicated region
    $region134: #{eeg_transformer_forward.1} parent=1 // pred_check
      _
    $region135: #{eeg_transformer_forward.1} parent=1 // pred_check_branch
      %7036 = sbr.rel (0) target = $region137
    $region136: #{eeg_transformer_forward.1} parent=1 // pred_region
      %7037 = dma.done [#allocation5], 32
    $region137: #{eeg_transformer_forward.1} parent=1 // pred_fallthru
      _
    %7038 = vsyncpa [#allocation3], 1
    %7039 = vsyncpa [#allocation5], 1

</llo_original>
